<compile_context>
chip_gen: v6e
topology: v6e:2x2x1
jax: 0.10.0
libtpu: 0.0.40
codegen_flags: <defaults>
</compile_context>

<pallas_src>
import jax
import jax.numpy as jnp
from jax.experimental import pallas as pl
from jax.experimental.pallas import tpu as pltpu  # noqa: F401  (TPU backend assumed)


def _lstm_ae_kernel(gx_enc_ref, whh_enc_ref, wih_dec_ref, b_dec_ref,
                    whh_dec_ref, out_ref):
    """Fused encoder+decoder LSTM forward, fully unrolled over time.

    gx_enc_ref : (T, 4, B, H)  encoder x-projection + bias, gate-major (i,f,g,o)
    whh_enc_ref: (4, H, H)     encoder recurrent weights, laid out for h @ w
    wih_dec_ref: (4, H, I)     decoder input weights, laid out for h_enc @ w
    b_dec_ref  : (4, 1, I)     decoder bias (b_ih + b_hh), gate-major
    whh_dec_ref: (4, I, I)     decoder recurrent weights
    out_ref    : (T, B, I)     decoder output sequence, time-major
    """
    T = gx_enc_ref.shape[0]
    B = gx_enc_ref.shape[2]
    H = gx_enc_ref.shape[3]
    I = whh_dec_ref.shape[-1]
    f32 = jnp.float32

    def dot32(a, b):
        return jnp.dot(a, b, preferred_element_type=f32)

    # ----------------- encoder recurrence (x-proj already hoisted) ----------
    whh_enc = [whh_enc_ref[g] for g in range(4)]   # hoisted weight loads
    h = jnp.zeros((B, H), f32)
    c = jnp.zeros((B, H), f32)
    enc_hs = []
    for t in range(T):                              # fully unrolled, T static
        i_g = jax.nn.sigmoid(gx_enc_ref[t, 0] + dot32(h, whh_enc[0]))
        f_g = jax.nn.sigmoid(gx_enc_ref[t, 1] + dot32(h, whh_enc[1]))
        g_g = jnp.tanh(      gx_enc_ref[t, 2] + dot32(h, whh_enc[2]))
        o_g = jax.nn.sigmoid(gx_enc_ref[t, 3] + dot32(h, whh_enc[3]))
        c = f_g * c + i_g * g_g
        h = o_g * jnp.tanh(c)
        enc_hs.append(h)                            # stays in vregs/VMEM

    # ----------------- decoder recurrence ------------------------------------
    # enc_hs[t] @ wih_dec is independent of the decoder h/c chain; since the
    # loop is unrolled, the scheduler overlaps these off the serial path.
    wih_dec = [wih_dec_ref[g] for g in range(4)]
    whh_dec = [whh_dec_ref[g] for g in range(4)]
    b_dec = [b_dec_ref[g] for g in range(4)]        # (1, I), broadcasts over B
    h = jnp.zeros((B, I), f32)
    c = jnp.zeros((B, I), f32)
    dec_hs = []
    for t in range(T):
        e = enc_hs[t]
        i_g = jax.nn.sigmoid(dot32(e, wih_dec[0]) + b_dec[0] + dot32(h, whh_dec[0]))
        f_g = jax.nn.sigmoid(dot32(e, wih_dec[1]) + b_dec[1] + dot32(h, whh_dec[1]))
        g_g = jnp.tanh(      dot32(e, wih_dec[2]) + b_dec[2] + dot32(h, whh_dec[2]))
        o_g = jax.nn.sigmoid(dot32(e, wih_dec[3]) + b_dec[3] + dot32(h, whh_dec[3]))
        c = f_g * c + i_g * g_g
        h = o_g * jnp.tanh(c)
        dec_hs.append(h)

    # Single bulk store of the whole output block (no per-timestep partial
    # stores); HBM writeback happens once after the kernel.
    out_ref[...] = jnp.stack(dec_hs, axis=0)


@jax.jit
def lstm_ae_forward(x, params):
    """LSTM_AE.forward: encoder LSTM then decoder LSTM, returns dec_output.

    x: (B, T, input_size) float, batch_first like PyTorch. Returns (B, T, input_size).
    """
    B, T, D_in = x.shape
    H = params["enc_w_ih"].shape[0] // 4
    I = params["dec_w_ih"].shape[0] // 4
    f32 = jnp.float32

    # Gate-major (i, f, g, o) weight layouts — cheap one-time XLA prep.
    # PyTorch W is (4*out, in); view as (4, out, in) and transpose so the
    # kernel computes h @ W_g (== h @ W[g].T in PyTorch convention).
    wih_enc = params["enc_w_ih"].astype(f32).reshape(4, H, D_in).transpose(0, 2, 1)  # (4,D,H)
    whh_enc = params["enc_w_hh"].astype(f32).reshape(4, H, H).transpose(0, 2, 1)     # (4,H,H)
    b_enc = (params["enc_b_ih"] + params["enc_b_hh"]).astype(f32).reshape(4, 1, H)   # (4,1,H)

    wih_dec = params["dec_w_ih"].astype(f32).reshape(4, I, H).transpose(0, 2, 1)     # (4,H,I)
    whh_dec = params["dec_w_hh"].astype(f32).reshape(4, I, I).transpose(0, 2, 1)     # (4,I,I)
    b_dec = (params["dec_b_ih"] + params["dec_b_hh"]).astype(f32).reshape(4, 1, I)   # (4,1,I)

    # Encoder input projection for ALL timesteps as ONE bulk matmul (off the
    # recurrent critical path), bias folded in; gate-major result (T, 4, B, H).
    gx_enc = jnp.einsum("btd,gdh->tgbh", x.astype(f32), wih_enc) + b_enc[None]

    # Single fused pallas_call: grid=(), every operand is a whole-array VMEM
    # block (shapes are a few KB), one DMA in / one DMA out.
    out_tm = pl.pallas_call(
        _lstm_ae_kernel,
        out_shape=jax.ShapeDtypeStruct((T, B, I), f32),
    )(gx_enc, whh_enc, wih_dec, b_dec, whh_dec)

    return jnp.transpose(out_tm, (1, 0, 2))   # back to batch-first (B, T, I)


# ------------------------- pure-JAX reference -------------------------------
def _lstm_layer_ref(x, w_ih, w_hh, b_ih, b_hh):
    B, T, _ = x.shape
    H = w_hh.shape[1]

    def step(carry, x_t):
        h, c = carry
        gates = x_t @ w_ih.T + b_ih + h @ w_hh.T + b_hh
        i, f, g, o = jnp.split(gates, 4, axis=-1)
        c = jax.nn.sigmoid(f) * c + jax.nn.sigmoid(i) * jnp.tanh(g)
        h = jax.nn.sigmoid(o) * jnp.tanh(c)
        return (h, c), h

    init = (jnp.zeros((B, H), jnp.float32), jnp.zeros((B, H), jnp.float32))
    _, ys = jax.lax.scan(step, init, jnp.transpose(x, (1, 0, 2)))
    return jnp.transpose(ys, (1, 0, 2))


def _lstm_ae_ref(x, p):
    enc = _lstm_layer_ref(x, p["enc_w_ih"], p["enc_w_hh"], p["enc_b_ih"], p["enc_b_hh"])
    return _lstm_layer_ref(enc, p["dec_w_ih"], p["dec_w_hh"], p["dec_b_ih"], p["dec_b_hh"])


# --------------------------------- main --------------------------------------
if __name__ == "__main__":
    B, T = 2, 8
    INPUT_SIZE, HIDDEN_SIZE = 4, 32

    key = jax.random.PRNGKey(0)
    keys = jax.random.split(key, 9)

    # PyTorch nn.LSTM default init: U(-1/sqrt(hidden), 1/sqrt(hidden))
    k_enc = 1.0 / jnp.sqrt(HIDDEN_SIZE)
    k_dec = 1.0 / jnp.sqrt(INPUT_SIZE)

    params = {
        "enc_w_ih": jax.random.uniform(keys[0], (4 * HIDDEN_SIZE, INPUT_SIZE),
                                       jnp.float32, -k_enc, k_enc),
        "enc_w_hh": jax.random.uniform(keys[1], (4 * HIDDEN_SIZE, HIDDEN_SIZE),
                                       jnp.float32, -k_enc, k_enc),
        "enc_b_ih": jax.random.uniform(keys[2], (4 * HIDDEN_SIZE,),
                                       jnp.float32, -k_enc, k_enc),
        "enc_b_hh": jax.random.uniform(keys[3], (4 * HIDDEN_SIZE,),
                                       jnp.float32, -k_enc, k_enc),
        "dec_w_ih": jax.random.uniform(keys[4], (4 * INPUT_SIZE, HIDDEN_SIZE),
                                       jnp.float32, -k_dec, k_dec),
        "dec_w_hh": jax.random.uniform(keys[5], (4 * INPUT_SIZE, INPUT_SIZE),
                                       jnp.float32, -k_dec, k_dec),
        "dec_b_ih": jax.random.uniform(keys[6], (4 * INPUT_SIZE,),
                                       jnp.float32, -k_dec, k_dec),
        "dec_b_hh": jax.random.uniform(keys[7], (4 * INPUT_SIZE,),
                                       jnp.float32, -k_dec, k_dec),
    }

    x = jax.random.normal(keys[8], (B, T, INPUT_SIZE), jnp.float32)

    out = jax.block_until_ready(lstm_ae_forward(x, params))
    assert out.shape == (B, T, INPUT_SIZE), out.shape

    ref = jax.block_until_ready(_lstm_ae_ref(x, params))
    assert jnp.allclose(out, ref, rtol=1e-4, atol=2e-5), \
        f"max abs err {jnp.max(jnp.abs(out - ref))}"

    print("KERNEL_OK")
</pallas_src>

<mosaic_0001>
module attributes {stable_mosaic.version = 11 : i64} {
  func.func @_lstm_ae_kernel(%arg0: memref<8x4x2x32xf32, #tpu.memory_space<vmem>>, %arg1: memref<4x32x32xf32, #tpu.memory_space<vmem>>, %arg2: memref<4x32x4xf32, #tpu.memory_space<vmem>>, %arg3: memref<4x1x4xf32, #tpu.memory_space<vmem>>, %arg4: memref<4x4x4xf32, #tpu.memory_space<vmem>>, %arg5: memref<8x2x4xf32, #tpu.memory_space<vmem>>) attributes {dimension_semantics = [], scalar_prefetch = 0 : i64, scratch_operands = 0 : i64, tpu.core_type = #tpu.core_type<tc>} {
    %c0 = arith.constant 0 : index
    %c0_0 = arith.constant 0 : index
    %c0_1 = arith.constant 0 : index
    %0 = vector.load %arg1[%c0, %c0_0, %c0_1] : memref<4x32x32xf32, #tpu.memory_space<vmem>>, vector<1x32x32xf32>
    %1 = vector.shape_cast %0 : vector<1x32x32xf32> to vector<32x32xf32>
    %c1 = arith.constant 1 : index
    %c0_2 = arith.constant 0 : index
    %c0_3 = arith.constant 0 : index
    %2 = vector.load %arg1[%c1, %c0_2, %c0_3] : memref<4x32x32xf32, #tpu.memory_space<vmem>>, vector<1x32x32xf32>
    %3 = vector.shape_cast %2 : vector<1x32x32xf32> to vector<32x32xf32>
    %c2 = arith.constant 2 : index
    %c0_4 = arith.constant 0 : index
    %c0_5 = arith.constant 0 : index
    %4 = vector.load %arg1[%c2, %c0_4, %c0_5] : memref<4x32x32xf32, #tpu.memory_space<vmem>>, vector<1x32x32xf32>
    %5 = vector.shape_cast %4 : vector<1x32x32xf32> to vector<32x32xf32>
    %c3 = arith.constant 3 : index
    %c0_6 = arith.constant 0 : index
    %c0_7 = arith.constant 0 : index
    %6 = vector.load %arg1[%c3, %c0_6, %c0_7] : memref<4x32x32xf32, #tpu.memory_space<vmem>>, vector<1x32x32xf32>
    %7 = vector.shape_cast %6 : vector<1x32x32xf32> to vector<32x32xf32>
    %cst = arith.constant 0.000000e+00 : f32
    %8 = vector.broadcast %cst : f32 to vector<2x32xf32>
    %cst_8 = arith.constant 0.000000e+00 : f32
    %9 = vector.broadcast %cst_8 : f32 to vector<2x32xf32>
    %c0_9 = arith.constant 0 : index
    %c0_10 = arith.constant 0 : index
    %c0_11 = arith.constant 0 : index
    %c0_12 = arith.constant 0 : index
    %10 = vector.load %arg0[%c0_9, %c0_10, %c0_11, %c0_12] : memref<8x4x2x32xf32, #tpu.memory_space<vmem>>, vector<1x1x2x32xf32>
    %11 = vector.shape_cast %10 : vector<1x1x2x32xf32> to vector<2x32xf32>
    %cst_13 = arith.constant dense<0.000000e+00> : vector<2x32xf32>
    %12 = tpu.matmul %8, %1, %cst_13 {dimension_numbers = #tpu.dot_dimension_numbers<[1], [0], [0], [1], [0, 0, 1, 1], [], []>} : vector<2x32xf32>, vector<32x32xf32>, vector<2x32xf32> -> vector<2x32xf32>
    %13 = arith.addf %11, %12 : vector<2x32xf32>
    %14 = arith.negf %13 : vector<2x32xf32>
    %15 = math.exp %14 : vector<2x32xf32>
    %cst_14 = arith.constant 1.000000e+00 : f32
    %16 = vector.broadcast %cst_14 : f32 to vector<2x32xf32>
    %17 = arith.addf %16, %15 : vector<2x32xf32>
    %18 = arith.divf %16, %17 : vector<2x32xf32>
    %c0_15 = arith.constant 0 : index
    %c1_16 = arith.constant 1 : index
    %c0_17 = arith.constant 0 : index
    %c0_18 = arith.constant 0 : index
    %19 = vector.load %arg0[%c0_15, %c1_16, %c0_17, %c0_18] : memref<8x4x2x32xf32, #tpu.memory_space<vmem>>, vector<1x1x2x32xf32>
    %20 = vector.shape_cast %19 : vector<1x1x2x32xf32> to vector<2x32xf32>
    %cst_19 = arith.constant dense<0.000000e+00> : vector<2x32xf32>
    %21 = tpu.matmul %8, %3, %cst_19 {dimension_numbers = #tpu.dot_dimension_numbers<[1], [0], [0], [1], [0, 0, 1, 1], [], []>} : vector<2x32xf32>, vector<32x32xf32>, vector<2x32xf32> -> vector<2x32xf32>
    %22 = arith.addf %20, %21 : vector<2x32xf32>
    %23 = arith.negf %22 : vector<2x32xf32>
    %24 = math.exp %23 : vector<2x32xf32>
    %cst_20 = arith.constant 1.000000e+00 : f32
    %25 = vector.broadcast %cst_20 : f32 to vector<2x32xf32>
    %26 = arith.addf %25, %24 : vector<2x32xf32>
    %27 = arith.divf %25, %26 : vector<2x32xf32>
    %c0_21 = arith.constant 0 : index
    %c2_22 = arith.constant 2 : index
    %c0_23 = arith.constant 0 : index
    %c0_24 = arith.constant 0 : index
    %28 = vector.load %arg0[%c0_21, %c2_22, %c0_23, %c0_24] : memref<8x4x2x32xf32, #tpu.memory_space<vmem>>, vector<1x1x2x32xf32>
    %29 = vector.shape_cast %28 : vector<1x1x2x32xf32> to vector<2x32xf32>
    %cst_25 = arith.constant dense<0.000000e+00> : vector<2x32xf32>
    %30 = tpu.matmul %8, %5, %cst_25 {dimension_numbers = #tpu.dot_dimension_numbers<[1], [0], [0], [1], [0, 0, 1, 1], [], []>} : vector<2x32xf32>, vector<32x32xf32>, vector<2x32xf32> -> vector<2x32xf32>
    %31 = arith.addf %29, %30 : vector<2x32xf32>
    %32 = math.tanh %31 : vector<2x32xf32>
    %c0_26 = arith.constant 0 : index
    %c3_27 = arith.constant 3 : index
    %c0_28 = arith.constant 0 : index
    %c0_29 = arith.constant 0 : index
    %33 = vector.load %arg0[%c0_26, %c3_27, %c0_28, %c0_29] : memref<8x4x2x32xf32, #tpu.memory_space<vmem>>, vector<1x1x2x32xf32>
    %34 = vector.shape_cast %33 : vector<1x1x2x32xf32> to vector<2x32xf32>
    %cst_30 = arith.constant dense<0.000000e+00> : vector<2x32xf32>
    %35 = tpu.matmul %8, %7, %cst_30 {dimension_numbers = #tpu.dot_dimension_numbers<[1], [0], [0], [1], [0, 0, 1, 1], [], []>} : vector<2x32xf32>, vector<32x32xf32>, vector<2x32xf32> -> vector<2x32xf32>
    %36 = arith.addf %34, %35 : vector<2x32xf32>
    %37 = arith.negf %36 : vector<2x32xf32>
    %38 = math.exp %37 : vector<2x32xf32>
    %cst_31 = arith.constant 1.000000e+00 : f32
    %39 = vector.broadcast %cst_31 : f32 to vector<2x32xf32>
    %40 = arith.addf %39, %38 : vector<2x32xf32>
    %41 = arith.divf %39, %40 : vector<2x32xf32>
    %42 = arith.mulf %27, %9 : vector<2x32xf32>
    %43 = arith.mulf %18, %32 : vector<2x32xf32>
    %44 = arith.addf %42, %43 : vector<2x32xf32>
    %45 = math.tanh %44 : vector<2x32xf32>
    %46 = arith.mulf %41, %45 : vector<2x32xf32>
    %c1_32 = arith.constant 1 : index
    %c0_33 = arith.constant 0 : index
    %c0_34 = arith.constant 0 : index
    %c0_35 = arith.constant 0 : index
    %47 = vector.load %arg0[%c1_32, %c0_33, %c0_34, %c0_35] : memref<8x4x2x32xf32, #tpu.memory_space<vmem>>, vector<1x1x2x32xf32>
    %48 = vector.shape_cast %47 : vector<1x1x2x32xf32> to vector<2x32xf32>
    %cst_36 = arith.constant dense<0.000000e+00> : vector<2x32xf32>
    %49 = tpu.matmul %46, %1, %cst_36 {dimension_numbers = #tpu.dot_dimension_numbers<[1], [0], [0], [1], [0, 0, 1, 1], [], []>} : vector<2x32xf32>, vector<32x32xf32>, vector<2x32xf32> -> vector<2x32xf32>
    %50 = arith.addf %48, %49 : vector<2x32xf32>
    %51 = arith.negf %50 : vector<2x32xf32>
    %52 = math.exp %51 : vector<2x32xf32>
    %cst_37 = arith.constant 1.000000e+00 : f32
    %53 = vector.broadcast %cst_37 : f32 to vector<2x32xf32>
    %54 = arith.addf %53, %52 : vector<2x32xf32>
    %55 = arith.divf %53, %54 : vector<2x32xf32>
    %c1_38 = arith.constant 1 : index
    %c1_39 = arith.constant 1 : index
    %c0_40 = arith.constant 0 : index
    %c0_41 = arith.constant 0 : index
    %56 = vector.load %arg0[%c1_38, %c1_39, %c0_40, %c0_41] : memref<8x4x2x32xf32, #tpu.memory_space<vmem>>, vector<1x1x2x32xf32>
    %57 = vector.shape_cast %56 : vector<1x1x2x32xf32> to vector<2x32xf32>
    %cst_42 = arith.constant dense<0.000000e+00> : vector<2x32xf32>
    %58 = tpu.matmul %46, %3, %cst_42 {dimension_numbers = #tpu.dot_dimension_numbers<[1], [0], [0], [1], [0, 0, 1, 1], [], []>} : vector<2x32xf32>, vector<32x32xf32>, vector<2x32xf32> -> vector<2x32xf32>
    %59 = arith.addf %57, %58 : vector<2x32xf32>
    %60 = arith.negf %59 : vector<2x32xf32>
    %61 = math.exp %60 : vector<2x32xf32>
    %cst_43 = arith.constant 1.000000e+00 : f32
    %62 = vector.broadcast %cst_43 : f32 to vector<2x32xf32>
    %63 = arith.addf %62, %61 : vector<2x32xf32>
    %64 = arith.divf %62, %63 : vector<2x32xf32>
    %c1_44 = arith.constant 1 : index
    %c2_45 = arith.constant 2 : index
    %c0_46 = arith.constant 0 : index
    %c0_47 = arith.constant 0 : index
    %65 = vector.load %arg0[%c1_44, %c2_45, %c0_46, %c0_47] : memref<8x4x2x32xf32, #tpu.memory_space<vmem>>, vector<1x1x2x32xf32>
    %66 = vector.shape_cast %65 : vector<1x1x2x32xf32> to vector<2x32xf32>
    %cst_48 = arith.constant dense<0.000000e+00> : vector<2x32xf32>
    %67 = tpu.matmul %46, %5, %cst_48 {dimension_numbers = #tpu.dot_dimension_numbers<[1], [0], [0], [1], [0, 0, 1, 1], [], []>} : vector<2x32xf32>, vector<32x32xf32>, vector<2x32xf32> -> vector<2x32xf32>
    %68 = arith.addf %66, %67 : vector<2x32xf32>
    %69 = math.tanh %68 : vector<2x32xf32>
    %c1_49 = arith.constant 1 : index
    %c3_50 = arith.constant 3 : index
    %c0_51 = arith.constant 0 : index
    %c0_52 = arith.constant 0 : index
    %70 = vector.load %arg0[%c1_49, %c3_50, %c0_51, %c0_52] : memref<8x4x2x32xf32, #tpu.memory_space<vmem>>, vector<1x1x2x32xf32>
    %71 = vector.shape_cast %70 : vector<1x1x2x32xf32> to vector<2x32xf32>
    %cst_53 = arith.constant dense<0.000000e+00> : vector<2x32xf32>
    %72 = tpu.matmul %46, %7, %cst_53 {dimension_numbers = #tpu.dot_dimension_numbers<[1], [0], [0], [1], [0, 0, 1, 1], [], []>} : vector<2x32xf32>, vector<32x32xf32>, vector<2x32xf32> -> vector<2x32xf32>
    %73 = arith.addf %71, %72 : vector<2x32xf32>
    %74 = arith.negf %73 : vector<2x32xf32>
    %75 = math.exp %74 : vector<2x32xf32>
    %cst_54 = arith.constant 1.000000e+00 : f32
    %76 = vector.broadcast %cst_54 : f32 to vector<2x32xf32>
    %77 = arith.addf %76, %75 : vector<2x32xf32>
    %78 = arith.divf %76, %77 : vector<2x32xf32>
    %79 = arith.mulf %64, %44 : vector<2x32xf32>
    %80 = arith.mulf %55, %69 : vector<2x32xf32>
    %81 = arith.addf %79, %80 : vector<2x32xf32>
    %82 = math.tanh %81 : vector<2x32xf32>
    %83 = arith.mulf %78, %82 : vector<2x32xf32>
    %c2_55 = arith.constant 2 : index
    %c0_56 = arith.constant 0 : index
    %c0_57 = arith.constant 0 : index
    %c0_58 = arith.constant 0 : index
    %84 = vector.load %arg0[%c2_55, %c0_56, %c0_57, %c0_58] : memref<8x4x2x32xf32, #tpu.memory_space<vmem>>, vector<1x1x2x32xf32>
    %85 = vector.shape_cast %84 : vector<1x1x2x32xf32> to vector<2x32xf32>
    %cst_59 = arith.constant dense<0.000000e+00> : vector<2x32xf32>
    %86 = tpu.matmul %83, %1, %cst_59 {dimension_numbers = #tpu.dot_dimension_numbers<[1], [0], [0], [1], [0, 0, 1, 1], [], []>} : vector<2x32xf32>, vector<32x32xf32>, vector<2x32xf32> -> vector<2x32xf32>
    %87 = arith.addf %85, %86 : vector<2x32xf32>
    %88 = arith.negf %87 : vector<2x32xf32>
    %89 = math.exp %88 : vector<2x32xf32>
    %cst_60 = arith.constant 1.000000e+00 : f32
    %90 = vector.broadcast %cst_60 : f32 to vector<2x32xf32>
    %91 = arith.addf %90, %89 : vector<2x32xf32>
    %92 = arith.divf %90, %91 : vector<2x32xf32>
    %c2_61 = arith.constant 2 : index
    %c1_62 = arith.constant 1 : index
    %c0_63 = arith.constant 0 : index
    %c0_64 = arith.constant 0 : index
    %93 = vector.load %arg0[%c2_61, %c1_62, %c0_63, %c0_64] : memref<8x4x2x32xf32, #tpu.memory_space<vmem>>, vector<1x1x2x32xf32>
    %94 = vector.shape_cast %93 : vector<1x1x2x32xf32> to vector<2x32xf32>
    %cst_65 = arith.constant dense<0.000000e+00> : vector<2x32xf32>
    %95 = tpu.matmul %83, %3, %cst_65 {dimension_numbers = #tpu.dot_dimension_numbers<[1], [0], [0], [1], [0, 0, 1, 1], [], []>} : vector<2x32xf32>, vector<32x32xf32>, vector<2x32xf32> -> vector<2x32xf32>
    %96 = arith.addf %94, %95 : vector<2x32xf32>
    %97 = arith.negf %96 : vector<2x32xf32>
    %98 = math.exp %97 : vector<2x32xf32>
    %cst_66 = arith.constant 1.000000e+00 : f32
    %99 = vector.broadcast %cst_66 : f32 to vector<2x32xf32>
    %100 = arith.addf %99, %98 : vector<2x32xf32>
    %101 = arith.divf %99, %100 : vector<2x32xf32>
    %c2_67 = arith.constant 2 : index
    %c2_68 = arith.constant 2 : index
    %c0_69 = arith.constant 0 : index
    %c0_70 = arith.constant 0 : index
    %102 = vector.load %arg0[%c2_67, %c2_68, %c0_69, %c0_70] : memref<8x4x2x32xf32, #tpu.memory_space<vmem>>, vector<1x1x2x32xf32>
    %103 = vector.shape_cast %102 : vector<1x1x2x32xf32> to vector<2x32xf32>
    %cst_71 = arith.constant dense<0.000000e+00> : vector<2x32xf32>
    %104 = tpu.matmul %83, %5, %cst_71 {dimension_numbers = #tpu.dot_dimension_numbers<[1], [0], [0], [1], [0, 0, 1, 1], [], []>} : vector<2x32xf32>, vector<32x32xf32>, vector<2x32xf32> -> vector<2x32xf32>
    %105 = arith.addf %103, %104 : vector<2x32xf32>
    %106 = math.tanh %105 : vector<2x32xf32>
    %c2_72 = arith.constant 2 : index
    %c3_73 = arith.constant 3 : index
    %c0_74 = arith.constant 0 : index
    %c0_75 = arith.constant 0 : index
    %107 = vector.load %arg0[%c2_72, %c3_73, %c0_74, %c0_75] : memref<8x4x2x32xf32, #tpu.memory_space<vmem>>, vector<1x1x2x32xf32>
    %108 = vector.shape_cast %107 : vector<1x1x2x32xf32> to vector<2x32xf32>
    %cst_76 = arith.constant dense<0.000000e+00> : vector<2x32xf32>
    %109 = tpu.matmul %83, %7, %cst_76 {dimension_numbers = #tpu.dot_dimension_numbers<[1], [0], [0], [1], [0, 0, 1, 1], [], []>} : vector<2x32xf32>, vector<32x32xf32>, vector<2x32xf32> -> vector<2x32xf32>
    %110 = arith.addf %108, %109 : vector<2x32xf32>
    %111 = arith.negf %110 : vector<2x32xf32>
    %112 = math.exp %111 : vector<2x32xf32>
    %cst_77 = arith.constant 1.000000e+00 : f32
    %113 = vector.broadcast %cst_77 : f32 to vector<2x32xf32>
    %114 = arith.addf %113, %112 : vector<2x32xf32>
    %115 = arith.divf %113, %114 : vector<2x32xf32>
    %116 = arith.mulf %101, %81 : vector<2x32xf32>
    %117 = arith.mulf %92, %106 : vector<2x32xf32>
    %118 = arith.addf %116, %117 : vector<2x32xf32>
    %119 = math.tanh %118 : vector<2x32xf32>
    %120 = arith.mulf %115, %119 : vector<2x32xf32>
    %c3_78 = arith.constant 3 : index
    %c0_79 = arith.constant 0 : index
    %c0_80 = arith.constant 0 : index
    %c0_81 = arith.constant 0 : index
    %121 = vector.load %arg0[%c3_78, %c0_79, %c0_80, %c0_81] : memref<8x4x2x32xf32, #tpu.memory_space<vmem>>, vector<1x1x2x32xf32>
    %122 = vector.shape_cast %121 : vector<1x1x2x32xf32> to vector<2x32xf32>
    %cst_82 = arith.constant dense<0.000000e+00> : vector<2x32xf32>
    %123 = tpu.matmul %120, %1, %cst_82 {dimension_numbers = #tpu.dot_dimension_numbers<[1], [0], [0], [1], [0, 0, 1, 1], [], []>} : vector<2x32xf32>, vector<32x32xf32>, vector<2x32xf32> -> vector<2x32xf32>
    %124 = arith.addf %122, %123 : vector<2x32xf32>
    %125 = arith.negf %124 : vector<2x32xf32>
    %126 = math.exp %125 : vector<2x32xf32>
    %cst_83 = arith.constant 1.000000e+00 : f32
    %127 = vector.broadcast %cst_83 : f32 to vector<2x32xf32>
    %128 = arith.addf %127, %126 : vector<2x32xf32>
    %129 = arith.divf %127, %128 : vector<2x32xf32>
    %c3_84 = arith.constant 3 : index
    %c1_85 = arith.constant 1 : index
    %c0_86 = arith.constant 0 : index
    %c0_87 = arith.constant 0 : index
    %130 = vector.load %arg0[%c3_84, %c1_85, %c0_86, %c0_87] : memref<8x4x2x32xf32, #tpu.memory_space<vmem>>, vector<1x1x2x32xf32>
    %131 = vector.shape_cast %130 : vector<1x1x2x32xf32> to vector<2x32xf32>
    %cst_88 = arith.constant dense<0.000000e+00> : vector<2x32xf32>
    %132 = tpu.matmul %120, %3, %cst_88 {dimension_numbers = #tpu.dot_dimension_numbers<[1], [0], [0], [1], [0, 0, 1, 1], [], []>} : vector<2x32xf32>, vector<32x32xf32>, vector<2x32xf32> -> vector<2x32xf32>
    %133 = arith.addf %131, %132 : vector<2x32xf32>
    %134 = arith.negf %133 : vector<2x32xf32>
    %135 = math.exp %134 : vector<2x32xf32>
    %cst_89 = arith.constant 1.000000e+00 : f32
    %136 = vector.broadcast %cst_89 : f32 to vector<2x32xf32>
    %137 = arith.addf %136, %135 : vector<2x32xf32>
    %138 = arith.divf %136, %137 : vector<2x32xf32>
    %c3_90 = arith.constant 3 : index
    %c2_91 = arith.constant 2 : index
    %c0_92 = arith.constant 0 : index
    %c0_93 = arith.constant 0 : index
    %139 = vector.load %arg0[%c3_90, %c2_91, %c0_92, %c0_93] : memref<8x4x2x32xf32, #tpu.memory_space<vmem>>, vector<1x1x2x32xf32>
    %140 = vector.shape_cast %139 : vector<1x1x2x32xf32> to vector<2x32xf32>
    %cst_94 = arith.constant dense<0.000000e+00> : vector<2x32xf32>
    %141 = tpu.matmul %120, %5, %cst_94 {dimension_numbers = #tpu.dot_dimension_numbers<[1], [0], [0], [1], [0, 0, 1, 1], [], []>} : vector<2x32xf32>, vector<32x32xf32>, vector<2x32xf32> -> vector<2x32xf32>
    %142 = arith.addf %140, %141 : vector<2x32xf32>
    %143 = math.tanh %142 : vector<2x32xf32>
    %c3_95 = arith.constant 3 : index
    %c3_96 = arith.constant 3 : index
    %c0_97 = arith.constant 0 : index
    %c0_98 = arith.constant 0 : index
    %144 = vector.load %arg0[%c3_95, %c3_96, %c0_97, %c0_98] : memref<8x4x2x32xf32, #tpu.memory_space<vmem>>, vector<1x1x2x32xf32>
    %145 = vector.shape_cast %144 : vector<1x1x2x32xf32> to vector<2x32xf32>
    %cst_99 = arith.constant dense<0.000000e+00> : vector<2x32xf32>
    %146 = tpu.matmul %120, %7, %cst_99 {dimension_numbers = #tpu.dot_dimension_numbers<[1], [0], [0], [1], [0, 0, 1, 1], [], []>} : vector<2x32xf32>, vector<32x32xf32>, vector<2x32xf32> -> vector<2x32xf32>
    %147 = arith.addf %145, %146 : vector<2x32xf32>
    %148 = arith.negf %147 : vector<2x32xf32>
    %149 = math.exp %148 : vector<2x32xf32>
    %cst_100 = arith.constant 1.000000e+00 : f32
    %150 = vector.broadcast %cst_100 : f32 to vector<2x32xf32>
    %151 = arith.addf %150, %149 : vector<2x32xf32>
    %152 = arith.divf %150, %151 : vector<2x32xf32>
    %153 = arith.mulf %138, %118 : vector<2x32xf32>
    %154 = arith.mulf %129, %143 : vector<2x32xf32>
    %155 = arith.addf %153, %154 : vector<2x32xf32>
    %156 = math.tanh %155 : vector<2x32xf32>
    %157 = arith.mulf %152, %156 : vector<2x32xf32>
    %c4 = arith.constant 4 : index
    %c0_101 = arith.constant 0 : index
    %c0_102 = arith.constant 0 : index
    %c0_103 = arith.constant 0 : index
    %158 = vector.load %arg0[%c4, %c0_101, %c0_102, %c0_103] : memref<8x4x2x32xf32, #tpu.memory_space<vmem>>, vector<1x1x2x32xf32>
    %159 = vector.shape_cast %158 : vector<1x1x2x32xf32> to vector<2x32xf32>
    %cst_104 = arith.constant dense<0.000000e+00> : vector<2x32xf32>
    %160 = tpu.matmul %157, %1, %cst_104 {dimension_numbers = #tpu.dot_dimension_numbers<[1], [0], [0], [1], [0, 0, 1, 1], [], []>} : vector<2x32xf32>, vector<32x32xf32>, vector<2x32xf32> -> vector<2x32xf32>
    %161 = arith.addf %159, %160 : vector<2x32xf32>
    %162 = arith.negf %161 : vector<2x32xf32>
    %163 = math.exp %162 : vector<2x32xf32>
    %cst_105 = arith.constant 1.000000e+00 : f32
    %164 = vector.broadcast %cst_105 : f32 to vector<2x32xf32>
    %165 = arith.addf %164, %163 : vector<2x32xf32>
    %166 = arith.divf %164, %165 : vector<2x32xf32>
    %c4_106 = arith.constant 4 : index
    %c1_107 = arith.constant 1 : index
    %c0_108 = arith.constant 0 : index
    %c0_109 = arith.constant 0 : index
    %167 = vector.load %arg0[%c4_106, %c1_107, %c0_108, %c0_109] : memref<8x4x2x32xf32, #tpu.memory_space<vmem>>, vector<1x1x2x32xf32>
    %168 = vector.shape_cast %167 : vector<1x1x2x32xf32> to vector<2x32xf32>
    %cst_110 = arith.constant dense<0.000000e+00> : vector<2x32xf32>
    %169 = tpu.matmul %157, %3, %cst_110 {dimension_numbers = #tpu.dot_dimension_numbers<[1], [0], [0], [1], [0, 0, 1, 1], [], []>} : vector<2x32xf32>, vector<32x32xf32>, vector<2x32xf32> -> vector<2x32xf32>
    %170 = arith.addf %168, %169 : vector<2x32xf32>
    %171 = arith.negf %170 : vector<2x32xf32>
    %172 = math.exp %171 : vector<2x32xf32>
    %cst_111 = arith.constant 1.000000e+00 : f32
    %173 = vector.broadcast %cst_111 : f32 to vector<2x32xf32>
    %174 = arith.addf %173, %172 : vector<2x32xf32>
    %175 = arith.divf %173, %174 : vector<2x32xf32>
    %c4_112 = arith.constant 4 : index
    %c2_113 = arith.constant 2 : index
    %c0_114 = arith.constant 0 : index
    %c0_115 = arith.constant 0 : index
    %176 = vector.load %arg0[%c4_112, %c2_113, %c0_114, %c0_115] : memref<8x4x2x32xf32, #tpu.memory_space<vmem>>, vector<1x1x2x32xf32>
    %177 = vector.shape_cast %176 : vector<1x1x2x32xf32> to vector<2x32xf32>
    %cst_116 = arith.constant dense<0.000000e+00> : vector<2x32xf32>
    %178 = tpu.matmul %157, %5, %cst_116 {dimension_numbers = #tpu.dot_dimension_numbers<[1], [0], [0], [1], [0, 0, 1, 1], [], []>} : vector<2x32xf32>, vector<32x32xf32>, vector<2x32xf32> -> vector<2x32xf32>
    %179 = arith.addf %177, %178 : vector<2x32xf32>
    %180 = math.tanh %179 : vector<2x32xf32>
    %c4_117 = arith.constant 4 : index
    %c3_118 = arith.constant 3 : index
    %c0_119 = arith.constant 0 : index
    %c0_120 = arith.constant 0 : index
    %181 = vector.load %arg0[%c4_117, %c3_118, %c0_119, %c0_120] : memref<8x4x2x32xf32, #tpu.memory_space<vmem>>, vector<1x1x2x32xf32>
    %182 = vector.shape_cast %181 : vector<1x1x2x32xf32> to vector<2x32xf32>
    %cst_121 = arith.constant dense<0.000000e+00> : vector<2x32xf32>
    %183 = tpu.matmul %157, %7, %cst_121 {dimension_numbers = #tpu.dot_dimension_numbers<[1], [0], [0], [1], [0, 0, 1, 1], [], []>} : vector<2x32xf32>, vector<32x32xf32>, vector<2x32xf32> -> vector<2x32xf32>
    %184 = arith.addf %182, %183 : vector<2x32xf32>
    %185 = arith.negf %184 : vector<2x32xf32>
    %186 = math.exp %185 : vector<2x32xf32>
    %cst_122 = arith.constant 1.000000e+00 : f32
    %187 = vector.broadcast %cst_122 : f32 to vector<2x32xf32>
    %188 = arith.addf %187, %186 : vector<2x32xf32>
    %189 = arith.divf %187, %188 : vector<2x32xf32>
    %190 = arith.mulf %175, %155 : vector<2x32xf32>
    %191 = arith.mulf %166, %180 : vector<2x32xf32>
    %192 = arith.addf %190, %191 : vector<2x32xf32>
    %193 = math.tanh %192 : vector<2x32xf32>
    %194 = arith.mulf %189, %193 : vector<2x32xf32>
    %c5 = arith.constant 5 : index
    %c0_123 = arith.constant 0 : index
    %c0_124 = arith.constant 0 : index
    %c0_125 = arith.constant 0 : index
    %195 = vector.load %arg0[%c5, %c0_123, %c0_124, %c0_125] : memref<8x4x2x32xf32, #tpu.memory_space<vmem>>, vector<1x1x2x32xf32>
    %196 = vector.shape_cast %195 : vector<1x1x2x32xf32> to vector<2x32xf32>
    %cst_126 = arith.constant dense<0.000000e+00> : vector<2x32xf32>
    %197 = tpu.matmul %194, %1, %cst_126 {dimension_numbers = #tpu.dot_dimension_numbers<[1], [0], [0], [1], [0, 0, 1, 1], [], []>} : vector<2x32xf32>, vector<32x32xf32>, vector<2x32xf32> -> vector<2x32xf32>
    %198 = arith.addf %196, %197 : vector<2x32xf32>
    %199 = arith.negf %198 : vector<2x32xf32>
    %200 = math.exp %199 : vector<2x32xf32>
    %cst_127 = arith.constant 1.000000e+00 : f32
    %201 = vector.broadcast %cst_127 : f32 to vector<2x32xf32>
    %202 = arith.addf %201, %200 : vector<2x32xf32>
    %203 = arith.divf %201, %202 : vector<2x32xf32>
    %c5_128 = arith.constant 5 : index
    %c1_129 = arith.constant 1 : index
    %c0_130 = arith.constant 0 : index
    %c0_131 = arith.constant 0 : index
    %204 = vector.load %arg0[%c5_128, %c1_129, %c0_130, %c0_131] : memref<8x4x2x32xf32, #tpu.memory_space<vmem>>, vector<1x1x2x32xf32>
    %205 = vector.shape_cast %204 : vector<1x1x2x32xf32> to vector<2x32xf32>
    %cst_132 = arith.constant dense<0.000000e+00> : vector<2x32xf32>
    %206 = tpu.matmul %194, %3, %cst_132 {dimension_numbers = #tpu.dot_dimension_numbers<[1], [0], [0], [1], [0, 0, 1, 1], [], []>} : vector<2x32xf32>, vector<32x32xf32>, vector<2x32xf32> -> vector<2x32xf32>
    %207 = arith.addf %205, %206 : vector<2x32xf32>
    %208 = arith.negf %207 : vector<2x32xf32>
    %209 = math.exp %208 : vector<2x32xf32>
    %cst_133 = arith.constant 1.000000e+00 : f32
    %210 = vector.broadcast %cst_133 : f32 to vector<2x32xf32>
    %211 = arith.addf %210, %209 : vector<2x32xf32>
    %212 = arith.divf %210, %211 : vector<2x32xf32>
    %c5_134 = arith.constant 5 : index
    %c2_135 = arith.constant 2 : index
    %c0_136 = arith.constant 0 : index
    %c0_137 = arith.constant 0 : index
    %213 = vector.load %arg0[%c5_134, %c2_135, %c0_136, %c0_137] : memref<8x4x2x32xf32, #tpu.memory_space<vmem>>, vector<1x1x2x32xf32>
    %214 = vector.shape_cast %213 : vector<1x1x2x32xf32> to vector<2x32xf32>
    %cst_138 = arith.constant dense<0.000000e+00> : vector<2x32xf32>
    %215 = tpu.matmul %194, %5, %cst_138 {dimension_numbers = #tpu.dot_dimension_numbers<[1], [0], [0], [1], [0, 0, 1, 1], [], []>} : vector<2x32xf32>, vector<32x32xf32>, vector<2x32xf32> -> vector<2x32xf32>
    %216 = arith.addf %214, %215 : vector<2x32xf32>
    %217 = math.tanh %216 : vector<2x32xf32>
    %c5_139 = arith.constant 5 : index
    %c3_140 = arith.constant 3 : index
    %c0_141 = arith.constant 0 : index
    %c0_142 = arith.constant 0 : index
    %218 = vector.load %arg0[%c5_139, %c3_140, %c0_141, %c0_142] : memref<8x4x2x32xf32, #tpu.memory_space<vmem>>, vector<1x1x2x32xf32>
    %219 = vector.shape_cast %218 : vector<1x1x2x32xf32> to vector<2x32xf32>
    %cst_143 = arith.constant dense<0.000000e+00> : vector<2x32xf32>
    %220 = tpu.matmul %194, %7, %cst_143 {dimension_numbers = #tpu.dot_dimension_numbers<[1], [0], [0], [1], [0, 0, 1, 1], [], []>} : vector<2x32xf32>, vector<32x32xf32>, vector<2x32xf32> -> vector<2x32xf32>
    %221 = arith.addf %219, %220 : vector<2x32xf32>
    %222 = arith.negf %221 : vector<2x32xf32>
    %223 = math.exp %222 : vector<2x32xf32>
    %cst_144 = arith.constant 1.000000e+00 : f32
    %224 = vector.broadcast %cst_144 : f32 to vector<2x32xf32>
    %225 = arith.addf %224, %223 : vector<2x32xf32>
    %226 = arith.divf %224, %225 : vector<2x32xf32>
    %227 = arith.mulf %212, %192 : vector<2x32xf32>
    %228 = arith.mulf %203, %217 : vector<2x32xf32>
    %229 = arith.addf %227, %228 : vector<2x32xf32>
    %230 = math.tanh %229 : vector<2x32xf32>
    %231 = arith.mulf %226, %230 : vector<2x32xf32>
    %c6 = arith.constant 6 : index
    %c0_145 = arith.constant 0 : index
    %c0_146 = arith.constant 0 : index
    %c0_147 = arith.constant 0 : index
    %232 = vector.load %arg0[%c6, %c0_145, %c0_146, %c0_147] : memref<8x4x2x32xf32, #tpu.memory_space<vmem>>, vector<1x1x2x32xf32>
    %233 = vector.shape_cast %232 : vector<1x1x2x32xf32> to vector<2x32xf32>
    %cst_148 = arith.constant dense<0.000000e+00> : vector<2x32xf32>
    %234 = tpu.matmul %231, %1, %cst_148 {dimension_numbers = #tpu.dot_dimension_numbers<[1], [0], [0], [1], [0, 0, 1, 1], [], []>} : vector<2x32xf32>, vector<32x32xf32>, vector<2x32xf32> -> vector<2x32xf32>
    %235 = arith.addf %233, %234 : vector<2x32xf32>
    %236 = arith.negf %235 : vector<2x32xf32>
    %237 = math.exp %236 : vector<2x32xf32>
    %cst_149 = arith.constant 1.000000e+00 : f32
    %238 = vector.broadcast %cst_149 : f32 to vector<2x32xf32>
    %239 = arith.addf %238, %237 : vector<2x32xf32>
    %240 = arith.divf %238, %239 : vector<2x32xf32>
    %c6_150 = arith.constant 6 : index
    %c1_151 = arith.constant 1 : index
    %c0_152 = arith.constant 0 : index
    %c0_153 = arith.constant 0 : index
    %241 = vector.load %arg0[%c6_150, %c1_151, %c0_152, %c0_153] : memref<8x4x2x32xf32, #tpu.memory_space<vmem>>, vector<1x1x2x32xf32>
    %242 = vector.shape_cast %241 : vector<1x1x2x32xf32> to vector<2x32xf32>
    %cst_154 = arith.constant dense<0.000000e+00> : vector<2x32xf32>
    %243 = tpu.matmul %231, %3, %cst_154 {dimension_numbers = #tpu.dot_dimension_numbers<[1], [0], [0], [1], [0, 0, 1, 1], [], []>} : vector<2x32xf32>, vector<32x32xf32>, vector<2x32xf32> -> vector<2x32xf32>
    %244 = arith.addf %242, %243 : vector<2x32xf32>
    %245 = arith.negf %244 : vector<2x32xf32>
    %246 = math.exp %245 : vector<2x32xf32>
    %cst_155 = arith.constant 1.000000e+00 : f32
    %247 = vector.broadcast %cst_155 : f32 to vector<2x32xf32>
    %248 = arith.addf %247, %246 : vector<2x32xf32>
    %249 = arith.divf %247, %248 : vector<2x32xf32>
    %c6_156 = arith.constant 6 : index
    %c2_157 = arith.constant 2 : index
    %c0_158 = arith.constant 0 : index
    %c0_159 = arith.constant 0 : index
    %250 = vector.load %arg0[%c6_156, %c2_157, %c0_158, %c0_159] : memref<8x4x2x32xf32, #tpu.memory_space<vmem>>, vector<1x1x2x32xf32>
    %251 = vector.shape_cast %250 : vector<1x1x2x32xf32> to vector<2x32xf32>
    %cst_160 = arith.constant dense<0.000000e+00> : vector<2x32xf32>
    %252 = tpu.matmul %231, %5, %cst_160 {dimension_numbers = #tpu.dot_dimension_numbers<[1], [0], [0], [1], [0, 0, 1, 1], [], []>} : vector<2x32xf32>, vector<32x32xf32>, vector<2x32xf32> -> vector<2x32xf32>
    %253 = arith.addf %251, %252 : vector<2x32xf32>
    %254 = math.tanh %253 : vector<2x32xf32>
    %c6_161 = arith.constant 6 : index
    %c3_162 = arith.constant 3 : index
    %c0_163 = arith.constant 0 : index
    %c0_164 = arith.constant 0 : index
    %255 = vector.load %arg0[%c6_161, %c3_162, %c0_163, %c0_164] : memref<8x4x2x32xf32, #tpu.memory_space<vmem>>, vector<1x1x2x32xf32>
    %256 = vector.shape_cast %255 : vector<1x1x2x32xf32> to vector<2x32xf32>
    %cst_165 = arith.constant dense<0.000000e+00> : vector<2x32xf32>
    %257 = tpu.matmul %231, %7, %cst_165 {dimension_numbers = #tpu.dot_dimension_numbers<[1], [0], [0], [1], [0, 0, 1, 1], [], []>} : vector<2x32xf32>, vector<32x32xf32>, vector<2x32xf32> -> vector<2x32xf32>
    %258 = arith.addf %256, %257 : vector<2x32xf32>
    %259 = arith.negf %258 : vector<2x32xf32>
    %260 = math.exp %259 : vector<2x32xf32>
    %cst_166 = arith.constant 1.000000e+00 : f32
    %261 = vector.broadcast %cst_166 : f32 to vector<2x32xf32>
    %262 = arith.addf %261, %260 : vector<2x32xf32>
    %263 = arith.divf %261, %262 : vector<2x32xf32>
    %264 = arith.mulf %249, %229 : vector<2x32xf32>
    %265 = arith.mulf %240, %254 : vector<2x32xf32>
    %266 = arith.addf %264, %265 : vector<2x32xf32>
    %267 = math.tanh %266 : vector<2x32xf32>
    %268 = arith.mulf %263, %267 : vector<2x32xf32>
    %c7 = arith.constant 7 : index
    %c0_167 = arith.constant 0 : index
    %c0_168 = arith.constant 0 : index
    %c0_169 = arith.constant 0 : index
    %269 = vector.load %arg0[%c7, %c0_167, %c0_168, %c0_169] : memref<8x4x2x32xf32, #tpu.memory_space<vmem>>, vector<1x1x2x32xf32>
    %270 = vector.shape_cast %269 : vector<1x1x2x32xf32> to vector<2x32xf32>
    %cst_170 = arith.constant dense<0.000000e+00> : vector<2x32xf32>
    %271 = tpu.matmul %268, %1, %cst_170 {dimension_numbers = #tpu.dot_dimension_numbers<[1], [0], [0], [1], [0, 0, 1, 1], [], []>} : vector<2x32xf32>, vector<32x32xf32>, vector<2x32xf32> -> vector<2x32xf32>
    %272 = arith.addf %270, %271 : vector<2x32xf32>
    %273 = arith.negf %272 : vector<2x32xf32>
    %274 = math.exp %273 : vector<2x32xf32>
    %cst_171 = arith.constant 1.000000e+00 : f32
    %275 = vector.broadcast %cst_171 : f32 to vector<2x32xf32>
    %276 = arith.addf %275, %274 : vector<2x32xf32>
    %277 = arith.divf %275, %276 : vector<2x32xf32>
    %c7_172 = arith.constant 7 : index
    %c1_173 = arith.constant 1 : index
    %c0_174 = arith.constant 0 : index
    %c0_175 = arith.constant 0 : index
    %278 = vector.load %arg0[%c7_172, %c1_173, %c0_174, %c0_175] : memref<8x4x2x32xf32, #tpu.memory_space<vmem>>, vector<1x1x2x32xf32>
    %279 = vector.shape_cast %278 : vector<1x1x2x32xf32> to vector<2x32xf32>
    %cst_176 = arith.constant dense<0.000000e+00> : vector<2x32xf32>
    %280 = tpu.matmul %268, %3, %cst_176 {dimension_numbers = #tpu.dot_dimension_numbers<[1], [0], [0], [1], [0, 0, 1, 1], [], []>} : vector<2x32xf32>, vector<32x32xf32>, vector<2x32xf32> -> vector<2x32xf32>
    %281 = arith.addf %279, %280 : vector<2x32xf32>
    %282 = arith.negf %281 : vector<2x32xf32>
    %283 = math.exp %282 : vector<2x32xf32>
    %cst_177 = arith.constant 1.000000e+00 : f32
    %284 = vector.broadcast %cst_177 : f32 to vector<2x32xf32>
    %285 = arith.addf %284, %283 : vector<2x32xf32>
    %286 = arith.divf %284, %285 : vector<2x32xf32>
    %c7_178 = arith.constant 7 : index
    %c2_179 = arith.constant 2 : index
    %c0_180 = arith.constant 0 : index
    %c0_181 = arith.constant 0 : index
    %287 = vector.load %arg0[%c7_178, %c2_179, %c0_180, %c0_181] : memref<8x4x2x32xf32, #tpu.memory_space<vmem>>, vector<1x1x2x32xf32>
    %288 = vector.shape_cast %287 : vector<1x1x2x32xf32> to vector<2x32xf32>
    %cst_182 = arith.constant dense<0.000000e+00> : vector<2x32xf32>
    %289 = tpu.matmul %268, %5, %cst_182 {dimension_numbers = #tpu.dot_dimension_numbers<[1], [0], [0], [1], [0, 0, 1, 1], [], []>} : vector<2x32xf32>, vector<32x32xf32>, vector<2x32xf32> -> vector<2x32xf32>
    %290 = arith.addf %288, %289 : vector<2x32xf32>
    %291 = math.tanh %290 : vector<2x32xf32>
    %c7_183 = arith.constant 7 : index
    %c3_184 = arith.constant 3 : index
    %c0_185 = arith.constant 0 : index
    %c0_186 = arith.constant 0 : index
    %292 = vector.load %arg0[%c7_183, %c3_184, %c0_185, %c0_186] : memref<8x4x2x32xf32, #tpu.memory_space<vmem>>, vector<1x1x2x32xf32>
    %293 = vector.shape_cast %292 : vector<1x1x2x32xf32> to vector<2x32xf32>
    %cst_187 = arith.constant dense<0.000000e+00> : vector<2x32xf32>
    %294 = tpu.matmul %268, %7, %cst_187 {dimension_numbers = #tpu.dot_dimension_numbers<[1], [0], [0], [1], [0, 0, 1, 1], [], []>} : vector<2x32xf32>, vector<32x32xf32>, vector<2x32xf32> -> vector<2x32xf32>
    %295 = arith.addf %293, %294 : vector<2x32xf32>
    %296 = arith.negf %295 : vector<2x32xf32>
    %297 = math.exp %296 : vector<2x32xf32>
    %cst_188 = arith.constant 1.000000e+00 : f32
    %298 = vector.broadcast %cst_188 : f32 to vector<2x32xf32>
    %299 = arith.addf %298, %297 : vector<2x32xf32>
    %300 = arith.divf %298, %299 : vector<2x32xf32>
    %301 = arith.mulf %286, %266 : vector<2x32xf32>
    %302 = arith.mulf %277, %291 : vector<2x32xf32>
    %303 = arith.addf %301, %302 : vector<2x32xf32>
    %304 = math.tanh %303 : vector<2x32xf32>
    %305 = arith.mulf %300, %304 : vector<2x32xf32>
    %c0_189 = arith.constant 0 : index
    %c0_190 = arith.constant 0 : index
    %c0_191 = arith.constant 0 : index
    %306 = vector.load %arg2[%c0_189, %c0_190, %c0_191] : memref<4x32x4xf32, #tpu.memory_space<vmem>>, vector<1x32x4xf32>
    %307 = vector.shape_cast %306 : vector<1x32x4xf32> to vector<32x4xf32>
    %c1_192 = arith.constant 1 : index
    %c0_193 = arith.constant 0 : index
    %c0_194 = arith.constant 0 : index
    %308 = vector.load %arg2[%c1_192, %c0_193, %c0_194] : memref<4x32x4xf32, #tpu.memory_space<vmem>>, vector<1x32x4xf32>
    %309 = vector.shape_cast %308 : vector<1x32x4xf32> to vector<32x4xf32>
    %c2_195 = arith.constant 2 : index
    %c0_196 = arith.constant 0 : index
    %c0_197 = arith.constant 0 : index
    %310 = vector.load %arg2[%c2_195, %c0_196, %c0_197] : memref<4x32x4xf32, #tpu.memory_space<vmem>>, vector<1x32x4xf32>
    %311 = vector.shape_cast %310 : vector<1x32x4xf32> to vector<32x4xf32>
    %c3_198 = arith.constant 3 : index
    %c0_199 = arith.constant 0 : index
    %c0_200 = arith.constant 0 : index
    %312 = vector.load %arg2[%c3_198, %c0_199, %c0_200] : memref<4x32x4xf32, #tpu.memory_space<vmem>>, vector<1x32x4xf32>
    %313 = vector.shape_cast %312 : vector<1x32x4xf32> to vector<32x4xf32>
    %c0_201 = arith.constant 0 : index
    %c0_202 = arith.constant 0 : index
    %c0_203 = arith.constant 0 : index
    %314 = vector.load %arg4[%c0_201, %c0_202, %c0_203] : memref<4x4x4xf32, #tpu.memory_space<vmem>>, vector<1x4x4xf32>
    %315 = vector.shape_cast %314 : vector<1x4x4xf32> to vector<4x4xf32>
    %c1_204 = arith.constant 1 : index
    %c0_205 = arith.constant 0 : index
    %c0_206 = arith.constant 0 : index
    %316 = vector.load %arg4[%c1_204, %c0_205, %c0_206] : memref<4x4x4xf32, #tpu.memory_space<vmem>>, vector<1x4x4xf32>
    %317 = vector.shape_cast %316 : vector<1x4x4xf32> to vector<4x4xf32>
    %c2_207 = arith.constant 2 : index
    %c0_208 = arith.constant 0 : index
    %c0_209 = arith.constant 0 : index
    %318 = vector.load %arg4[%c2_207, %c0_208, %c0_209] : memref<4x4x4xf32, #tpu.memory_space<vmem>>, vector<1x4x4xf32>
    %319 = vector.shape_cast %318 : vector<1x4x4xf32> to vector<4x4xf32>
    %c3_210 = arith.constant 3 : index
    %c0_211 = arith.constant 0 : index
    %c0_212 = arith.constant 0 : index
    %320 = vector.load %arg4[%c3_210, %c0_211, %c0_212] : memref<4x4x4xf32, #tpu.memory_space<vmem>>, vector<1x4x4xf32>
    %321 = vector.shape_cast %320 : vector<1x4x4xf32> to vector<4x4xf32>
    %c0_213 = arith.constant 0 : index
    %c0_214 = arith.constant 0 : index
    %c0_215 = arith.constant 0 : index
    %322 = vector.load %arg3[%c0_213, %c0_214, %c0_215] : memref<4x1x4xf32, #tpu.memory_space<vmem>>, vector<1x1x4xf32>
    %323 = vector.shape_cast %322 : vector<1x1x4xf32> to vector<1x4xf32>
    %c1_216 = arith.constant 1 : index
    %c0_217 = arith.constant 0 : index
    %c0_218 = arith.constant 0 : index
    %324 = vector.load %arg3[%c1_216, %c0_217, %c0_218] : memref<4x1x4xf32, #tpu.memory_space<vmem>>, vector<1x1x4xf32>
    %325 = vector.shape_cast %324 : vector<1x1x4xf32> to vector<1x4xf32>
    %c2_219 = arith.constant 2 : index
    %c0_220 = arith.constant 0 : index
    %c0_221 = arith.constant 0 : index
    %326 = vector.load %arg3[%c2_219, %c0_220, %c0_221] : memref<4x1x4xf32, #tpu.memory_space<vmem>>, vector<1x1x4xf32>
    %327 = vector.shape_cast %326 : vector<1x1x4xf32> to vector<1x4xf32>
    %c3_222 = arith.constant 3 : index
    %c0_223 = arith.constant 0 : index
    %c0_224 = arith.constant 0 : index
    %328 = vector.load %arg3[%c3_222, %c0_223, %c0_224] : memref<4x1x4xf32, #tpu.memory_space<vmem>>, vector<1x1x4xf32>
    %329 = vector.shape_cast %328 : vector<1x1x4xf32> to vector<1x4xf32>
    %cst_225 = arith.constant 0.000000e+00 : f32
    %330 = vector.broadcast %cst_225 : f32 to vector<2x4xf32>
    %cst_226 = arith.constant 0.000000e+00 : f32
    %331 = vector.broadcast %cst_226 : f32 to vector<2x4xf32>
    %cst_227 = arith.constant dense<0.000000e+00> : vector<2x4xf32>
    %332 = tpu.matmul %46, %307, %cst_227 {dimension_numbers = #tpu.dot_dimension_numbers<[1], [0], [0], [1], [0, 0, 1, 1], [], []>} : vector<2x32xf32>, vector<32x4xf32>, vector<2x4xf32> -> vector<2x4xf32>
    %333 = vector.broadcast %323 : vector<1x4xf32> to vector<2x4xf32>
    %334 = arith.addf %332, %333 : vector<2x4xf32>
    %cst_228 = arith.constant dense<0.000000e+00> : vector<2x4xf32>
    %335 = tpu.matmul %330, %315, %cst_228 {dimension_numbers = #tpu.dot_dimension_numbers<[1], [0], [0], [1], [0, 0, 1, 1], [], []>} : vector<2x4xf32>, vector<4x4xf32>, vector<2x4xf32> -> vector<2x4xf32>
    %336 = arith.addf %334, %335 : vector<2x4xf32>
    %337 = arith.negf %336 : vector<2x4xf32>
    %338 = math.exp %337 : vector<2x4xf32>
    %cst_229 = arith.constant 1.000000e+00 : f32
    %339 = vector.broadcast %cst_229 : f32 to vector<2x4xf32>
    %340 = arith.addf %339, %338 : vector<2x4xf32>
    %341 = arith.divf %339, %340 : vector<2x4xf32>
    %cst_230 = arith.constant dense<0.000000e+00> : vector<2x4xf32>
    %342 = tpu.matmul %46, %309, %cst_230 {dimension_numbers = #tpu.dot_dimension_numbers<[1], [0], [0], [1], [0, 0, 1, 1], [], []>} : vector<2x32xf32>, vector<32x4xf32>, vector<2x4xf32> -> vector<2x4xf32>
    %343 = vector.broadcast %325 : vector<1x4xf32> to vector<2x4xf32>
    %344 = arith.addf %342, %343 : vector<2x4xf32>
    %cst_231 = arith.constant dense<0.000000e+00> : vector<2x4xf32>
    %345 = tpu.matmul %330, %317, %cst_231 {dimension_numbers = #tpu.dot_dimension_numbers<[1], [0], [0], [1], [0, 0, 1, 1], [], []>} : vector<2x4xf32>, vector<4x4xf32>, vector<2x4xf32> -> vector<2x4xf32>
    %346 = arith.addf %344, %345 : vector<2x4xf32>
    %347 = arith.negf %346 : vector<2x4xf32>
    %348 = math.exp %347 : vector<2x4xf32>
    %cst_232 = arith.constant 1.000000e+00 : f32
    %349 = vector.broadcast %cst_232 : f32 to vector<2x4xf32>
    %350 = arith.addf %349, %348 : vector<2x4xf32>
    %351 = arith.divf %349, %350 : vector<2x4xf32>
    %cst_233 = arith.constant dense<0.000000e+00> : vector<2x4xf32>
    %352 = tpu.matmul %46, %311, %cst_233 {dimension_numbers = #tpu.dot_dimension_numbers<[1], [0], [0], [1], [0, 0, 1, 1], [], []>} : vector<2x32xf32>, vector<32x4xf32>, vector<2x4xf32> -> vector<2x4xf32>
    %353 = vector.broadcast %327 : vector<1x4xf32> to vector<2x4xf32>
    %354 = arith.addf %352, %353 : vector<2x4xf32>
    %cst_234 = arith.constant dense<0.000000e+00> : vector<2x4xf32>
    %355 = tpu.matmul %330, %319, %cst_234 {dimension_numbers = #tpu.dot_dimension_numbers<[1], [0], [0], [1], [0, 0, 1, 1], [], []>} : vector<2x4xf32>, vector<4x4xf32>, vector<2x4xf32> -> vector<2x4xf32>
    %356 = arith.addf %354, %355 : vector<2x4xf32>
    %357 = math.tanh %356 : vector<2x4xf32>
    %cst_235 = arith.constant dense<0.000000e+00> : vector<2x4xf32>
    %358 = tpu.matmul %46, %313, %cst_235 {dimension_numbers = #tpu.dot_dimension_numbers<[1], [0], [0], [1], [0, 0, 1, 1], [], []>} : vector<2x32xf32>, vector<32x4xf32>, vector<2x4xf32> -> vector<2x4xf32>
    %359 = vector.broadcast %329 : vector<1x4xf32> to vector<2x4xf32>
    %360 = arith.addf %358, %359 : vector<2x4xf32>
    %cst_236 = arith.constant dense<0.000000e+00> : vector<2x4xf32>
    %361 = tpu.matmul %330, %321, %cst_236 {dimension_numbers = #tpu.dot_dimension_numbers<[1], [0], [0], [1], [0, 0, 1, 1], [], []>} : vector<2x4xf32>, vector<4x4xf32>, vector<2x4xf32> -> vector<2x4xf32>
    %362 = arith.addf %360, %361 : vector<2x4xf32>
    %363 = arith.negf %362 : vector<2x4xf32>
    %364 = math.exp %363 : vector<2x4xf32>
    %cst_237 = arith.constant 1.000000e+00 : f32
    %365 = vector.broadcast %cst_237 : f32 to vector<2x4xf32>
    %366 = arith.addf %365, %364 : vector<2x4xf32>
    %367 = arith.divf %365, %366 : vector<2x4xf32>
    %368 = arith.mulf %351, %331 : vector<2x4xf32>
    %369 = arith.mulf %341, %357 : vector<2x4xf32>
    %370 = arith.addf %368, %369 : vector<2x4xf32>
    %371 = math.tanh %370 : vector<2x4xf32>
    %372 = arith.mulf %367, %371 : vector<2x4xf32>
    %cst_238 = arith.constant dense<0.000000e+00> : vector<2x4xf32>
    %373 = tpu.matmul %83, %307, %cst_238 {dimension_numbers = #tpu.dot_dimension_numbers<[1], [0], [0], [1], [0, 0, 1, 1], [], []>} : vector<2x32xf32>, vector<32x4xf32>, vector<2x4xf32> -> vector<2x4xf32>
    %374 = vector.broadcast %323 : vector<1x4xf32> to vector<2x4xf32>
    %375 = arith.addf %373, %374 : vector<2x4xf32>
    %cst_239 = arith.constant dense<0.000000e+00> : vector<2x4xf32>
    %376 = tpu.matmul %372, %315, %cst_239 {dimension_numbers = #tpu.dot_dimension_numbers<[1], [0], [0], [1], [0, 0, 1, 1], [], []>} : vector<2x4xf32>, vector<4x4xf32>, vector<2x4xf32> -> vector<2x4xf32>
    %377 = arith.addf %375, %376 : vector<2x4xf32>
    %378 = arith.negf %377 : vector<2x4xf32>
    %379 = math.exp %378 : vector<2x4xf32>
    %cst_240 = arith.constant 1.000000e+00 : f32
    %380 = vector.broadcast %cst_240 : f32 to vector<2x4xf32>
    %381 = arith.addf %380, %379 : vector<2x4xf32>
    %382 = arith.divf %380, %381 : vector<2x4xf32>
    %cst_241 = arith.constant dense<0.000000e+00> : vector<2x4xf32>
    %383 = tpu.matmul %83, %309, %cst_241 {dimension_numbers = #tpu.dot_dimension_numbers<[1], [0], [0], [1], [0, 0, 1, 1], [], []>} : vector<2x32xf32>, vector<32x4xf32>, vector<2x4xf32> -> vector<2x4xf32>
    %384 = vector.broadcast %325 : vector<1x4xf32> to vector<2x4xf32>
    %385 = arith.addf %383, %384 : vector<2x4xf32>
    %cst_242 = arith.constant dense<0.000000e+00> : vector<2x4xf32>
    %386 = tpu.matmul %372, %317, %cst_242 {dimension_numbers = #tpu.dot_dimension_numbers<[1], [0], [0], [1], [0, 0, 1, 1], [], []>} : vector<2x4xf32>, vector<4x4xf32>, vector<2x4xf32> -> vector<2x4xf32>
    %387 = arith.addf %385, %386 : vector<2x4xf32>
    %388 = arith.negf %387 : vector<2x4xf32>
    %389 = math.exp %388 : vector<2x4xf32>
    %cst_243 = arith.constant 1.000000e+00 : f32
    %390 = vector.broadcast %cst_243 : f32 to vector<2x4xf32>
    %391 = arith.addf %390, %389 : vector<2x4xf32>
    %392 = arith.divf %390, %391 : vector<2x4xf32>
    %cst_244 = arith.constant dense<0.000000e+00> : vector<2x4xf32>
    %393 = tpu.matmul %83, %311, %cst_244 {dimension_numbers = #tpu.dot_dimension_numbers<[1], [0], [0], [1], [0, 0, 1, 1], [], []>} : vector<2x32xf32>, vector<32x4xf32>, vector<2x4xf32> -> vector<2x4xf32>
    %394 = vector.broadcast %327 : vector<1x4xf32> to vector<2x4xf32>
    %395 = arith.addf %393, %394 : vector<2x4xf32>
    %cst_245 = arith.constant dense<0.000000e+00> : vector<2x4xf32>
    %396 = tpu.matmul %372, %319, %cst_245 {dimension_numbers = #tpu.dot_dimension_numbers<[1], [0], [0], [1], [0, 0, 1, 1], [], []>} : vector<2x4xf32>, vector<4x4xf32>, vector<2x4xf32> -> vector<2x4xf32>
    %397 = arith.addf %395, %396 : vector<2x4xf32>
    %398 = math.tanh %397 : vector<2x4xf32>
    %cst_246 = arith.constant dense<0.000000e+00> : vector<2x4xf32>
    %399 = tpu.matmul %83, %313, %cst_246 {dimension_numbers = #tpu.dot_dimension_numbers<[1], [0], [0], [1], [0, 0, 1, 1], [], []>} : vector<2x32xf32>, vector<32x4xf32>, vector<2x4xf32> -> vector<2x4xf32>
    %400 = vector.broadcast %329 : vector<1x4xf32> to vector<2x4xf32>
    %401 = arith.addf %399, %400 : vector<2x4xf32>
    %cst_247 = arith.constant dense<0.000000e+00> : vector<2x4xf32>
    %402 = tpu.matmul %372, %321, %cst_247 {dimension_numbers = #tpu.dot_dimension_numbers<[1], [0], [0], [1], [0, 0, 1, 1], [], []>} : vector<2x4xf32>, vector<4x4xf32>, vector<2x4xf32> -> vector<2x4xf32>
    %403 = arith.addf %401, %402 : vector<2x4xf32>
    %404 = arith.negf %403 : vector<2x4xf32>
    %405 = math.exp %404 : vector<2x4xf32>
    %cst_248 = arith.constant 1.000000e+00 : f32
    %406 = vector.broadcast %cst_248 : f32 to vector<2x4xf32>
    %407 = arith.addf %406, %405 : vector<2x4xf32>
    %408 = arith.divf %406, %407 : vector<2x4xf32>
    %409 = arith.mulf %392, %370 : vector<2x4xf32>
    %410 = arith.mulf %382, %398 : vector<2x4xf32>
    %411 = arith.addf %409, %410 : vector<2x4xf32>
    %412 = math.tanh %411 : vector<2x4xf32>
    %413 = arith.mulf %408, %412 : vector<2x4xf32>
    %cst_249 = arith.constant dense<0.000000e+00> : vector<2x4xf32>
    %414 = tpu.matmul %120, %307, %cst_249 {dimension_numbers = #tpu.dot_dimension_numbers<[1], [0], [0], [1], [0, 0, 1, 1], [], []>} : vector<2x32xf32>, vector<32x4xf32>, vector<2x4xf32> -> vector<2x4xf32>
    %415 = vector.broadcast %323 : vector<1x4xf32> to vector<2x4xf32>
    %416 = arith.addf %414, %415 : vector<2x4xf32>
    %cst_250 = arith.constant dense<0.000000e+00> : vector<2x4xf32>
    %417 = tpu.matmul %413, %315, %cst_250 {dimension_numbers = #tpu.dot_dimension_numbers<[1], [0], [0], [1], [0, 0, 1, 1], [], []>} : vector<2x4xf32>, vector<4x4xf32>, vector<2x4xf32> -> vector<2x4xf32>
    %418 = arith.addf %416, %417 : vector<2x4xf32>
    %419 = arith.negf %418 : vector<2x4xf32>
    %420 = math.exp %419 : vector<2x4xf32>
    %cst_251 = arith.constant 1.000000e+00 : f32
    %421 = vector.broadcast %cst_251 : f32 to vector<2x4xf32>
    %422 = arith.addf %421, %420 : vector<2x4xf32>
    %423 = arith.divf %421, %422 : vector<2x4xf32>
    %cst_252 = arith.constant dense<0.000000e+00> : vector<2x4xf32>
    %424 = tpu.matmul %120, %309, %cst_252 {dimension_numbers = #tpu.dot_dimension_numbers<[1], [0], [0], [1], [0, 0, 1, 1], [], []>} : vector<2x32xf32>, vector<32x4xf32>, vector<2x4xf32> -> vector<2x4xf32>
    %425 = vector.broadcast %325 : vector<1x4xf32> to vector<2x4xf32>
    %426 = arith.addf %424, %425 : vector<2x4xf32>
    %cst_253 = arith.constant dense<0.000000e+00> : vector<2x4xf32>
    %427 = tpu.matmul %413, %317, %cst_253 {dimension_numbers = #tpu.dot_dimension_numbers<[1], [0], [0], [1], [0, 0, 1, 1], [], []>} : vector<2x4xf32>, vector<4x4xf32>, vector<2x4xf32> -> vector<2x4xf32>
    %428 = arith.addf %426, %427 : vector<2x4xf32>
    %429 = arith.negf %428 : vector<2x4xf32>
    %430 = math.exp %429 : vector<2x4xf32>
    %cst_254 = arith.constant 1.000000e+00 : f32
    %431 = vector.broadcast %cst_254 : f32 to vector<2x4xf32>
    %432 = arith.addf %431, %430 : vector<2x4xf32>
    %433 = arith.divf %431, %432 : vector<2x4xf32>
    %cst_255 = arith.constant dense<0.000000e+00> : vector<2x4xf32>
    %434 = tpu.matmul %120, %311, %cst_255 {dimension_numbers = #tpu.dot_dimension_numbers<[1], [0], [0], [1], [0, 0, 1, 1], [], []>} : vector<2x32xf32>, vector<32x4xf32>, vector<2x4xf32> -> vector<2x4xf32>
    %435 = vector.broadcast %327 : vector<1x4xf32> to vector<2x4xf32>
    %436 = arith.addf %434, %435 : vector<2x4xf32>
    %cst_256 = arith.constant dense<0.000000e+00> : vector<2x4xf32>
    %437 = tpu.matmul %413, %319, %cst_256 {dimension_numbers = #tpu.dot_dimension_numbers<[1], [0], [0], [1], [0, 0, 1, 1], [], []>} : vector<2x4xf32>, vector<4x4xf32>, vector<2x4xf32> -> vector<2x4xf32>
    %438 = arith.addf %436, %437 : vector<2x4xf32>
    %439 = math.tanh %438 : vector<2x4xf32>
    %cst_257 = arith.constant dense<0.000000e+00> : vector<2x4xf32>
    %440 = tpu.matmul %120, %313, %cst_257 {dimension_numbers = #tpu.dot_dimension_numbers<[1], [0], [0], [1], [0, 0, 1, 1], [], []>} : vector<2x32xf32>, vector<32x4xf32>, vector<2x4xf32> -> vector<2x4xf32>
    %441 = vector.broadcast %329 : vector<1x4xf32> to vector<2x4xf32>
    %442 = arith.addf %440, %441 : vector<2x4xf32>
    %cst_258 = arith.constant dense<0.000000e+00> : vector<2x4xf32>
    %443 = tpu.matmul %413, %321, %cst_258 {dimension_numbers = #tpu.dot_dimension_numbers<[1], [0], [0], [1], [0, 0, 1, 1], [], []>} : vector<2x4xf32>, vector<4x4xf32>, vector<2x4xf32> -> vector<2x4xf32>
    %444 = arith.addf %442, %443 : vector<2x4xf32>
    %445 = arith.negf %444 : vector<2x4xf32>
    %446 = math.exp %445 : vector<2x4xf32>
    %cst_259 = arith.constant 1.000000e+00 : f32
    %447 = vector.broadcast %cst_259 : f32 to vector<2x4xf32>
    %448 = arith.addf %447, %446 : vector<2x4xf32>
    %449 = arith.divf %447, %448 : vector<2x4xf32>
    %450 = arith.mulf %433, %411 : vector<2x4xf32>
    %451 = arith.mulf %423, %439 : vector<2x4xf32>
    %452 = arith.addf %450, %451 : vector<2x4xf32>
    %453 = math.tanh %452 : vector<2x4xf32>
    %454 = arith.mulf %449, %453 : vector<2x4xf32>
    %cst_260 = arith.constant dense<0.000000e+00> : vector<2x4xf32>
    %455 = tpu.matmul %157, %307, %cst_260 {dimension_numbers = #tpu.dot_dimension_numbers<[1], [0], [0], [1], [0, 0, 1, 1], [], []>} : vector<2x32xf32>, vector<32x4xf32>, vector<2x4xf32> -> vector<2x4xf32>
    %456 = vector.broadcast %323 : vector<1x4xf32> to vector<2x4xf32>
    %457 = arith.addf %455, %456 : vector<2x4xf32>
    %cst_261 = arith.constant dense<0.000000e+00> : vector<2x4xf32>
    %458 = tpu.matmul %454, %315, %cst_261 {dimension_numbers = #tpu.dot_dimension_numbers<[1], [0], [0], [1], [0, 0, 1, 1], [], []>} : vector<2x4xf32>, vector<4x4xf32>, vector<2x4xf32> -> vector<2x4xf32>
    %459 = arith.addf %457, %458 : vector<2x4xf32>
    %460 = arith.negf %459 : vector<2x4xf32>
    %461 = math.exp %460 : vector<2x4xf32>
    %cst_262 = arith.constant 1.000000e+00 : f32
    %462 = vector.broadcast %cst_262 : f32 to vector<2x4xf32>
    %463 = arith.addf %462, %461 : vector<2x4xf32>
    %464 = arith.divf %462, %463 : vector<2x4xf32>
    %cst_263 = arith.constant dense<0.000000e+00> : vector<2x4xf32>
    %465 = tpu.matmul %157, %309, %cst_263 {dimension_numbers = #tpu.dot_dimension_numbers<[1], [0], [0], [1], [0, 0, 1, 1], [], []>} : vector<2x32xf32>, vector<32x4xf32>, vector<2x4xf32> -> vector<2x4xf32>
    %466 = vector.broadcast %325 : vector<1x4xf32> to vector<2x4xf32>
    %467 = arith.addf %465, %466 : vector<2x4xf32>
    %cst_264 = arith.constant dense<0.000000e+00> : vector<2x4xf32>
    %468 = tpu.matmul %454, %317, %cst_264 {dimension_numbers = #tpu.dot_dimension_numbers<[1], [0], [0], [1], [0, 0, 1, 1], [], []>} : vector<2x4xf32>, vector<4x4xf32>, vector<2x4xf32> -> vector<2x4xf32>
    %469 = arith.addf %467, %468 : vector<2x4xf32>
    %470 = arith.negf %469 : vector<2x4xf32>
    %471 = math.exp %470 : vector<2x4xf32>
    %cst_265 = arith.constant 1.000000e+00 : f32
    %472 = vector.broadcast %cst_265 : f32 to vector<2x4xf32>
    %473 = arith.addf %472, %471 : vector<2x4xf32>
    %474 = arith.divf %472, %473 : vector<2x4xf32>
    %cst_266 = arith.constant dense<0.000000e+00> : vector<2x4xf32>
    %475 = tpu.matmul %157, %311, %cst_266 {dimension_numbers = #tpu.dot_dimension_numbers<[1], [0], [0], [1], [0, 0, 1, 1], [], []>} : vector<2x32xf32>, vector<32x4xf32>, vector<2x4xf32> -> vector<2x4xf32>
    %476 = vector.broadcast %327 : vector<1x4xf32> to vector<2x4xf32>
    %477 = arith.addf %475, %476 : vector<2x4xf32>
    %cst_267 = arith.constant dense<0.000000e+00> : vector<2x4xf32>
    %478 = tpu.matmul %454, %319, %cst_267 {dimension_numbers = #tpu.dot_dimension_numbers<[1], [0], [0], [1], [0, 0, 1, 1], [], []>} : vector<2x4xf32>, vector<4x4xf32>, vector<2x4xf32> -> vector<2x4xf32>
    %479 = arith.addf %477, %478 : vector<2x4xf32>
    %480 = math.tanh %479 : vector<2x4xf32>
    %cst_268 = arith.constant dense<0.000000e+00> : vector<2x4xf32>
    %481 = tpu.matmul %157, %313, %cst_268 {dimension_numbers = #tpu.dot_dimension_numbers<[1], [0], [0], [1], [0, 0, 1, 1], [], []>} : vector<2x32xf32>, vector<32x4xf32>, vector<2x4xf32> -> vector<2x4xf32>
    %482 = vector.broadcast %329 : vector<1x4xf32> to vector<2x4xf32>
    %483 = arith.addf %481, %482 : vector<2x4xf32>
    %cst_269 = arith.constant dense<0.000000e+00> : vector<2x4xf32>
    %484 = tpu.matmul %454, %321, %cst_269 {dimension_numbers = #tpu.dot_dimension_numbers<[1], [0], [0], [1], [0, 0, 1, 1], [], []>} : vector<2x4xf32>, vector<4x4xf32>, vector<2x4xf32> -> vector<2x4xf32>
    %485 = arith.addf %483, %484 : vector<2x4xf32>
    %486 = arith.negf %485 : vector<2x4xf32>
    %487 = math.exp %486 : vector<2x4xf32>
    %cst_270 = arith.constant 1.000000e+00 : f32
    %488 = vector.broadcast %cst_270 : f32 to vector<2x4xf32>
    %489 = arith.addf %488, %487 : vector<2x4xf32>
    %490 = arith.divf %488, %489 : vector<2x4xf32>
    %491 = arith.mulf %474, %452 : vector<2x4xf32>
    %492 = arith.mulf %464, %480 : vector<2x4xf32>
    %493 = arith.addf %491, %492 : vector<2x4xf32>
    %494 = math.tanh %493 : vector<2x4xf32>
    %495 = arith.mulf %490, %494 : vector<2x4xf32>
    %cst_271 = arith.constant dense<0.000000e+00> : vector<2x4xf32>
    %496 = tpu.matmul %194, %307, %cst_271 {dimension_numbers = #tpu.dot_dimension_numbers<[1], [0], [0], [1], [0, 0, 1, 1], [], []>} : vector<2x32xf32>, vector<32x4xf32>, vector<2x4xf32> -> vector<2x4xf32>
    %497 = vector.broadcast %323 : vector<1x4xf32> to vector<2x4xf32>
    %498 = arith.addf %496, %497 : vector<2x4xf32>
    %cst_272 = arith.constant dense<0.000000e+00> : vector<2x4xf32>
    %499 = tpu.matmul %495, %315, %cst_272 {dimension_numbers = #tpu.dot_dimension_numbers<[1], [0], [0], [1], [0, 0, 1, 1], [], []>} : vector<2x4xf32>, vector<4x4xf32>, vector<2x4xf32> -> vector<2x4xf32>
    %500 = arith.addf %498, %499 : vector<2x4xf32>
    %501 = arith.negf %500 : vector<2x4xf32>
    %502 = math.exp %501 : vector<2x4xf32>
    %cst_273 = arith.constant 1.000000e+00 : f32
    %503 = vector.broadcast %cst_273 : f32 to vector<2x4xf32>
    %504 = arith.addf %503, %502 : vector<2x4xf32>
    %505 = arith.divf %503, %504 : vector<2x4xf32>
    %cst_274 = arith.constant dense<0.000000e+00> : vector<2x4xf32>
    %506 = tpu.matmul %194, %309, %cst_274 {dimension_numbers = #tpu.dot_dimension_numbers<[1], [0], [0], [1], [0, 0, 1, 1], [], []>} : vector<2x32xf32>, vector<32x4xf32>, vector<2x4xf32> -> vector<2x4xf32>
    %507 = vector.broadcast %325 : vector<1x4xf32> to vector<2x4xf32>
    %508 = arith.addf %506, %507 : vector<2x4xf32>
    %cst_275 = arith.constant dense<0.000000e+00> : vector<2x4xf32>
    %509 = tpu.matmul %495, %317, %cst_275 {dimension_numbers = #tpu.dot_dimension_numbers<[1], [0], [0], [1], [0, 0, 1, 1], [], []>} : vector<2x4xf32>, vector<4x4xf32>, vector<2x4xf32> -> vector<2x4xf32>
    %510 = arith.addf %508, %509 : vector<2x4xf32>
    %511 = arith.negf %510 : vector<2x4xf32>
    %512 = math.exp %511 : vector<2x4xf32>
    %cst_276 = arith.constant 1.000000e+00 : f32
    %513 = vector.broadcast %cst_276 : f32 to vector<2x4xf32>
    %514 = arith.addf %513, %512 : vector<2x4xf32>
    %515 = arith.divf %513, %514 : vector<2x4xf32>
    %cst_277 = arith.constant dense<0.000000e+00> : vector<2x4xf32>
    %516 = tpu.matmul %194, %311, %cst_277 {dimension_numbers = #tpu.dot_dimension_numbers<[1], [0], [0], [1], [0, 0, 1, 1], [], []>} : vector<2x32xf32>, vector<32x4xf32>, vector<2x4xf32> -> vector<2x4xf32>
    %517 = vector.broadcast %327 : vector<1x4xf32> to vector<2x4xf32>
    %518 = arith.addf %516, %517 : vector<2x4xf32>
    %cst_278 = arith.constant dense<0.000000e+00> : vector<2x4xf32>
    %519 = tpu.matmul %495, %319, %cst_278 {dimension_numbers = #tpu.dot_dimension_numbers<[1], [0], [0], [1], [0, 0, 1, 1], [], []>} : vector<2x4xf32>, vector<4x4xf32>, vector<2x4xf32> -> vector<2x4xf32>
    %520 = arith.addf %518, %519 : vector<2x4xf32>
    %521 = math.tanh %520 : vector<2x4xf32>
    %cst_279 = arith.constant dense<0.000000e+00> : vector<2x4xf32>
    %522 = tpu.matmul %194, %313, %cst_279 {dimension_numbers = #tpu.dot_dimension_numbers<[1], [0], [0], [1], [0, 0, 1, 1], [], []>} : vector<2x32xf32>, vector<32x4xf32>, vector<2x4xf32> -> vector<2x4xf32>
    %523 = vector.broadcast %329 : vector<1x4xf32> to vector<2x4xf32>
    %524 = arith.addf %522, %523 : vector<2x4xf32>
    %cst_280 = arith.constant dense<0.000000e+00> : vector<2x4xf32>
    %525 = tpu.matmul %495, %321, %cst_280 {dimension_numbers = #tpu.dot_dimension_numbers<[1], [0], [0], [1], [0, 0, 1, 1], [], []>} : vector<2x4xf32>, vector<4x4xf32>, vector<2x4xf32> -> vector<2x4xf32>
    %526 = arith.addf %524, %525 : vector<2x4xf32>
    %527 = arith.negf %526 : vector<2x4xf32>
    %528 = math.exp %527 : vector<2x4xf32>
    %cst_281 = arith.constant 1.000000e+00 : f32
    %529 = vector.broadcast %cst_281 : f32 to vector<2x4xf32>
    %530 = arith.addf %529, %528 : vector<2x4xf32>
    %531 = arith.divf %529, %530 : vector<2x4xf32>
    %532 = arith.mulf %515, %493 : vector<2x4xf32>
    %533 = arith.mulf %505, %521 : vector<2x4xf32>
    %534 = arith.addf %532, %533 : vector<2x4xf32>
    %535 = math.tanh %534 : vector<2x4xf32>
    %536 = arith.mulf %531, %535 : vector<2x4xf32>
    %cst_282 = arith.constant dense<0.000000e+00> : vector<2x4xf32>
    %537 = tpu.matmul %231, %307, %cst_282 {dimension_numbers = #tpu.dot_dimension_numbers<[1], [0], [0], [1], [0, 0, 1, 1], [], []>} : vector<2x32xf32>, vector<32x4xf32>, vector<2x4xf32> -> vector<2x4xf32>
    %538 = vector.broadcast %323 : vector<1x4xf32> to vector<2x4xf32>
    %539 = arith.addf %537, %538 : vector<2x4xf32>
    %cst_283 = arith.constant dense<0.000000e+00> : vector<2x4xf32>
    %540 = tpu.matmul %536, %315, %cst_283 {dimension_numbers = #tpu.dot_dimension_numbers<[1], [0], [0], [1], [0, 0, 1, 1], [], []>} : vector<2x4xf32>, vector<4x4xf32>, vector<2x4xf32> -> vector<2x4xf32>
    %541 = arith.addf %539, %540 : vector<2x4xf32>
    %542 = arith.negf %541 : vector<2x4xf32>
    %543 = math.exp %542 : vector<2x4xf32>
    %cst_284 = arith.constant 1.000000e+00 : f32
    %544 = vector.broadcast %cst_284 : f32 to vector<2x4xf32>
    %545 = arith.addf %544, %543 : vector<2x4xf32>
    %546 = arith.divf %544, %545 : vector<2x4xf32>
    %cst_285 = arith.constant dense<0.000000e+00> : vector<2x4xf32>
    %547 = tpu.matmul %231, %309, %cst_285 {dimension_numbers = #tpu.dot_dimension_numbers<[1], [0], [0], [1], [0, 0, 1, 1], [], []>} : vector<2x32xf32>, vector<32x4xf32>, vector<2x4xf32> -> vector<2x4xf32>
    %548 = vector.broadcast %325 : vector<1x4xf32> to vector<2x4xf32>
    %549 = arith.addf %547, %548 : vector<2x4xf32>
    %cst_286 = arith.constant dense<0.000000e+00> : vector<2x4xf32>
    %550 = tpu.matmul %536, %317, %cst_286 {dimension_numbers = #tpu.dot_dimension_numbers<[1], [0], [0], [1], [0, 0, 1, 1], [], []>} : vector<2x4xf32>, vector<4x4xf32>, vector<2x4xf32> -> vector<2x4xf32>
    %551 = arith.addf %549, %550 : vector<2x4xf32>
    %552 = arith.negf %551 : vector<2x4xf32>
    %553 = math.exp %552 : vector<2x4xf32>
    %cst_287 = arith.constant 1.000000e+00 : f32
    %554 = vector.broadcast %cst_287 : f32 to vector<2x4xf32>
    %555 = arith.addf %554, %553 : vector<2x4xf32>
    %556 = arith.divf %554, %555 : vector<2x4xf32>
    %cst_288 = arith.constant dense<0.000000e+00> : vector<2x4xf32>
    %557 = tpu.matmul %231, %311, %cst_288 {dimension_numbers = #tpu.dot_dimension_numbers<[1], [0], [0], [1], [0, 0, 1, 1], [], []>} : vector<2x32xf32>, vector<32x4xf32>, vector<2x4xf32> -> vector<2x4xf32>
    %558 = vector.broadcast %327 : vector<1x4xf32> to vector<2x4xf32>
    %559 = arith.addf %557, %558 : vector<2x4xf32>
    %cst_289 = arith.constant dense<0.000000e+00> : vector<2x4xf32>
    %560 = tpu.matmul %536, %319, %cst_289 {dimension_numbers = #tpu.dot_dimension_numbers<[1], [0], [0], [1], [0, 0, 1, 1], [], []>} : vector<2x4xf32>, vector<4x4xf32>, vector<2x4xf32> -> vector<2x4xf32>
    %561 = arith.addf %559, %560 : vector<2x4xf32>
    %562 = math.tanh %561 : vector<2x4xf32>
    %cst_290 = arith.constant dense<0.000000e+00> : vector<2x4xf32>
    %563 = tpu.matmul %231, %313, %cst_290 {dimension_numbers = #tpu.dot_dimension_numbers<[1], [0], [0], [1], [0, 0, 1, 1], [], []>} : vector<2x32xf32>, vector<32x4xf32>, vector<2x4xf32> -> vector<2x4xf32>
    %564 = vector.broadcast %329 : vector<1x4xf32> to vector<2x4xf32>
    %565 = arith.addf %563, %564 : vector<2x4xf32>
    %cst_291 = arith.constant dense<0.000000e+00> : vector<2x4xf32>
    %566 = tpu.matmul %536, %321, %cst_291 {dimension_numbers = #tpu.dot_dimension_numbers<[1], [0], [0], [1], [0, 0, 1, 1], [], []>} : vector<2x4xf32>, vector<4x4xf32>, vector<2x4xf32> -> vector<2x4xf32>
    %567 = arith.addf %565, %566 : vector<2x4xf32>
    %568 = arith.negf %567 : vector<2x4xf32>
    %569 = math.exp %568 : vector<2x4xf32>
    %cst_292 = arith.constant 1.000000e+00 : f32
    %570 = vector.broadcast %cst_292 : f32 to vector<2x4xf32>
    %571 = arith.addf %570, %569 : vector<2x4xf32>
    %572 = arith.divf %570, %571 : vector<2x4xf32>
    %573 = arith.mulf %556, %534 : vector<2x4xf32>
    %574 = arith.mulf %546, %562 : vector<2x4xf32>
    %575 = arith.addf %573, %574 : vector<2x4xf32>
    %576 = math.tanh %575 : vector<2x4xf32>
    %577 = arith.mulf %572, %576 : vector<2x4xf32>
    %cst_293 = arith.constant dense<0.000000e+00> : vector<2x4xf32>
    %578 = tpu.matmul %268, %307, %cst_293 {dimension_numbers = #tpu.dot_dimension_numbers<[1], [0], [0], [1], [0, 0, 1, 1], [], []>} : vector<2x32xf32>, vector<32x4xf32>, vector<2x4xf32> -> vector<2x4xf32>
    %579 = vector.broadcast %323 : vector<1x4xf32> to vector<2x4xf32>
    %580 = arith.addf %578, %579 : vector<2x4xf32>
    %cst_294 = arith.constant dense<0.000000e+00> : vector<2x4xf32>
    %581 = tpu.matmul %577, %315, %cst_294 {dimension_numbers = #tpu.dot_dimension_numbers<[1], [0], [0], [1], [0, 0, 1, 1], [], []>} : vector<2x4xf32>, vector<4x4xf32>, vector<2x4xf32> -> vector<2x4xf32>
    %582 = arith.addf %580, %581 : vector<2x4xf32>
    %583 = arith.negf %582 : vector<2x4xf32>
    %584 = math.exp %583 : vector<2x4xf32>
    %cst_295 = arith.constant 1.000000e+00 : f32
    %585 = vector.broadcast %cst_295 : f32 to vector<2x4xf32>
    %586 = arith.addf %585, %584 : vector<2x4xf32>
    %587 = arith.divf %585, %586 : vector<2x4xf32>
    %cst_296 = arith.constant dense<0.000000e+00> : vector<2x4xf32>
    %588 = tpu.matmul %268, %309, %cst_296 {dimension_numbers = #tpu.dot_dimension_numbers<[1], [0], [0], [1], [0, 0, 1, 1], [], []>} : vector<2x32xf32>, vector<32x4xf32>, vector<2x4xf32> -> vector<2x4xf32>
    %589 = vector.broadcast %325 : vector<1x4xf32> to vector<2x4xf32>
    %590 = arith.addf %588, %589 : vector<2x4xf32>
    %cst_297 = arith.constant dense<0.000000e+00> : vector<2x4xf32>
    %591 = tpu.matmul %577, %317, %cst_297 {dimension_numbers = #tpu.dot_dimension_numbers<[1], [0], [0], [1], [0, 0, 1, 1], [], []>} : vector<2x4xf32>, vector<4x4xf32>, vector<2x4xf32> -> vector<2x4xf32>
    %592 = arith.addf %590, %591 : vector<2x4xf32>
    %593 = arith.negf %592 : vector<2x4xf32>
    %594 = math.exp %593 : vector<2x4xf32>
    %cst_298 = arith.constant 1.000000e+00 : f32
    %595 = vector.broadcast %cst_298 : f32 to vector<2x4xf32>
    %596 = arith.addf %595, %594 : vector<2x4xf32>
    %597 = arith.divf %595, %596 : vector<2x4xf32>
    %cst_299 = arith.constant dense<0.000000e+00> : vector<2x4xf32>
    %598 = tpu.matmul %268, %311, %cst_299 {dimension_numbers = #tpu.dot_dimension_numbers<[1], [0], [0], [1], [0, 0, 1, 1], [], []>} : vector<2x32xf32>, vector<32x4xf32>, vector<2x4xf32> -> vector<2x4xf32>
    %599 = vector.broadcast %327 : vector<1x4xf32> to vector<2x4xf32>
    %600 = arith.addf %598, %599 : vector<2x4xf32>
    %cst_300 = arith.constant dense<0.000000e+00> : vector<2x4xf32>
    %601 = tpu.matmul %577, %319, %cst_300 {dimension_numbers = #tpu.dot_dimension_numbers<[1], [0], [0], [1], [0, 0, 1, 1], [], []>} : vector<2x4xf32>, vector<4x4xf32>, vector<2x4xf32> -> vector<2x4xf32>
    %602 = arith.addf %600, %601 : vector<2x4xf32>
    %603 = math.tanh %602 : vector<2x4xf32>
    %cst_301 = arith.constant dense<0.000000e+00> : vector<2x4xf32>
    %604 = tpu.matmul %268, %313, %cst_301 {dimension_numbers = #tpu.dot_dimension_numbers<[1], [0], [0], [1], [0, 0, 1, 1], [], []>} : vector<2x32xf32>, vector<32x4xf32>, vector<2x4xf32> -> vector<2x4xf32>
    %605 = vector.broadcast %329 : vector<1x4xf32> to vector<2x4xf32>
    %606 = arith.addf %604, %605 : vector<2x4xf32>
    %cst_302 = arith.constant dense<0.000000e+00> : vector<2x4xf32>
    %607 = tpu.matmul %577, %321, %cst_302 {dimension_numbers = #tpu.dot_dimension_numbers<[1], [0], [0], [1], [0, 0, 1, 1], [], []>} : vector<2x4xf32>, vector<4x4xf32>, vector<2x4xf32> -> vector<2x4xf32>
    %608 = arith.addf %606, %607 : vector<2x4xf32>
    %609 = arith.negf %608 : vector<2x4xf32>
    %610 = math.exp %609 : vector<2x4xf32>
    %cst_303 = arith.constant 1.000000e+00 : f32
    %611 = vector.broadcast %cst_303 : f32 to vector<2x4xf32>
    %612 = arith.addf %611, %610 : vector<2x4xf32>
    %613 = arith.divf %611, %612 : vector<2x4xf32>
    %614 = arith.mulf %597, %575 : vector<2x4xf32>
    %615 = arith.mulf %587, %603 : vector<2x4xf32>
    %616 = arith.addf %614, %615 : vector<2x4xf32>
    %617 = math.tanh %616 : vector<2x4xf32>
    %618 = arith.mulf %613, %617 : vector<2x4xf32>
    %cst_304 = arith.constant dense<0.000000e+00> : vector<2x4xf32>
    %619 = tpu.matmul %305, %307, %cst_304 {dimension_numbers = #tpu.dot_dimension_numbers<[1], [0], [0], [1], [0, 0, 1, 1], [], []>} : vector<2x32xf32>, vector<32x4xf32>, vector<2x4xf32> -> vector<2x4xf32>
    %620 = vector.broadcast %323 : vector<1x4xf32> to vector<2x4xf32>
    %621 = arith.addf %619, %620 : vector<2x4xf32>
    %cst_305 = arith.constant dense<0.000000e+00> : vector<2x4xf32>
    %622 = tpu.matmul %618, %315, %cst_305 {dimension_numbers = #tpu.dot_dimension_numbers<[1], [0], [0], [1], [0, 0, 1, 1], [], []>} : vector<2x4xf32>, vector<4x4xf32>, vector<2x4xf32> -> vector<2x4xf32>
    %623 = arith.addf %621, %622 : vector<2x4xf32>
    %624 = arith.negf %623 : vector<2x4xf32>
    %625 = math.exp %624 : vector<2x4xf32>
    %cst_306 = arith.constant 1.000000e+00 : f32
    %626 = vector.broadcast %cst_306 : f32 to vector<2x4xf32>
    %627 = arith.addf %626, %625 : vector<2x4xf32>
    %628 = arith.divf %626, %627 : vector<2x4xf32>
    %cst_307 = arith.constant dense<0.000000e+00> : vector<2x4xf32>
    %629 = tpu.matmul %305, %309, %cst_307 {dimension_numbers = #tpu.dot_dimension_numbers<[1], [0], [0], [1], [0, 0, 1, 1], [], []>} : vector<2x32xf32>, vector<32x4xf32>, vector<2x4xf32> -> vector<2x4xf32>
    %630 = vector.broadcast %325 : vector<1x4xf32> to vector<2x4xf32>
    %631 = arith.addf %629, %630 : vector<2x4xf32>
    %cst_308 = arith.constant dense<0.000000e+00> : vector<2x4xf32>
    %632 = tpu.matmul %618, %317, %cst_308 {dimension_numbers = #tpu.dot_dimension_numbers<[1], [0], [0], [1], [0, 0, 1, 1], [], []>} : vector<2x4xf32>, vector<4x4xf32>, vector<2x4xf32> -> vector<2x4xf32>
    %633 = arith.addf %631, %632 : vector<2x4xf32>
    %634 = arith.negf %633 : vector<2x4xf32>
    %635 = math.exp %634 : vector<2x4xf32>
    %cst_309 = arith.constant 1.000000e+00 : f32
    %636 = vector.broadcast %cst_309 : f32 to vector<2x4xf32>
    %637 = arith.addf %636, %635 : vector<2x4xf32>
    %638 = arith.divf %636, %637 : vector<2x4xf32>
    %cst_310 = arith.constant dense<0.000000e+00> : vector<2x4xf32>
    %639 = tpu.matmul %305, %311, %cst_310 {dimension_numbers = #tpu.dot_dimension_numbers<[1], [0], [0], [1], [0, 0, 1, 1], [], []>} : vector<2x32xf32>, vector<32x4xf32>, vector<2x4xf32> -> vector<2x4xf32>
    %640 = vector.broadcast %327 : vector<1x4xf32> to vector<2x4xf32>
    %641 = arith.addf %639, %640 : vector<2x4xf32>
    %cst_311 = arith.constant dense<0.000000e+00> : vector<2x4xf32>
    %642 = tpu.matmul %618, %319, %cst_311 {dimension_numbers = #tpu.dot_dimension_numbers<[1], [0], [0], [1], [0, 0, 1, 1], [], []>} : vector<2x4xf32>, vector<4x4xf32>, vector<2x4xf32> -> vector<2x4xf32>
    %643 = arith.addf %641, %642 : vector<2x4xf32>
    %644 = math.tanh %643 : vector<2x4xf32>
    %cst_312 = arith.constant dense<0.000000e+00> : vector<2x4xf32>
    %645 = tpu.matmul %305, %313, %cst_312 {dimension_numbers = #tpu.dot_dimension_numbers<[1], [0], [0], [1], [0, 0, 1, 1], [], []>} : vector<2x32xf32>, vector<32x4xf32>, vector<2x4xf32> -> vector<2x4xf32>
    %646 = vector.broadcast %329 : vector<1x4xf32> to vector<2x4xf32>
    %647 = arith.addf %645, %646 : vector<2x4xf32>
    %cst_313 = arith.constant dense<0.000000e+00> : vector<2x4xf32>
    %648 = tpu.matmul %618, %321, %cst_313 {dimension_numbers = #tpu.dot_dimension_numbers<[1], [0], [0], [1], [0, 0, 1, 1], [], []>} : vector<2x4xf32>, vector<4x4xf32>, vector<2x4xf32> -> vector<2x4xf32>
    %649 = arith.addf %647, %648 : vector<2x4xf32>
    %650 = arith.negf %649 : vector<2x4xf32>
    %651 = math.exp %650 : vector<2x4xf32>
    %cst_314 = arith.constant 1.000000e+00 : f32
    %652 = vector.broadcast %cst_314 : f32 to vector<2x4xf32>
    %653 = arith.addf %652, %651 : vector<2x4xf32>
    %654 = arith.divf %652, %653 : vector<2x4xf32>
    %655 = arith.mulf %638, %616 : vector<2x4xf32>
    %656 = arith.mulf %628, %644 : vector<2x4xf32>
    %657 = arith.addf %655, %656 : vector<2x4xf32>
    %658 = math.tanh %657 : vector<2x4xf32>
    %659 = arith.mulf %654, %658 : vector<2x4xf32>
    %660 = vector.shape_cast %372 : vector<2x4xf32> to vector<1x2x4xf32>
    %661 = vector.shape_cast %413 : vector<2x4xf32> to vector<1x2x4xf32>
    %662 = vector.shape_cast %454 : vector<2x4xf32> to vector<1x2x4xf32>
    %663 = vector.shape_cast %495 : vector<2x4xf32> to vector<1x2x4xf32>
    %664 = vector.shape_cast %536 : vector<2x4xf32> to vector<1x2x4xf32>
    %665 = vector.shape_cast %577 : vector<2x4xf32> to vector<1x2x4xf32>
    %666 = vector.shape_cast %618 : vector<2x4xf32> to vector<1x2x4xf32>
    %667 = vector.shape_cast %659 : vector<2x4xf32> to vector<1x2x4xf32>
    %668 = tpu.concatenate %660, %661, %662, %663, %664, %665, %666, %667 in 0 : vector<1x2x4xf32>, vector<1x2x4xf32>, vector<1x2x4xf32>, vector<1x2x4xf32>, vector<1x2x4xf32>, vector<1x2x4xf32>, vector<1x2x4xf32>, vector<1x2x4xf32> -> vector<8x2x4xf32>
    %c0_315 = arith.constant 0 : index
    %c0_316 = arith.constant 0 : index
    %c0_317 = arith.constant 0 : index
    %669 = vector.load %arg5[%c0_315, %c0_316, %c0_317] : memref<8x2x4xf32, #tpu.memory_space<vmem>>, vector<8x2x4xf32>
    tpu.vector_store %arg5[%c0_315, %c0_316, %c0_317], %668 {strides = array<i32>} : memref<8x2x4xf32, #tpu.memory_space<vmem>>, vector<8x2x4xf32>,
    return
  }
}

</mosaic_0001>

<llo_original>
// kernel: lstm_ae_forward.1
$region0: #{lstm_ae_forward.1}
  #allocation0 [shape = 'u32[]', space=smem, size = 0x4, offset = 0x4, fixed_abs, tag = 'smem constant byte address 0x4 - core index']
  #allocation1 [shape = 'u32[144,128]{1,0:T(1,128)}', space=vmem, size = 0x12000, scoped, tag = 'internal scratch']
  %s0 = inlined_call_operand.vmem [shape: f32[8,4,2,32], index: 0, kind: input, shape index: {}]
  %s1 = inlined_call_operand.vmem [shape: f32[4,32,32], index: 1, kind: input, shape index: {}]
  %s2 = inlined_call_operand.vmem [shape: f32[4,32,4], index: 2, kind: input, shape index: {}]
  %s3 = inlined_call_operand.vmem [shape: f32[4,1,4], index: 3, kind: input, shape index: {}]
  %s4 = inlined_call_operand.vmem [shape: f32[4,4,4], index: 4, kind: input, shape index: {}]
  %s5 = inlined_call_operand.vmem [shape: f32[8,2,4], index: 5, kind: output, shape index: {}]
  %s6 = sld [smem:[#allocation0]]
  $region30: #{lstm_ae_forward.1} parent=0
    _
  %s8 = ssub.s32 1, %s6
  %s9 = scalar_select 0, %s8, %s6
  // Predicated region
  $region2: #{lstm_ae_forward.1} parent=0 // pred_check
    _
  $region3: #{lstm_ae_forward.1} parent=0 // pred_check_branch
    %11 = sbr.rel (0) target = $region5
  $region4: #{lstm_ae_forward.1} parent=0 // pred_region
    _
  $region5: #{lstm_ae_forward.1} parent=0 // pred_fallthru
    _
  // Predicated region
  $region6: #{lstm_ae_forward.1} parent=0 // pred_check
    _
  $region7: #{lstm_ae_forward.1} parent=0 // pred_check_branch
    %13 = sbr.rel (0) target = $region9
  $region8: #{lstm_ae_forward.1} parent=0 // pred_region
    _
  $region9: #{lstm_ae_forward.1} parent=0 // pred_fallthru
    _
  // Predicated region
  $region10: #{lstm_ae_forward.1} parent=0 // pred_check
    _
  $region11: #{lstm_ae_forward.1} parent=0 // pred_check_branch
    %15 = sbr.rel (0) target = $region13
  $region12: #{lstm_ae_forward.1} parent=0 // pred_region
    _
  $region13: #{lstm_ae_forward.1} parent=0 // pred_fallthru
    _
  // Predicated region
  $region14: #{lstm_ae_forward.1} parent=0 // pred_check
    _
  $region15: #{lstm_ae_forward.1} parent=0 // pred_check_branch
    %17 = sbr.rel (0) target = $region17
  $region16: #{lstm_ae_forward.1} parent=0 // pred_region
    _
  $region17: #{lstm_ae_forward.1} parent=0 // pred_fallthru
    _
  // Predicated region
  $region18: #{lstm_ae_forward.1} parent=0 // pred_check
    _
  $region19: #{lstm_ae_forward.1} parent=0 // pred_check_branch
    %19 = sbr.rel (0) target = $region21
  $region20: #{lstm_ae_forward.1} parent=0 // pred_region
    _
  $region21: #{lstm_ae_forward.1} parent=0 // pred_fallthru
    _
  %v20 = vld [vmem:[%s1] sm:$0xff]
  %v21 = vld [vmem:[%s1 + $0x8] sm:$0xff]
  %v22 = vld [vmem:[%s1 + $0x10] sm:$0xff]
  %v23 = vld [vmem:[%s1 + $0x18] sm:$0xff]
  %s24 = scalar_lea.vmem %s1, 32
  %v25 = vld [vmem:[%s24] sm:$0xff]
  %v26 = vld [vmem:[%s24 + $0x8] sm:$0xff]
  %v27 = vld [vmem:[%s24 + $0x10] sm:$0xff]
  %v28 = vld [vmem:[%s24 + $0x18] sm:$0xff]
  %s29 = scalar_lea.vmem %s1, 64
  %v30 = vld [vmem:[%s29] sm:$0xff]
  %v31 = vld [vmem:[%s29 + $0x8] sm:$0xff]
  %v32 = vld [vmem:[%s29 + $0x10] sm:$0xff]
  %v33 = vld [vmem:[%s29 + $0x18] sm:$0xff]
  %s34 = scalar_lea.vmem %s1, 96
  %v35 = vld [vmem:[%s34] sm:$0xff]
  %v36 = vld [vmem:[%s34 + $0x8] sm:$0xff]
  %v37 = vld [vmem:[%s34 + $0x10] sm:$0xff]
  %v38 = vld [vmem:[%s34 + $0x18] sm:$0xff]
  %v39 = vld [vmem:[%s0] sm:$0x3]
  %vm40 = vcmask 261120
  %v42 = vsel %vm40, 0.0, 0
  %44 = vmatprep.subr.mxu0 0.0
  %45 = vmatpush1.msra.mxu0 0.0
  %46 = vmatprep.subr.mxu0 0.0
  %47 = vmatpush1.msra.mxu0 0.0
  %48 = vmatprep.subr.mxu0 0.0
  %49 = vmatpush1.msra.mxu0 0.0
  %50 = vmatprep.subr.mxu0 0.0
  %51 = vmatpush1.msra.mxu0 0.0
  %52 = vmatprep.subr.mxu0 0.0
  %53 = vmatpush1.msra.mxu0 0.0
  %54 = vmatprep.subr.mxu0 0.0
  %55 = vmatpush1.msra.mxu0 0.0
  %56 = vmatprep.subr.mxu0 0.0
  %57 = vmatpush1.msra.mxu0 0.0
  %58 = vmatprep.subr.mxu0 0.0
  %59 = vmatpush1.msra.mxu0 0.0
  %60 = vmatprep.subr.mxu0 0.0
  %61 = vmatpush1.msra.mxu0 0.0
  %62 = vmatprep.subr.mxu0 0.0
  %63 = vmatpush1.msra.mxu0 0.0
  %64 = vmatprep.subr.mxu0 0.0
  %65 = vmatpush1.msra.mxu0 0.0
  %66 = vmatprep.subr.mxu0 0.0
  %67 = vmatpush1.msra.mxu0 0.0
  %68 = vmatprep.subr.mxu0 0.0
  %69 = vmatpush1.msra.mxu0 %v23
  %70 = vmatprep.subr.mxu0 0.0
  %71 = vmatpush1.msra.mxu0 %v22
  %72 = vmatprep.subr.mxu0 0.0
  %73 = vmatpush1.msra.mxu0 %v21
  %74 = vmatprep.subr.mxu0 0.0
  %75 = vmatpush1.msra.mxu0 %v20
  %76 = vmatprep.subr.mxu0 0.0
  %77 = vmatpush2.msra.mxu0 0.0
  %78 = vmatprep.subr.mxu0 0.0
  %79 = vmatpush2.msra.mxu0 0.0
  %80 = vmatprep.subr.mxu0 0.0
  %81 = vmatpush2.msra.mxu0 0.0
  %82 = vmatprep.subr.mxu0 0.0
  %83 = vmatpush2.msra.mxu0 0.0
  %84 = vmatprep.subr.mxu0 0.0
  %85 = vmatpush2.msra.mxu0 0.0
  %86 = vmatprep.subr.mxu0 0.0
  %87 = vmatpush2.msra.mxu0 0.0
  %88 = vmatprep.subr.mxu0 0.0
  %89 = vmatpush2.msra.mxu0 0.0
  %90 = vmatprep.subr.mxu0 0.0
  %91 = vmatpush2.msra.mxu0 0.0
  %92 = vmatprep.subr.mxu0 0.0
  %93 = vmatpush2.msra.mxu0 0.0
  %94 = vmatprep.subr.mxu0 0.0
  %95 = vmatpush2.msra.mxu0 0.0
  %96 = vmatprep.subr.mxu0 0.0
  %97 = vmatpush2.msra.mxu0 0.0
  %98 = vmatprep.subr.mxu0 0.0
  %99 = vmatpush2.msra.mxu0 0.0
  %100 = vmatprep.subr.mxu0 0.0
  %101 = vmatpush2.msra.mxu0 0.0
  %102 = vmatprep.subr.mxu0 0.0
  %103 = vmatpush2.msra.mxu0 0.0
  %104 = vmatprep.subr.mxu0 0.0
  %105 = vmatpush2.msra.mxu0 0.0
  %106 = vmatprep.subr.mxu0 0.0
  %107 = vmatpush2.msra.mxu0 0.0
  %108 = vmatprep.mubr.f32.mxu0 0.0
  %109 = vmatmul.mubr.f32.gmra.mxu0 %v42
  %v110 = vpop.f32.mrf.mxu0
  %v111 = vadd.f32 0.0, %v110
  %v112 = vpop.f32.mrf.mxu0
  %113 = vdwg.mxu0
  %v114 = vadd.f32 %v39, %v111
  %v115 = vxor.u32 %v114, 2147483648
  %v116 = vmul.f32 %v115, 1.442695
  %v117 = vpow.pop %v116
  %v118 = vadd.f32 %v117, 1.0
  %v119 = vrcp.pop %v118
  %v120 = vmul.f32 1.0, %v119
  %s121 = scalar_lea.vmem %s0, 2
  %v122 = vld [vmem:[%s121] sm:$0x3]
  %123 = vmatprep.subr.mxu0 0.0
  %124 = vmatpush1.msra.mxu0 0.0
  %125 = vmatprep.subr.mxu0 0.0
  %126 = vmatpush1.msra.mxu0 0.0
  %127 = vmatprep.subr.mxu0 0.0
  %128 = vmatpush1.msra.mxu0 0.0
  %129 = vmatprep.subr.mxu0 0.0
  %130 = vmatpush1.msra.mxu0 0.0
  %131 = vmatprep.subr.mxu0 0.0
  %132 = vmatpush1.msra.mxu0 0.0
  %133 = vmatprep.subr.mxu0 0.0
  %134 = vmatpush1.msra.mxu0 0.0
  %135 = vmatprep.subr.mxu0 0.0
  %136 = vmatpush1.msra.mxu0 0.0
  %137 = vmatprep.subr.mxu0 0.0
  %138 = vmatpush1.msra.mxu0 0.0
  %139 = vmatprep.subr.mxu0 0.0
  %140 = vmatpush1.msra.mxu0 0.0
  %141 = vmatprep.subr.mxu0 0.0
  %142 = vmatpush1.msra.mxu0 0.0
  %143 = vmatprep.subr.mxu0 0.0
  %144 = vmatpush1.msra.mxu0 0.0
  %145 = vmatprep.subr.mxu0 0.0
  %146 = vmatpush1.msra.mxu0 0.0
  %147 = vmatprep.subr.mxu0 0.0
  %148 = vmatpush1.msra.mxu0 %v28
  %149 = vmatprep.subr.mxu0 0.0
  %150 = vmatpush1.msra.mxu0 %v27
  %151 = vmatprep.subr.mxu0 0.0
  %152 = vmatpush1.msra.mxu0 %v26
  %153 = vmatprep.subr.mxu0 0.0
  %154 = vmatpush1.msra.mxu0 %v25
  %155 = vmatprep.subr.mxu0 0.0
  %156 = vmatpush2.msra.mxu0 0.0
  %157 = vmatprep.subr.mxu0 0.0
  %158 = vmatpush2.msra.mxu0 0.0
  %159 = vmatprep.subr.mxu0 0.0
  %160 = vmatpush2.msra.mxu0 0.0
  %161 = vmatprep.subr.mxu0 0.0
  %162 = vmatpush2.msra.mxu0 0.0
  %163 = vmatprep.subr.mxu0 0.0
  %164 = vmatpush2.msra.mxu0 0.0
  %165 = vmatprep.subr.mxu0 0.0
  %166 = vmatpush2.msra.mxu0 0.0
  %167 = vmatprep.subr.mxu0 0.0
  %168 = vmatpush2.msra.mxu0 0.0
  %169 = vmatprep.subr.mxu0 0.0
  %170 = vmatpush2.msra.mxu0 0.0
  %171 = vmatprep.subr.mxu0 0.0
  %172 = vmatpush2.msra.mxu0 0.0
  %173 = vmatprep.subr.mxu0 0.0
  %174 = vmatpush2.msra.mxu0 0.0
  %175 = vmatprep.subr.mxu0 0.0
  %176 = vmatpush2.msra.mxu0 0.0
  %177 = vmatprep.subr.mxu0 0.0
  %178 = vmatpush2.msra.mxu0 0.0
  %179 = vmatprep.subr.mxu0 0.0
  %180 = vmatpush2.msra.mxu0 0.0
  %181 = vmatprep.subr.mxu0 0.0
  %182 = vmatpush2.msra.mxu0 0.0
  %183 = vmatprep.subr.mxu0 0.0
  %184 = vmatpush2.msra.mxu0 0.0
  %185 = vmatprep.subr.mxu0 0.0
  %186 = vmatpush2.msra.mxu0 0.0
  %187 = vmatprep.mubr.f32.mxu0 0.0
  %188 = vmatmul.mubr.f32.gmra.mxu0 %v42
  %v189 = vpop.f32.mrf.mxu0
  %v190 = vadd.f32 0.0, %v189
  %v191 = vpop.f32.mrf.mxu0
  %192 = vdwg.mxu0
  %v193 = vadd.f32 %v122, %v190
  %v194 = vxor.u32 %v193, 2147483648
  %v195 = vmul.f32 %v194, 1.442695
  %v196 = vpow.pop %v195
  %v197 = vadd.f32 %v196, 1.0
  %v198 = vrcp.pop %v197
  %v199 = vmul.f32 1.0, %v198
  %s200 = scalar_lea.vmem %s0, 4
  %v201 = vld [vmem:[%s200] sm:$0x3]
  %202 = vmatprep.subr.mxu0 0.0
  %203 = vmatpush1.msra.mxu0 0.0
  %204 = vmatprep.subr.mxu0 0.0
  %205 = vmatpush1.msra.mxu0 0.0
  %206 = vmatprep.subr.mxu0 0.0
  %207 = vmatpush1.msra.mxu0 0.0
  %208 = vmatprep.subr.mxu0 0.0
  %209 = vmatpush1.msra.mxu0 0.0
  %210 = vmatprep.subr.mxu0 0.0
  %211 = vmatpush1.msra.mxu0 0.0
  %212 = vmatprep.subr.mxu0 0.0
  %213 = vmatpush1.msra.mxu0 0.0
  %214 = vmatprep.subr.mxu0 0.0
  %215 = vmatpush1.msra.mxu0 0.0
  %216 = vmatprep.subr.mxu0 0.0
  %217 = vmatpush1.msra.mxu0 0.0
  %218 = vmatprep.subr.mxu0 0.0
  %219 = vmatpush1.msra.mxu0 0.0
  %220 = vmatprep.subr.mxu0 0.0
  %221 = vmatpush1.msra.mxu0 0.0
  %222 = vmatprep.subr.mxu0 0.0
  %223 = vmatpush1.msra.mxu0 0.0
  %224 = vmatprep.subr.mxu0 0.0
  %225 = vmatpush1.msra.mxu0 0.0
  %226 = vmatprep.subr.mxu0 0.0
  %227 = vmatpush1.msra.mxu0 %v33
  %228 = vmatprep.subr.mxu0 0.0
  %229 = vmatpush1.msra.mxu0 %v32
  %230 = vmatprep.subr.mxu0 0.0
  %231 = vmatpush1.msra.mxu0 %v31
  %232 = vmatprep.subr.mxu0 0.0
  %233 = vmatpush1.msra.mxu0 %v30
  %234 = vmatprep.subr.mxu0 0.0
  %235 = vmatpush2.msra.mxu0 0.0
  %236 = vmatprep.subr.mxu0 0.0
  %237 = vmatpush2.msra.mxu0 0.0
  %238 = vmatprep.subr.mxu0 0.0
  %239 = vmatpush2.msra.mxu0 0.0
  %240 = vmatprep.subr.mxu0 0.0
  %241 = vmatpush2.msra.mxu0 0.0
  %242 = vmatprep.subr.mxu0 0.0
  %243 = vmatpush2.msra.mxu0 0.0
  %244 = vmatprep.subr.mxu0 0.0
  %245 = vmatpush2.msra.mxu0 0.0
  %246 = vmatprep.subr.mxu0 0.0
  %247 = vmatpush2.msra.mxu0 0.0
  %248 = vmatprep.subr.mxu0 0.0
  %249 = vmatpush2.msra.mxu0 0.0
  %250 = vmatprep.subr.mxu0 0.0
  %251 = vmatpush2.msra.mxu0 0.0
  %252 = vmatprep.subr.mxu0 0.0
  %253 = vmatpush2.msra.mxu0 0.0
  %254 = vmatprep.subr.mxu0 0.0
  %255 = vmatpush2.msra.mxu0 0.0
  %256 = vmatprep.subr.mxu0 0.0
  %257 = vmatpush2.msra.mxu0 0.0
  %258 = vmatprep.subr.mxu0 0.0
  %259 = vmatpush2.msra.mxu0 0.0
  %260 = vmatprep.subr.mxu0 0.0
  %261 = vmatpush2.msra.mxu0 0.0
  %262 = vmatprep.subr.mxu0 0.0
  %263 = vmatpush2.msra.mxu0 0.0
  %264 = vmatprep.subr.mxu0 0.0
  %265 = vmatpush2.msra.mxu0 0.0
  %266 = vmatprep.mubr.f32.mxu0 0.0
  %267 = vmatmul.mubr.f32.gmra.mxu0 %v42
  %v268 = vpop.f32.mrf.mxu0
  %v269 = vadd.f32 0.0, %v268
  %v270 = vpop.f32.mrf.mxu0
  %271 = vdwg.mxu0
  %v272 = vadd.f32 %v201, %v269
  %v273 = vtanh.pop %v272
  %s274 = scalar_lea.vmem %s0, 6
  %v275 = vld [vmem:[%s274] sm:$0x3]
  %276 = vmatprep.subr.mxu0 0.0
  %277 = vmatpush1.msra.mxu0 0.0
  %278 = vmatprep.subr.mxu0 0.0
  %279 = vmatpush1.msra.mxu0 0.0
  %280 = vmatprep.subr.mxu0 0.0
  %281 = vmatpush1.msra.mxu0 0.0
  %282 = vmatprep.subr.mxu0 0.0
  %283 = vmatpush1.msra.mxu0 0.0
  %284 = vmatprep.subr.mxu0 0.0
  %285 = vmatpush1.msra.mxu0 0.0
  %286 = vmatprep.subr.mxu0 0.0
  %287 = vmatpush1.msra.mxu0 0.0
  %288 = vmatprep.subr.mxu0 0.0
  %289 = vmatpush1.msra.mxu0 0.0
  %290 = vmatprep.subr.mxu0 0.0
  %291 = vmatpush1.msra.mxu0 0.0
  %292 = vmatprep.subr.mxu0 0.0
  %293 = vmatpush1.msra.mxu0 0.0
  %294 = vmatprep.subr.mxu0 0.0
  %295 = vmatpush1.msra.mxu0 0.0
  %296 = vmatprep.subr.mxu0 0.0
  %297 = vmatpush1.msra.mxu0 0.0
  %298 = vmatprep.subr.mxu0 0.0
  %299 = vmatpush1.msra.mxu0 0.0
  %300 = vmatprep.subr.mxu0 0.0
  %301 = vmatpush1.msra.mxu0 %v38
  %302 = vmatprep.subr.mxu0 0.0
  %303 = vmatpush1.msra.mxu0 %v37
  %304 = vmatprep.subr.mxu0 0.0
  %305 = vmatpush1.msra.mxu0 %v36
  %306 = vmatprep.subr.mxu0 0.0
  %307 = vmatpush1.msra.mxu0 %v35
  %308 = vmatprep.subr.mxu0 0.0
  %309 = vmatpush2.msra.mxu0 0.0
  %310 = vmatprep.subr.mxu0 0.0
  %311 = vmatpush2.msra.mxu0 0.0
  %312 = vmatprep.subr.mxu0 0.0
  %313 = vmatpush2.msra.mxu0 0.0
  %314 = vmatprep.subr.mxu0 0.0
  %315 = vmatpush2.msra.mxu0 0.0
  %316 = vmatprep.subr.mxu0 0.0
  %317 = vmatpush2.msra.mxu0 0.0
  %318 = vmatprep.subr.mxu0 0.0
  %319 = vmatpush2.msra.mxu0 0.0
  %320 = vmatprep.subr.mxu0 0.0
  %321 = vmatpush2.msra.mxu0 0.0
  %322 = vmatprep.subr.mxu0 0.0
  %323 = vmatpush2.msra.mxu0 0.0
  %324 = vmatprep.subr.mxu0 0.0
  %325 = vmatpush2.msra.mxu0 0.0
  %326 = vmatprep.subr.mxu0 0.0
  %327 = vmatpush2.msra.mxu0 0.0
  %328 = vmatprep.subr.mxu0 0.0
  %329 = vmatpush2.msra.mxu0 0.0
  %330 = vmatprep.subr.mxu0 0.0
  %331 = vmatpush2.msra.mxu0 0.0
  %332 = vmatprep.subr.mxu0 0.0
  %333 = vmatpush2.msra.mxu0 0.0
  %334 = vmatprep.subr.mxu0 0.0
  %335 = vmatpush2.msra.mxu0 0.0
  %336 = vmatprep.subr.mxu0 0.0
  %337 = vmatpush2.msra.mxu0 0.0
  %338 = vmatprep.subr.mxu0 0.0
  %339 = vmatpush2.msra.mxu0 0.0
  %340 = vmatprep.mubr.f32.mxu0 0.0
  %341 = vmatmul.mubr.f32.gmra.mxu0 %v42
  %v342 = vpop.f32.mrf.mxu0
  %v343 = vadd.f32 0.0, %v342
  %v344 = vpop.f32.mrf.mxu0
  %345 = vdwg.mxu0
  %v346 = vadd.f32 %v275, %v343
  %v347 = vxor.u32 %v346, 2147483648
  %v348 = vmul.f32 %v347, 1.442695
  %v349 = vpow.pop %v348
  %v350 = vadd.f32 %v349, 1.0
  %v351 = vrcp.pop %v350
  %v352 = vmul.f32 1.0, %v351
  %v353 = vmul.f32 %v199, 0.0
  %v354 = vmul.f32 %v120, %v273
  %v355 = vadd.f32 %v353, %v354
  %v356 = vtanh.pop %v355
  %v357 = vmul.f32 %v352, %v356
  %s358 = scalar_lea.vmem %s0, 8
  %v359 = vld [vmem:[%s358] sm:$0x3]
  %v361 = vsel %vm40, %v357, 0
  %363 = vmatprep.subr.mxu0 0.0
  %364 = vmatpush1.msra.mxu0 0.0
  %365 = vmatprep.subr.mxu0 0.0
  %366 = vmatpush1.msra.mxu0 0.0
  %367 = vmatprep.subr.mxu0 0.0
  %368 = vmatpush1.msra.mxu0 0.0
  %369 = vmatprep.subr.mxu0 0.0
  %370 = vmatpush1.msra.mxu0 0.0
  %371 = vmatprep.subr.mxu0 0.0
  %372 = vmatpush1.msra.mxu0 0.0
  %373 = vmatprep.subr.mxu0 0.0
  %374 = vmatpush1.msra.mxu0 0.0
  %375 = vmatprep.subr.mxu0 0.0
  %376 = vmatpush1.msra.mxu0 0.0
  %377 = vmatprep.subr.mxu0 0.0
  %378 = vmatpush1.msra.mxu0 0.0
  %379 = vmatprep.subr.mxu0 0.0
  %380 = vmatpush1.msra.mxu0 0.0
  %381 = vmatprep.subr.mxu0 0.0
  %382 = vmatpush1.msra.mxu0 0.0
  %383 = vmatprep.subr.mxu0 0.0
  %384 = vmatpush1.msra.mxu0 0.0
  %385 = vmatprep.subr.mxu0 0.0
  %386 = vmatpush1.msra.mxu0 0.0
  %387 = vmatprep.subr.mxu0 0.0
  %388 = vmatpush1.msra.mxu0 %v23
  %389 = vmatprep.subr.mxu0 0.0
  %390 = vmatpush1.msra.mxu0 %v22
  %391 = vmatprep.subr.mxu0 0.0
  %392 = vmatpush1.msra.mxu0 %v21
  %393 = vmatprep.subr.mxu0 0.0
  %394 = vmatpush1.msra.mxu0 %v20
  %395 = vmatprep.subr.mxu0 0.0
  %396 = vmatpush2.msra.mxu0 0.0
  %397 = vmatprep.subr.mxu0 0.0
  %398 = vmatpush2.msra.mxu0 0.0
  %399 = vmatprep.subr.mxu0 0.0
  %400 = vmatpush2.msra.mxu0 0.0
  %401 = vmatprep.subr.mxu0 0.0
  %402 = vmatpush2.msra.mxu0 0.0
  %403 = vmatprep.subr.mxu0 0.0
  %404 = vmatpush2.msra.mxu0 0.0
  %405 = vmatprep.subr.mxu0 0.0
  %406 = vmatpush2.msra.mxu0 0.0
  %407 = vmatprep.subr.mxu0 0.0
  %408 = vmatpush2.msra.mxu0 0.0
  %409 = vmatprep.subr.mxu0 0.0
  %410 = vmatpush2.msra.mxu0 0.0
  %411 = vmatprep.subr.mxu0 0.0
  %412 = vmatpush2.msra.mxu0 0.0
  %413 = vmatprep.subr.mxu0 0.0
  %414 = vmatpush2.msra.mxu0 0.0
  %415 = vmatprep.subr.mxu0 0.0
  %416 = vmatpush2.msra.mxu0 0.0
  %417 = vmatprep.subr.mxu0 0.0
  %418 = vmatpush2.msra.mxu0 0.0
  %419 = vmatprep.subr.mxu0 0.0
  %420 = vmatpush2.msra.mxu0 0.0
  %421 = vmatprep.subr.mxu0 0.0
  %422 = vmatpush2.msra.mxu0 0.0
  %423 = vmatprep.subr.mxu0 0.0
  %424 = vmatpush2.msra.mxu0 0.0
  %425 = vmatprep.subr.mxu0 0.0
  %426 = vmatpush2.msra.mxu0 0.0
  %427 = vmatprep.mubr.f32.mxu0 0.0
  %428 = vmatmul.mubr.f32.gmra.mxu0 %v361
  %v429 = vpop.f32.mrf.mxu0
  %v430 = vadd.f32 0.0, %v429
  %v431 = vpop.f32.mrf.mxu0
  %432 = vdwg.mxu0
  %v433 = vadd.f32 %v359, %v430
  %v434 = vxor.u32 %v433, 2147483648
  %v435 = vmul.f32 %v434, 1.442695
  %v436 = vpow.pop %v435
  %v437 = vadd.f32 %v436, 1.0
  %v438 = vrcp.pop %v437
  %v439 = vmul.f32 1.0, %v438
  %s440 = scalar_lea.vmem %s0, 10
  %v441 = vld [vmem:[%s440] sm:$0x3]
  %442 = vmatprep.subr.mxu0 0.0
  %443 = vmatpush1.msra.mxu0 0.0
  %444 = vmatprep.subr.mxu0 0.0
  %445 = vmatpush1.msra.mxu0 0.0
  %446 = vmatprep.subr.mxu0 0.0
  %447 = vmatpush1.msra.mxu0 0.0
  %448 = vmatprep.subr.mxu0 0.0
  %449 = vmatpush1.msra.mxu0 0.0
  %450 = vmatprep.subr.mxu0 0.0
  %451 = vmatpush1.msra.mxu0 0.0
  %452 = vmatprep.subr.mxu0 0.0
  %453 = vmatpush1.msra.mxu0 0.0
  %454 = vmatprep.subr.mxu0 0.0
  %455 = vmatpush1.msra.mxu0 0.0
  %456 = vmatprep.subr.mxu0 0.0
  %457 = vmatpush1.msra.mxu0 0.0
  %458 = vmatprep.subr.mxu0 0.0
  %459 = vmatpush1.msra.mxu0 0.0
  %460 = vmatprep.subr.mxu0 0.0
  %461 = vmatpush1.msra.mxu0 0.0
  %462 = vmatprep.subr.mxu0 0.0
  %463 = vmatpush1.msra.mxu0 0.0
  %464 = vmatprep.subr.mxu0 0.0
  %465 = vmatpush1.msra.mxu0 0.0
  %466 = vmatprep.subr.mxu0 0.0
  %467 = vmatpush1.msra.mxu0 %v28
  %468 = vmatprep.subr.mxu0 0.0
  %469 = vmatpush1.msra.mxu0 %v27
  %470 = vmatprep.subr.mxu0 0.0
  %471 = vmatpush1.msra.mxu0 %v26
  %472 = vmatprep.subr.mxu0 0.0
  %473 = vmatpush1.msra.mxu0 %v25
  %474 = vmatprep.subr.mxu0 0.0
  %475 = vmatpush2.msra.mxu0 0.0
  %476 = vmatprep.subr.mxu0 0.0
  %477 = vmatpush2.msra.mxu0 0.0
  %478 = vmatprep.subr.mxu0 0.0
  %479 = vmatpush2.msra.mxu0 0.0
  %480 = vmatprep.subr.mxu0 0.0
  %481 = vmatpush2.msra.mxu0 0.0
  %482 = vmatprep.subr.mxu0 0.0
  %483 = vmatpush2.msra.mxu0 0.0
  %484 = vmatprep.subr.mxu0 0.0
  %485 = vmatpush2.msra.mxu0 0.0
  %486 = vmatprep.subr.mxu0 0.0
  %487 = vmatpush2.msra.mxu0 0.0
  %488 = vmatprep.subr.mxu0 0.0
  %489 = vmatpush2.msra.mxu0 0.0
  %490 = vmatprep.subr.mxu0 0.0
  %491 = vmatpush2.msra.mxu0 0.0
  %492 = vmatprep.subr.mxu0 0.0
  %493 = vmatpush2.msra.mxu0 0.0
  %494 = vmatprep.subr.mxu0 0.0
  %495 = vmatpush2.msra.mxu0 0.0
  %496 = vmatprep.subr.mxu0 0.0
  %497 = vmatpush2.msra.mxu0 0.0
  %498 = vmatprep.subr.mxu0 0.0
  %499 = vmatpush2.msra.mxu0 0.0
  %500 = vmatprep.subr.mxu0 0.0
  %501 = vmatpush2.msra.mxu0 0.0
  %502 = vmatprep.subr.mxu0 0.0
  %503 = vmatpush2.msra.mxu0 0.0
  %504 = vmatprep.subr.mxu0 0.0
  %505 = vmatpush2.msra.mxu0 0.0
  %506 = vmatprep.mubr.f32.mxu0 0.0
  %507 = vmatmul.mubr.f32.gmra.mxu0 %v361
  %v508 = vpop.f32.mrf.mxu0
  %v509 = vadd.f32 0.0, %v508
  %v510 = vpop.f32.mrf.mxu0
  %511 = vdwg.mxu0
  %v512 = vadd.f32 %v441, %v509
  %v513 = vxor.u32 %v512, 2147483648
  %v514 = vmul.f32 %v513, 1.442695
  %v515 = vpow.pop %v514
  %v516 = vadd.f32 %v515, 1.0
  %v517 = vrcp.pop %v516
  %v518 = vmul.f32 1.0, %v517
  %s519 = scalar_lea.vmem %s0, 12
  %v520 = vld [vmem:[%s519] sm:$0x3]
  %521 = vmatprep.subr.mxu0 0.0
  %522 = vmatpush1.msra.mxu0 0.0
  %523 = vmatprep.subr.mxu0 0.0
  %524 = vmatpush1.msra.mxu0 0.0
  %525 = vmatprep.subr.mxu0 0.0
  %526 = vmatpush1.msra.mxu0 0.0
  %527 = vmatprep.subr.mxu0 0.0
  %528 = vmatpush1.msra.mxu0 0.0
  %529 = vmatprep.subr.mxu0 0.0
  %530 = vmatpush1.msra.mxu0 0.0
  %531 = vmatprep.subr.mxu0 0.0
  %532 = vmatpush1.msra.mxu0 0.0
  %533 = vmatprep.subr.mxu0 0.0
  %534 = vmatpush1.msra.mxu0 0.0
  %535 = vmatprep.subr.mxu0 0.0
  %536 = vmatpush1.msra.mxu0 0.0
  %537 = vmatprep.subr.mxu0 0.0
  %538 = vmatpush1.msra.mxu0 0.0
  %539 = vmatprep.subr.mxu0 0.0
  %540 = vmatpush1.msra.mxu0 0.0
  %541 = vmatprep.subr.mxu0 0.0
  %542 = vmatpush1.msra.mxu0 0.0
  %543 = vmatprep.subr.mxu0 0.0
  %544 = vmatpush1.msra.mxu0 0.0
  %545 = vmatprep.subr.mxu0 0.0
  %546 = vmatpush1.msra.mxu0 %v33
  %547 = vmatprep.subr.mxu0 0.0
  %548 = vmatpush1.msra.mxu0 %v32
  %549 = vmatprep.subr.mxu0 0.0
  %550 = vmatpush1.msra.mxu0 %v31
  %551 = vmatprep.subr.mxu0 0.0
  %552 = vmatpush1.msra.mxu0 %v30
  %553 = vmatprep.subr.mxu0 0.0
  %554 = vmatpush2.msra.mxu0 0.0
  %555 = vmatprep.subr.mxu0 0.0
  %556 = vmatpush2.msra.mxu0 0.0
  %557 = vmatprep.subr.mxu0 0.0
  %558 = vmatpush2.msra.mxu0 0.0
  %559 = vmatprep.subr.mxu0 0.0
  %560 = vmatpush2.msra.mxu0 0.0
  %561 = vmatprep.subr.mxu0 0.0
  %562 = vmatpush2.msra.mxu0 0.0
  %563 = vmatprep.subr.mxu0 0.0
  %564 = vmatpush2.msra.mxu0 0.0
  %565 = vmatprep.subr.mxu0 0.0
  %566 = vmatpush2.msra.mxu0 0.0
  %567 = vmatprep.subr.mxu0 0.0
  %568 = vmatpush2.msra.mxu0 0.0
  %569 = vmatprep.subr.mxu0 0.0
  %570 = vmatpush2.msra.mxu0 0.0
  %571 = vmatprep.subr.mxu0 0.0
  %572 = vmatpush2.msra.mxu0 0.0
  %573 = vmatprep.subr.mxu0 0.0
  %574 = vmatpush2.msra.mxu0 0.0
  %575 = vmatprep.subr.mxu0 0.0
  %576 = vmatpush2.msra.mxu0 0.0
  %577 = vmatprep.subr.mxu0 0.0
  %578 = vmatpush2.msra.mxu0 0.0
  %579 = vmatprep.subr.mxu0 0.0
  %580 = vmatpush2.msra.mxu0 0.0
  %581 = vmatprep.subr.mxu0 0.0
  %582 = vmatpush2.msra.mxu0 0.0
  %583 = vmatprep.subr.mxu0 0.0
  %584 = vmatpush2.msra.mxu0 0.0
  %585 = vmatprep.mubr.f32.mxu0 0.0
  %586 = vmatmul.mubr.f32.gmra.mxu0 %v361
  %v587 = vpop.f32.mrf.mxu0
  %v588 = vadd.f32 0.0, %v587
  %v589 = vpop.f32.mrf.mxu0
  %590 = vdwg.mxu0
  %v591 = vadd.f32 %v520, %v588
  %v592 = vtanh.pop %v591
  %s593 = scalar_lea.vmem %s0, 14
  %v594 = vld [vmem:[%s593] sm:$0x3]
  %595 = vmatprep.subr.mxu0 0.0
  %596 = vmatpush1.msra.mxu0 0.0
  %597 = vmatprep.subr.mxu0 0.0
  %598 = vmatpush1.msra.mxu0 0.0
  %599 = vmatprep.subr.mxu0 0.0
  %600 = vmatpush1.msra.mxu0 0.0
  %601 = vmatprep.subr.mxu0 0.0
  %602 = vmatpush1.msra.mxu0 0.0
  %603 = vmatprep.subr.mxu0 0.0
  %604 = vmatpush1.msra.mxu0 0.0
  %605 = vmatprep.subr.mxu0 0.0
  %606 = vmatpush1.msra.mxu0 0.0
  %607 = vmatprep.subr.mxu0 0.0
  %608 = vmatpush1.msra.mxu0 0.0
  %609 = vmatprep.subr.mxu0 0.0
  %610 = vmatpush1.msra.mxu0 0.0
  %611 = vmatprep.subr.mxu0 0.0
  %612 = vmatpush1.msra.mxu0 0.0
  %613 = vmatprep.subr.mxu0 0.0
  %614 = vmatpush1.msra.mxu0 0.0
  %615 = vmatprep.subr.mxu0 0.0
  %616 = vmatpush1.msra.mxu0 0.0
  %617 = vmatprep.subr.mxu0 0.0
  %618 = vmatpush1.msra.mxu0 0.0
  %619 = vmatprep.subr.mxu0 0.0
  %620 = vmatpush1.msra.mxu0 %v38
  %621 = vmatprep.subr.mxu0 0.0
  %622 = vmatpush1.msra.mxu0 %v37
  %623 = vmatprep.subr.mxu0 0.0
  %624 = vmatpush1.msra.mxu0 %v36
  %625 = vmatprep.subr.mxu0 0.0
  %626 = vmatpush1.msra.mxu0 %v35
  %627 = vmatprep.subr.mxu0 0.0
  %628 = vmatpush2.msra.mxu0 0.0
  %629 = vmatprep.subr.mxu0 0.0
  %630 = vmatpush2.msra.mxu0 0.0
  %631 = vmatprep.subr.mxu0 0.0
  %632 = vmatpush2.msra.mxu0 0.0
  %633 = vmatprep.subr.mxu0 0.0
  %634 = vmatpush2.msra.mxu0 0.0
  %635 = vmatprep.subr.mxu0 0.0
  %636 = vmatpush2.msra.mxu0 0.0
  %637 = vmatprep.subr.mxu0 0.0
  %638 = vmatpush2.msra.mxu0 0.0
  %639 = vmatprep.subr.mxu0 0.0
  %640 = vmatpush2.msra.mxu0 0.0
  %641 = vmatprep.subr.mxu0 0.0
  %642 = vmatpush2.msra.mxu0 0.0
  %643 = vmatprep.subr.mxu0 0.0
  %644 = vmatpush2.msra.mxu0 0.0
  %645 = vmatprep.subr.mxu0 0.0
  %646 = vmatpush2.msra.mxu0 0.0
  %647 = vmatprep.subr.mxu0 0.0
  %648 = vmatpush2.msra.mxu0 0.0
  %649 = vmatprep.subr.mxu0 0.0
  %650 = vmatpush2.msra.mxu0 0.0
  %651 = vmatprep.subr.mxu0 0.0
  %652 = vmatpush2.msra.mxu0 0.0
  %653 = vmatprep.subr.mxu0 0.0
  %654 = vmatpush2.msra.mxu0 0.0
  %655 = vmatprep.subr.mxu0 0.0
  %656 = vmatpush2.msra.mxu0 0.0
  %657 = vmatprep.subr.mxu0 0.0
  %658 = vmatpush2.msra.mxu0 0.0
  %659 = vmatprep.mubr.f32.mxu0 0.0
  %660 = vmatmul.mubr.f32.gmra.mxu0 %v361
  %v661 = vpop.f32.mrf.mxu0
  %v662 = vadd.f32 0.0, %v661
  %v663 = vpop.f32.mrf.mxu0
  %664 = vdwg.mxu0
  %v665 = vadd.f32 %v594, %v662
  %v666 = vxor.u32 %v665, 2147483648
  %v667 = vmul.f32 %v666, 1.442695
  %v668 = vpow.pop %v667
  %v669 = vadd.f32 %v668, 1.0
  %v670 = vrcp.pop %v669
  %v671 = vmul.f32 1.0, %v670
  %v672 = vmul.f32 %v518, %v355
  %v673 = vmul.f32 %v439, %v592
  %v674 = vadd.f32 %v672, %v673
  %v675 = vtanh.pop %v674
  %v676 = vmul.f32 %v671, %v675
  %s677 = scalar_lea.vmem %s0, 16
  %v678 = vld [vmem:[%s677] sm:$0x3]
  %v680 = vsel %vm40, %v676, 0
  %682 = vmatprep.subr.mxu0 0.0
  %683 = vmatpush1.msra.mxu0 0.0
  %684 = vmatprep.subr.mxu0 0.0
  %685 = vmatpush1.msra.mxu0 0.0
  %686 = vmatprep.subr.mxu0 0.0
  %687 = vmatpush1.msra.mxu0 0.0
  %688 = vmatprep.subr.mxu0 0.0
  %689 = vmatpush1.msra.mxu0 0.0
  %690 = vmatprep.subr.mxu0 0.0
  %691 = vmatpush1.msra.mxu0 0.0
  %692 = vmatprep.subr.mxu0 0.0
  %693 = vmatpush1.msra.mxu0 0.0
  %694 = vmatprep.subr.mxu0 0.0
  %695 = vmatpush1.msra.mxu0 0.0
  %696 = vmatprep.subr.mxu0 0.0
  %697 = vmatpush1.msra.mxu0 0.0
  %698 = vmatprep.subr.mxu0 0.0
  %699 = vmatpush1.msra.mxu0 0.0
  %700 = vmatprep.subr.mxu0 0.0
  %701 = vmatpush1.msra.mxu0 0.0
  %702 = vmatprep.subr.mxu0 0.0
  %703 = vmatpush1.msra.mxu0 0.0
  %704 = vmatprep.subr.mxu0 0.0
  %705 = vmatpush1.msra.mxu0 0.0
  %706 = vmatprep.subr.mxu0 0.0
  %707 = vmatpush1.msra.mxu0 %v23
  %708 = vmatprep.subr.mxu0 0.0
  %709 = vmatpush1.msra.mxu0 %v22
  %710 = vmatprep.subr.mxu0 0.0
  %711 = vmatpush1.msra.mxu0 %v21
  %712 = vmatprep.subr.mxu0 0.0
  %713 = vmatpush1.msra.mxu0 %v20
  %714 = vmatprep.subr.mxu0 0.0
  %715 = vmatpush2.msra.mxu0 0.0
  %716 = vmatprep.subr.mxu0 0.0
  %717 = vmatpush2.msra.mxu0 0.0
  %718 = vmatprep.subr.mxu0 0.0
  %719 = vmatpush2.msra.mxu0 0.0
  %720 = vmatprep.subr.mxu0 0.0
  %721 = vmatpush2.msra.mxu0 0.0
  %722 = vmatprep.subr.mxu0 0.0
  %723 = vmatpush2.msra.mxu0 0.0
  %724 = vmatprep.subr.mxu0 0.0
  %725 = vmatpush2.msra.mxu0 0.0
  %726 = vmatprep.subr.mxu0 0.0
  %727 = vmatpush2.msra.mxu0 0.0
  %728 = vmatprep.subr.mxu0 0.0
  %729 = vmatpush2.msra.mxu0 0.0
  %730 = vmatprep.subr.mxu0 0.0
  %731 = vmatpush2.msra.mxu0 0.0
  %732 = vmatprep.subr.mxu0 0.0
  %733 = vmatpush2.msra.mxu0 0.0
  %734 = vmatprep.subr.mxu0 0.0
  %735 = vmatpush2.msra.mxu0 0.0
  %736 = vmatprep.subr.mxu0 0.0
  %737 = vmatpush2.msra.mxu0 0.0
  %738 = vmatprep.subr.mxu0 0.0
  %739 = vmatpush2.msra.mxu0 0.0
  %740 = vmatprep.subr.mxu0 0.0
  %741 = vmatpush2.msra.mxu0 0.0
  %742 = vmatprep.subr.mxu0 0.0
  %743 = vmatpush2.msra.mxu0 0.0
  %744 = vmatprep.subr.mxu0 0.0
  %745 = vmatpush2.msra.mxu0 0.0
  %746 = vmatprep.mubr.f32.mxu0 0.0
  %747 = vmatmul.mubr.f32.gmra.mxu0 %v680
  %v748 = vpop.f32.mrf.mxu0
  %v749 = vadd.f32 0.0, %v748
  %v750 = vpop.f32.mrf.mxu0
  %751 = vdwg.mxu0
  %v752 = vadd.f32 %v678, %v749
  %v753 = vxor.u32 %v752, 2147483648
  %v754 = vmul.f32 %v753, 1.442695
  %v755 = vpow.pop %v754
  %v756 = vadd.f32 %v755, 1.0
  %v757 = vrcp.pop %v756
  %v758 = vmul.f32 1.0, %v757
  %s759 = scalar_lea.vmem %s0, 18
  %v760 = vld [vmem:[%s759] sm:$0x3]
  %761 = vmatprep.subr.mxu0 0.0
  %762 = vmatpush1.msra.mxu0 0.0
  %763 = vmatprep.subr.mxu0 0.0
  %764 = vmatpush1.msra.mxu0 0.0
  %765 = vmatprep.subr.mxu0 0.0
  %766 = vmatpush1.msra.mxu0 0.0
  %767 = vmatprep.subr.mxu0 0.0
  %768 = vmatpush1.msra.mxu0 0.0
  %769 = vmatprep.subr.mxu0 0.0
  %770 = vmatpush1.msra.mxu0 0.0
  %771 = vmatprep.subr.mxu0 0.0
  %772 = vmatpush1.msra.mxu0 0.0
  %773 = vmatprep.subr.mxu0 0.0
  %774 = vmatpush1.msra.mxu0 0.0
  %775 = vmatprep.subr.mxu0 0.0
  %776 = vmatpush1.msra.mxu0 0.0
  %777 = vmatprep.subr.mxu0 0.0
  %778 = vmatpush1.msra.mxu0 0.0
  %779 = vmatprep.subr.mxu0 0.0
  %780 = vmatpush1.msra.mxu0 0.0
  %781 = vmatprep.subr.mxu0 0.0
  %782 = vmatpush1.msra.mxu0 0.0
  %783 = vmatprep.subr.mxu0 0.0
  %784 = vmatpush1.msra.mxu0 0.0
  %785 = vmatprep.subr.mxu0 0.0
  %786 = vmatpush1.msra.mxu0 %v28
  %787 = vmatprep.subr.mxu0 0.0
  %788 = vmatpush1.msra.mxu0 %v27
  %789 = vmatprep.subr.mxu0 0.0
  %790 = vmatpush1.msra.mxu0 %v26
  %791 = vmatprep.subr.mxu0 0.0
  %792 = vmatpush1.msra.mxu0 %v25
  %793 = vmatprep.subr.mxu0 0.0
  %794 = vmatpush2.msra.mxu0 0.0
  %795 = vmatprep.subr.mxu0 0.0
  %796 = vmatpush2.msra.mxu0 0.0
  %797 = vmatprep.subr.mxu0 0.0
  %798 = vmatpush2.msra.mxu0 0.0
  %799 = vmatprep.subr.mxu0 0.0
  %800 = vmatpush2.msra.mxu0 0.0
  %801 = vmatprep.subr.mxu0 0.0
  %802 = vmatpush2.msra.mxu0 0.0
  %803 = vmatprep.subr.mxu0 0.0
  %804 = vmatpush2.msra.mxu0 0.0
  %805 = vmatprep.subr.mxu0 0.0
  %806 = vmatpush2.msra.mxu0 0.0
  %807 = vmatprep.subr.mxu0 0.0
  %808 = vmatpush2.msra.mxu0 0.0
  %809 = vmatprep.subr.mxu0 0.0
  %810 = vmatpush2.msra.mxu0 0.0
  %811 = vmatprep.subr.mxu0 0.0
  %812 = vmatpush2.msra.mxu0 0.0
  %813 = vmatprep.subr.mxu0 0.0
  %814 = vmatpush2.msra.mxu0 0.0
  %815 = vmatprep.subr.mxu0 0.0
  %816 = vmatpush2.msra.mxu0 0.0
  %817 = vmatprep.subr.mxu0 0.0
  %818 = vmatpush2.msra.mxu0 0.0
  %819 = vmatprep.subr.mxu0 0.0
  %820 = vmatpush2.msra.mxu0 0.0
  %821 = vmatprep.subr.mxu0 0.0
  %822 = vmatpush2.msra.mxu0 0.0
  %823 = vmatprep.subr.mxu0 0.0
  %824 = vmatpush2.msra.mxu0 0.0
  %825 = vmatprep.mubr.f32.mxu0 0.0
  %826 = vmatmul.mubr.f32.gmra.mxu0 %v680
  %v827 = vpop.f32.mrf.mxu0
  %v828 = vadd.f32 0.0, %v827
  %v829 = vpop.f32.mrf.mxu0
  %830 = vdwg.mxu0
  %v831 = vadd.f32 %v760, %v828
  %v832 = vxor.u32 %v831, 2147483648
  %v833 = vmul.f32 %v832, 1.442695
  %v834 = vpow.pop %v833
  %v835 = vadd.f32 %v834, 1.0
  %v836 = vrcp.pop %v835
  %v837 = vmul.f32 1.0, %v836
  %s838 = scalar_lea.vmem %s0, 20
  %v839 = vld [vmem:[%s838] sm:$0x3]
  %840 = vmatprep.subr.mxu0 0.0
  %841 = vmatpush1.msra.mxu0 0.0
  %842 = vmatprep.subr.mxu0 0.0
  %843 = vmatpush1.msra.mxu0 0.0
  %844 = vmatprep.subr.mxu0 0.0
  %845 = vmatpush1.msra.mxu0 0.0
  %846 = vmatprep.subr.mxu0 0.0
  %847 = vmatpush1.msra.mxu0 0.0
  %848 = vmatprep.subr.mxu0 0.0
  %849 = vmatpush1.msra.mxu0 0.0
  %850 = vmatprep.subr.mxu0 0.0
  %851 = vmatpush1.msra.mxu0 0.0
  %852 = vmatprep.subr.mxu0 0.0
  %853 = vmatpush1.msra.mxu0 0.0
  %854 = vmatprep.subr.mxu0 0.0
  %855 = vmatpush1.msra.mxu0 0.0
  %856 = vmatprep.subr.mxu0 0.0
  %857 = vmatpush1.msra.mxu0 0.0
  %858 = vmatprep.subr.mxu0 0.0
  %859 = vmatpush1.msra.mxu0 0.0
  %860 = vmatprep.subr.mxu0 0.0
  %861 = vmatpush1.msra.mxu0 0.0
  %862 = vmatprep.subr.mxu0 0.0
  %863 = vmatpush1.msra.mxu0 0.0
  %864 = vmatprep.subr.mxu0 0.0
  %865 = vmatpush1.msra.mxu0 %v33
  %866 = vmatprep.subr.mxu0 0.0
  %867 = vmatpush1.msra.mxu0 %v32
  %868 = vmatprep.subr.mxu0 0.0
  %869 = vmatpush1.msra.mxu0 %v31
  %870 = vmatprep.subr.mxu0 0.0
  %871 = vmatpush1.msra.mxu0 %v30
  %872 = vmatprep.subr.mxu0 0.0
  %873 = vmatpush2.msra.mxu0 0.0
  %874 = vmatprep.subr.mxu0 0.0
  %875 = vmatpush2.msra.mxu0 0.0
  %876 = vmatprep.subr.mxu0 0.0
  %877 = vmatpush2.msra.mxu0 0.0
  %878 = vmatprep.subr.mxu0 0.0
  %879 = vmatpush2.msra.mxu0 0.0
  %880 = vmatprep.subr.mxu0 0.0
  %881 = vmatpush2.msra.mxu0 0.0
  %882 = vmatprep.subr.mxu0 0.0
  %883 = vmatpush2.msra.mxu0 0.0
  %884 = vmatprep.subr.mxu0 0.0
  %885 = vmatpush2.msra.mxu0 0.0
  %886 = vmatprep.subr.mxu0 0.0
  %887 = vmatpush2.msra.mxu0 0.0
  %888 = vmatprep.subr.mxu0 0.0
  %889 = vmatpush2.msra.mxu0 0.0
  %890 = vmatprep.subr.mxu0 0.0
  %891 = vmatpush2.msra.mxu0 0.0
  %892 = vmatprep.subr.mxu0 0.0
  %893 = vmatpush2.msra.mxu0 0.0
  %894 = vmatprep.subr.mxu0 0.0
  %895 = vmatpush2.msra.mxu0 0.0
  %896 = vmatprep.subr.mxu0 0.0
  %897 = vmatpush2.msra.mxu0 0.0
  %898 = vmatprep.subr.mxu0 0.0
  %899 = vmatpush2.msra.mxu0 0.0
  %900 = vmatprep.subr.mxu0 0.0
  %901 = vmatpush2.msra.mxu0 0.0
  %902 = vmatprep.subr.mxu0 0.0
  %903 = vmatpush2.msra.mxu0 0.0
  %904 = vmatprep.mubr.f32.mxu0 0.0
  %905 = vmatmul.mubr.f32.gmra.mxu0 %v680
  %v906 = vpop.f32.mrf.mxu0
  %v907 = vadd.f32 0.0, %v906
  %v908 = vpop.f32.mrf.mxu0
  %909 = vdwg.mxu0
  %v910 = vadd.f32 %v839, %v907
  %v911 = vtanh.pop %v910
  %s912 = scalar_lea.vmem %s0, 22
  %v913 = vld [vmem:[%s912] sm:$0x3]
  %914 = vmatprep.subr.mxu0 0.0
  %915 = vmatpush1.msra.mxu0 0.0
  %916 = vmatprep.subr.mxu0 0.0
  %917 = vmatpush1.msra.mxu0 0.0
  %918 = vmatprep.subr.mxu0 0.0
  %919 = vmatpush1.msra.mxu0 0.0
  %920 = vmatprep.subr.mxu0 0.0
  %921 = vmatpush1.msra.mxu0 0.0
  %922 = vmatprep.subr.mxu0 0.0
  %923 = vmatpush1.msra.mxu0 0.0
  %924 = vmatprep.subr.mxu0 0.0
  %925 = vmatpush1.msra.mxu0 0.0
  %926 = vmatprep.subr.mxu0 0.0
  %927 = vmatpush1.msra.mxu0 0.0
  %928 = vmatprep.subr.mxu0 0.0
  %929 = vmatpush1.msra.mxu0 0.0
  %930 = vmatprep.subr.mxu0 0.0
  %931 = vmatpush1.msra.mxu0 0.0
  %932 = vmatprep.subr.mxu0 0.0
  %933 = vmatpush1.msra.mxu0 0.0
  %934 = vmatprep.subr.mxu0 0.0
  %935 = vmatpush1.msra.mxu0 0.0
  %936 = vmatprep.subr.mxu0 0.0
  %937 = vmatpush1.msra.mxu0 0.0
  %938 = vmatprep.subr.mxu0 0.0
  %939 = vmatpush1.msra.mxu0 %v38
  %940 = vmatprep.subr.mxu0 0.0
  %941 = vmatpush1.msra.mxu0 %v37
  %942 = vmatprep.subr.mxu0 0.0
  %943 = vmatpush1.msra.mxu0 %v36
  %944 = vmatprep.subr.mxu0 0.0
  %945 = vmatpush1.msra.mxu0 %v35
  %946 = vmatprep.subr.mxu0 0.0
  %947 = vmatpush2.msra.mxu0 0.0
  %948 = vmatprep.subr.mxu0 0.0
  %949 = vmatpush2.msra.mxu0 0.0
  %950 = vmatprep.subr.mxu0 0.0
  %951 = vmatpush2.msra.mxu0 0.0
  %952 = vmatprep.subr.mxu0 0.0
  %953 = vmatpush2.msra.mxu0 0.0
  %954 = vmatprep.subr.mxu0 0.0
  %955 = vmatpush2.msra.mxu0 0.0
  %956 = vmatprep.subr.mxu0 0.0
  %957 = vmatpush2.msra.mxu0 0.0
  %958 = vmatprep.subr.mxu0 0.0
  %959 = vmatpush2.msra.mxu0 0.0
  %960 = vmatprep.subr.mxu0 0.0
  %961 = vmatpush2.msra.mxu0 0.0
  %962 = vmatprep.subr.mxu0 0.0
  %963 = vmatpush2.msra.mxu0 0.0
  %964 = vmatprep.subr.mxu0 0.0
  %965 = vmatpush2.msra.mxu0 0.0
  %966 = vmatprep.subr.mxu0 0.0
  %967 = vmatpush2.msra.mxu0 0.0
  %968 = vmatprep.subr.mxu0 0.0
  %969 = vmatpush2.msra.mxu0 0.0
  %970 = vmatprep.subr.mxu0 0.0
  %971 = vmatpush2.msra.mxu0 0.0
  %972 = vmatprep.subr.mxu0 0.0
  %973 = vmatpush2.msra.mxu0 0.0
  %974 = vmatprep.subr.mxu0 0.0
  %975 = vmatpush2.msra.mxu0 0.0
  %976 = vmatprep.subr.mxu0 0.0
  %977 = vmatpush2.msra.mxu0 0.0
  %978 = vmatprep.mubr.f32.mxu0 0.0
  %979 = vmatmul.mubr.f32.gmra.mxu0 %v680
  %v980 = vpop.f32.mrf.mxu0
  %v981 = vadd.f32 0.0, %v980
  %v982 = vpop.f32.mrf.mxu0
  %983 = vdwg.mxu0
  %v984 = vadd.f32 %v913, %v981
  %v985 = vxor.u32 %v984, 2147483648
  %v986 = vmul.f32 %v985, 1.442695
  %v987 = vpow.pop %v986
  %v988 = vadd.f32 %v987, 1.0
  %v989 = vrcp.pop %v988
  %v990 = vmul.f32 1.0, %v989
  %v991 = vmul.f32 %v837, %v674
  %v992 = vmul.f32 %v758, %v911
  %v993 = vadd.f32 %v991, %v992
  %v994 = vtanh.pop %v993
  %v995 = vmul.f32 %v990, %v994
  %s996 = scalar_lea.vmem %s0, 24
  %v997 = vld [vmem:[%s996] sm:$0x3]
  %v999 = vsel %vm40, %v995, 0
  %1001 = vmatprep.subr.mxu0 0.0
  %1002 = vmatpush1.msra.mxu0 0.0
  %1003 = vmatprep.subr.mxu0 0.0
  %1004 = vmatpush1.msra.mxu0 0.0
  %1005 = vmatprep.subr.mxu0 0.0
  %1006 = vmatpush1.msra.mxu0 0.0
  %1007 = vmatprep.subr.mxu0 0.0
  %1008 = vmatpush1.msra.mxu0 0.0
  %1009 = vmatprep.subr.mxu0 0.0
  %1010 = vmatpush1.msra.mxu0 0.0
  %1011 = vmatprep.subr.mxu0 0.0
  %1012 = vmatpush1.msra.mxu0 0.0
  %1013 = vmatprep.subr.mxu0 0.0
  %1014 = vmatpush1.msra.mxu0 0.0
  %1015 = vmatprep.subr.mxu0 0.0
  %1016 = vmatpush1.msra.mxu0 0.0
  %1017 = vmatprep.subr.mxu0 0.0
  %1018 = vmatpush1.msra.mxu0 0.0
  %1019 = vmatprep.subr.mxu0 0.0
  %1020 = vmatpush1.msra.mxu0 0.0
  %1021 = vmatprep.subr.mxu0 0.0
  %1022 = vmatpush1.msra.mxu0 0.0
  %1023 = vmatprep.subr.mxu0 0.0
  %1024 = vmatpush1.msra.mxu0 0.0
  %1025 = vmatprep.subr.mxu0 0.0
  %1026 = vmatpush1.msra.mxu0 %v23
  %1027 = vmatprep.subr.mxu0 0.0
  %1028 = vmatpush1.msra.mxu0 %v22
  %1029 = vmatprep.subr.mxu0 0.0
  %1030 = vmatpush1.msra.mxu0 %v21
  %1031 = vmatprep.subr.mxu0 0.0
  %1032 = vmatpush1.msra.mxu0 %v20
  %1033 = vmatprep.subr.mxu0 0.0
  %1034 = vmatpush2.msra.mxu0 0.0
  %1035 = vmatprep.subr.mxu0 0.0
  %1036 = vmatpush2.msra.mxu0 0.0
  %1037 = vmatprep.subr.mxu0 0.0
  %1038 = vmatpush2.msra.mxu0 0.0
  %1039 = vmatprep.subr.mxu0 0.0
  %1040 = vmatpush2.msra.mxu0 0.0
  %1041 = vmatprep.subr.mxu0 0.0
  %1042 = vmatpush2.msra.mxu0 0.0
  %1043 = vmatprep.subr.mxu0 0.0
  %1044 = vmatpush2.msra.mxu0 0.0
  %1045 = vmatprep.subr.mxu0 0.0
  %1046 = vmatpush2.msra.mxu0 0.0
  %1047 = vmatprep.subr.mxu0 0.0
  %1048 = vmatpush2.msra.mxu0 0.0
  %1049 = vmatprep.subr.mxu0 0.0
  %1050 = vmatpush2.msra.mxu0 0.0
  %1051 = vmatprep.subr.mxu0 0.0
  %1052 = vmatpush2.msra.mxu0 0.0
  %1053 = vmatprep.subr.mxu0 0.0
  %1054 = vmatpush2.msra.mxu0 0.0
  %1055 = vmatprep.subr.mxu0 0.0
  %1056 = vmatpush2.msra.mxu0 0.0
  %1057 = vmatprep.subr.mxu0 0.0
  %1058 = vmatpush2.msra.mxu0 0.0
  %1059 = vmatprep.subr.mxu0 0.0
  %1060 = vmatpush2.msra.mxu0 0.0
  %1061 = vmatprep.subr.mxu0 0.0
  %1062 = vmatpush2.msra.mxu0 0.0
  %1063 = vmatprep.subr.mxu0 0.0
  %1064 = vmatpush2.msra.mxu0 0.0
  %1065 = vmatprep.mubr.f32.mxu0 0.0
  %1066 = vmatmul.mubr.f32.gmra.mxu0 %v999
  %v1067 = vpop.f32.mrf.mxu0
  %v1068 = vadd.f32 0.0, %v1067
  %v1069 = vpop.f32.mrf.mxu0
  %1070 = vdwg.mxu0
  %v1071 = vadd.f32 %v997, %v1068
  %v1072 = vxor.u32 %v1071, 2147483648
  %v1073 = vmul.f32 %v1072, 1.442695
  %v1074 = vpow.pop %v1073
  %v1075 = vadd.f32 %v1074, 1.0
  %v1076 = vrcp.pop %v1075
  %v1077 = vmul.f32 1.0, %v1076
  %s1078 = scalar_lea.vmem %s0, 26
  %v1079 = vld [vmem:[%s1078] sm:$0x3]
  %1080 = vmatprep.subr.mxu0 0.0
  %1081 = vmatpush1.msra.mxu0 0.0
  %1082 = vmatprep.subr.mxu0 0.0
  %1083 = vmatpush1.msra.mxu0 0.0
  %1084 = vmatprep.subr.mxu0 0.0
  %1085 = vmatpush1.msra.mxu0 0.0
  %1086 = vmatprep.subr.mxu0 0.0
  %1087 = vmatpush1.msra.mxu0 0.0
  %1088 = vmatprep.subr.mxu0 0.0
  %1089 = vmatpush1.msra.mxu0 0.0
  %1090 = vmatprep.subr.mxu0 0.0
  %1091 = vmatpush1.msra.mxu0 0.0
  %1092 = vmatprep.subr.mxu0 0.0
  %1093 = vmatpush1.msra.mxu0 0.0
  %1094 = vmatprep.subr.mxu0 0.0
  %1095 = vmatpush1.msra.mxu0 0.0
  %1096 = vmatprep.subr.mxu0 0.0
  %1097 = vmatpush1.msra.mxu0 0.0
  %1098 = vmatprep.subr.mxu0 0.0
  %1099 = vmatpush1.msra.mxu0 0.0
  %1100 = vmatprep.subr.mxu0 0.0
  %1101 = vmatpush1.msra.mxu0 0.0
  %1102 = vmatprep.subr.mxu0 0.0
  %1103 = vmatpush1.msra.mxu0 0.0
  %1104 = vmatprep.subr.mxu0 0.0
  %1105 = vmatpush1.msra.mxu0 %v28
  %1106 = vmatprep.subr.mxu0 0.0
  %1107 = vmatpush1.msra.mxu0 %v27
  %1108 = vmatprep.subr.mxu0 0.0
  %1109 = vmatpush1.msra.mxu0 %v26
  %1110 = vmatprep.subr.mxu0 0.0
  %1111 = vmatpush1.msra.mxu0 %v25
  %1112 = vmatprep.subr.mxu0 0.0
  %1113 = vmatpush2.msra.mxu0 0.0
  %1114 = vmatprep.subr.mxu0 0.0
  %1115 = vmatpush2.msra.mxu0 0.0
  %1116 = vmatprep.subr.mxu0 0.0
  %1117 = vmatpush2.msra.mxu0 0.0
  %1118 = vmatprep.subr.mxu0 0.0
  %1119 = vmatpush2.msra.mxu0 0.0
  %1120 = vmatprep.subr.mxu0 0.0
  %1121 = vmatpush2.msra.mxu0 0.0
  %1122 = vmatprep.subr.mxu0 0.0
  %1123 = vmatpush2.msra.mxu0 0.0
  %1124 = vmatprep.subr.mxu0 0.0
  %1125 = vmatpush2.msra.mxu0 0.0
  %1126 = vmatprep.subr.mxu0 0.0
  %1127 = vmatpush2.msra.mxu0 0.0
  %1128 = vmatprep.subr.mxu0 0.0
  %1129 = vmatpush2.msra.mxu0 0.0
  %1130 = vmatprep.subr.mxu0 0.0
  %1131 = vmatpush2.msra.mxu0 0.0
  %1132 = vmatprep.subr.mxu0 0.0
  %1133 = vmatpush2.msra.mxu0 0.0
  %1134 = vmatprep.subr.mxu0 0.0
  %1135 = vmatpush2.msra.mxu0 0.0
  %1136 = vmatprep.subr.mxu0 0.0
  %1137 = vmatpush2.msra.mxu0 0.0
  %1138 = vmatprep.subr.mxu0 0.0
  %1139 = vmatpush2.msra.mxu0 0.0
  %1140 = vmatprep.subr.mxu0 0.0
  %1141 = vmatpush2.msra.mxu0 0.0
  %1142 = vmatprep.subr.mxu0 0.0
  %1143 = vmatpush2.msra.mxu0 0.0
  %1144 = vmatprep.mubr.f32.mxu0 0.0
  %1145 = vmatmul.mubr.f32.gmra.mxu0 %v999
  %v1146 = vpop.f32.mrf.mxu0
  %v1147 = vadd.f32 0.0, %v1146
  %v1148 = vpop.f32.mrf.mxu0
  %1149 = vdwg.mxu0
  %v1150 = vadd.f32 %v1079, %v1147
  %v1151 = vxor.u32 %v1150, 2147483648
  %v1152 = vmul.f32 %v1151, 1.442695
  %v1153 = vpow.pop %v1152
  %v1154 = vadd.f32 %v1153, 1.0
  %v1155 = vrcp.pop %v1154
  %v1156 = vmul.f32 1.0, %v1155
  %s1157 = scalar_lea.vmem %s0, 28
  %v1158 = vld [vmem:[%s1157] sm:$0x3]
  %1159 = vmatprep.subr.mxu0 0.0
  %1160 = vmatpush1.msra.mxu0 0.0
  %1161 = vmatprep.subr.mxu0 0.0
  %1162 = vmatpush1.msra.mxu0 0.0
  %1163 = vmatprep.subr.mxu0 0.0
  %1164 = vmatpush1.msra.mxu0 0.0
  %1165 = vmatprep.subr.mxu0 0.0
  %1166 = vmatpush1.msra.mxu0 0.0
  %1167 = vmatprep.subr.mxu0 0.0
  %1168 = vmatpush1.msra.mxu0 0.0
  %1169 = vmatprep.subr.mxu0 0.0
  %1170 = vmatpush1.msra.mxu0 0.0
  %1171 = vmatprep.subr.mxu0 0.0
  %1172 = vmatpush1.msra.mxu0 0.0
  %1173 = vmatprep.subr.mxu0 0.0
  %1174 = vmatpush1.msra.mxu0 0.0
  %1175 = vmatprep.subr.mxu0 0.0
  %1176 = vmatpush1.msra.mxu0 0.0
  %1177 = vmatprep.subr.mxu0 0.0
  %1178 = vmatpush1.msra.mxu0 0.0
  %1179 = vmatprep.subr.mxu0 0.0
  %1180 = vmatpush1.msra.mxu0 0.0
  %1181 = vmatprep.subr.mxu0 0.0
  %1182 = vmatpush1.msra.mxu0 0.0
  %1183 = vmatprep.subr.mxu0 0.0
  %1184 = vmatpush1.msra.mxu0 %v33
  %1185 = vmatprep.subr.mxu0 0.0
  %1186 = vmatpush1.msra.mxu0 %v32
  %1187 = vmatprep.subr.mxu0 0.0
  %1188 = vmatpush1.msra.mxu0 %v31
  %1189 = vmatprep.subr.mxu0 0.0
  %1190 = vmatpush1.msra.mxu0 %v30
  %1191 = vmatprep.subr.mxu0 0.0
  %1192 = vmatpush2.msra.mxu0 0.0
  %1193 = vmatprep.subr.mxu0 0.0
  %1194 = vmatpush2.msra.mxu0 0.0
  %1195 = vmatprep.subr.mxu0 0.0
  %1196 = vmatpush2.msra.mxu0 0.0
  %1197 = vmatprep.subr.mxu0 0.0
  %1198 = vmatpush2.msra.mxu0 0.0
  %1199 = vmatprep.subr.mxu0 0.0
  %1200 = vmatpush2.msra.mxu0 0.0
  %1201 = vmatprep.subr.mxu0 0.0
  %1202 = vmatpush2.msra.mxu0 0.0
  %1203 = vmatprep.subr.mxu0 0.0
  %1204 = vmatpush2.msra.mxu0 0.0
  %1205 = vmatprep.subr.mxu0 0.0
  %1206 = vmatpush2.msra.mxu0 0.0
  %1207 = vmatprep.subr.mxu0 0.0
  %1208 = vmatpush2.msra.mxu0 0.0
  %1209 = vmatprep.subr.mxu0 0.0
  %1210 = vmatpush2.msra.mxu0 0.0
  %1211 = vmatprep.subr.mxu0 0.0
  %1212 = vmatpush2.msra.mxu0 0.0
  %1213 = vmatprep.subr.mxu0 0.0
  %1214 = vmatpush2.msra.mxu0 0.0
  %1215 = vmatprep.subr.mxu0 0.0
  %1216 = vmatpush2.msra.mxu0 0.0
  %1217 = vmatprep.subr.mxu0 0.0
  %1218 = vmatpush2.msra.mxu0 0.0
  %1219 = vmatprep.subr.mxu0 0.0
  %1220 = vmatpush2.msra.mxu0 0.0
  %1221 = vmatprep.subr.mxu0 0.0
  %1222 = vmatpush2.msra.mxu0 0.0
  %1223 = vmatprep.mubr.f32.mxu0 0.0
  %1224 = vmatmul.mubr.f32.gmra.mxu0 %v999
  %v1225 = vpop.f32.mrf.mxu0
  %v1226 = vadd.f32 0.0, %v1225
  %v1227 = vpop.f32.mrf.mxu0
  %1228 = vdwg.mxu0
  %v1229 = vadd.f32 %v1158, %v1226
  %v1230 = vtanh.pop %v1229
  %s1231 = scalar_lea.vmem %s0, 30
  %v1232 = vld [vmem:[%s1231] sm:$0x3]
  %1233 = vmatprep.subr.mxu0 0.0
  %1234 = vmatpush1.msra.mxu0 0.0
  %1235 = vmatprep.subr.mxu0 0.0
  %1236 = vmatpush1.msra.mxu0 0.0
  %1237 = vmatprep.subr.mxu0 0.0
  %1238 = vmatpush1.msra.mxu0 0.0
  %1239 = vmatprep.subr.mxu0 0.0
  %1240 = vmatpush1.msra.mxu0 0.0
  %1241 = vmatprep.subr.mxu0 0.0
  %1242 = vmatpush1.msra.mxu0 0.0
  %1243 = vmatprep.subr.mxu0 0.0
  %1244 = vmatpush1.msra.mxu0 0.0
  %1245 = vmatprep.subr.mxu0 0.0
  %1246 = vmatpush1.msra.mxu0 0.0
  %1247 = vmatprep.subr.mxu0 0.0
  %1248 = vmatpush1.msra.mxu0 0.0
  %1249 = vmatprep.subr.mxu0 0.0
  %1250 = vmatpush1.msra.mxu0 0.0
  %1251 = vmatprep.subr.mxu0 0.0
  %1252 = vmatpush1.msra.mxu0 0.0
  %1253 = vmatprep.subr.mxu0 0.0
  %1254 = vmatpush1.msra.mxu0 0.0
  %1255 = vmatprep.subr.mxu0 0.0
  %1256 = vmatpush1.msra.mxu0 0.0
  %1257 = vmatprep.subr.mxu0 0.0
  %1258 = vmatpush1.msra.mxu0 %v38
  %1259 = vmatprep.subr.mxu0 0.0
  %1260 = vmatpush1.msra.mxu0 %v37
  %1261 = vmatprep.subr.mxu0 0.0
  %1262 = vmatpush1.msra.mxu0 %v36
  %1263 = vmatprep.subr.mxu0 0.0
  %1264 = vmatpush1.msra.mxu0 %v35
  %1265 = vmatprep.subr.mxu0 0.0
  %1266 = vmatpush2.msra.mxu0 0.0
  %1267 = vmatprep.subr.mxu0 0.0
  %1268 = vmatpush2.msra.mxu0 0.0
  %1269 = vmatprep.subr.mxu0 0.0
  %1270 = vmatpush2.msra.mxu0 0.0
  %1271 = vmatprep.subr.mxu0 0.0
  %1272 = vmatpush2.msra.mxu0 0.0
  %1273 = vmatprep.subr.mxu0 0.0
  %1274 = vmatpush2.msra.mxu0 0.0
  %1275 = vmatprep.subr.mxu0 0.0
  %1276 = vmatpush2.msra.mxu0 0.0
  %1277 = vmatprep.subr.mxu0 0.0
  %1278 = vmatpush2.msra.mxu0 0.0
  %1279 = vmatprep.subr.mxu0 0.0
  %1280 = vmatpush2.msra.mxu0 0.0
  %1281 = vmatprep.subr.mxu0 0.0
  %1282 = vmatpush2.msra.mxu0 0.0
  %1283 = vmatprep.subr.mxu0 0.0
  %1284 = vmatpush2.msra.mxu0 0.0
  %1285 = vmatprep.subr.mxu0 0.0
  %1286 = vmatpush2.msra.mxu0 0.0
  %1287 = vmatprep.subr.mxu0 0.0
  %1288 = vmatpush2.msra.mxu0 0.0
  %1289 = vmatprep.subr.mxu0 0.0
  %1290 = vmatpush2.msra.mxu0 0.0
  %1291 = vmatprep.subr.mxu0 0.0
  %1292 = vmatpush2.msra.mxu0 0.0
  %1293 = vmatprep.subr.mxu0 0.0
  %1294 = vmatpush2.msra.mxu0 0.0
  %1295 = vmatprep.subr.mxu0 0.0
  %1296 = vmatpush2.msra.mxu0 0.0
  %1297 = vmatprep.mubr.f32.mxu0 0.0
  %1298 = vmatmul.mubr.f32.gmra.mxu0 %v999
  %v1299 = vpop.f32.mrf.mxu0
  %v1300 = vadd.f32 0.0, %v1299
  %v1301 = vpop.f32.mrf.mxu0
  %1302 = vdwg.mxu0
  %v1303 = vadd.f32 %v1232, %v1300
  %v1304 = vxor.u32 %v1303, 2147483648
  %v1305 = vmul.f32 %v1304, 1.442695
  %v1306 = vpow.pop %v1305
  %v1307 = vadd.f32 %v1306, 1.0
  %v1308 = vrcp.pop %v1307
  %v1309 = vmul.f32 1.0, %v1308
  %v1310 = vmul.f32 %v1156, %v993
  %v1311 = vmul.f32 %v1077, %v1230
  %v1312 = vadd.f32 %v1310, %v1311
  %v1313 = vtanh.pop %v1312
  %v1314 = vmul.f32 %v1309, %v1313
  %s1315 = scalar_lea.vmem %s0, 32
  %v1316 = vld [vmem:[%s1315] sm:$0x3]
  %v1318 = vsel %vm40, %v1314, 0
  %1320 = vmatprep.subr.mxu0 0.0
  %1321 = vmatpush1.msra.mxu0 0.0
  %1322 = vmatprep.subr.mxu0 0.0
  %1323 = vmatpush1.msra.mxu0 0.0
  %1324 = vmatprep.subr.mxu0 0.0
  %1325 = vmatpush1.msra.mxu0 0.0
  %1326 = vmatprep.subr.mxu0 0.0
  %1327 = vmatpush1.msra.mxu0 0.0
  %1328 = vmatprep.subr.mxu0 0.0
  %1329 = vmatpush1.msra.mxu0 0.0
  %1330 = vmatprep.subr.mxu0 0.0
  %1331 = vmatpush1.msra.mxu0 0.0
  %1332 = vmatprep.subr.mxu0 0.0
  %1333 = vmatpush1.msra.mxu0 0.0
  %1334 = vmatprep.subr.mxu0 0.0
  %1335 = vmatpush1.msra.mxu0 0.0
  %1336 = vmatprep.subr.mxu0 0.0
  %1337 = vmatpush1.msra.mxu0 0.0
  %1338 = vmatprep.subr.mxu0 0.0
  %1339 = vmatpush1.msra.mxu0 0.0
  %1340 = vmatprep.subr.mxu0 0.0
  %1341 = vmatpush1.msra.mxu0 0.0
  %1342 = vmatprep.subr.mxu0 0.0
  %1343 = vmatpush1.msra.mxu0 0.0
  %1344 = vmatprep.subr.mxu0 0.0
  %1345 = vmatpush1.msra.mxu0 %v23
  %1346 = vmatprep.subr.mxu0 0.0
  %1347 = vmatpush1.msra.mxu0 %v22
  %1348 = vmatprep.subr.mxu0 0.0
  %1349 = vmatpush1.msra.mxu0 %v21
  %1350 = vmatprep.subr.mxu0 0.0
  %1351 = vmatpush1.msra.mxu0 %v20
  %1352 = vmatprep.subr.mxu0 0.0
  %1353 = vmatpush2.msra.mxu0 0.0
  %1354 = vmatprep.subr.mxu0 0.0
  %1355 = vmatpush2.msra.mxu0 0.0
  %1356 = vmatprep.subr.mxu0 0.0
  %1357 = vmatpush2.msra.mxu0 0.0
  %1358 = vmatprep.subr.mxu0 0.0
  %1359 = vmatpush2.msra.mxu0 0.0
  %1360 = vmatprep.subr.mxu0 0.0
  %1361 = vmatpush2.msra.mxu0 0.0
  %1362 = vmatprep.subr.mxu0 0.0
  %1363 = vmatpush2.msra.mxu0 0.0
  %1364 = vmatprep.subr.mxu0 0.0
  %1365 = vmatpush2.msra.mxu0 0.0
  %1366 = vmatprep.subr.mxu0 0.0
  %1367 = vmatpush2.msra.mxu0 0.0
  %1368 = vmatprep.subr.mxu0 0.0
  %1369 = vmatpush2.msra.mxu0 0.0
  %1370 = vmatprep.subr.mxu0 0.0
  %1371 = vmatpush2.msra.mxu0 0.0
  %1372 = vmatprep.subr.mxu0 0.0
  %1373 = vmatpush2.msra.mxu0 0.0
  %1374 = vmatprep.subr.mxu0 0.0
  %1375 = vmatpush2.msra.mxu0 0.0
  %1376 = vmatprep.subr.mxu0 0.0
  %1377 = vmatpush2.msra.mxu0 0.0
  %1378 = vmatprep.subr.mxu0 0.0
  %1379 = vmatpush2.msra.mxu0 0.0
  %1380 = vmatprep.subr.mxu0 0.0
  %1381 = vmatpush2.msra.mxu0 0.0
  %1382 = vmatprep.subr.mxu0 0.0
  %1383 = vmatpush2.msra.mxu0 0.0
  %1384 = vmatprep.mubr.f32.mxu0 0.0
  %1385 = vmatmul.mubr.f32.gmra.mxu0 %v1318
  %v1386 = vpop.f32.mrf.mxu0
  %v1387 = vadd.f32 0.0, %v1386
  %v1388 = vpop.f32.mrf.mxu0
  %1389 = vdwg.mxu0
  %v1390 = vadd.f32 %v1316, %v1387
  %v1391 = vxor.u32 %v1390, 2147483648
  %v1392 = vmul.f32 %v1391, 1.442695
  %v1393 = vpow.pop %v1392
  %v1394 = vadd.f32 %v1393, 1.0
  %v1395 = vrcp.pop %v1394
  %v1396 = vmul.f32 1.0, %v1395
  %s1397 = scalar_lea.vmem %s0, 34
  %v1398 = vld [vmem:[%s1397] sm:$0x3]
  %1399 = vmatprep.subr.mxu0 0.0
  %1400 = vmatpush1.msra.mxu0 0.0
  %1401 = vmatprep.subr.mxu0 0.0
  %1402 = vmatpush1.msra.mxu0 0.0
  %1403 = vmatprep.subr.mxu0 0.0
  %1404 = vmatpush1.msra.mxu0 0.0
  %1405 = vmatprep.subr.mxu0 0.0
  %1406 = vmatpush1.msra.mxu0 0.0
  %1407 = vmatprep.subr.mxu0 0.0
  %1408 = vmatpush1.msra.mxu0 0.0
  %1409 = vmatprep.subr.mxu0 0.0
  %1410 = vmatpush1.msra.mxu0 0.0
  %1411 = vmatprep.subr.mxu0 0.0
  %1412 = vmatpush1.msra.mxu0 0.0
  %1413 = vmatprep.subr.mxu0 0.0
  %1414 = vmatpush1.msra.mxu0 0.0
  %1415 = vmatprep.subr.mxu0 0.0
  %1416 = vmatpush1.msra.mxu0 0.0
  %1417 = vmatprep.subr.mxu0 0.0
  %1418 = vmatpush1.msra.mxu0 0.0
  %1419 = vmatprep.subr.mxu0 0.0
  %1420 = vmatpush1.msra.mxu0 0.0
  %1421 = vmatprep.subr.mxu0 0.0
  %1422 = vmatpush1.msra.mxu0 0.0
  %1423 = vmatprep.subr.mxu0 0.0
  %1424 = vmatpush1.msra.mxu0 %v28
  %1425 = vmatprep.subr.mxu0 0.0
  %1426 = vmatpush1.msra.mxu0 %v27
  %1427 = vmatprep.subr.mxu0 0.0
  %1428 = vmatpush1.msra.mxu0 %v26
  %1429 = vmatprep.subr.mxu0 0.0
  %1430 = vmatpush1.msra.mxu0 %v25
  %1431 = vmatprep.subr.mxu0 0.0
  %1432 = vmatpush2.msra.mxu0 0.0
  %1433 = vmatprep.subr.mxu0 0.0
  %1434 = vmatpush2.msra.mxu0 0.0
  %1435 = vmatprep.subr.mxu0 0.0
  %1436 = vmatpush2.msra.mxu0 0.0
  %1437 = vmatprep.subr.mxu0 0.0
  %1438 = vmatpush2.msra.mxu0 0.0
  %1439 = vmatprep.subr.mxu0 0.0
  %1440 = vmatpush2.msra.mxu0 0.0
  %1441 = vmatprep.subr.mxu0 0.0
  %1442 = vmatpush2.msra.mxu0 0.0
  %1443 = vmatprep.subr.mxu0 0.0
  %1444 = vmatpush2.msra.mxu0 0.0
  %1445 = vmatprep.subr.mxu0 0.0
  %1446 = vmatpush2.msra.mxu0 0.0
  %1447 = vmatprep.subr.mxu0 0.0
  %1448 = vmatpush2.msra.mxu0 0.0
  %1449 = vmatprep.subr.mxu0 0.0
  %1450 = vmatpush2.msra.mxu0 0.0
  %1451 = vmatprep.subr.mxu0 0.0
  %1452 = vmatpush2.msra.mxu0 0.0
  %1453 = vmatprep.subr.mxu0 0.0
  %1454 = vmatpush2.msra.mxu0 0.0
  %1455 = vmatprep.subr.mxu0 0.0
  %1456 = vmatpush2.msra.mxu0 0.0
  %1457 = vmatprep.subr.mxu0 0.0
  %1458 = vmatpush2.msra.mxu0 0.0
  %1459 = vmatprep.subr.mxu0 0.0
  %1460 = vmatpush2.msra.mxu0 0.0
  %1461 = vmatprep.subr.mxu0 0.0
  %1462 = vmatpush2.msra.mxu0 0.0
  %1463 = vmatprep.mubr.f32.mxu0 0.0
  %1464 = vmatmul.mubr.f32.gmra.mxu0 %v1318
  %v1465 = vpop.f32.mrf.mxu0
  %v1466 = vadd.f32 0.0, %v1465
  %v1467 = vpop.f32.mrf.mxu0
  %1468 = vdwg.mxu0
  %v1469 = vadd.f32 %v1398, %v1466
  %v1470 = vxor.u32 %v1469, 2147483648
  %v1471 = vmul.f32 %v1470, 1.442695
  %v1472 = vpow.pop %v1471
  %v1473 = vadd.f32 %v1472, 1.0
  %v1474 = vrcp.pop %v1473
  %v1475 = vmul.f32 1.0, %v1474
  %s1476 = scalar_lea.vmem %s0, 36
  %v1477 = vld [vmem:[%s1476] sm:$0x3]
  %1478 = vmatprep.subr.mxu0 0.0
  %1479 = vmatpush1.msra.mxu0 0.0
  %1480 = vmatprep.subr.mxu0 0.0
  %1481 = vmatpush1.msra.mxu0 0.0
  %1482 = vmatprep.subr.mxu0 0.0
  %1483 = vmatpush1.msra.mxu0 0.0
  %1484 = vmatprep.subr.mxu0 0.0
  %1485 = vmatpush1.msra.mxu0 0.0
  %1486 = vmatprep.subr.mxu0 0.0
  %1487 = vmatpush1.msra.mxu0 0.0
  %1488 = vmatprep.subr.mxu0 0.0
  %1489 = vmatpush1.msra.mxu0 0.0
  %1490 = vmatprep.subr.mxu0 0.0
  %1491 = vmatpush1.msra.mxu0 0.0
  %1492 = vmatprep.subr.mxu0 0.0
  %1493 = vmatpush1.msra.mxu0 0.0
  %1494 = vmatprep.subr.mxu0 0.0
  %1495 = vmatpush1.msra.mxu0 0.0
  %1496 = vmatprep.subr.mxu0 0.0
  %1497 = vmatpush1.msra.mxu0 0.0
  %1498 = vmatprep.subr.mxu0 0.0
  %1499 = vmatpush1.msra.mxu0 0.0
  %1500 = vmatprep.subr.mxu0 0.0
  %1501 = vmatpush1.msra.mxu0 0.0
  %1502 = vmatprep.subr.mxu0 0.0
  %1503 = vmatpush1.msra.mxu0 %v33
  %1504 = vmatprep.subr.mxu0 0.0
  %1505 = vmatpush1.msra.mxu0 %v32
  %1506 = vmatprep.subr.mxu0 0.0
  %1507 = vmatpush1.msra.mxu0 %v31
  %1508 = vmatprep.subr.mxu0 0.0
  %1509 = vmatpush1.msra.mxu0 %v30
  %1510 = vmatprep.subr.mxu0 0.0
  %1511 = vmatpush2.msra.mxu0 0.0
  %1512 = vmatprep.subr.mxu0 0.0
  %1513 = vmatpush2.msra.mxu0 0.0
  %1514 = vmatprep.subr.mxu0 0.0
  %1515 = vmatpush2.msra.mxu0 0.0
  %1516 = vmatprep.subr.mxu0 0.0
  %1517 = vmatpush2.msra.mxu0 0.0
  %1518 = vmatprep.subr.mxu0 0.0
  %1519 = vmatpush2.msra.mxu0 0.0
  %1520 = vmatprep.subr.mxu0 0.0
  %1521 = vmatpush2.msra.mxu0 0.0
  %1522 = vmatprep.subr.mxu0 0.0
  %1523 = vmatpush2.msra.mxu0 0.0
  %1524 = vmatprep.subr.mxu0 0.0
  %1525 = vmatpush2.msra.mxu0 0.0
  %1526 = vmatprep.subr.mxu0 0.0
  %1527 = vmatpush2.msra.mxu0 0.0
  %1528 = vmatprep.subr.mxu0 0.0
  %1529 = vmatpush2.msra.mxu0 0.0
  %1530 = vmatprep.subr.mxu0 0.0
  %1531 = vmatpush2.msra.mxu0 0.0
  %1532 = vmatprep.subr.mxu0 0.0
  %1533 = vmatpush2.msra.mxu0 0.0
  %1534 = vmatprep.subr.mxu0 0.0
  %1535 = vmatpush2.msra.mxu0 0.0
  %1536 = vmatprep.subr.mxu0 0.0
  %1537 = vmatpush2.msra.mxu0 0.0
  %1538 = vmatprep.subr.mxu0 0.0
  %1539 = vmatpush2.msra.mxu0 0.0
  %1540 = vmatprep.subr.mxu0 0.0
  %1541 = vmatpush2.msra.mxu0 0.0
  %1542 = vmatprep.mubr.f32.mxu0 0.0
  %1543 = vmatmul.mubr.f32.gmra.mxu0 %v1318
  %v1544 = vpop.f32.mrf.mxu0
  %v1545 = vadd.f32 0.0, %v1544
  %v1546 = vpop.f32.mrf.mxu0
  %1547 = vdwg.mxu0
  %v1548 = vadd.f32 %v1477, %v1545
  %v1549 = vtanh.pop %v1548
  %s1550 = scalar_lea.vmem %s0, 38
  %v1551 = vld [vmem:[%s1550] sm:$0x3]
  %1552 = vmatprep.subr.mxu0 0.0
  %1553 = vmatpush1.msra.mxu0 0.0
  %1554 = vmatprep.subr.mxu0 0.0
  %1555 = vmatpush1.msra.mxu0 0.0
  %1556 = vmatprep.subr.mxu0 0.0
  %1557 = vmatpush1.msra.mxu0 0.0
  %1558 = vmatprep.subr.mxu0 0.0
  %1559 = vmatpush1.msra.mxu0 0.0
  %1560 = vmatprep.subr.mxu0 0.0
  %1561 = vmatpush1.msra.mxu0 0.0
  %1562 = vmatprep.subr.mxu0 0.0
  %1563 = vmatpush1.msra.mxu0 0.0
  %1564 = vmatprep.subr.mxu0 0.0
  %1565 = vmatpush1.msra.mxu0 0.0
  %1566 = vmatprep.subr.mxu0 0.0
  %1567 = vmatpush1.msra.mxu0 0.0
  %1568 = vmatprep.subr.mxu0 0.0
  %1569 = vmatpush1.msra.mxu0 0.0
  %1570 = vmatprep.subr.mxu0 0.0
  %1571 = vmatpush1.msra.mxu0 0.0
  %1572 = vmatprep.subr.mxu0 0.0
  %1573 = vmatpush1.msra.mxu0 0.0
  %1574 = vmatprep.subr.mxu0 0.0
  %1575 = vmatpush1.msra.mxu0 0.0
  %1576 = vmatprep.subr.mxu0 0.0
  %1577 = vmatpush1.msra.mxu0 %v38
  %1578 = vmatprep.subr.mxu0 0.0
  %1579 = vmatpush1.msra.mxu0 %v37
  %1580 = vmatprep.subr.mxu0 0.0
  %1581 = vmatpush1.msra.mxu0 %v36
  %1582 = vmatprep.subr.mxu0 0.0
  %1583 = vmatpush1.msra.mxu0 %v35
  %1584 = vmatprep.subr.mxu0 0.0
  %1585 = vmatpush2.msra.mxu0 0.0
  %1586 = vmatprep.subr.mxu0 0.0
  %1587 = vmatpush2.msra.mxu0 0.0
  %1588 = vmatprep.subr.mxu0 0.0
  %1589 = vmatpush2.msra.mxu0 0.0
  %1590 = vmatprep.subr.mxu0 0.0
  %1591 = vmatpush2.msra.mxu0 0.0
  %1592 = vmatprep.subr.mxu0 0.0
  %1593 = vmatpush2.msra.mxu0 0.0
  %1594 = vmatprep.subr.mxu0 0.0
  %1595 = vmatpush2.msra.mxu0 0.0
  %1596 = vmatprep.subr.mxu0 0.0
  %1597 = vmatpush2.msra.mxu0 0.0
  %1598 = vmatprep.subr.mxu0 0.0
  %1599 = vmatpush2.msra.mxu0 0.0
  %1600 = vmatprep.subr.mxu0 0.0
  %1601 = vmatpush2.msra.mxu0 0.0
  %1602 = vmatprep.subr.mxu0 0.0
  %1603 = vmatpush2.msra.mxu0 0.0
  %1604 = vmatprep.subr.mxu0 0.0
  %1605 = vmatpush2.msra.mxu0 0.0
  %1606 = vmatprep.subr.mxu0 0.0
  %1607 = vmatpush2.msra.mxu0 0.0
  %1608 = vmatprep.subr.mxu0 0.0
  %1609 = vmatpush2.msra.mxu0 0.0
  %1610 = vmatprep.subr.mxu0 0.0
  %1611 = vmatpush2.msra.mxu0 0.0
  %1612 = vmatprep.subr.mxu0 0.0
  %1613 = vmatpush2.msra.mxu0 0.0
  %1614 = vmatprep.subr.mxu0 0.0
  %1615 = vmatpush2.msra.mxu0 0.0
  %1616 = vmatprep.mubr.f32.mxu0 0.0
  %1617 = vmatmul.mubr.f32.gmra.mxu0 %v1318
  %v1618 = vpop.f32.mrf.mxu0
  %v1619 = vadd.f32 0.0, %v1618
  %v1620 = vpop.f32.mrf.mxu0
  %1621 = vdwg.mxu0
  %v1622 = vadd.f32 %v1551, %v1619
  %v1623 = vxor.u32 %v1622, 2147483648
  %v1624 = vmul.f32 %v1623, 1.442695
  %v1625 = vpow.pop %v1624
  %v1626 = vadd.f32 %v1625, 1.0
  %v1627 = vrcp.pop %v1626
  %v1628 = vmul.f32 1.0, %v1627
  %v1629 = vmul.f32 %v1475, %v1312
  %v1630 = vmul.f32 %v1396, %v1549
  %v1631 = vadd.f32 %v1629, %v1630
  %v1632 = vtanh.pop %v1631
  %v1633 = vmul.f32 %v1628, %v1632
  %s1634 = scalar_lea.vmem %s0, 40
  %v1635 = vld [vmem:[%s1634] sm:$0x3]
  %v1637 = vsel %vm40, %v1633, 0
  %1639 = vmatprep.subr.mxu0 0.0
  %1640 = vmatpush1.msra.mxu0 0.0
  %1641 = vmatprep.subr.mxu0 0.0
  %1642 = vmatpush1.msra.mxu0 0.0
  %1643 = vmatprep.subr.mxu0 0.0
  %1644 = vmatpush1.msra.mxu0 0.0
  %1645 = vmatprep.subr.mxu0 0.0
  %1646 = vmatpush1.msra.mxu0 0.0
  %1647 = vmatprep.subr.mxu0 0.0
  %1648 = vmatpush1.msra.mxu0 0.0
  %1649 = vmatprep.subr.mxu0 0.0
  %1650 = vmatpush1.msra.mxu0 0.0
  %1651 = vmatprep.subr.mxu0 0.0
  %1652 = vmatpush1.msra.mxu0 0.0
  %1653 = vmatprep.subr.mxu0 0.0
  %1654 = vmatpush1.msra.mxu0 0.0
  %1655 = vmatprep.subr.mxu0 0.0
  %1656 = vmatpush1.msra.mxu0 0.0
  %1657 = vmatprep.subr.mxu0 0.0
  %1658 = vmatpush1.msra.mxu0 0.0
  %1659 = vmatprep.subr.mxu0 0.0
  %1660 = vmatpush1.msra.mxu0 0.0
  %1661 = vmatprep.subr.mxu0 0.0
  %1662 = vmatpush1.msra.mxu0 0.0
  %1663 = vmatprep.subr.mxu0 0.0
  %1664 = vmatpush1.msra.mxu0 %v23
  %1665 = vmatprep.subr.mxu0 0.0
  %1666 = vmatpush1.msra.mxu0 %v22
  %1667 = vmatprep.subr.mxu0 0.0
  %1668 = vmatpush1.msra.mxu0 %v21
  %1669 = vmatprep.subr.mxu0 0.0
  %1670 = vmatpush1.msra.mxu0 %v20
  %1671 = vmatprep.subr.mxu0 0.0
  %1672 = vmatpush2.msra.mxu0 0.0
  %1673 = vmatprep.subr.mxu0 0.0
  %1674 = vmatpush2.msra.mxu0 0.0
  %1675 = vmatprep.subr.mxu0 0.0
  %1676 = vmatpush2.msra.mxu0 0.0
  %1677 = vmatprep.subr.mxu0 0.0
  %1678 = vmatpush2.msra.mxu0 0.0
  %1679 = vmatprep.subr.mxu0 0.0
  %1680 = vmatpush2.msra.mxu0 0.0
  %1681 = vmatprep.subr.mxu0 0.0
  %1682 = vmatpush2.msra.mxu0 0.0
  %1683 = vmatprep.subr.mxu0 0.0
  %1684 = vmatpush2.msra.mxu0 0.0
  %1685 = vmatprep.subr.mxu0 0.0
  %1686 = vmatpush2.msra.mxu0 0.0
  %1687 = vmatprep.subr.mxu0 0.0
  %1688 = vmatpush2.msra.mxu0 0.0
  %1689 = vmatprep.subr.mxu0 0.0
  %1690 = vmatpush2.msra.mxu0 0.0
  %1691 = vmatprep.subr.mxu0 0.0
  %1692 = vmatpush2.msra.mxu0 0.0
  %1693 = vmatprep.subr.mxu0 0.0
  %1694 = vmatpush2.msra.mxu0 0.0
  %1695 = vmatprep.subr.mxu0 0.0
  %1696 = vmatpush2.msra.mxu0 0.0
  %1697 = vmatprep.subr.mxu0 0.0
  %1698 = vmatpush2.msra.mxu0 0.0
  %1699 = vmatprep.subr.mxu0 0.0
  %1700 = vmatpush2.msra.mxu0 0.0
  %1701 = vmatprep.subr.mxu0 0.0
  %1702 = vmatpush2.msra.mxu0 0.0
  %1703 = vmatprep.mubr.f32.mxu0 0.0
  %1704 = vmatmul.mubr.f32.gmra.mxu0 %v1637
  %v1705 = vpop.f32.mrf.mxu0
  %v1706 = vadd.f32 0.0, %v1705
  %v1707 = vpop.f32.mrf.mxu0
  %1708 = vdwg.mxu0
  %v1709 = vadd.f32 %v1635, %v1706
  %v1710 = vxor.u32 %v1709, 2147483648
  %v1711 = vmul.f32 %v1710, 1.442695
  %v1712 = vpow.pop %v1711
  %v1713 = vadd.f32 %v1712, 1.0
  %v1714 = vrcp.pop %v1713
  %v1715 = vmul.f32 1.0, %v1714
  %s1716 = scalar_lea.vmem %s0, 42
  %v1717 = vld [vmem:[%s1716] sm:$0x3]
  %1718 = vmatprep.subr.mxu0 0.0
  %1719 = vmatpush1.msra.mxu0 0.0
  %1720 = vmatprep.subr.mxu0 0.0
  %1721 = vmatpush1.msra.mxu0 0.0
  %1722 = vmatprep.subr.mxu0 0.0
  %1723 = vmatpush1.msra.mxu0 0.0
  %1724 = vmatprep.subr.mxu0 0.0
  %1725 = vmatpush1.msra.mxu0 0.0
  %1726 = vmatprep.subr.mxu0 0.0
  %1727 = vmatpush1.msra.mxu0 0.0
  %1728 = vmatprep.subr.mxu0 0.0
  %1729 = vmatpush1.msra.mxu0 0.0
  %1730 = vmatprep.subr.mxu0 0.0
  %1731 = vmatpush1.msra.mxu0 0.0
  %1732 = vmatprep.subr.mxu0 0.0
  %1733 = vmatpush1.msra.mxu0 0.0
  %1734 = vmatprep.subr.mxu0 0.0
  %1735 = vmatpush1.msra.mxu0 0.0
  %1736 = vmatprep.subr.mxu0 0.0
  %1737 = vmatpush1.msra.mxu0 0.0
  %1738 = vmatprep.subr.mxu0 0.0
  %1739 = vmatpush1.msra.mxu0 0.0
  %1740 = vmatprep.subr.mxu0 0.0
  %1741 = vmatpush1.msra.mxu0 0.0
  %1742 = vmatprep.subr.mxu0 0.0
  %1743 = vmatpush1.msra.mxu0 %v28
  %1744 = vmatprep.subr.mxu0 0.0
  %1745 = vmatpush1.msra.mxu0 %v27
  %1746 = vmatprep.subr.mxu0 0.0
  %1747 = vmatpush1.msra.mxu0 %v26
  %1748 = vmatprep.subr.mxu0 0.0
  %1749 = vmatpush1.msra.mxu0 %v25
  %1750 = vmatprep.subr.mxu0 0.0
  %1751 = vmatpush2.msra.mxu0 0.0
  %1752 = vmatprep.subr.mxu0 0.0
  %1753 = vmatpush2.msra.mxu0 0.0
  %1754 = vmatprep.subr.mxu0 0.0
  %1755 = vmatpush2.msra.mxu0 0.0
  %1756 = vmatprep.subr.mxu0 0.0
  %1757 = vmatpush2.msra.mxu0 0.0
  %1758 = vmatprep.subr.mxu0 0.0
  %1759 = vmatpush2.msra.mxu0 0.0
  %1760 = vmatprep.subr.mxu0 0.0
  %1761 = vmatpush2.msra.mxu0 0.0
  %1762 = vmatprep.subr.mxu0 0.0
  %1763 = vmatpush2.msra.mxu0 0.0
  %1764 = vmatprep.subr.mxu0 0.0
  %1765 = vmatpush2.msra.mxu0 0.0
  %1766 = vmatprep.subr.mxu0 0.0
  %1767 = vmatpush2.msra.mxu0 0.0
  %1768 = vmatprep.subr.mxu0 0.0
  %1769 = vmatpush2.msra.mxu0 0.0
  %1770 = vmatprep.subr.mxu0 0.0
  %1771 = vmatpush2.msra.mxu0 0.0
  %1772 = vmatprep.subr.mxu0 0.0
  %1773 = vmatpush2.msra.mxu0 0.0
  %1774 = vmatprep.subr.mxu0 0.0
  %1775 = vmatpush2.msra.mxu0 0.0
  %1776 = vmatprep.subr.mxu0 0.0
  %1777 = vmatpush2.msra.mxu0 0.0
  %1778 = vmatprep.subr.mxu0 0.0
  %1779 = vmatpush2.msra.mxu0 0.0
  %1780 = vmatprep.subr.mxu0 0.0
  %1781 = vmatpush2.msra.mxu0 0.0
  %1782 = vmatprep.mubr.f32.mxu0 0.0
  %1783 = vmatmul.mubr.f32.gmra.mxu0 %v1637
  %v1784 = vpop.f32.mrf.mxu0
  %v1785 = vadd.f32 0.0, %v1784
  %v1786 = vpop.f32.mrf.mxu0
  %1787 = vdwg.mxu0
  %v1788 = vadd.f32 %v1717, %v1785
  %v1789 = vxor.u32 %v1788, 2147483648
  %v1790 = vmul.f32 %v1789, 1.442695
  %v1791 = vpow.pop %v1790
  %v1792 = vadd.f32 %v1791, 1.0
  %v1793 = vrcp.pop %v1792
  %v1794 = vmul.f32 1.0, %v1793
  %s1795 = scalar_lea.vmem %s0, 44
  %v1796 = vld [vmem:[%s1795] sm:$0x3]
  %1797 = vmatprep.subr.mxu0 0.0
  %1798 = vmatpush1.msra.mxu0 0.0
  %1799 = vmatprep.subr.mxu0 0.0
  %1800 = vmatpush1.msra.mxu0 0.0
  %1801 = vmatprep.subr.mxu0 0.0
  %1802 = vmatpush1.msra.mxu0 0.0
  %1803 = vmatprep.subr.mxu0 0.0
  %1804 = vmatpush1.msra.mxu0 0.0
  %1805 = vmatprep.subr.mxu0 0.0
  %1806 = vmatpush1.msra.mxu0 0.0
  %1807 = vmatprep.subr.mxu0 0.0
  %1808 = vmatpush1.msra.mxu0 0.0
  %1809 = vmatprep.subr.mxu0 0.0
  %1810 = vmatpush1.msra.mxu0 0.0
  %1811 = vmatprep.subr.mxu0 0.0
  %1812 = vmatpush1.msra.mxu0 0.0
  %1813 = vmatprep.subr.mxu0 0.0
  %1814 = vmatpush1.msra.mxu0 0.0
  %1815 = vmatprep.subr.mxu0 0.0
  %1816 = vmatpush1.msra.mxu0 0.0
  %1817 = vmatprep.subr.mxu0 0.0
  %1818 = vmatpush1.msra.mxu0 0.0
  %1819 = vmatprep.subr.mxu0 0.0
  %1820 = vmatpush1.msra.mxu0 0.0
  %1821 = vmatprep.subr.mxu0 0.0
  %1822 = vmatpush1.msra.mxu0 %v33
  %1823 = vmatprep.subr.mxu0 0.0
  %1824 = vmatpush1.msra.mxu0 %v32
  %1825 = vmatprep.subr.mxu0 0.0
  %1826 = vmatpush1.msra.mxu0 %v31
  %1827 = vmatprep.subr.mxu0 0.0
  %1828 = vmatpush1.msra.mxu0 %v30
  %1829 = vmatprep.subr.mxu0 0.0
  %1830 = vmatpush2.msra.mxu0 0.0
  %1831 = vmatprep.subr.mxu0 0.0
  %1832 = vmatpush2.msra.mxu0 0.0
  %1833 = vmatprep.subr.mxu0 0.0
  %1834 = vmatpush2.msra.mxu0 0.0
  %1835 = vmatprep.subr.mxu0 0.0
  %1836 = vmatpush2.msra.mxu0 0.0
  %1837 = vmatprep.subr.mxu0 0.0
  %1838 = vmatpush2.msra.mxu0 0.0
  %1839 = vmatprep.subr.mxu0 0.0
  %1840 = vmatpush2.msra.mxu0 0.0
  %1841 = vmatprep.subr.mxu0 0.0
  %1842 = vmatpush2.msra.mxu0 0.0
  %1843 = vmatprep.subr.mxu0 0.0
  %1844 = vmatpush2.msra.mxu0 0.0
  %1845 = vmatprep.subr.mxu0 0.0
  %1846 = vmatpush2.msra.mxu0 0.0
  %1847 = vmatprep.subr.mxu0 0.0
  %1848 = vmatpush2.msra.mxu0 0.0
  %1849 = vmatprep.subr.mxu0 0.0
  %1850 = vmatpush2.msra.mxu0 0.0
  %1851 = vmatprep.subr.mxu0 0.0
  %1852 = vmatpush2.msra.mxu0 0.0
  %1853 = vmatprep.subr.mxu0 0.0
  %1854 = vmatpush2.msra.mxu0 0.0
  %1855 = vmatprep.subr.mxu0 0.0
  %1856 = vmatpush2.msra.mxu0 0.0
  %1857 = vmatprep.subr.mxu0 0.0
  %1858 = vmatpush2.msra.mxu0 0.0
  %1859 = vmatprep.subr.mxu0 0.0
  %1860 = vmatpush2.msra.mxu0 0.0
  %1861 = vmatprep.mubr.f32.mxu0 0.0
  %1862 = vmatmul.mubr.f32.gmra.mxu0 %v1637
  %v1863 = vpop.f32.mrf.mxu0
  %v1864 = vadd.f32 0.0, %v1863
  %v1865 = vpop.f32.mrf.mxu0
  %1866 = vdwg.mxu0
  %v1867 = vadd.f32 %v1796, %v1864
  %v1868 = vtanh.pop %v1867
  %s1869 = scalar_lea.vmem %s0, 46
  %v1870 = vld [vmem:[%s1869] sm:$0x3]
  %1871 = vmatprep.subr.mxu0 0.0
  %1872 = vmatpush1.msra.mxu0 0.0
  %1873 = vmatprep.subr.mxu0 0.0
  %1874 = vmatpush1.msra.mxu0 0.0
  %1875 = vmatprep.subr.mxu0 0.0
  %1876 = vmatpush1.msra.mxu0 0.0
  %1877 = vmatprep.subr.mxu0 0.0
  %1878 = vmatpush1.msra.mxu0 0.0
  %1879 = vmatprep.subr.mxu0 0.0
  %1880 = vmatpush1.msra.mxu0 0.0
  %1881 = vmatprep.subr.mxu0 0.0
  %1882 = vmatpush1.msra.mxu0 0.0
  %1883 = vmatprep.subr.mxu0 0.0
  %1884 = vmatpush1.msra.mxu0 0.0
  %1885 = vmatprep.subr.mxu0 0.0
  %1886 = vmatpush1.msra.mxu0 0.0
  %1887 = vmatprep.subr.mxu0 0.0
  %1888 = vmatpush1.msra.mxu0 0.0
  %1889 = vmatprep.subr.mxu0 0.0
  %1890 = vmatpush1.msra.mxu0 0.0
  %1891 = vmatprep.subr.mxu0 0.0
  %1892 = vmatpush1.msra.mxu0 0.0
  %1893 = vmatprep.subr.mxu0 0.0
  %1894 = vmatpush1.msra.mxu0 0.0
  %1895 = vmatprep.subr.mxu0 0.0
  %1896 = vmatpush1.msra.mxu0 %v38
  %1897 = vmatprep.subr.mxu0 0.0
  %1898 = vmatpush1.msra.mxu0 %v37
  %1899 = vmatprep.subr.mxu0 0.0
  %1900 = vmatpush1.msra.mxu0 %v36
  %1901 = vmatprep.subr.mxu0 0.0
  %1902 = vmatpush1.msra.mxu0 %v35
  %1903 = vmatprep.subr.mxu0 0.0
  %1904 = vmatpush2.msra.mxu0 0.0
  %1905 = vmatprep.subr.mxu0 0.0
  %1906 = vmatpush2.msra.mxu0 0.0
  %1907 = vmatprep.subr.mxu0 0.0
  %1908 = vmatpush2.msra.mxu0 0.0
  %1909 = vmatprep.subr.mxu0 0.0
  %1910 = vmatpush2.msra.mxu0 0.0
  %1911 = vmatprep.subr.mxu0 0.0
  %1912 = vmatpush2.msra.mxu0 0.0
  %1913 = vmatprep.subr.mxu0 0.0
  %1914 = vmatpush2.msra.mxu0 0.0
  %1915 = vmatprep.subr.mxu0 0.0
  %1916 = vmatpush2.msra.mxu0 0.0
  %1917 = vmatprep.subr.mxu0 0.0
  %1918 = vmatpush2.msra.mxu0 0.0
  %1919 = vmatprep.subr.mxu0 0.0
  %1920 = vmatpush2.msra.mxu0 0.0
  %1921 = vmatprep.subr.mxu0 0.0
  %1922 = vmatpush2.msra.mxu0 0.0
  %1923 = vmatprep.subr.mxu0 0.0
  %1924 = vmatpush2.msra.mxu0 0.0
  %1925 = vmatprep.subr.mxu0 0.0
  %1926 = vmatpush2.msra.mxu0 0.0
  %1927 = vmatprep.subr.mxu0 0.0
  %1928 = vmatpush2.msra.mxu0 0.0
  %1929 = vmatprep.subr.mxu0 0.0
  %1930 = vmatpush2.msra.mxu0 0.0
  %1931 = vmatprep.subr.mxu0 0.0
  %1932 = vmatpush2.msra.mxu0 0.0
  %1933 = vmatprep.subr.mxu0 0.0
  %1934 = vmatpush2.msra.mxu0 0.0
  %1935 = vmatprep.mubr.f32.mxu0 0.0
  %1936 = vmatmul.mubr.f32.gmra.mxu0 %v1637
  %v1937 = vpop.f32.mrf.mxu0
  %v1938 = vadd.f32 0.0, %v1937
  %v1939 = vpop.f32.mrf.mxu0
  %1940 = vdwg.mxu0
  %v1941 = vadd.f32 %v1870, %v1938
  %v1942 = vxor.u32 %v1941, 2147483648
  %v1943 = vmul.f32 %v1942, 1.442695
  %v1944 = vpow.pop %v1943
  %v1945 = vadd.f32 %v1944, 1.0
  %v1946 = vrcp.pop %v1945
  %v1947 = vmul.f32 1.0, %v1946
  %v1948 = vmul.f32 %v1794, %v1631
  %v1949 = vmul.f32 %v1715, %v1868
  %v1950 = vadd.f32 %v1948, %v1949
  %v1951 = vtanh.pop %v1950
  %v1952 = vmul.f32 %v1947, %v1951
  %s1953 = scalar_lea.vmem %s0, 48
  %v1954 = vld [vmem:[%s1953] sm:$0x3]
  %v1956 = vsel %vm40, %v1952, 0
  %1958 = vmatprep.subr.mxu0 0.0
  %1959 = vmatpush1.msra.mxu0 0.0
  %1960 = vmatprep.subr.mxu0 0.0
  %1961 = vmatpush1.msra.mxu0 0.0
  %1962 = vmatprep.subr.mxu0 0.0
  %1963 = vmatpush1.msra.mxu0 0.0
  %1964 = vmatprep.subr.mxu0 0.0
  %1965 = vmatpush1.msra.mxu0 0.0
  %1966 = vmatprep.subr.mxu0 0.0
  %1967 = vmatpush1.msra.mxu0 0.0
  %1968 = vmatprep.subr.mxu0 0.0
  %1969 = vmatpush1.msra.mxu0 0.0
  %1970 = vmatprep.subr.mxu0 0.0
  %1971 = vmatpush1.msra.mxu0 0.0
  %1972 = vmatprep.subr.mxu0 0.0
  %1973 = vmatpush1.msra.mxu0 0.0
  %1974 = vmatprep.subr.mxu0 0.0
  %1975 = vmatpush1.msra.mxu0 0.0
  %1976 = vmatprep.subr.mxu0 0.0
  %1977 = vmatpush1.msra.mxu0 0.0
  %1978 = vmatprep.subr.mxu0 0.0
  %1979 = vmatpush1.msra.mxu0 0.0
  %1980 = vmatprep.subr.mxu0 0.0
  %1981 = vmatpush1.msra.mxu0 0.0
  %1982 = vmatprep.subr.mxu0 0.0
  %1983 = vmatpush1.msra.mxu0 %v23
  %1984 = vmatprep.subr.mxu0 0.0
  %1985 = vmatpush1.msra.mxu0 %v22
  %1986 = vmatprep.subr.mxu0 0.0
  %1987 = vmatpush1.msra.mxu0 %v21
  %1988 = vmatprep.subr.mxu0 0.0
  %1989 = vmatpush1.msra.mxu0 %v20
  %1990 = vmatprep.subr.mxu0 0.0
  %1991 = vmatpush2.msra.mxu0 0.0
  %1992 = vmatprep.subr.mxu0 0.0
  %1993 = vmatpush2.msra.mxu0 0.0
  %1994 = vmatprep.subr.mxu0 0.0
  %1995 = vmatpush2.msra.mxu0 0.0
  %1996 = vmatprep.subr.mxu0 0.0
  %1997 = vmatpush2.msra.mxu0 0.0
  %1998 = vmatprep.subr.mxu0 0.0
  %1999 = vmatpush2.msra.mxu0 0.0
  %2000 = vmatprep.subr.mxu0 0.0
  %2001 = vmatpush2.msra.mxu0 0.0
  %2002 = vmatprep.subr.mxu0 0.0
  %2003 = vmatpush2.msra.mxu0 0.0
  %2004 = vmatprep.subr.mxu0 0.0
  %2005 = vmatpush2.msra.mxu0 0.0
  %2006 = vmatprep.subr.mxu0 0.0
  %2007 = vmatpush2.msra.mxu0 0.0
  %2008 = vmatprep.subr.mxu0 0.0
  %2009 = vmatpush2.msra.mxu0 0.0
  %2010 = vmatprep.subr.mxu0 0.0
  %2011 = vmatpush2.msra.mxu0 0.0
  %2012 = vmatprep.subr.mxu0 0.0
  %2013 = vmatpush2.msra.mxu0 0.0
  %2014 = vmatprep.subr.mxu0 0.0
  %2015 = vmatpush2.msra.mxu0 0.0
  %2016 = vmatprep.subr.mxu0 0.0
  %2017 = vmatpush2.msra.mxu0 0.0
  %2018 = vmatprep.subr.mxu0 0.0
  %2019 = vmatpush2.msra.mxu0 0.0
  %2020 = vmatprep.subr.mxu0 0.0
  %2021 = vmatpush2.msra.mxu0 0.0
  %2022 = vmatprep.mubr.f32.mxu0 0.0
  %2023 = vmatmul.mubr.f32.gmra.mxu0 %v1956
  %v2024 = vpop.f32.mrf.mxu0
  %v2025 = vadd.f32 0.0, %v2024
  %v2026 = vpop.f32.mrf.mxu0
  %2027 = vdwg.mxu0
  %v2028 = vadd.f32 %v1954, %v2025
  %v2029 = vxor.u32 %v2028, 2147483648
  %v2030 = vmul.f32 %v2029, 1.442695
  %v2031 = vpow.pop %v2030
  %v2032 = vadd.f32 %v2031, 1.0
  %v2033 = vrcp.pop %v2032
  %v2034 = vmul.f32 1.0, %v2033
  %s2035 = scalar_lea.vmem %s0, 50
  %v2036 = vld [vmem:[%s2035] sm:$0x3]
  %2037 = vmatprep.subr.mxu0 0.0
  %2038 = vmatpush1.msra.mxu0 0.0
  %2039 = vmatprep.subr.mxu0 0.0
  %2040 = vmatpush1.msra.mxu0 0.0
  %2041 = vmatprep.subr.mxu0 0.0
  %2042 = vmatpush1.msra.mxu0 0.0
  %2043 = vmatprep.subr.mxu0 0.0
  %2044 = vmatpush1.msra.mxu0 0.0
  %2045 = vmatprep.subr.mxu0 0.0
  %2046 = vmatpush1.msra.mxu0 0.0
  %2047 = vmatprep.subr.mxu0 0.0
  %2048 = vmatpush1.msra.mxu0 0.0
  %2049 = vmatprep.subr.mxu0 0.0
  %2050 = vmatpush1.msra.mxu0 0.0
  %2051 = vmatprep.subr.mxu0 0.0
  %2052 = vmatpush1.msra.mxu0 0.0
  %2053 = vmatprep.subr.mxu0 0.0
  %2054 = vmatpush1.msra.mxu0 0.0
  %2055 = vmatprep.subr.mxu0 0.0
  %2056 = vmatpush1.msra.mxu0 0.0
  %2057 = vmatprep.subr.mxu0 0.0
  %2058 = vmatpush1.msra.mxu0 0.0
  %2059 = vmatprep.subr.mxu0 0.0
  %2060 = vmatpush1.msra.mxu0 0.0
  %2061 = vmatprep.subr.mxu0 0.0
  %2062 = vmatpush1.msra.mxu0 %v28
  %2063 = vmatprep.subr.mxu0 0.0
  %2064 = vmatpush1.msra.mxu0 %v27
  %2065 = vmatprep.subr.mxu0 0.0
  %2066 = vmatpush1.msra.mxu0 %v26
  %2067 = vmatprep.subr.mxu0 0.0
  %2068 = vmatpush1.msra.mxu0 %v25
  %2069 = vmatprep.subr.mxu0 0.0
  %2070 = vmatpush2.msra.mxu0 0.0
  %2071 = vmatprep.subr.mxu0 0.0
  %2072 = vmatpush2.msra.mxu0 0.0
  %2073 = vmatprep.subr.mxu0 0.0
  %2074 = vmatpush2.msra.mxu0 0.0
  %2075 = vmatprep.subr.mxu0 0.0
  %2076 = vmatpush2.msra.mxu0 0.0
  %2077 = vmatprep.subr.mxu0 0.0
  %2078 = vmatpush2.msra.mxu0 0.0
  %2079 = vmatprep.subr.mxu0 0.0
  %2080 = vmatpush2.msra.mxu0 0.0
  %2081 = vmatprep.subr.mxu0 0.0
  %2082 = vmatpush2.msra.mxu0 0.0
  %2083 = vmatprep.subr.mxu0 0.0
  %2084 = vmatpush2.msra.mxu0 0.0
  %2085 = vmatprep.subr.mxu0 0.0
  %2086 = vmatpush2.msra.mxu0 0.0
  %2087 = vmatprep.subr.mxu0 0.0
  %2088 = vmatpush2.msra.mxu0 0.0
  %2089 = vmatprep.subr.mxu0 0.0
  %2090 = vmatpush2.msra.mxu0 0.0
  %2091 = vmatprep.subr.mxu0 0.0
  %2092 = vmatpush2.msra.mxu0 0.0
  %2093 = vmatprep.subr.mxu0 0.0
  %2094 = vmatpush2.msra.mxu0 0.0
  %2095 = vmatprep.subr.mxu0 0.0
  %2096 = vmatpush2.msra.mxu0 0.0
  %2097 = vmatprep.subr.mxu0 0.0
  %2098 = vmatpush2.msra.mxu0 0.0
  %2099 = vmatprep.subr.mxu0 0.0
  %2100 = vmatpush2.msra.mxu0 0.0
  %2101 = vmatprep.mubr.f32.mxu0 0.0
  %2102 = vmatmul.mubr.f32.gmra.mxu0 %v1956
  %v2103 = vpop.f32.mrf.mxu0
  %v2104 = vadd.f32 0.0, %v2103
  %v2105 = vpop.f32.mrf.mxu0
  %2106 = vdwg.mxu0
  %v2107 = vadd.f32 %v2036, %v2104
  %v2108 = vxor.u32 %v2107, 2147483648
  %v2109 = vmul.f32 %v2108, 1.442695
  %v2110 = vpow.pop %v2109
  %v2111 = vadd.f32 %v2110, 1.0
  %v2112 = vrcp.pop %v2111
  %v2113 = vmul.f32 1.0, %v2112
  %s2114 = scalar_lea.vmem %s0, 52
  %v2115 = vld [vmem:[%s2114] sm:$0x3]
  %2116 = vmatprep.subr.mxu0 0.0
  %2117 = vmatpush1.msra.mxu0 0.0
  %2118 = vmatprep.subr.mxu0 0.0
  %2119 = vmatpush1.msra.mxu0 0.0
  %2120 = vmatprep.subr.mxu0 0.0
  %2121 = vmatpush1.msra.mxu0 0.0
  %2122 = vmatprep.subr.mxu0 0.0
  %2123 = vmatpush1.msra.mxu0 0.0
  %2124 = vmatprep.subr.mxu0 0.0
  %2125 = vmatpush1.msra.mxu0 0.0
  %2126 = vmatprep.subr.mxu0 0.0
  %2127 = vmatpush1.msra.mxu0 0.0
  %2128 = vmatprep.subr.mxu0 0.0
  %2129 = vmatpush1.msra.mxu0 0.0
  %2130 = vmatprep.subr.mxu0 0.0
  %2131 = vmatpush1.msra.mxu0 0.0
  %2132 = vmatprep.subr.mxu0 0.0
  %2133 = vmatpush1.msra.mxu0 0.0
  %2134 = vmatprep.subr.mxu0 0.0
  %2135 = vmatpush1.msra.mxu0 0.0
  %2136 = vmatprep.subr.mxu0 0.0
  %2137 = vmatpush1.msra.mxu0 0.0
  %2138 = vmatprep.subr.mxu0 0.0
  %2139 = vmatpush1.msra.mxu0 0.0
  %2140 = vmatprep.subr.mxu0 0.0
  %2141 = vmatpush1.msra.mxu0 %v33
  %2142 = vmatprep.subr.mxu0 0.0
  %2143 = vmatpush1.msra.mxu0 %v32
  %2144 = vmatprep.subr.mxu0 0.0
  %2145 = vmatpush1.msra.mxu0 %v31
  %2146 = vmatprep.subr.mxu0 0.0
  %2147 = vmatpush1.msra.mxu0 %v30
  %2148 = vmatprep.subr.mxu0 0.0
  %2149 = vmatpush2.msra.mxu0 0.0
  %2150 = vmatprep.subr.mxu0 0.0
  %2151 = vmatpush2.msra.mxu0 0.0
  %2152 = vmatprep.subr.mxu0 0.0
  %2153 = vmatpush2.msra.mxu0 0.0
  %2154 = vmatprep.subr.mxu0 0.0
  %2155 = vmatpush2.msra.mxu0 0.0
  %2156 = vmatprep.subr.mxu0 0.0
  %2157 = vmatpush2.msra.mxu0 0.0
  %2158 = vmatprep.subr.mxu0 0.0
  %2159 = vmatpush2.msra.mxu0 0.0
  %2160 = vmatprep.subr.mxu0 0.0
  %2161 = vmatpush2.msra.mxu0 0.0
  %2162 = vmatprep.subr.mxu0 0.0
  %2163 = vmatpush2.msra.mxu0 0.0
  %2164 = vmatprep.subr.mxu0 0.0
  %2165 = vmatpush2.msra.mxu0 0.0
  %2166 = vmatprep.subr.mxu0 0.0
  %2167 = vmatpush2.msra.mxu0 0.0
  %2168 = vmatprep.subr.mxu0 0.0
  %2169 = vmatpush2.msra.mxu0 0.0
  %2170 = vmatprep.subr.mxu0 0.0
  %2171 = vmatpush2.msra.mxu0 0.0
  %2172 = vmatprep.subr.mxu0 0.0
  %2173 = vmatpush2.msra.mxu0 0.0
  %2174 = vmatprep.subr.mxu0 0.0
  %2175 = vmatpush2.msra.mxu0 0.0
  %2176 = vmatprep.subr.mxu0 0.0
  %2177 = vmatpush2.msra.mxu0 0.0
  %2178 = vmatprep.subr.mxu0 0.0
  %2179 = vmatpush2.msra.mxu0 0.0
  %2180 = vmatprep.mubr.f32.mxu0 0.0
  %2181 = vmatmul.mubr.f32.gmra.mxu0 %v1956
  %v2182 = vpop.f32.mrf.mxu0
  %v2183 = vadd.f32 0.0, %v2182
  %v2184 = vpop.f32.mrf.mxu0
  %2185 = vdwg.mxu0
  %v2186 = vadd.f32 %v2115, %v2183
  %v2187 = vtanh.pop %v2186
  %s2188 = scalar_lea.vmem %s0, 54
  %v2189 = vld [vmem:[%s2188] sm:$0x3]
  %2190 = vmatprep.subr.mxu0 0.0
  %2191 = vmatpush1.msra.mxu0 0.0
  %2192 = vmatprep.subr.mxu0 0.0
  %2193 = vmatpush1.msra.mxu0 0.0
  %2194 = vmatprep.subr.mxu0 0.0
  %2195 = vmatpush1.msra.mxu0 0.0
  %2196 = vmatprep.subr.mxu0 0.0
  %2197 = vmatpush1.msra.mxu0 0.0
  %2198 = vmatprep.subr.mxu0 0.0
  %2199 = vmatpush1.msra.mxu0 0.0
  %2200 = vmatprep.subr.mxu0 0.0
  %2201 = vmatpush1.msra.mxu0 0.0
  %2202 = vmatprep.subr.mxu0 0.0
  %2203 = vmatpush1.msra.mxu0 0.0
  %2204 = vmatprep.subr.mxu0 0.0
  %2205 = vmatpush1.msra.mxu0 0.0
  %2206 = vmatprep.subr.mxu0 0.0
  %2207 = vmatpush1.msra.mxu0 0.0
  %2208 = vmatprep.subr.mxu0 0.0
  %2209 = vmatpush1.msra.mxu0 0.0
  %2210 = vmatprep.subr.mxu0 0.0
  %2211 = vmatpush1.msra.mxu0 0.0
  %2212 = vmatprep.subr.mxu0 0.0
  %2213 = vmatpush1.msra.mxu0 0.0
  %2214 = vmatprep.subr.mxu0 0.0
  %2215 = vmatpush1.msra.mxu0 %v38
  %2216 = vmatprep.subr.mxu0 0.0
  %2217 = vmatpush1.msra.mxu0 %v37
  %2218 = vmatprep.subr.mxu0 0.0
  %2219 = vmatpush1.msra.mxu0 %v36
  %2220 = vmatprep.subr.mxu0 0.0
  %2221 = vmatpush1.msra.mxu0 %v35
  %2222 = vmatprep.subr.mxu0 0.0
  %2223 = vmatpush2.msra.mxu0 0.0
  %2224 = vmatprep.subr.mxu0 0.0
  %2225 = vmatpush2.msra.mxu0 0.0
  %2226 = vmatprep.subr.mxu0 0.0
  %2227 = vmatpush2.msra.mxu0 0.0
  %2228 = vmatprep.subr.mxu0 0.0
  %2229 = vmatpush2.msra.mxu0 0.0
  %2230 = vmatprep.subr.mxu0 0.0
  %2231 = vmatpush2.msra.mxu0 0.0
  %2232 = vmatprep.subr.mxu0 0.0
  %2233 = vmatpush2.msra.mxu0 0.0
  %2234 = vmatprep.subr.mxu0 0.0
  %2235 = vmatpush2.msra.mxu0 0.0
  %2236 = vmatprep.subr.mxu0 0.0
  %2237 = vmatpush2.msra.mxu0 0.0
  %2238 = vmatprep.subr.mxu0 0.0
  %2239 = vmatpush2.msra.mxu0 0.0
  %2240 = vmatprep.subr.mxu0 0.0
  %2241 = vmatpush2.msra.mxu0 0.0
  %2242 = vmatprep.subr.mxu0 0.0
  %2243 = vmatpush2.msra.mxu0 0.0
  %2244 = vmatprep.subr.mxu0 0.0
  %2245 = vmatpush2.msra.mxu0 0.0
  %2246 = vmatprep.subr.mxu0 0.0
  %2247 = vmatpush2.msra.mxu0 0.0
  %2248 = vmatprep.subr.mxu0 0.0
  %2249 = vmatpush2.msra.mxu0 0.0
  %2250 = vmatprep.subr.mxu0 0.0
  %2251 = vmatpush2.msra.mxu0 0.0
  %2252 = vmatprep.subr.mxu0 0.0
  %2253 = vmatpush2.msra.mxu0 0.0
  %2254 = vmatprep.mubr.f32.mxu0 0.0
  %2255 = vmatmul.mubr.f32.gmra.mxu0 %v1956
  %v2256 = vpop.f32.mrf.mxu0
  %v2257 = vadd.f32 0.0, %v2256
  %v2258 = vpop.f32.mrf.mxu0
  %2259 = vdwg.mxu0
  %v2260 = vadd.f32 %v2189, %v2257
  %v2261 = vxor.u32 %v2260, 2147483648
  %v2262 = vmul.f32 %v2261, 1.442695
  %v2263 = vpow.pop %v2262
  %v2264 = vadd.f32 %v2263, 1.0
  %v2265 = vrcp.pop %v2264
  %v2266 = vmul.f32 1.0, %v2265
  %v2267 = vmul.f32 %v2113, %v1950
  %v2268 = vmul.f32 %v2034, %v2187
  %v2269 = vadd.f32 %v2267, %v2268
  %v2270 = vtanh.pop %v2269
  %v2271 = vmul.f32 %v2266, %v2270
  %s2272 = scalar_lea.vmem %s0, 56
  %v2273 = vld [vmem:[%s2272] sm:$0x3]
  %v2275 = vsel %vm40, %v2271, 0
  %2277 = vmatprep.subr.mxu0 0.0
  %2278 = vmatpush1.msra.mxu0 0.0
  %2279 = vmatprep.subr.mxu0 0.0
  %2280 = vmatpush1.msra.mxu0 0.0
  %2281 = vmatprep.subr.mxu0 0.0
  %2282 = vmatpush1.msra.mxu0 0.0
  %2283 = vmatprep.subr.mxu0 0.0
  %2284 = vmatpush1.msra.mxu0 0.0
  %2285 = vmatprep.subr.mxu0 0.0
  %2286 = vmatpush1.msra.mxu0 0.0
  %2287 = vmatprep.subr.mxu0 0.0
  %2288 = vmatpush1.msra.mxu0 0.0
  %2289 = vmatprep.subr.mxu0 0.0
  %2290 = vmatpush1.msra.mxu0 0.0
  %2291 = vmatprep.subr.mxu0 0.0
  %2292 = vmatpush1.msra.mxu0 0.0
  %2293 = vmatprep.subr.mxu0 0.0
  %2294 = vmatpush1.msra.mxu0 0.0
  %2295 = vmatprep.subr.mxu0 0.0
  %2296 = vmatpush1.msra.mxu0 0.0
  %2297 = vmatprep.subr.mxu0 0.0
  %2298 = vmatpush1.msra.mxu0 0.0
  %2299 = vmatprep.subr.mxu0 0.0
  %2300 = vmatpush1.msra.mxu0 0.0
  %2301 = vmatprep.subr.mxu0 0.0
  %2302 = vmatpush1.msra.mxu0 %v23
  %2303 = vmatprep.subr.mxu0 0.0
  %2304 = vmatpush1.msra.mxu0 %v22
  %2305 = vmatprep.subr.mxu0 0.0
  %2306 = vmatpush1.msra.mxu0 %v21
  %2307 = vmatprep.subr.mxu0 0.0
  %2308 = vmatpush1.msra.mxu0 %v20
  %2309 = vmatprep.subr.mxu0 0.0
  %2310 = vmatpush2.msra.mxu0 0.0
  %2311 = vmatprep.subr.mxu0 0.0
  %2312 = vmatpush2.msra.mxu0 0.0
  %2313 = vmatprep.subr.mxu0 0.0
  %2314 = vmatpush2.msra.mxu0 0.0
  %2315 = vmatprep.subr.mxu0 0.0
  %2316 = vmatpush2.msra.mxu0 0.0
  %2317 = vmatprep.subr.mxu0 0.0
  %2318 = vmatpush2.msra.mxu0 0.0
  %2319 = vmatprep.subr.mxu0 0.0
  %2320 = vmatpush2.msra.mxu0 0.0
  %2321 = vmatprep.subr.mxu0 0.0
  %2322 = vmatpush2.msra.mxu0 0.0
  %2323 = vmatprep.subr.mxu0 0.0
  %2324 = vmatpush2.msra.mxu0 0.0
  %2325 = vmatprep.subr.mxu0 0.0
  %2326 = vmatpush2.msra.mxu0 0.0
  %2327 = vmatprep.subr.mxu0 0.0
  %2328 = vmatpush2.msra.mxu0 0.0
  %2329 = vmatprep.subr.mxu0 0.0
  %2330 = vmatpush2.msra.mxu0 0.0
  %2331 = vmatprep.subr.mxu0 0.0
  %2332 = vmatpush2.msra.mxu0 0.0
  %2333 = vmatprep.subr.mxu0 0.0
  %2334 = vmatpush2.msra.mxu0 0.0
  %2335 = vmatprep.subr.mxu0 0.0
  %2336 = vmatpush2.msra.mxu0 0.0
  %2337 = vmatprep.subr.mxu0 0.0
  %2338 = vmatpush2.msra.mxu0 0.0
  %2339 = vmatprep.subr.mxu0 0.0
  %2340 = vmatpush2.msra.mxu0 0.0
  %2341 = vmatprep.mubr.f32.mxu0 0.0
  %2342 = vmatmul.mubr.f32.gmra.mxu0 %v2275
  %v2343 = vpop.f32.mrf.mxu0
  %v2344 = vadd.f32 0.0, %v2343
  %v2345 = vpop.f32.mrf.mxu0
  %2346 = vdwg.mxu0
  %v2347 = vadd.f32 %v2273, %v2344
  %v2348 = vxor.u32 %v2347, 2147483648
  %v2349 = vmul.f32 %v2348, 1.442695
  %v2350 = vpow.pop %v2349
  %v2351 = vadd.f32 %v2350, 1.0
  %v2352 = vrcp.pop %v2351
  %v2353 = vmul.f32 1.0, %v2352
  %s2354 = scalar_lea.vmem %s0, 58
  %v2355 = vld [vmem:[%s2354] sm:$0x3]
  %2356 = vmatprep.subr.mxu0 0.0
  %2357 = vmatpush1.msra.mxu0 0.0
  %2358 = vmatprep.subr.mxu0 0.0
  %2359 = vmatpush1.msra.mxu0 0.0
  %2360 = vmatprep.subr.mxu0 0.0
  %2361 = vmatpush1.msra.mxu0 0.0
  %2362 = vmatprep.subr.mxu0 0.0
  %2363 = vmatpush1.msra.mxu0 0.0
  %2364 = vmatprep.subr.mxu0 0.0
  %2365 = vmatpush1.msra.mxu0 0.0
  %2366 = vmatprep.subr.mxu0 0.0
  %2367 = vmatpush1.msra.mxu0 0.0
  %2368 = vmatprep.subr.mxu0 0.0
  %2369 = vmatpush1.msra.mxu0 0.0
  %2370 = vmatprep.subr.mxu0 0.0
  %2371 = vmatpush1.msra.mxu0 0.0
  %2372 = vmatprep.subr.mxu0 0.0
  %2373 = vmatpush1.msra.mxu0 0.0
  %2374 = vmatprep.subr.mxu0 0.0
  %2375 = vmatpush1.msra.mxu0 0.0
  %2376 = vmatprep.subr.mxu0 0.0
  %2377 = vmatpush1.msra.mxu0 0.0
  %2378 = vmatprep.subr.mxu0 0.0
  %2379 = vmatpush1.msra.mxu0 0.0
  %2380 = vmatprep.subr.mxu0 0.0
  %2381 = vmatpush1.msra.mxu0 %v28
  %2382 = vmatprep.subr.mxu0 0.0
  %2383 = vmatpush1.msra.mxu0 %v27
  %2384 = vmatprep.subr.mxu0 0.0
  %2385 = vmatpush1.msra.mxu0 %v26
  %2386 = vmatprep.subr.mxu0 0.0
  %2387 = vmatpush1.msra.mxu0 %v25
  %2388 = vmatprep.subr.mxu0 0.0
  %2389 = vmatpush2.msra.mxu0 0.0
  %2390 = vmatprep.subr.mxu0 0.0
  %2391 = vmatpush2.msra.mxu0 0.0
  %2392 = vmatprep.subr.mxu0 0.0
  %2393 = vmatpush2.msra.mxu0 0.0
  %2394 = vmatprep.subr.mxu0 0.0
  %2395 = vmatpush2.msra.mxu0 0.0
  %2396 = vmatprep.subr.mxu0 0.0
  %2397 = vmatpush2.msra.mxu0 0.0
  %2398 = vmatprep.subr.mxu0 0.0
  %2399 = vmatpush2.msra.mxu0 0.0
  %2400 = vmatprep.subr.mxu0 0.0
  %2401 = vmatpush2.msra.mxu0 0.0
  %2402 = vmatprep.subr.mxu0 0.0
  %2403 = vmatpush2.msra.mxu0 0.0
  %2404 = vmatprep.subr.mxu0 0.0
  %2405 = vmatpush2.msra.mxu0 0.0
  %2406 = vmatprep.subr.mxu0 0.0
  %2407 = vmatpush2.msra.mxu0 0.0
  %2408 = vmatprep.subr.mxu0 0.0
  %2409 = vmatpush2.msra.mxu0 0.0
  %2410 = vmatprep.subr.mxu0 0.0
  %2411 = vmatpush2.msra.mxu0 0.0
  %2412 = vmatprep.subr.mxu0 0.0
  %2413 = vmatpush2.msra.mxu0 0.0
  %2414 = vmatprep.subr.mxu0 0.0
  %2415 = vmatpush2.msra.mxu0 0.0
  %2416 = vmatprep.subr.mxu0 0.0
  %2417 = vmatpush2.msra.mxu0 0.0
  %2418 = vmatprep.subr.mxu0 0.0
  %2419 = vmatpush2.msra.mxu0 0.0
  %2420 = vmatprep.mubr.f32.mxu0 0.0
  %2421 = vmatmul.mubr.f32.gmra.mxu0 %v2275
  %v2422 = vpop.f32.mrf.mxu0
  %v2423 = vadd.f32 0.0, %v2422
  %v2424 = vpop.f32.mrf.mxu0
  %2425 = vdwg.mxu0
  %v2426 = vadd.f32 %v2355, %v2423
  %v2427 = vxor.u32 %v2426, 2147483648
  %v2428 = vmul.f32 %v2427, 1.442695
  %v2429 = vpow.pop %v2428
  %v2430 = vadd.f32 %v2429, 1.0
  %v2431 = vrcp.pop %v2430
  %v2432 = vmul.f32 1.0, %v2431
  %s2433 = scalar_lea.vmem %s0, 60
  %v2434 = vld [vmem:[%s2433] sm:$0x3]
  %2435 = vmatprep.subr.mxu0 0.0
  %2436 = vmatpush1.msra.mxu0 0.0
  %2437 = vmatprep.subr.mxu0 0.0
  %2438 = vmatpush1.msra.mxu0 0.0
  %2439 = vmatprep.subr.mxu0 0.0
  %2440 = vmatpush1.msra.mxu0 0.0
  %2441 = vmatprep.subr.mxu0 0.0
  %2442 = vmatpush1.msra.mxu0 0.0
  %2443 = vmatprep.subr.mxu0 0.0
  %2444 = vmatpush1.msra.mxu0 0.0
  %2445 = vmatprep.subr.mxu0 0.0
  %2446 = vmatpush1.msra.mxu0 0.0
  %2447 = vmatprep.subr.mxu0 0.0
  %2448 = vmatpush1.msra.mxu0 0.0
  %2449 = vmatprep.subr.mxu0 0.0
  %2450 = vmatpush1.msra.mxu0 0.0
  %2451 = vmatprep.subr.mxu0 0.0
  %2452 = vmatpush1.msra.mxu0 0.0
  %2453 = vmatprep.subr.mxu0 0.0
  %2454 = vmatpush1.msra.mxu0 0.0
  %2455 = vmatprep.subr.mxu0 0.0
  %2456 = vmatpush1.msra.mxu0 0.0
  %2457 = vmatprep.subr.mxu0 0.0
  %2458 = vmatpush1.msra.mxu0 0.0
  %2459 = vmatprep.subr.mxu0 0.0
  %2460 = vmatpush1.msra.mxu0 %v33
  %2461 = vmatprep.subr.mxu0 0.0
  %2462 = vmatpush1.msra.mxu0 %v32
  %2463 = vmatprep.subr.mxu0 0.0
  %2464 = vmatpush1.msra.mxu0 %v31
  %2465 = vmatprep.subr.mxu0 0.0
  %2466 = vmatpush1.msra.mxu0 %v30
  %2467 = vmatprep.subr.mxu0 0.0
  %2468 = vmatpush2.msra.mxu0 0.0
  %2469 = vmatprep.subr.mxu0 0.0
  %2470 = vmatpush2.msra.mxu0 0.0
  %2471 = vmatprep.subr.mxu0 0.0
  %2472 = vmatpush2.msra.mxu0 0.0
  %2473 = vmatprep.subr.mxu0 0.0
  %2474 = vmatpush2.msra.mxu0 0.0
  %2475 = vmatprep.subr.mxu0 0.0
  %2476 = vmatpush2.msra.mxu0 0.0
  %2477 = vmatprep.subr.mxu0 0.0
  %2478 = vmatpush2.msra.mxu0 0.0
  %2479 = vmatprep.subr.mxu0 0.0
  %2480 = vmatpush2.msra.mxu0 0.0
  %2481 = vmatprep.subr.mxu0 0.0
  %2482 = vmatpush2.msra.mxu0 0.0
  %2483 = vmatprep.subr.mxu0 0.0
  %2484 = vmatpush2.msra.mxu0 0.0
  %2485 = vmatprep.subr.mxu0 0.0
  %2486 = vmatpush2.msra.mxu0 0.0
  %2487 = vmatprep.subr.mxu0 0.0
  %2488 = vmatpush2.msra.mxu0 0.0
  %2489 = vmatprep.subr.mxu0 0.0
  %2490 = vmatpush2.msra.mxu0 0.0
  %2491 = vmatprep.subr.mxu0 0.0
  %2492 = vmatpush2.msra.mxu0 0.0
  %2493 = vmatprep.subr.mxu0 0.0
  %2494 = vmatpush2.msra.mxu0 0.0
  %2495 = vmatprep.subr.mxu0 0.0
  %2496 = vmatpush2.msra.mxu0 0.0
  %2497 = vmatprep.subr.mxu0 0.0
  %2498 = vmatpush2.msra.mxu0 0.0
  %2499 = vmatprep.mubr.f32.mxu0 0.0
  %2500 = vmatmul.mubr.f32.gmra.mxu0 %v2275
  %v2501 = vpop.f32.mrf.mxu0
  %v2502 = vadd.f32 0.0, %v2501
  %v2503 = vpop.f32.mrf.mxu0
  %2504 = vdwg.mxu0
  %v2505 = vadd.f32 %v2434, %v2502
  %v2506 = vtanh.pop %v2505
  %s2507 = scalar_lea.vmem %s0, 62
  %v2508 = vld [vmem:[%s2507] sm:$0x3]
  %2509 = vmatprep.subr.mxu0 0.0
  %2510 = vmatpush1.msra.mxu0 0.0
  %2511 = vmatprep.subr.mxu0 0.0
  %2512 = vmatpush1.msra.mxu0 0.0
  %2513 = vmatprep.subr.mxu0 0.0
  %2514 = vmatpush1.msra.mxu0 0.0
  %2515 = vmatprep.subr.mxu0 0.0
  %2516 = vmatpush1.msra.mxu0 0.0
  %2517 = vmatprep.subr.mxu0 0.0
  %2518 = vmatpush1.msra.mxu0 0.0
  %2519 = vmatprep.subr.mxu0 0.0
  %2520 = vmatpush1.msra.mxu0 0.0
  %2521 = vmatprep.subr.mxu0 0.0
  %2522 = vmatpush1.msra.mxu0 0.0
  %2523 = vmatprep.subr.mxu0 0.0
  %2524 = vmatpush1.msra.mxu0 0.0
  %2525 = vmatprep.subr.mxu0 0.0
  %2526 = vmatpush1.msra.mxu0 0.0
  %2527 = vmatprep.subr.mxu0 0.0
  %2528 = vmatpush1.msra.mxu0 0.0
  %2529 = vmatprep.subr.mxu0 0.0
  %2530 = vmatpush1.msra.mxu0 0.0
  %2531 = vmatprep.subr.mxu0 0.0
  %2532 = vmatpush1.msra.mxu0 0.0
  %2533 = vmatprep.subr.mxu0 0.0
  %2534 = vmatpush1.msra.mxu0 %v38
  %2535 = vmatprep.subr.mxu0 0.0
  %2536 = vmatpush1.msra.mxu0 %v37
  %2537 = vmatprep.subr.mxu0 0.0
  %2538 = vmatpush1.msra.mxu0 %v36
  %2539 = vmatprep.subr.mxu0 0.0
  %2540 = vmatpush1.msra.mxu0 %v35
  %2541 = vmatprep.subr.mxu0 0.0
  %2542 = vmatpush2.msra.mxu0 0.0
  %2543 = vmatprep.subr.mxu0 0.0
  %2544 = vmatpush2.msra.mxu0 0.0
  %2545 = vmatprep.subr.mxu0 0.0
  %2546 = vmatpush2.msra.mxu0 0.0
  %2547 = vmatprep.subr.mxu0 0.0
  %2548 = vmatpush2.msra.mxu0 0.0
  %2549 = vmatprep.subr.mxu0 0.0
  %2550 = vmatpush2.msra.mxu0 0.0
  %2551 = vmatprep.subr.mxu0 0.0
  %2552 = vmatpush2.msra.mxu0 0.0
  %2553 = vmatprep.subr.mxu0 0.0
  %2554 = vmatpush2.msra.mxu0 0.0
  %2555 = vmatprep.subr.mxu0 0.0
  %2556 = vmatpush2.msra.mxu0 0.0
  %2557 = vmatprep.subr.mxu0 0.0
  %2558 = vmatpush2.msra.mxu0 0.0
  %2559 = vmatprep.subr.mxu0 0.0
  %2560 = vmatpush2.msra.mxu0 0.0
  %2561 = vmatprep.subr.mxu0 0.0
  %2562 = vmatpush2.msra.mxu0 0.0
  %2563 = vmatprep.subr.mxu0 0.0
  %2564 = vmatpush2.msra.mxu0 0.0
  %2565 = vmatprep.subr.mxu0 0.0
  %2566 = vmatpush2.msra.mxu0 0.0
  %2567 = vmatprep.subr.mxu0 0.0
  %2568 = vmatpush2.msra.mxu0 0.0
  %2569 = vmatprep.subr.mxu0 0.0
  %2570 = vmatpush2.msra.mxu0 0.0
  %2571 = vmatprep.subr.mxu0 0.0
  %2572 = vmatpush2.msra.mxu0 0.0
  %2573 = vmatprep.mubr.f32.mxu0 0.0
  %2574 = vmatmul.mubr.f32.gmra.mxu0 %v2275
  %v2575 = vpop.f32.mrf.mxu0
  %v2576 = vadd.f32 0.0, %v2575
  %v2577 = vpop.f32.mrf.mxu0
  %2578 = vdwg.mxu0
  %v2579 = vadd.f32 %v2508, %v2576
  %v2580 = vxor.u32 %v2579, 2147483648
  %v2581 = vmul.f32 %v2580, 1.442695
  %v2582 = vpow.pop %v2581
  %v2583 = vadd.f32 %v2582, 1.0
  %v2584 = vrcp.pop %v2583
  %v2585 = vmul.f32 1.0, %v2584
  %v2586 = vmul.f32 %v2432, %v2269
  %v2587 = vmul.f32 %v2353, %v2506
  %v2588 = vadd.f32 %v2586, %v2587
  %v2589 = vtanh.pop %v2588
  %v2590 = vmul.f32 %v2585, %v2589
  %v2591 = vld [vmem:[%s2] sm:$0xff]
  %v2592 = vld [vmem:[%s2 + $0x8] sm:$0xff]
  %v2593 = vld [vmem:[%s2 + $0x10] sm:$0xff]
  %v2594 = vld [vmem:[%s2 + $0x18] sm:$0xff]
  %s2595 = scalar_lea.vmem %s2, 32
  %v2596 = vld [vmem:[%s2595] sm:$0xff]
  %v2597 = vld [vmem:[%s2595 + $0x8] sm:$0xff]
  %v2598 = vld [vmem:[%s2595 + $0x10] sm:$0xff]
  %v2599 = vld [vmem:[%s2595 + $0x18] sm:$0xff]
  %s2600 = scalar_lea.vmem %s2, 64
  %v2601 = vld [vmem:[%s2600] sm:$0xff]
  %v2602 = vld [vmem:[%s2600 + $0x8] sm:$0xff]
  %v2603 = vld [vmem:[%s2600 + $0x10] sm:$0xff]
  %v2604 = vld [vmem:[%s2600 + $0x18] sm:$0xff]
  %s2605 = scalar_lea.vmem %s2, 96
  %v2606 = vld [vmem:[%s2605] sm:$0xff]
  %v2607 = vld [vmem:[%s2605 + $0x8] sm:$0xff]
  %v2608 = vld [vmem:[%s2605 + $0x10] sm:$0xff]
  %v2609 = vld [vmem:[%s2605 + $0x18] sm:$0xff]
  %v2610 = vld [vmem:[%s4] sm:$0xf]
  %s2611 = scalar_lea.vmem %s4, 4
  %v2612 = vld [vmem:[%s2611] sm:$0xf]
  %s2613 = scalar_lea.vmem %s4, 8
  %v2614 = vld [vmem:[%s2613] sm:$0xf]
  %s2615 = scalar_lea.vmem %s4, 12
  %v2616 = vld [vmem:[%s2615] sm:$0xf]
  %v2617 = vld [vmem:[%s3] sm:$0x1]
  %s2618 = scalar_lea.vmem %s3, 1
  %v2619 = vld [vmem:[%s2618] sm:$0x1]
  %s2620 = scalar_lea.vmem %s3, 2
  %v2621 = vld [vmem:[%s2620] sm:$0x1]
  %s2622 = scalar_lea.vmem %s3, 3
  %v2623 = vld [vmem:[%s2622] sm:$0x1]
  %v2625 = vlaneseq
  %v2626 = vshrl.u32 %v2625, 7
  %v2627 = vsub.s32 0, %v2626
  %v2628 = vrot.slane %v2617, %v2627
  %2630 = vmatprep.subr.mxu0 0.0
  %2631 = vmatpush1.msra.mxu0 0.0
  %2632 = vmatprep.subr.mxu0 0.0
  %2633 = vmatpush1.msra.mxu0 0.0
  %2634 = vmatprep.subr.mxu0 0.0
  %2635 = vmatpush1.msra.mxu0 0.0
  %2636 = vmatprep.subr.mxu0 0.0
  %2637 = vmatpush1.msra.mxu0 0.0
  %2638 = vmatprep.subr.mxu0 0.0
  %2639 = vmatpush1.msra.mxu0 0.0
  %2640 = vmatprep.subr.mxu0 0.0
  %2641 = vmatpush1.msra.mxu0 0.0
  %2642 = vmatprep.subr.mxu0 0.0
  %2643 = vmatpush1.msra.mxu0 0.0
  %2644 = vmatprep.subr.mxu0 0.0
  %2645 = vmatpush1.msra.mxu0 0.0
  %2646 = vmatprep.subr.mxu0 0.0
  %2647 = vmatpush1.msra.mxu0 0.0
  %2648 = vmatprep.subr.mxu0 0.0
  %2649 = vmatpush1.msra.mxu0 0.0
  %2650 = vmatprep.subr.mxu0 0.0
  %2651 = vmatpush1.msra.mxu0 0.0
  %2652 = vmatprep.subr.mxu0 0.0
  %2653 = vmatpush1.msra.mxu0 0.0
  %2654 = vmatprep.subr.mxu0 0.0
  %2655 = vmatpush1.msra.mxu0 %v2594
  %2656 = vmatprep.subr.mxu0 0.0
  %2657 = vmatpush1.msra.mxu0 %v2593
  %2658 = vmatprep.subr.mxu0 0.0
  %2659 = vmatpush1.msra.mxu0 %v2592
  %2660 = vmatprep.subr.mxu0 0.0
  %2661 = vmatpush1.msra.mxu0 %v2591
  %2662 = vmatprep.subr.mxu0 0.0
  %2663 = vmatpush2.msra.mxu0 0.0
  %2664 = vmatprep.subr.mxu0 0.0
  %2665 = vmatpush2.msra.mxu0 0.0
  %2666 = vmatprep.subr.mxu0 0.0
  %2667 = vmatpush2.msra.mxu0 0.0
  %2668 = vmatprep.subr.mxu0 0.0
  %2669 = vmatpush2.msra.mxu0 0.0
  %2670 = vmatprep.subr.mxu0 0.0
  %2671 = vmatpush2.msra.mxu0 0.0
  %2672 = vmatprep.subr.mxu0 0.0
  %2673 = vmatpush2.msra.mxu0 0.0
  %2674 = vmatprep.subr.mxu0 0.0
  %2675 = vmatpush2.msra.mxu0 0.0
  %2676 = vmatprep.subr.mxu0 0.0
  %2677 = vmatpush2.msra.mxu0 0.0
  %2678 = vmatprep.subr.mxu0 0.0
  %2679 = vmatpush2.msra.mxu0 0.0
  %2680 = vmatprep.subr.mxu0 0.0
  %2681 = vmatpush2.msra.mxu0 0.0
  %2682 = vmatprep.subr.mxu0 0.0
  %2683 = vmatpush2.msra.mxu0 0.0
  %2684 = vmatprep.subr.mxu0 0.0
  %2685 = vmatpush2.msra.mxu0 0.0
  %2686 = vmatprep.subr.mxu0 0.0
  %2687 = vmatpush2.msra.mxu0 0.0
  %2688 = vmatprep.subr.mxu0 0.0
  %2689 = vmatpush2.msra.mxu0 0.0
  %2690 = vmatprep.subr.mxu0 0.0
  %2691 = vmatpush2.msra.mxu0 0.0
  %2692 = vmatprep.subr.mxu0 0.0
  %2693 = vmatpush2.msra.mxu0 0.0
  %2694 = vmatprep.mubr.f32.mxu0 0.0
  %2695 = vmatmul.mubr.f32.gmra.mxu0 %v361
  %v2696 = vpop.f32.mrf.mxu0
  %v2697 = vadd.f32 %v2628, %v2696
  %v2698 = vpop.f32.mrf.mxu0
  %2699 = vdwg.mxu0
  %vm2700 = vcmask 31744
  %v2701 = vsel %vm2700, 0.0, 0
  %vm2703 = vcmask 1043456
  %v2705 = vsel %vm2703, %v2610, 0
  %2707 = vmatprep.subr.mxu0 0.0
  %2708 = vmatpush1.msra.mxu0 0.0
  %2709 = vmatprep.subr.mxu0 0.0
  %2710 = vmatpush1.msra.mxu0 0.0
  %2711 = vmatprep.subr.mxu0 0.0
  %2712 = vmatpush1.msra.mxu0 0.0
  %2713 = vmatprep.subr.mxu0 0.0
  %2714 = vmatpush1.msra.mxu0 0.0
  %2715 = vmatprep.subr.mxu0 0.0
  %2716 = vmatpush1.msra.mxu0 0.0
  %2717 = vmatprep.subr.mxu0 0.0
  %2718 = vmatpush1.msra.mxu0 0.0
  %2719 = vmatprep.subr.mxu0 0.0
  %2720 = vmatpush1.msra.mxu0 0.0
  %2721 = vmatprep.subr.mxu0 0.0
  %2722 = vmatpush1.msra.mxu0 0.0
  %2723 = vmatprep.subr.mxu0 0.0
  %2724 = vmatpush1.msra.mxu0 0.0
  %2725 = vmatprep.subr.mxu0 0.0
  %2726 = vmatpush1.msra.mxu0 0.0
  %2727 = vmatprep.subr.mxu0 0.0
  %2728 = vmatpush1.msra.mxu0 0.0
  %2729 = vmatprep.subr.mxu0 0.0
  %2730 = vmatpush1.msra.mxu0 0.0
  %2731 = vmatprep.subr.mxu0 0.0
  %2732 = vmatpush1.msra.mxu0 0.0
  %2733 = vmatprep.subr.mxu0 0.0
  %2734 = vmatpush1.msra.mxu0 0.0
  %2735 = vmatprep.subr.mxu0 0.0
  %2736 = vmatpush1.msra.mxu0 0.0
  %2737 = vmatprep.subr.mxu0 0.0
  %2738 = vmatpush1.msra.mxu0 %v2705
  %2739 = vmatprep.subr.mxu0 0.0
  %2740 = vmatpush2.msra.mxu0 0.0
  %2741 = vmatprep.subr.mxu0 0.0
  %2742 = vmatpush2.msra.mxu0 0.0
  %2743 = vmatprep.subr.mxu0 0.0
  %2744 = vmatpush2.msra.mxu0 0.0
  %2745 = vmatprep.subr.mxu0 0.0
  %2746 = vmatpush2.msra.mxu0 0.0
  %2747 = vmatprep.subr.mxu0 0.0
  %2748 = vmatpush2.msra.mxu0 0.0
  %2749 = vmatprep.subr.mxu0 0.0
  %2750 = vmatpush2.msra.mxu0 0.0
  %2751 = vmatprep.subr.mxu0 0.0
  %2752 = vmatpush2.msra.mxu0 0.0
  %2753 = vmatprep.subr.mxu0 0.0
  %2754 = vmatpush2.msra.mxu0 0.0
  %2755 = vmatprep.subr.mxu0 0.0
  %2756 = vmatpush2.msra.mxu0 0.0
  %2757 = vmatprep.subr.mxu0 0.0
  %2758 = vmatpush2.msra.mxu0 0.0
  %2759 = vmatprep.subr.mxu0 0.0
  %2760 = vmatpush2.msra.mxu0 0.0
  %2761 = vmatprep.subr.mxu0 0.0
  %2762 = vmatpush2.msra.mxu0 0.0
  %2763 = vmatprep.subr.mxu0 0.0
  %2764 = vmatpush2.msra.mxu0 0.0
  %2765 = vmatprep.subr.mxu0 0.0
  %2766 = vmatpush2.msra.mxu0 0.0
  %2767 = vmatprep.subr.mxu0 0.0
  %2768 = vmatpush2.msra.mxu0 0.0
  %2769 = vmatprep.subr.mxu0 0.0
  %2770 = vmatpush2.msra.mxu0 0.0
  %2771 = vmatprep.mubr.f32.mxu0 0.0
  %2772 = vmatmul.mubr.f32.gmra.mxu0 %v2701
  %v2773 = vpop.f32.mrf.mxu0
  %v2774 = vadd.f32 0.0, %v2773
  %v2775 = vpop.f32.mrf.mxu0
  %2776 = vdwg.mxu0
  %v2777 = vadd.f32 %v2697, %v2774
  %v2778 = vxor.u32 %v2777, 2147483648
  %v2779 = vmul.f32 %v2778, 1.442695
  %v2780 = vpow.pop %v2779
  %v2781 = vadd.f32 %v2780, 1.0
  %v2782 = vrcp.pop %v2781
  %v2783 = vmul.f32 1.0, %v2782
  %v2785 = vlaneseq
  %v2786 = vshrl.u32 %v2785, 7
  %v2787 = vsub.s32 0, %v2786
  %v2788 = vrot.slane %v2619, %v2787
  %2790 = vmatprep.subr.mxu0 0.0
  %2791 = vmatpush1.msra.mxu0 0.0
  %2792 = vmatprep.subr.mxu0 0.0
  %2793 = vmatpush1.msra.mxu0 0.0
  %2794 = vmatprep.subr.mxu0 0.0
  %2795 = vmatpush1.msra.mxu0 0.0
  %2796 = vmatprep.subr.mxu0 0.0
  %2797 = vmatpush1.msra.mxu0 0.0
  %2798 = vmatprep.subr.mxu0 0.0
  %2799 = vmatpush1.msra.mxu0 0.0
  %2800 = vmatprep.subr.mxu0 0.0
  %2801 = vmatpush1.msra.mxu0 0.0
  %2802 = vmatprep.subr.mxu0 0.0
  %2803 = vmatpush1.msra.mxu0 0.0
  %2804 = vmatprep.subr.mxu0 0.0
  %2805 = vmatpush1.msra.mxu0 0.0
  %2806 = vmatprep.subr.mxu0 0.0
  %2807 = vmatpush1.msra.mxu0 0.0
  %2808 = vmatprep.subr.mxu0 0.0
  %2809 = vmatpush1.msra.mxu0 0.0
  %2810 = vmatprep.subr.mxu0 0.0
  %2811 = vmatpush1.msra.mxu0 0.0
  %2812 = vmatprep.subr.mxu0 0.0
  %2813 = vmatpush1.msra.mxu0 0.0
  %2814 = vmatprep.subr.mxu0 0.0
  %2815 = vmatpush1.msra.mxu0 %v2599
  %2816 = vmatprep.subr.mxu0 0.0
  %2817 = vmatpush1.msra.mxu0 %v2598
  %2818 = vmatprep.subr.mxu0 0.0
  %2819 = vmatpush1.msra.mxu0 %v2597
  %2820 = vmatprep.subr.mxu0 0.0
  %2821 = vmatpush1.msra.mxu0 %v2596
  %2822 = vmatprep.subr.mxu0 0.0
  %2823 = vmatpush2.msra.mxu0 0.0
  %2824 = vmatprep.subr.mxu0 0.0
  %2825 = vmatpush2.msra.mxu0 0.0
  %2826 = vmatprep.subr.mxu0 0.0
  %2827 = vmatpush2.msra.mxu0 0.0
  %2828 = vmatprep.subr.mxu0 0.0
  %2829 = vmatpush2.msra.mxu0 0.0
  %2830 = vmatprep.subr.mxu0 0.0
  %2831 = vmatpush2.msra.mxu0 0.0
  %2832 = vmatprep.subr.mxu0 0.0
  %2833 = vmatpush2.msra.mxu0 0.0
  %2834 = vmatprep.subr.mxu0 0.0
  %2835 = vmatpush2.msra.mxu0 0.0
  %2836 = vmatprep.subr.mxu0 0.0
  %2837 = vmatpush2.msra.mxu0 0.0
  %2838 = vmatprep.subr.mxu0 0.0
  %2839 = vmatpush2.msra.mxu0 0.0
  %2840 = vmatprep.subr.mxu0 0.0
  %2841 = vmatpush2.msra.mxu0 0.0
  %2842 = vmatprep.subr.mxu0 0.0
  %2843 = vmatpush2.msra.mxu0 0.0
  %2844 = vmatprep.subr.mxu0 0.0
  %2845 = vmatpush2.msra.mxu0 0.0
  %2846 = vmatprep.subr.mxu0 0.0
  %2847 = vmatpush2.msra.mxu0 0.0
  %2848 = vmatprep.subr.mxu0 0.0
  %2849 = vmatpush2.msra.mxu0 0.0
  %2850 = vmatprep.subr.mxu0 0.0
  %2851 = vmatpush2.msra.mxu0 0.0
  %2852 = vmatprep.subr.mxu0 0.0
  %2853 = vmatpush2.msra.mxu0 0.0
  %2854 = vmatprep.mubr.f32.mxu0 0.0
  %2855 = vmatmul.mubr.f32.gmra.mxu0 %v361
  %v2856 = vpop.f32.mrf.mxu0
  %v2857 = vadd.f32 %v2788, %v2856
  %v2858 = vpop.f32.mrf.mxu0
  %2859 = vdwg.mxu0
  %v2861 = vsel %vm2703, %v2612, 0
  %2863 = vmatprep.subr.mxu0 0.0
  %2864 = vmatpush1.msra.mxu0 0.0
  %2865 = vmatprep.subr.mxu0 0.0
  %2866 = vmatpush1.msra.mxu0 0.0
  %2867 = vmatprep.subr.mxu0 0.0
  %2868 = vmatpush1.msra.mxu0 0.0
  %2869 = vmatprep.subr.mxu0 0.0
  %2870 = vmatpush1.msra.mxu0 0.0
  %2871 = vmatprep.subr.mxu0 0.0
  %2872 = vmatpush1.msra.mxu0 0.0
  %2873 = vmatprep.subr.mxu0 0.0
  %2874 = vmatpush1.msra.mxu0 0.0
  %2875 = vmatprep.subr.mxu0 0.0
  %2876 = vmatpush1.msra.mxu0 0.0
  %2877 = vmatprep.subr.mxu0 0.0
  %2878 = vmatpush1.msra.mxu0 0.0
  %2879 = vmatprep.subr.mxu0 0.0
  %2880 = vmatpush1.msra.mxu0 0.0
  %2881 = vmatprep.subr.mxu0 0.0
  %2882 = vmatpush1.msra.mxu0 0.0
  %2883 = vmatprep.subr.mxu0 0.0
  %2884 = vmatpush1.msra.mxu0 0.0
  %2885 = vmatprep.subr.mxu0 0.0
  %2886 = vmatpush1.msra.mxu0 0.0
  %2887 = vmatprep.subr.mxu0 0.0
  %2888 = vmatpush1.msra.mxu0 0.0
  %2889 = vmatprep.subr.mxu0 0.0
  %2890 = vmatpush1.msra.mxu0 0.0
  %2891 = vmatprep.subr.mxu0 0.0
  %2892 = vmatpush1.msra.mxu0 0.0
  %2893 = vmatprep.subr.mxu0 0.0
  %2894 = vmatpush1.msra.mxu0 %v2861
  %2895 = vmatprep.subr.mxu0 0.0
  %2896 = vmatpush2.msra.mxu0 0.0
  %2897 = vmatprep.subr.mxu0 0.0
  %2898 = vmatpush2.msra.mxu0 0.0
  %2899 = vmatprep.subr.mxu0 0.0
  %2900 = vmatpush2.msra.mxu0 0.0
  %2901 = vmatprep.subr.mxu0 0.0
  %2902 = vmatpush2.msra.mxu0 0.0
  %2903 = vmatprep.subr.mxu0 0.0
  %2904 = vmatpush2.msra.mxu0 0.0
  %2905 = vmatprep.subr.mxu0 0.0
  %2906 = vmatpush2.msra.mxu0 0.0
  %2907 = vmatprep.subr.mxu0 0.0
  %2908 = vmatpush2.msra.mxu0 0.0
  %2909 = vmatprep.subr.mxu0 0.0
  %2910 = vmatpush2.msra.mxu0 0.0
  %2911 = vmatprep.subr.mxu0 0.0
  %2912 = vmatpush2.msra.mxu0 0.0
  %2913 = vmatprep.subr.mxu0 0.0
  %2914 = vmatpush2.msra.mxu0 0.0
  %2915 = vmatprep.subr.mxu0 0.0
  %2916 = vmatpush2.msra.mxu0 0.0
  %2917 = vmatprep.subr.mxu0 0.0
  %2918 = vmatpush2.msra.mxu0 0.0
  %2919 = vmatprep.subr.mxu0 0.0
  %2920 = vmatpush2.msra.mxu0 0.0
  %2921 = vmatprep.subr.mxu0 0.0
  %2922 = vmatpush2.msra.mxu0 0.0
  %2923 = vmatprep.subr.mxu0 0.0
  %2924 = vmatpush2.msra.mxu0 0.0
  %2925 = vmatprep.subr.mxu0 0.0
  %2926 = vmatpush2.msra.mxu0 0.0
  %2927 = vmatprep.mubr.f32.mxu0 0.0
  %2928 = vmatmul.mubr.f32.gmra.mxu0 %v2701
  %v2929 = vpop.f32.mrf.mxu0
  %v2930 = vadd.f32 0.0, %v2929
  %v2931 = vpop.f32.mrf.mxu0
  %2932 = vdwg.mxu0
  %v2933 = vadd.f32 %v2857, %v2930
  %v2934 = vxor.u32 %v2933, 2147483648
  %v2935 = vmul.f32 %v2934, 1.442695
  %v2936 = vpow.pop %v2935
  %v2937 = vadd.f32 %v2936, 1.0
  %v2938 = vrcp.pop %v2937
  %v2939 = vmul.f32 1.0, %v2938
  %v2941 = vlaneseq
  %v2942 = vshrl.u32 %v2941, 7
  %v2943 = vsub.s32 0, %v2942
  %v2944 = vrot.slane %v2621, %v2943
  %2946 = vmatprep.subr.mxu0 0.0
  %2947 = vmatpush1.msra.mxu0 0.0
  %2948 = vmatprep.subr.mxu0 0.0
  %2949 = vmatpush1.msra.mxu0 0.0
  %2950 = vmatprep.subr.mxu0 0.0
  %2951 = vmatpush1.msra.mxu0 0.0
  %2952 = vmatprep.subr.mxu0 0.0
  %2953 = vmatpush1.msra.mxu0 0.0
  %2954 = vmatprep.subr.mxu0 0.0
  %2955 = vmatpush1.msra.mxu0 0.0
  %2956 = vmatprep.subr.mxu0 0.0
  %2957 = vmatpush1.msra.mxu0 0.0
  %2958 = vmatprep.subr.mxu0 0.0
  %2959 = vmatpush1.msra.mxu0 0.0
  %2960 = vmatprep.subr.mxu0 0.0
  %2961 = vmatpush1.msra.mxu0 0.0
  %2962 = vmatprep.subr.mxu0 0.0
  %2963 = vmatpush1.msra.mxu0 0.0
  %2964 = vmatprep.subr.mxu0 0.0
  %2965 = vmatpush1.msra.mxu0 0.0
  %2966 = vmatprep.subr.mxu0 0.0
  %2967 = vmatpush1.msra.mxu0 0.0
  %2968 = vmatprep.subr.mxu0 0.0
  %2969 = vmatpush1.msra.mxu0 0.0
  %2970 = vmatprep.subr.mxu0 0.0
  %2971 = vmatpush1.msra.mxu0 %v2604
  %2972 = vmatprep.subr.mxu0 0.0
  %2973 = vmatpush1.msra.mxu0 %v2603
  %2974 = vmatprep.subr.mxu0 0.0
  %2975 = vmatpush1.msra.mxu0 %v2602
  %2976 = vmatprep.subr.mxu0 0.0
  %2977 = vmatpush1.msra.mxu0 %v2601
  %2978 = vmatprep.subr.mxu0 0.0
  %2979 = vmatpush2.msra.mxu0 0.0
  %2980 = vmatprep.subr.mxu0 0.0
  %2981 = vmatpush2.msra.mxu0 0.0
  %2982 = vmatprep.subr.mxu0 0.0
  %2983 = vmatpush2.msra.mxu0 0.0
  %2984 = vmatprep.subr.mxu0 0.0
  %2985 = vmatpush2.msra.mxu0 0.0
  %2986 = vmatprep.subr.mxu0 0.0
  %2987 = vmatpush2.msra.mxu0 0.0
  %2988 = vmatprep.subr.mxu0 0.0
  %2989 = vmatpush2.msra.mxu0 0.0
  %2990 = vmatprep.subr.mxu0 0.0
  %2991 = vmatpush2.msra.mxu0 0.0
  %2992 = vmatprep.subr.mxu0 0.0
  %2993 = vmatpush2.msra.mxu0 0.0
  %2994 = vmatprep.subr.mxu0 0.0
  %2995 = vmatpush2.msra.mxu0 0.0
  %2996 = vmatprep.subr.mxu0 0.0
  %2997 = vmatpush2.msra.mxu0 0.0
  %2998 = vmatprep.subr.mxu0 0.0
  %2999 = vmatpush2.msra.mxu0 0.0
  %3000 = vmatprep.subr.mxu0 0.0
  %3001 = vmatpush2.msra.mxu0 0.0
  %3002 = vmatprep.subr.mxu0 0.0
  %3003 = vmatpush2.msra.mxu0 0.0
  %3004 = vmatprep.subr.mxu0 0.0
  %3005 = vmatpush2.msra.mxu0 0.0
  %3006 = vmatprep.subr.mxu0 0.0
  %3007 = vmatpush2.msra.mxu0 0.0
  %3008 = vmatprep.subr.mxu0 0.0
  %3009 = vmatpush2.msra.mxu0 0.0
  %3010 = vmatprep.mubr.f32.mxu0 0.0
  %3011 = vmatmul.mubr.f32.gmra.mxu0 %v361
  %v3012 = vpop.f32.mrf.mxu0
  %v3013 = vadd.f32 %v2944, %v3012
  %v3014 = vpop.f32.mrf.mxu0
  %3015 = vdwg.mxu0
  %v3017 = vsel %vm2703, %v2614, 0
  %3019 = vmatprep.subr.mxu0 0.0
  %3020 = vmatpush1.msra.mxu0 0.0
  %3021 = vmatprep.subr.mxu0 0.0
  %3022 = vmatpush1.msra.mxu0 0.0
  %3023 = vmatprep.subr.mxu0 0.0
  %3024 = vmatpush1.msra.mxu0 0.0
  %3025 = vmatprep.subr.mxu0 0.0
  %3026 = vmatpush1.msra.mxu0 0.0
  %3027 = vmatprep.subr.mxu0 0.0
  %3028 = vmatpush1.msra.mxu0 0.0
  %3029 = vmatprep.subr.mxu0 0.0
  %3030 = vmatpush1.msra.mxu0 0.0
  %3031 = vmatprep.subr.mxu0 0.0
  %3032 = vmatpush1.msra.mxu0 0.0
  %3033 = vmatprep.subr.mxu0 0.0
  %3034 = vmatpush1.msra.mxu0 0.0
  %3035 = vmatprep.subr.mxu0 0.0
  %3036 = vmatpush1.msra.mxu0 0.0
  %3037 = vmatprep.subr.mxu0 0.0
  %3038 = vmatpush1.msra.mxu0 0.0
  %3039 = vmatprep.subr.mxu0 0.0
  %3040 = vmatpush1.msra.mxu0 0.0
  %3041 = vmatprep.subr.mxu0 0.0
  %3042 = vmatpush1.msra.mxu0 0.0
  %3043 = vmatprep.subr.mxu0 0.0
  %3044 = vmatpush1.msra.mxu0 0.0
  %3045 = vmatprep.subr.mxu0 0.0
  %3046 = vmatpush1.msra.mxu0 0.0
  %3047 = vmatprep.subr.mxu0 0.0
  %3048 = vmatpush1.msra.mxu0 0.0
  %3049 = vmatprep.subr.mxu0 0.0
  %3050 = vmatpush1.msra.mxu0 %v3017
  %3051 = vmatprep.subr.mxu0 0.0
  %3052 = vmatpush2.msra.mxu0 0.0
  %3053 = vmatprep.subr.mxu0 0.0
  %3054 = vmatpush2.msra.mxu0 0.0
  %3055 = vmatprep.subr.mxu0 0.0
  %3056 = vmatpush2.msra.mxu0 0.0
  %3057 = vmatprep.subr.mxu0 0.0
  %3058 = vmatpush2.msra.mxu0 0.0
  %3059 = vmatprep.subr.mxu0 0.0
  %3060 = vmatpush2.msra.mxu0 0.0
  %3061 = vmatprep.subr.mxu0 0.0
  %3062 = vmatpush2.msra.mxu0 0.0
  %3063 = vmatprep.subr.mxu0 0.0
  %3064 = vmatpush2.msra.mxu0 0.0
  %3065 = vmatprep.subr.mxu0 0.0
  %3066 = vmatpush2.msra.mxu0 0.0
  %3067 = vmatprep.subr.mxu0 0.0
  %3068 = vmatpush2.msra.mxu0 0.0
  %3069 = vmatprep.subr.mxu0 0.0
  %3070 = vmatpush2.msra.mxu0 0.0
  %3071 = vmatprep.subr.mxu0 0.0
  %3072 = vmatpush2.msra.mxu0 0.0
  %3073 = vmatprep.subr.mxu0 0.0
  %3074 = vmatpush2.msra.mxu0 0.0
  %3075 = vmatprep.subr.mxu0 0.0
  %3076 = vmatpush2.msra.mxu0 0.0
  %3077 = vmatprep.subr.mxu0 0.0
  %3078 = vmatpush2.msra.mxu0 0.0
  %3079 = vmatprep.subr.mxu0 0.0
  %3080 = vmatpush2.msra.mxu0 0.0
  %3081 = vmatprep.subr.mxu0 0.0
  %3082 = vmatpush2.msra.mxu0 0.0
  %3083 = vmatprep.mubr.f32.mxu0 0.0
  %3084 = vmatmul.mubr.f32.gmra.mxu0 %v2701
  %v3085 = vpop.f32.mrf.mxu0
  %v3086 = vadd.f32 0.0, %v3085
  %v3087 = vpop.f32.mrf.mxu0
  %3088 = vdwg.mxu0
  %v3089 = vadd.f32 %v3013, %v3086
  %v3090 = vtanh.pop %v3089
  %v3092 = vlaneseq
  %v3093 = vshrl.u32 %v3092, 7
  %v3094 = vsub.s32 0, %v3093
  %v3095 = vrot.slane %v2623, %v3094
  %3097 = vmatprep.subr.mxu0 0.0
  %3098 = vmatpush1.msra.mxu0 0.0
  %3099 = vmatprep.subr.mxu0 0.0
  %3100 = vmatpush1.msra.mxu0 0.0
  %3101 = vmatprep.subr.mxu0 0.0
  %3102 = vmatpush1.msra.mxu0 0.0
  %3103 = vmatprep.subr.mxu0 0.0
  %3104 = vmatpush1.msra.mxu0 0.0
  %3105 = vmatprep.subr.mxu0 0.0
  %3106 = vmatpush1.msra.mxu0 0.0
  %3107 = vmatprep.subr.mxu0 0.0
  %3108 = vmatpush1.msra.mxu0 0.0
  %3109 = vmatprep.subr.mxu0 0.0
  %3110 = vmatpush1.msra.mxu0 0.0
  %3111 = vmatprep.subr.mxu0 0.0
  %3112 = vmatpush1.msra.mxu0 0.0
  %3113 = vmatprep.subr.mxu0 0.0
  %3114 = vmatpush1.msra.mxu0 0.0
  %3115 = vmatprep.subr.mxu0 0.0
  %3116 = vmatpush1.msra.mxu0 0.0
  %3117 = vmatprep.subr.mxu0 0.0
  %3118 = vmatpush1.msra.mxu0 0.0
  %3119 = vmatprep.subr.mxu0 0.0
  %3120 = vmatpush1.msra.mxu0 0.0
  %3121 = vmatprep.subr.mxu0 0.0
  %3122 = vmatpush1.msra.mxu0 %v2609
  %3123 = vmatprep.subr.mxu0 0.0
  %3124 = vmatpush1.msra.mxu0 %v2608
  %3125 = vmatprep.subr.mxu0 0.0
  %3126 = vmatpush1.msra.mxu0 %v2607
  %3127 = vmatprep.subr.mxu0 0.0
  %3128 = vmatpush1.msra.mxu0 %v2606
  %3129 = vmatprep.subr.mxu0 0.0
  %3130 = vmatpush2.msra.mxu0 0.0
  %3131 = vmatprep.subr.mxu0 0.0
  %3132 = vmatpush2.msra.mxu0 0.0
  %3133 = vmatprep.subr.mxu0 0.0
  %3134 = vmatpush2.msra.mxu0 0.0
  %3135 = vmatprep.subr.mxu0 0.0
  %3136 = vmatpush2.msra.mxu0 0.0
  %3137 = vmatprep.subr.mxu0 0.0
  %3138 = vmatpush2.msra.mxu0 0.0
  %3139 = vmatprep.subr.mxu0 0.0
  %3140 = vmatpush2.msra.mxu0 0.0
  %3141 = vmatprep.subr.mxu0 0.0
  %3142 = vmatpush2.msra.mxu0 0.0
  %3143 = vmatprep.subr.mxu0 0.0
  %3144 = vmatpush2.msra.mxu0 0.0
  %3145 = vmatprep.subr.mxu0 0.0
  %3146 = vmatpush2.msra.mxu0 0.0
  %3147 = vmatprep.subr.mxu0 0.0
  %3148 = vmatpush2.msra.mxu0 0.0
  %3149 = vmatprep.subr.mxu0 0.0
  %3150 = vmatpush2.msra.mxu0 0.0
  %3151 = vmatprep.subr.mxu0 0.0
  %3152 = vmatpush2.msra.mxu0 0.0
  %3153 = vmatprep.subr.mxu0 0.0
  %3154 = vmatpush2.msra.mxu0 0.0
  %3155 = vmatprep.subr.mxu0 0.0
  %3156 = vmatpush2.msra.mxu0 0.0
  %3157 = vmatprep.subr.mxu0 0.0
  %3158 = vmatpush2.msra.mxu0 0.0
  %3159 = vmatprep.subr.mxu0 0.0
  %3160 = vmatpush2.msra.mxu0 0.0
  %3161 = vmatprep.mubr.f32.mxu0 0.0
  %3162 = vmatmul.mubr.f32.gmra.mxu0 %v361
  %v3163 = vpop.f32.mrf.mxu0
  %v3164 = vadd.f32 %v3095, %v3163
  %v3165 = vpop.f32.mrf.mxu0
  %3166 = vdwg.mxu0
  %v3168 = vsel %vm2703, %v2616, 0
  %3170 = vmatprep.subr.mxu0 0.0
  %3171 = vmatpush1.msra.mxu0 0.0
  %3172 = vmatprep.subr.mxu0 0.0
  %3173 = vmatpush1.msra.mxu0 0.0
  %3174 = vmatprep.subr.mxu0 0.0
  %3175 = vmatpush1.msra.mxu0 0.0
  %3176 = vmatprep.subr.mxu0 0.0
  %3177 = vmatpush1.msra.mxu0 0.0
  %3178 = vmatprep.subr.mxu0 0.0
  %3179 = vmatpush1.msra.mxu0 0.0
  %3180 = vmatprep.subr.mxu0 0.0
  %3181 = vmatpush1.msra.mxu0 0.0
  %3182 = vmatprep.subr.mxu0 0.0
  %3183 = vmatpush1.msra.mxu0 0.0
  %3184 = vmatprep.subr.mxu0 0.0
  %3185 = vmatpush1.msra.mxu0 0.0
  %3186 = vmatprep.subr.mxu0 0.0
  %3187 = vmatpush1.msra.mxu0 0.0
  %3188 = vmatprep.subr.mxu0 0.0
  %3189 = vmatpush1.msra.mxu0 0.0
  %3190 = vmatprep.subr.mxu0 0.0
  %3191 = vmatpush1.msra.mxu0 0.0
  %3192 = vmatprep.subr.mxu0 0.0
  %3193 = vmatpush1.msra.mxu0 0.0
  %3194 = vmatprep.subr.mxu0 0.0
  %3195 = vmatpush1.msra.mxu0 0.0
  %3196 = vmatprep.subr.mxu0 0.0
  %3197 = vmatpush1.msra.mxu0 0.0
  %3198 = vmatprep.subr.mxu0 0.0
  %3199 = vmatpush1.msra.mxu0 0.0
  %3200 = vmatprep.subr.mxu0 0.0
  %3201 = vmatpush1.msra.mxu0 %v3168
  %3202 = vmatprep.subr.mxu0 0.0
  %3203 = vmatpush2.msra.mxu0 0.0
  %3204 = vmatprep.subr.mxu0 0.0
  %3205 = vmatpush2.msra.mxu0 0.0
  %3206 = vmatprep.subr.mxu0 0.0
  %3207 = vmatpush2.msra.mxu0 0.0
  %3208 = vmatprep.subr.mxu0 0.0
  %3209 = vmatpush2.msra.mxu0 0.0
  %3210 = vmatprep.subr.mxu0 0.0
  %3211 = vmatpush2.msra.mxu0 0.0
  %3212 = vmatprep.subr.mxu0 0.0
  %3213 = vmatpush2.msra.mxu0 0.0
  %3214 = vmatprep.subr.mxu0 0.0
  %3215 = vmatpush2.msra.mxu0 0.0
  %3216 = vmatprep.subr.mxu0 0.0
  %3217 = vmatpush2.msra.mxu0 0.0
  %3218 = vmatprep.subr.mxu0 0.0
  %3219 = vmatpush2.msra.mxu0 0.0
  %3220 = vmatprep.subr.mxu0 0.0
  %3221 = vmatpush2.msra.mxu0 0.0
  %3222 = vmatprep.subr.mxu0 0.0
  %3223 = vmatpush2.msra.mxu0 0.0
  %3224 = vmatprep.subr.mxu0 0.0
  %3225 = vmatpush2.msra.mxu0 0.0
  %3226 = vmatprep.subr.mxu0 0.0
  %3227 = vmatpush2.msra.mxu0 0.0
  %3228 = vmatprep.subr.mxu0 0.0
  %3229 = vmatpush2.msra.mxu0 0.0
  %3230 = vmatprep.subr.mxu0 0.0
  %3231 = vmatpush2.msra.mxu0 0.0
  %3232 = vmatprep.subr.mxu0 0.0
  %3233 = vmatpush2.msra.mxu0 0.0
  %3234 = vmatprep.mubr.f32.mxu0 0.0
  %3235 = vmatmul.mubr.f32.gmra.mxu0 %v2701
  %v3236 = vpop.f32.mrf.mxu0
  %v3237 = vadd.f32 0.0, %v3236
  %v3238 = vpop.f32.mrf.mxu0
  %3239 = vdwg.mxu0
  %v3240 = vadd.f32 %v3164, %v3237
  %v3241 = vxor.u32 %v3240, 2147483648
  %v3242 = vmul.f32 %v3241, 1.442695
  %v3243 = vpow.pop %v3242
  %v3244 = vadd.f32 %v3243, 1.0
  %v3245 = vrcp.pop %v3244
  %v3246 = vmul.f32 1.0, %v3245
  %v3247 = vmul.f32 %v2939, 0.0
  %v3248 = vmul.f32 %v2783, %v3090
  %v3249 = vadd.f32 %v3247, %v3248
  %v3250 = vtanh.pop %v3249
  %v3251 = vmul.f32 %v3246, %v3250
  %3252 = vmatprep.subr.mxu0 0.0
  %3253 = vmatpush1.msra.mxu0 0.0
  %3254 = vmatprep.subr.mxu0 0.0
  %3255 = vmatpush1.msra.mxu0 0.0
  %3256 = vmatprep.subr.mxu0 0.0
  %3257 = vmatpush1.msra.mxu0 0.0
  %3258 = vmatprep.subr.mxu0 0.0
  %3259 = vmatpush1.msra.mxu0 0.0
  %3260 = vmatprep.subr.mxu0 0.0
  %3261 = vmatpush1.msra.mxu0 0.0
  %3262 = vmatprep.subr.mxu0 0.0
  %3263 = vmatpush1.msra.mxu0 0.0
  %3264 = vmatprep.subr.mxu0 0.0
  %3265 = vmatpush1.msra.mxu0 0.0
  %3266 = vmatprep.subr.mxu0 0.0
  %3267 = vmatpush1.msra.mxu0 0.0
  %3268 = vmatprep.subr.mxu0 0.0
  %3269 = vmatpush1.msra.mxu0 0.0
  %3270 = vmatprep.subr.mxu0 0.0
  %3271 = vmatpush1.msra.mxu0 0.0
  %3272 = vmatprep.subr.mxu0 0.0
  %3273 = vmatpush1.msra.mxu0 0.0
  %3274 = vmatprep.subr.mxu0 0.0
  %3275 = vmatpush1.msra.mxu0 0.0
  %3276 = vmatprep.subr.mxu0 0.0
  %3277 = vmatpush1.msra.mxu0 %v2594
  %3278 = vmatprep.subr.mxu0 0.0
  %3279 = vmatpush1.msra.mxu0 %v2593
  %3280 = vmatprep.subr.mxu0 0.0
  %3281 = vmatpush1.msra.mxu0 %v2592
  %3282 = vmatprep.subr.mxu0 0.0
  %3283 = vmatpush1.msra.mxu0 %v2591
  %3284 = vmatprep.subr.mxu0 0.0
  %3285 = vmatpush2.msra.mxu0 0.0
  %3286 = vmatprep.subr.mxu0 0.0
  %3287 = vmatpush2.msra.mxu0 0.0
  %3288 = vmatprep.subr.mxu0 0.0
  %3289 = vmatpush2.msra.mxu0 0.0
  %3290 = vmatprep.subr.mxu0 0.0
  %3291 = vmatpush2.msra.mxu0 0.0
  %3292 = vmatprep.subr.mxu0 0.0
  %3293 = vmatpush2.msra.mxu0 0.0
  %3294 = vmatprep.subr.mxu0 0.0
  %3295 = vmatpush2.msra.mxu0 0.0
  %3296 = vmatprep.subr.mxu0 0.0
  %3297 = vmatpush2.msra.mxu0 0.0
  %3298 = vmatprep.subr.mxu0 0.0
  %3299 = vmatpush2.msra.mxu0 0.0
  %3300 = vmatprep.subr.mxu0 0.0
  %3301 = vmatpush2.msra.mxu0 0.0
  %3302 = vmatprep.subr.mxu0 0.0
  %3303 = vmatpush2.msra.mxu0 0.0
  %3304 = vmatprep.subr.mxu0 0.0
  %3305 = vmatpush2.msra.mxu0 0.0
  %3306 = vmatprep.subr.mxu0 0.0
  %3307 = vmatpush2.msra.mxu0 0.0
  %3308 = vmatprep.subr.mxu0 0.0
  %3309 = vmatpush2.msra.mxu0 0.0
  %3310 = vmatprep.subr.mxu0 0.0
  %3311 = vmatpush2.msra.mxu0 0.0
  %3312 = vmatprep.subr.mxu0 0.0
  %3313 = vmatpush2.msra.mxu0 0.0
  %3314 = vmatprep.subr.mxu0 0.0
  %3315 = vmatpush2.msra.mxu0 0.0
  %3316 = vmatprep.mubr.f32.mxu0 0.0
  %3317 = vmatmul.mubr.f32.gmra.mxu0 %v680
  %v3318 = vpop.f32.mrf.mxu0
  %v3319 = vadd.f32 %v2628, %v3318
  %v3320 = vpop.f32.mrf.mxu0
  %3321 = vdwg.mxu0
  %v3323 = vsel %vm2700, %v3251, 0
  %3325 = vmatprep.subr.mxu0 0.0
  %3326 = vmatpush1.msra.mxu0 0.0
  %3327 = vmatprep.subr.mxu0 0.0
  %3328 = vmatpush1.msra.mxu0 0.0
  %3329 = vmatprep.subr.mxu0 0.0
  %3330 = vmatpush1.msra.mxu0 0.0
  %3331 = vmatprep.subr.mxu0 0.0
  %3332 = vmatpush1.msra.mxu0 0.0
  %3333 = vmatprep.subr.mxu0 0.0
  %3334 = vmatpush1.msra.mxu0 0.0
  %3335 = vmatprep.subr.mxu0 0.0
  %3336 = vmatpush1.msra.mxu0 0.0
  %3337 = vmatprep.subr.mxu0 0.0
  %3338 = vmatpush1.msra.mxu0 0.0
  %3339 = vmatprep.subr.mxu0 0.0
  %3340 = vmatpush1.msra.mxu0 0.0
  %3341 = vmatprep.subr.mxu0 0.0
  %3342 = vmatpush1.msra.mxu0 0.0
  %3343 = vmatprep.subr.mxu0 0.0
  %3344 = vmatpush1.msra.mxu0 0.0
  %3345 = vmatprep.subr.mxu0 0.0
  %3346 = vmatpush1.msra.mxu0 0.0
  %3347 = vmatprep.subr.mxu0 0.0
  %3348 = vmatpush1.msra.mxu0 0.0
  %3349 = vmatprep.subr.mxu0 0.0
  %3350 = vmatpush1.msra.mxu0 0.0
  %3351 = vmatprep.subr.mxu0 0.0
  %3352 = vmatpush1.msra.mxu0 0.0
  %3353 = vmatprep.subr.mxu0 0.0
  %3354 = vmatpush1.msra.mxu0 0.0
  %3355 = vmatprep.subr.mxu0 0.0
  %3356 = vmatpush1.msra.mxu0 %v2705
  %3357 = vmatprep.subr.mxu0 0.0
  %3358 = vmatpush2.msra.mxu0 0.0
  %3359 = vmatprep.subr.mxu0 0.0
  %3360 = vmatpush2.msra.mxu0 0.0
  %3361 = vmatprep.subr.mxu0 0.0
  %3362 = vmatpush2.msra.mxu0 0.0
  %3363 = vmatprep.subr.mxu0 0.0
  %3364 = vmatpush2.msra.mxu0 0.0
  %3365 = vmatprep.subr.mxu0 0.0
  %3366 = vmatpush2.msra.mxu0 0.0
  %3367 = vmatprep.subr.mxu0 0.0
  %3368 = vmatpush2.msra.mxu0 0.0
  %3369 = vmatprep.subr.mxu0 0.0
  %3370 = vmatpush2.msra.mxu0 0.0
  %3371 = vmatprep.subr.mxu0 0.0
  %3372 = vmatpush2.msra.mxu0 0.0
  %3373 = vmatprep.subr.mxu0 0.0
  %3374 = vmatpush2.msra.mxu0 0.0
  %3375 = vmatprep.subr.mxu0 0.0
  %3376 = vmatpush2.msra.mxu0 0.0
  %3377 = vmatprep.subr.mxu0 0.0
  %3378 = vmatpush2.msra.mxu0 0.0
  %3379 = vmatprep.subr.mxu0 0.0
  %3380 = vmatpush2.msra.mxu0 0.0
  %3381 = vmatprep.subr.mxu0 0.0
  %3382 = vmatpush2.msra.mxu0 0.0
  %3383 = vmatprep.subr.mxu0 0.0
  %3384 = vmatpush2.msra.mxu0 0.0
  %3385 = vmatprep.subr.mxu0 0.0
  %3386 = vmatpush2.msra.mxu0 0.0
  %3387 = vmatprep.subr.mxu0 0.0
  %3388 = vmatpush2.msra.mxu0 0.0
  %3389 = vmatprep.mubr.f32.mxu0 0.0
  %3390 = vmatmul.mubr.f32.gmra.mxu0 %v3323
  %v3391 = vpop.f32.mrf.mxu0
  %v3392 = vadd.f32 0.0, %v3391
  %v3393 = vpop.f32.mrf.mxu0
  %3394 = vdwg.mxu0
  %v3395 = vadd.f32 %v3319, %v3392
  %v3396 = vxor.u32 %v3395, 2147483648
  %v3397 = vmul.f32 %v3396, 1.442695
  %v3398 = vpow.pop %v3397
  %v3399 = vadd.f32 %v3398, 1.0
  %v3400 = vrcp.pop %v3399
  %v3401 = vmul.f32 1.0, %v3400
  %3402 = vmatprep.subr.mxu0 0.0
  %3403 = vmatpush1.msra.mxu0 0.0
  %3404 = vmatprep.subr.mxu0 0.0
  %3405 = vmatpush1.msra.mxu0 0.0
  %3406 = vmatprep.subr.mxu0 0.0
  %3407 = vmatpush1.msra.mxu0 0.0
  %3408 = vmatprep.subr.mxu0 0.0
  %3409 = vmatpush1.msra.mxu0 0.0
  %3410 = vmatprep.subr.mxu0 0.0
  %3411 = vmatpush1.msra.mxu0 0.0
  %3412 = vmatprep.subr.mxu0 0.0
  %3413 = vmatpush1.msra.mxu0 0.0
  %3414 = vmatprep.subr.mxu0 0.0
  %3415 = vmatpush1.msra.mxu0 0.0
  %3416 = vmatprep.subr.mxu0 0.0
  %3417 = vmatpush1.msra.mxu0 0.0
  %3418 = vmatprep.subr.mxu0 0.0
  %3419 = vmatpush1.msra.mxu0 0.0
  %3420 = vmatprep.subr.mxu0 0.0
  %3421 = vmatpush1.msra.mxu0 0.0
  %3422 = vmatprep.subr.mxu0 0.0
  %3423 = vmatpush1.msra.mxu0 0.0
  %3424 = vmatprep.subr.mxu0 0.0
  %3425 = vmatpush1.msra.mxu0 0.0
  %3426 = vmatprep.subr.mxu0 0.0
  %3427 = vmatpush1.msra.mxu0 %v2599
  %3428 = vmatprep.subr.mxu0 0.0
  %3429 = vmatpush1.msra.mxu0 %v2598
  %3430 = vmatprep.subr.mxu0 0.0
  %3431 = vmatpush1.msra.mxu0 %v2597
  %3432 = vmatprep.subr.mxu0 0.0
  %3433 = vmatpush1.msra.mxu0 %v2596
  %3434 = vmatprep.subr.mxu0 0.0
  %3435 = vmatpush2.msra.mxu0 0.0
  %3436 = vmatprep.subr.mxu0 0.0
  %3437 = vmatpush2.msra.mxu0 0.0
  %3438 = vmatprep.subr.mxu0 0.0
  %3439 = vmatpush2.msra.mxu0 0.0
  %3440 = vmatprep.subr.mxu0 0.0
  %3441 = vmatpush2.msra.mxu0 0.0
  %3442 = vmatprep.subr.mxu0 0.0
  %3443 = vmatpush2.msra.mxu0 0.0
  %3444 = vmatprep.subr.mxu0 0.0
  %3445 = vmatpush2.msra.mxu0 0.0
  %3446 = vmatprep.subr.mxu0 0.0
  %3447 = vmatpush2.msra.mxu0 0.0
  %3448 = vmatprep.subr.mxu0 0.0
  %3449 = vmatpush2.msra.mxu0 0.0
  %3450 = vmatprep.subr.mxu0 0.0
  %3451 = vmatpush2.msra.mxu0 0.0
  %3452 = vmatprep.subr.mxu0 0.0
  %3453 = vmatpush2.msra.mxu0 0.0
  %3454 = vmatprep.subr.mxu0 0.0
  %3455 = vmatpush2.msra.mxu0 0.0
  %3456 = vmatprep.subr.mxu0 0.0
  %3457 = vmatpush2.msra.mxu0 0.0
  %3458 = vmatprep.subr.mxu0 0.0
  %3459 = vmatpush2.msra.mxu0 0.0
  %3460 = vmatprep.subr.mxu0 0.0
  %3461 = vmatpush2.msra.mxu0 0.0
  %3462 = vmatprep.subr.mxu0 0.0
  %3463 = vmatpush2.msra.mxu0 0.0
  %3464 = vmatprep.subr.mxu0 0.0
  %3465 = vmatpush2.msra.mxu0 0.0
  %3466 = vmatprep.mubr.f32.mxu0 0.0
  %3467 = vmatmul.mubr.f32.gmra.mxu0 %v680
  %v3468 = vpop.f32.mrf.mxu0
  %v3469 = vadd.f32 %v2788, %v3468
  %v3470 = vpop.f32.mrf.mxu0
  %3471 = vdwg.mxu0
  %3472 = vmatprep.subr.mxu0 0.0
  %3473 = vmatpush1.msra.mxu0 0.0
  %3474 = vmatprep.subr.mxu0 0.0
  %3475 = vmatpush1.msra.mxu0 0.0
  %3476 = vmatprep.subr.mxu0 0.0
  %3477 = vmatpush1.msra.mxu0 0.0
  %3478 = vmatprep.subr.mxu0 0.0
  %3479 = vmatpush1.msra.mxu0 0.0
  %3480 = vmatprep.subr.mxu0 0.0
  %3481 = vmatpush1.msra.mxu0 0.0
  %3482 = vmatprep.subr.mxu0 0.0
  %3483 = vmatpush1.msra.mxu0 0.0
  %3484 = vmatprep.subr.mxu0 0.0
  %3485 = vmatpush1.msra.mxu0 0.0
  %3486 = vmatprep.subr.mxu0 0.0
  %3487 = vmatpush1.msra.mxu0 0.0
  %3488 = vmatprep.subr.mxu0 0.0
  %3489 = vmatpush1.msra.mxu0 0.0
  %3490 = vmatprep.subr.mxu0 0.0
  %3491 = vmatpush1.msra.mxu0 0.0
  %3492 = vmatprep.subr.mxu0 0.0
  %3493 = vmatpush1.msra.mxu0 0.0
  %3494 = vmatprep.subr.mxu0 0.0
  %3495 = vmatpush1.msra.mxu0 0.0
  %3496 = vmatprep.subr.mxu0 0.0
  %3497 = vmatpush1.msra.mxu0 0.0
  %3498 = vmatprep.subr.mxu0 0.0
  %3499 = vmatpush1.msra.mxu0 0.0
  %3500 = vmatprep.subr.mxu0 0.0
  %3501 = vmatpush1.msra.mxu0 0.0
  %3502 = vmatprep.subr.mxu0 0.0
  %3503 = vmatpush1.msra.mxu0 %v2861
  %3504 = vmatprep.subr.mxu0 0.0
  %3505 = vmatpush2.msra.mxu0 0.0
  %3506 = vmatprep.subr.mxu0 0.0
  %3507 = vmatpush2.msra.mxu0 0.0
  %3508 = vmatprep.subr.mxu0 0.0
  %3509 = vmatpush2.msra.mxu0 0.0
  %3510 = vmatprep.subr.mxu0 0.0
  %3511 = vmatpush2.msra.mxu0 0.0
  %3512 = vmatprep.subr.mxu0 0.0
  %3513 = vmatpush2.msra.mxu0 0.0
  %3514 = vmatprep.subr.mxu0 0.0
  %3515 = vmatpush2.msra.mxu0 0.0
  %3516 = vmatprep.subr.mxu0 0.0
  %3517 = vmatpush2.msra.mxu0 0.0
  %3518 = vmatprep.subr.mxu0 0.0
  %3519 = vmatpush2.msra.mxu0 0.0
  %3520 = vmatprep.subr.mxu0 0.0
  %3521 = vmatpush2.msra.mxu0 0.0
  %3522 = vmatprep.subr.mxu0 0.0
  %3523 = vmatpush2.msra.mxu0 0.0
  %3524 = vmatprep.subr.mxu0 0.0
  %3525 = vmatpush2.msra.mxu0 0.0
  %3526 = vmatprep.subr.mxu0 0.0
  %3527 = vmatpush2.msra.mxu0 0.0
  %3528 = vmatprep.subr.mxu0 0.0
  %3529 = vmatpush2.msra.mxu0 0.0
  %3530 = vmatprep.subr.mxu0 0.0
  %3531 = vmatpush2.msra.mxu0 0.0
  %3532 = vmatprep.subr.mxu0 0.0
  %3533 = vmatpush2.msra.mxu0 0.0
  %3534 = vmatprep.subr.mxu0 0.0
  %3535 = vmatpush2.msra.mxu0 0.0
  %3536 = vmatprep.mubr.f32.mxu0 0.0
  %3537 = vmatmul.mubr.f32.gmra.mxu0 %v3323
  %v3538 = vpop.f32.mrf.mxu0
  %v3539 = vadd.f32 0.0, %v3538
  %v3540 = vpop.f32.mrf.mxu0
  %3541 = vdwg.mxu0
  %v3542 = vadd.f32 %v3469, %v3539
  %v3543 = vxor.u32 %v3542, 2147483648
  %v3544 = vmul.f32 %v3543, 1.442695
  %v3545 = vpow.pop %v3544
  %v3546 = vadd.f32 %v3545, 1.0
  %v3547 = vrcp.pop %v3546
  %v3548 = vmul.f32 1.0, %v3547
  %3549 = vmatprep.subr.mxu0 0.0
  %3550 = vmatpush1.msra.mxu0 0.0
  %3551 = vmatprep.subr.mxu0 0.0
  %3552 = vmatpush1.msra.mxu0 0.0
  %3553 = vmatprep.subr.mxu0 0.0
  %3554 = vmatpush1.msra.mxu0 0.0
  %3555 = vmatprep.subr.mxu0 0.0
  %3556 = vmatpush1.msra.mxu0 0.0
  %3557 = vmatprep.subr.mxu0 0.0
  %3558 = vmatpush1.msra.mxu0 0.0
  %3559 = vmatprep.subr.mxu0 0.0
  %3560 = vmatpush1.msra.mxu0 0.0
  %3561 = vmatprep.subr.mxu0 0.0
  %3562 = vmatpush1.msra.mxu0 0.0
  %3563 = vmatprep.subr.mxu0 0.0
  %3564 = vmatpush1.msra.mxu0 0.0
  %3565 = vmatprep.subr.mxu0 0.0
  %3566 = vmatpush1.msra.mxu0 0.0
  %3567 = vmatprep.subr.mxu0 0.0
  %3568 = vmatpush1.msra.mxu0 0.0
  %3569 = vmatprep.subr.mxu0 0.0
  %3570 = vmatpush1.msra.mxu0 0.0
  %3571 = vmatprep.subr.mxu0 0.0
  %3572 = vmatpush1.msra.mxu0 0.0
  %3573 = vmatprep.subr.mxu0 0.0
  %3574 = vmatpush1.msra.mxu0 %v2604
  %3575 = vmatprep.subr.mxu0 0.0
  %3576 = vmatpush1.msra.mxu0 %v2603
  %3577 = vmatprep.subr.mxu0 0.0
  %3578 = vmatpush1.msra.mxu0 %v2602
  %3579 = vmatprep.subr.mxu0 0.0
  %3580 = vmatpush1.msra.mxu0 %v2601
  %3581 = vmatprep.subr.mxu0 0.0
  %3582 = vmatpush2.msra.mxu0 0.0
  %3583 = vmatprep.subr.mxu0 0.0
  %3584 = vmatpush2.msra.mxu0 0.0
  %3585 = vmatprep.subr.mxu0 0.0
  %3586 = vmatpush2.msra.mxu0 0.0
  %3587 = vmatprep.subr.mxu0 0.0
  %3588 = vmatpush2.msra.mxu0 0.0
  %3589 = vmatprep.subr.mxu0 0.0
  %3590 = vmatpush2.msra.mxu0 0.0
  %3591 = vmatprep.subr.mxu0 0.0
  %3592 = vmatpush2.msra.mxu0 0.0
  %3593 = vmatprep.subr.mxu0 0.0
  %3594 = vmatpush2.msra.mxu0 0.0
  %3595 = vmatprep.subr.mxu0 0.0
  %3596 = vmatpush2.msra.mxu0 0.0
  %3597 = vmatprep.subr.mxu0 0.0
  %3598 = vmatpush2.msra.mxu0 0.0
  %3599 = vmatprep.subr.mxu0 0.0
  %3600 = vmatpush2.msra.mxu0 0.0
  %3601 = vmatprep.subr.mxu0 0.0
  %3602 = vmatpush2.msra.mxu0 0.0
  %3603 = vmatprep.subr.mxu0 0.0
  %3604 = vmatpush2.msra.mxu0 0.0
  %3605 = vmatprep.subr.mxu0 0.0
  %3606 = vmatpush2.msra.mxu0 0.0
  %3607 = vmatprep.subr.mxu0 0.0
  %3608 = vmatpush2.msra.mxu0 0.0
  %3609 = vmatprep.subr.mxu0 0.0
  %3610 = vmatpush2.msra.mxu0 0.0
  %3611 = vmatprep.subr.mxu0 0.0
  %3612 = vmatpush2.msra.mxu0 0.0
  %3613 = vmatprep.mubr.f32.mxu0 0.0
  %3614 = vmatmul.mubr.f32.gmra.mxu0 %v680
  %v3615 = vpop.f32.mrf.mxu0
  %v3616 = vadd.f32 %v2944, %v3615
  %v3617 = vpop.f32.mrf.mxu0
  %3618 = vdwg.mxu0
  %3619 = vmatprep.subr.mxu0 0.0
  %3620 = vmatpush1.msra.mxu0 0.0
  %3621 = vmatprep.subr.mxu0 0.0
  %3622 = vmatpush1.msra.mxu0 0.0
  %3623 = vmatprep.subr.mxu0 0.0
  %3624 = vmatpush1.msra.mxu0 0.0
  %3625 = vmatprep.subr.mxu0 0.0
  %3626 = vmatpush1.msra.mxu0 0.0
  %3627 = vmatprep.subr.mxu0 0.0
  %3628 = vmatpush1.msra.mxu0 0.0
  %3629 = vmatprep.subr.mxu0 0.0
  %3630 = vmatpush1.msra.mxu0 0.0
  %3631 = vmatprep.subr.mxu0 0.0
  %3632 = vmatpush1.msra.mxu0 0.0
  %3633 = vmatprep.subr.mxu0 0.0
  %3634 = vmatpush1.msra.mxu0 0.0
  %3635 = vmatprep.subr.mxu0 0.0
  %3636 = vmatpush1.msra.mxu0 0.0
  %3637 = vmatprep.subr.mxu0 0.0
  %3638 = vmatpush1.msra.mxu0 0.0
  %3639 = vmatprep.subr.mxu0 0.0
  %3640 = vmatpush1.msra.mxu0 0.0
  %3641 = vmatprep.subr.mxu0 0.0
  %3642 = vmatpush1.msra.mxu0 0.0
  %3643 = vmatprep.subr.mxu0 0.0
  %3644 = vmatpush1.msra.mxu0 0.0
  %3645 = vmatprep.subr.mxu0 0.0
  %3646 = vmatpush1.msra.mxu0 0.0
  %3647 = vmatprep.subr.mxu0 0.0
  %3648 = vmatpush1.msra.mxu0 0.0
  %3649 = vmatprep.subr.mxu0 0.0
  %3650 = vmatpush1.msra.mxu0 %v3017
  %3651 = vmatprep.subr.mxu0 0.0
  %3652 = vmatpush2.msra.mxu0 0.0
  %3653 = vmatprep.subr.mxu0 0.0
  %3654 = vmatpush2.msra.mxu0 0.0
  %3655 = vmatprep.subr.mxu0 0.0
  %3656 = vmatpush2.msra.mxu0 0.0
  %3657 = vmatprep.subr.mxu0 0.0
  %3658 = vmatpush2.msra.mxu0 0.0
  %3659 = vmatprep.subr.mxu0 0.0
  %3660 = vmatpush2.msra.mxu0 0.0
  %3661 = vmatprep.subr.mxu0 0.0
  %3662 = vmatpush2.msra.mxu0 0.0
  %3663 = vmatprep.subr.mxu0 0.0
  %3664 = vmatpush2.msra.mxu0 0.0
  %3665 = vmatprep.subr.mxu0 0.0
  %3666 = vmatpush2.msra.mxu0 0.0
  %3667 = vmatprep.subr.mxu0 0.0
  %3668 = vmatpush2.msra.mxu0 0.0
  %3669 = vmatprep.subr.mxu0 0.0
  %3670 = vmatpush2.msra.mxu0 0.0
  %3671 = vmatprep.subr.mxu0 0.0
  %3672 = vmatpush2.msra.mxu0 0.0
  %3673 = vmatprep.subr.mxu0 0.0
  %3674 = vmatpush2.msra.mxu0 0.0
  %3675 = vmatprep.subr.mxu0 0.0
  %3676 = vmatpush2.msra.mxu0 0.0
  %3677 = vmatprep.subr.mxu0 0.0
  %3678 = vmatpush2.msra.mxu0 0.0
  %3679 = vmatprep.subr.mxu0 0.0
  %3680 = vmatpush2.msra.mxu0 0.0
  %3681 = vmatprep.subr.mxu0 0.0
  %3682 = vmatpush2.msra.mxu0 0.0
  %3683 = vmatprep.mubr.f32.mxu0 0.0
  %3684 = vmatmul.mubr.f32.gmra.mxu0 %v3323
  %v3685 = vpop.f32.mrf.mxu0
  %v3686 = vadd.f32 0.0, %v3685
  %v3687 = vpop.f32.mrf.mxu0
  %3688 = vdwg.mxu0
  %v3689 = vadd.f32 %v3616, %v3686
  %v3690 = vtanh.pop %v3689
  %3691 = vmatprep.subr.mxu0 0.0
  %3692 = vmatpush1.msra.mxu0 0.0
  %3693 = vmatprep.subr.mxu0 0.0
  %3694 = vmatpush1.msra.mxu0 0.0
  %3695 = vmatprep.subr.mxu0 0.0
  %3696 = vmatpush1.msra.mxu0 0.0
  %3697 = vmatprep.subr.mxu0 0.0
  %3698 = vmatpush1.msra.mxu0 0.0
  %3699 = vmatprep.subr.mxu0 0.0
  %3700 = vmatpush1.msra.mxu0 0.0
  %3701 = vmatprep.subr.mxu0 0.0
  %3702 = vmatpush1.msra.mxu0 0.0
  %3703 = vmatprep.subr.mxu0 0.0
  %3704 = vmatpush1.msra.mxu0 0.0
  %3705 = vmatprep.subr.mxu0 0.0
  %3706 = vmatpush1.msra.mxu0 0.0
  %3707 = vmatprep.subr.mxu0 0.0
  %3708 = vmatpush1.msra.mxu0 0.0
  %3709 = vmatprep.subr.mxu0 0.0
  %3710 = vmatpush1.msra.mxu0 0.0
  %3711 = vmatprep.subr.mxu0 0.0
  %3712 = vmatpush1.msra.mxu0 0.0
  %3713 = vmatprep.subr.mxu0 0.0
  %3714 = vmatpush1.msra.mxu0 0.0
  %3715 = vmatprep.subr.mxu0 0.0
  %3716 = vmatpush1.msra.mxu0 %v2609
  %3717 = vmatprep.subr.mxu0 0.0
  %3718 = vmatpush1.msra.mxu0 %v2608
  %3719 = vmatprep.subr.mxu0 0.0
  %3720 = vmatpush1.msra.mxu0 %v2607
  %3721 = vmatprep.subr.mxu0 0.0
  %3722 = vmatpush1.msra.mxu0 %v2606
  %3723 = vmatprep.subr.mxu0 0.0
  %3724 = vmatpush2.msra.mxu0 0.0
  %3725 = vmatprep.subr.mxu0 0.0
  %3726 = vmatpush2.msra.mxu0 0.0
  %3727 = vmatprep.subr.mxu0 0.0
  %3728 = vmatpush2.msra.mxu0 0.0
  %3729 = vmatprep.subr.mxu0 0.0
  %3730 = vmatpush2.msra.mxu0 0.0
  %3731 = vmatprep.subr.mxu0 0.0
  %3732 = vmatpush2.msra.mxu0 0.0
  %3733 = vmatprep.subr.mxu0 0.0
  %3734 = vmatpush2.msra.mxu0 0.0
  %3735 = vmatprep.subr.mxu0 0.0
  %3736 = vmatpush2.msra.mxu0 0.0
  %3737 = vmatprep.subr.mxu0 0.0
  %3738 = vmatpush2.msra.mxu0 0.0
  %3739 = vmatprep.subr.mxu0 0.0
  %3740 = vmatpush2.msra.mxu0 0.0
  %3741 = vmatprep.subr.mxu0 0.0
  %3742 = vmatpush2.msra.mxu0 0.0
  %3743 = vmatprep.subr.mxu0 0.0
  %3744 = vmatpush2.msra.mxu0 0.0
  %3745 = vmatprep.subr.mxu0 0.0
  %3746 = vmatpush2.msra.mxu0 0.0
  %3747 = vmatprep.subr.mxu0 0.0
  %3748 = vmatpush2.msra.mxu0 0.0
  %3749 = vmatprep.subr.mxu0 0.0
  %3750 = vmatpush2.msra.mxu0 0.0
  %3751 = vmatprep.subr.mxu0 0.0
  %3752 = vmatpush2.msra.mxu0 0.0
  %3753 = vmatprep.subr.mxu0 0.0
  %3754 = vmatpush2.msra.mxu0 0.0
  %3755 = vmatprep.mubr.f32.mxu0 0.0
  %3756 = vmatmul.mubr.f32.gmra.mxu0 %v680
  %v3757 = vpop.f32.mrf.mxu0
  %v3758 = vadd.f32 %v3095, %v3757
  %v3759 = vpop.f32.mrf.mxu0
  %3760 = vdwg.mxu0
  %3761 = vmatprep.subr.mxu0 0.0
  %3762 = vmatpush1.msra.mxu0 0.0
  %3763 = vmatprep.subr.mxu0 0.0
  %3764 = vmatpush1.msra.mxu0 0.0
  %3765 = vmatprep.subr.mxu0 0.0
  %3766 = vmatpush1.msra.mxu0 0.0
  %3767 = vmatprep.subr.mxu0 0.0
  %3768 = vmatpush1.msra.mxu0 0.0
  %3769 = vmatprep.subr.mxu0 0.0
  %3770 = vmatpush1.msra.mxu0 0.0
  %3771 = vmatprep.subr.mxu0 0.0
  %3772 = vmatpush1.msra.mxu0 0.0
  %3773 = vmatprep.subr.mxu0 0.0
  %3774 = vmatpush1.msra.mxu0 0.0
  %3775 = vmatprep.subr.mxu0 0.0
  %3776 = vmatpush1.msra.mxu0 0.0
  %3777 = vmatprep.subr.mxu0 0.0
  %3778 = vmatpush1.msra.mxu0 0.0
  %3779 = vmatprep.subr.mxu0 0.0
  %3780 = vmatpush1.msra.mxu0 0.0
  %3781 = vmatprep.subr.mxu0 0.0
  %3782 = vmatpush1.msra.mxu0 0.0
  %3783 = vmatprep.subr.mxu0 0.0
  %3784 = vmatpush1.msra.mxu0 0.0
  %3785 = vmatprep.subr.mxu0 0.0
  %3786 = vmatpush1.msra.mxu0 0.0
  %3787 = vmatprep.subr.mxu0 0.0
  %3788 = vmatpush1.msra.mxu0 0.0
  %3789 = vmatprep.subr.mxu0 0.0
  %3790 = vmatpush1.msra.mxu0 0.0
  %3791 = vmatprep.subr.mxu0 0.0
  %3792 = vmatpush1.msra.mxu0 %v3168
  %3793 = vmatprep.subr.mxu0 0.0
  %3794 = vmatpush2.msra.mxu0 0.0
  %3795 = vmatprep.subr.mxu0 0.0
  %3796 = vmatpush2.msra.mxu0 0.0
  %3797 = vmatprep.subr.mxu0 0.0
  %3798 = vmatpush2.msra.mxu0 0.0
  %3799 = vmatprep.subr.mxu0 0.0
  %3800 = vmatpush2.msra.mxu0 0.0
  %3801 = vmatprep.subr.mxu0 0.0
  %3802 = vmatpush2.msra.mxu0 0.0
  %3803 = vmatprep.subr.mxu0 0.0
  %3804 = vmatpush2.msra.mxu0 0.0
  %3805 = vmatprep.subr.mxu0 0.0
  %3806 = vmatpush2.msra.mxu0 0.0
  %3807 = vmatprep.subr.mxu0 0.0
  %3808 = vmatpush2.msra.mxu0 0.0
  %3809 = vmatprep.subr.mxu0 0.0
  %3810 = vmatpush2.msra.mxu0 0.0
  %3811 = vmatprep.subr.mxu0 0.0
  %3812 = vmatpush2.msra.mxu0 0.0
  %3813 = vmatprep.subr.mxu0 0.0
  %3814 = vmatpush2.msra.mxu0 0.0
  %3815 = vmatprep.subr.mxu0 0.0
  %3816 = vmatpush2.msra.mxu0 0.0
  %3817 = vmatprep.subr.mxu0 0.0
  %3818 = vmatpush2.msra.mxu0 0.0
  %3819 = vmatprep.subr.mxu0 0.0
  %3820 = vmatpush2.msra.mxu0 0.0
  %3821 = vmatprep.subr.mxu0 0.0
  %3822 = vmatpush2.msra.mxu0 0.0
  %3823 = vmatprep.subr.mxu0 0.0
  %3824 = vmatpush2.msra.mxu0 0.0
  %3825 = vmatprep.mubr.f32.mxu0 0.0
  %3826 = vmatmul.mubr.f32.gmra.mxu0 %v3323
  %v3827 = vpop.f32.mrf.mxu0
  %v3828 = vadd.f32 0.0, %v3827
  %v3829 = vpop.f32.mrf.mxu0
  %3830 = vdwg.mxu0
  %v3831 = vadd.f32 %v3758, %v3828
  %v3832 = vxor.u32 %v3831, 2147483648
  %v3833 = vmul.f32 %v3832, 1.442695
  %v3834 = vpow.pop %v3833
  %v3835 = vadd.f32 %v3834, 1.0
  %v3836 = vrcp.pop %v3835
  %v3837 = vmul.f32 1.0, %v3836
  %v3838 = vmul.f32 %v3548, %v3249
  %v3839 = vmul.f32 %v3401, %v3690
  %v3840 = vadd.f32 %v3838, %v3839
  %v3841 = vtanh.pop %v3840
  %v3842 = vmul.f32 %v3837, %v3841
  %3843 = vmatprep.subr.mxu0 0.0
  %3844 = vmatpush1.msra.mxu0 0.0
  %3845 = vmatprep.subr.mxu0 0.0
  %3846 = vmatpush1.msra.mxu0 0.0
  %3847 = vmatprep.subr.mxu0 0.0
  %3848 = vmatpush1.msra.mxu0 0.0
  %3849 = vmatprep.subr.mxu0 0.0
  %3850 = vmatpush1.msra.mxu0 0.0
  %3851 = vmatprep.subr.mxu0 0.0
  %3852 = vmatpush1.msra.mxu0 0.0
  %3853 = vmatprep.subr.mxu0 0.0
  %3854 = vmatpush1.msra.mxu0 0.0
  %3855 = vmatprep.subr.mxu0 0.0
  %3856 = vmatpush1.msra.mxu0 0.0
  %3857 = vmatprep.subr.mxu0 0.0
  %3858 = vmatpush1.msra.mxu0 0.0
  %3859 = vmatprep.subr.mxu0 0.0
  %3860 = vmatpush1.msra.mxu0 0.0
  %3861 = vmatprep.subr.mxu0 0.0
  %3862 = vmatpush1.msra.mxu0 0.0
  %3863 = vmatprep.subr.mxu0 0.0
  %3864 = vmatpush1.msra.mxu0 0.0
  %3865 = vmatprep.subr.mxu0 0.0
  %3866 = vmatpush1.msra.mxu0 0.0
  %3867 = vmatprep.subr.mxu0 0.0
  %3868 = vmatpush1.msra.mxu0 %v2594
  %3869 = vmatprep.subr.mxu0 0.0
  %3870 = vmatpush1.msra.mxu0 %v2593
  %3871 = vmatprep.subr.mxu0 0.0
  %3872 = vmatpush1.msra.mxu0 %v2592
  %3873 = vmatprep.subr.mxu0 0.0
  %3874 = vmatpush1.msra.mxu0 %v2591
  %3875 = vmatprep.subr.mxu0 0.0
  %3876 = vmatpush2.msra.mxu0 0.0
  %3877 = vmatprep.subr.mxu0 0.0
  %3878 = vmatpush2.msra.mxu0 0.0
  %3879 = vmatprep.subr.mxu0 0.0
  %3880 = vmatpush2.msra.mxu0 0.0
  %3881 = vmatprep.subr.mxu0 0.0
  %3882 = vmatpush2.msra.mxu0 0.0
  %3883 = vmatprep.subr.mxu0 0.0
  %3884 = vmatpush2.msra.mxu0 0.0
  %3885 = vmatprep.subr.mxu0 0.0
  %3886 = vmatpush2.msra.mxu0 0.0
  %3887 = vmatprep.subr.mxu0 0.0
  %3888 = vmatpush2.msra.mxu0 0.0
  %3889 = vmatprep.subr.mxu0 0.0
  %3890 = vmatpush2.msra.mxu0 0.0
  %3891 = vmatprep.subr.mxu0 0.0
  %3892 = vmatpush2.msra.mxu0 0.0
  %3893 = vmatprep.subr.mxu0 0.0
  %3894 = vmatpush2.msra.mxu0 0.0
  %3895 = vmatprep.subr.mxu0 0.0
  %3896 = vmatpush2.msra.mxu0 0.0
  %3897 = vmatprep.subr.mxu0 0.0
  %3898 = vmatpush2.msra.mxu0 0.0
  %3899 = vmatprep.subr.mxu0 0.0
  %3900 = vmatpush2.msra.mxu0 0.0
  %3901 = vmatprep.subr.mxu0 0.0
  %3902 = vmatpush2.msra.mxu0 0.0
  %3903 = vmatprep.subr.mxu0 0.0
  %3904 = vmatpush2.msra.mxu0 0.0
  %3905 = vmatprep.subr.mxu0 0.0
  %3906 = vmatpush2.msra.mxu0 0.0
  %3907 = vmatprep.mubr.f32.mxu0 0.0
  %3908 = vmatmul.mubr.f32.gmra.mxu0 %v999
  %v3909 = vpop.f32.mrf.mxu0
  %v3910 = vadd.f32 %v2628, %v3909
  %v3911 = vpop.f32.mrf.mxu0
  %3912 = vdwg.mxu0
  %v3914 = vsel %vm2700, %v3842, 0
  %3916 = vmatprep.subr.mxu0 0.0
  %3917 = vmatpush1.msra.mxu0 0.0
  %3918 = vmatprep.subr.mxu0 0.0
  %3919 = vmatpush1.msra.mxu0 0.0
  %3920 = vmatprep.subr.mxu0 0.0
  %3921 = vmatpush1.msra.mxu0 0.0
  %3922 = vmatprep.subr.mxu0 0.0
  %3923 = vmatpush1.msra.mxu0 0.0
  %3924 = vmatprep.subr.mxu0 0.0
  %3925 = vmatpush1.msra.mxu0 0.0
  %3926 = vmatprep.subr.mxu0 0.0
  %3927 = vmatpush1.msra.mxu0 0.0
  %3928 = vmatprep.subr.mxu0 0.0
  %3929 = vmatpush1.msra.mxu0 0.0
  %3930 = vmatprep.subr.mxu0 0.0
  %3931 = vmatpush1.msra.mxu0 0.0
  %3932 = vmatprep.subr.mxu0 0.0
  %3933 = vmatpush1.msra.mxu0 0.0
  %3934 = vmatprep.subr.mxu0 0.0
  %3935 = vmatpush1.msra.mxu0 0.0
  %3936 = vmatprep.subr.mxu0 0.0
  %3937 = vmatpush1.msra.mxu0 0.0
  %3938 = vmatprep.subr.mxu0 0.0
  %3939 = vmatpush1.msra.mxu0 0.0
  %3940 = vmatprep.subr.mxu0 0.0
  %3941 = vmatpush1.msra.mxu0 0.0
  %3942 = vmatprep.subr.mxu0 0.0
  %3943 = vmatpush1.msra.mxu0 0.0
  %3944 = vmatprep.subr.mxu0 0.0
  %3945 = vmatpush1.msra.mxu0 0.0
  %3946 = vmatprep.subr.mxu0 0.0
  %3947 = vmatpush1.msra.mxu0 %v2705
  %3948 = vmatprep.subr.mxu0 0.0
  %3949 = vmatpush2.msra.mxu0 0.0
  %3950 = vmatprep.subr.mxu0 0.0
  %3951 = vmatpush2.msra.mxu0 0.0
  %3952 = vmatprep.subr.mxu0 0.0
  %3953 = vmatpush2.msra.mxu0 0.0
  %3954 = vmatprep.subr.mxu0 0.0
  %3955 = vmatpush2.msra.mxu0 0.0
  %3956 = vmatprep.subr.mxu0 0.0
  %3957 = vmatpush2.msra.mxu0 0.0
  %3958 = vmatprep.subr.mxu0 0.0
  %3959 = vmatpush2.msra.mxu0 0.0
  %3960 = vmatprep.subr.mxu0 0.0
  %3961 = vmatpush2.msra.mxu0 0.0
  %3962 = vmatprep.subr.mxu0 0.0
  %3963 = vmatpush2.msra.mxu0 0.0
  %3964 = vmatprep.subr.mxu0 0.0
  %3965 = vmatpush2.msra.mxu0 0.0
  %3966 = vmatprep.subr.mxu0 0.0
  %3967 = vmatpush2.msra.mxu0 0.0
  %3968 = vmatprep.subr.mxu0 0.0
  %3969 = vmatpush2.msra.mxu0 0.0
  %3970 = vmatprep.subr.mxu0 0.0
  %3971 = vmatpush2.msra.mxu0 0.0
  %3972 = vmatprep.subr.mxu0 0.0
  %3973 = vmatpush2.msra.mxu0 0.0
  %3974 = vmatprep.subr.mxu0 0.0
  %3975 = vmatpush2.msra.mxu0 0.0
  %3976 = vmatprep.subr.mxu0 0.0
  %3977 = vmatpush2.msra.mxu0 0.0
  %3978 = vmatprep.subr.mxu0 0.0
  %3979 = vmatpush2.msra.mxu0 0.0
  %3980 = vmatprep.mubr.f32.mxu0 0.0
  %3981 = vmatmul.mubr.f32.gmra.mxu0 %v3914
  %v3982 = vpop.f32.mrf.mxu0
  %v3983 = vadd.f32 0.0, %v3982
  %v3984 = vpop.f32.mrf.mxu0
  %3985 = vdwg.mxu0
  %v3986 = vadd.f32 %v3910, %v3983
  %v3987 = vxor.u32 %v3986, 2147483648
  %v3988 = vmul.f32 %v3987, 1.442695
  %v3989 = vpow.pop %v3988
  %v3990 = vadd.f32 %v3989, 1.0
  %v3991 = vrcp.pop %v3990
  %v3992 = vmul.f32 1.0, %v3991
  %3993 = vmatprep.subr.mxu0 0.0
  %3994 = vmatpush1.msra.mxu0 0.0
  %3995 = vmatprep.subr.mxu0 0.0
  %3996 = vmatpush1.msra.mxu0 0.0
  %3997 = vmatprep.subr.mxu0 0.0
  %3998 = vmatpush1.msra.mxu0 0.0
  %3999 = vmatprep.subr.mxu0 0.0
  %4000 = vmatpush1.msra.mxu0 0.0
  %4001 = vmatprep.subr.mxu0 0.0
  %4002 = vmatpush1.msra.mxu0 0.0
  %4003 = vmatprep.subr.mxu0 0.0
  %4004 = vmatpush1.msra.mxu0 0.0
  %4005 = vmatprep.subr.mxu0 0.0
  %4006 = vmatpush1.msra.mxu0 0.0
  %4007 = vmatprep.subr.mxu0 0.0
  %4008 = vmatpush1.msra.mxu0 0.0
  %4009 = vmatprep.subr.mxu0 0.0
  %4010 = vmatpush1.msra.mxu0 0.0
  %4011 = vmatprep.subr.mxu0 0.0
  %4012 = vmatpush1.msra.mxu0 0.0
  %4013 = vmatprep.subr.mxu0 0.0
  %4014 = vmatpush1.msra.mxu0 0.0
  %4015 = vmatprep.subr.mxu0 0.0
  %4016 = vmatpush1.msra.mxu0 0.0
  %4017 = vmatprep.subr.mxu0 0.0
  %4018 = vmatpush1.msra.mxu0 %v2599
  %4019 = vmatprep.subr.mxu0 0.0
  %4020 = vmatpush1.msra.mxu0 %v2598
  %4021 = vmatprep.subr.mxu0 0.0
  %4022 = vmatpush1.msra.mxu0 %v2597
  %4023 = vmatprep.subr.mxu0 0.0
  %4024 = vmatpush1.msra.mxu0 %v2596
  %4025 = vmatprep.subr.mxu0 0.0
  %4026 = vmatpush2.msra.mxu0 0.0
  %4027 = vmatprep.subr.mxu0 0.0
  %4028 = vmatpush2.msra.mxu0 0.0
  %4029 = vmatprep.subr.mxu0 0.0
  %4030 = vmatpush2.msra.mxu0 0.0
  %4031 = vmatprep.subr.mxu0 0.0
  %4032 = vmatpush2.msra.mxu0 0.0
  %4033 = vmatprep.subr.mxu0 0.0
  %4034 = vmatpush2.msra.mxu0 0.0
  %4035 = vmatprep.subr.mxu0 0.0
  %4036 = vmatpush2.msra.mxu0 0.0
  %4037 = vmatprep.subr.mxu0 0.0
  %4038 = vmatpush2.msra.mxu0 0.0
  %4039 = vmatprep.subr.mxu0 0.0
  %4040 = vmatpush2.msra.mxu0 0.0
  %4041 = vmatprep.subr.mxu0 0.0
  %4042 = vmatpush2.msra.mxu0 0.0
  %4043 = vmatprep.subr.mxu0 0.0
  %4044 = vmatpush2.msra.mxu0 0.0
  %4045 = vmatprep.subr.mxu0 0.0
  %4046 = vmatpush2.msra.mxu0 0.0
  %4047 = vmatprep.subr.mxu0 0.0
  %4048 = vmatpush2.msra.mxu0 0.0
  %4049 = vmatprep.subr.mxu0 0.0
  %4050 = vmatpush2.msra.mxu0 0.0
  %4051 = vmatprep.subr.mxu0 0.0
  %4052 = vmatpush2.msra.mxu0 0.0
  %4053 = vmatprep.subr.mxu0 0.0
  %4054 = vmatpush2.msra.mxu0 0.0
  %4055 = vmatprep.subr.mxu0 0.0
  %4056 = vmatpush2.msra.mxu0 0.0
  %4057 = vmatprep.mubr.f32.mxu0 0.0
  %4058 = vmatmul.mubr.f32.gmra.mxu0 %v999
  %v4059 = vpop.f32.mrf.mxu0
  %v4060 = vadd.f32 %v2788, %v4059
  %v4061 = vpop.f32.mrf.mxu0
  %4062 = vdwg.mxu0
  %4063 = vmatprep.subr.mxu0 0.0
  %4064 = vmatpush1.msra.mxu0 0.0
  %4065 = vmatprep.subr.mxu0 0.0
  %4066 = vmatpush1.msra.mxu0 0.0
  %4067 = vmatprep.subr.mxu0 0.0
  %4068 = vmatpush1.msra.mxu0 0.0
  %4069 = vmatprep.subr.mxu0 0.0
  %4070 = vmatpush1.msra.mxu0 0.0
  %4071 = vmatprep.subr.mxu0 0.0
  %4072 = vmatpush1.msra.mxu0 0.0
  %4073 = vmatprep.subr.mxu0 0.0
  %4074 = vmatpush1.msra.mxu0 0.0
  %4075 = vmatprep.subr.mxu0 0.0
  %4076 = vmatpush1.msra.mxu0 0.0
  %4077 = vmatprep.subr.mxu0 0.0
  %4078 = vmatpush1.msra.mxu0 0.0
  %4079 = vmatprep.subr.mxu0 0.0
  %4080 = vmatpush1.msra.mxu0 0.0
  %4081 = vmatprep.subr.mxu0 0.0
  %4082 = vmatpush1.msra.mxu0 0.0
  %4083 = vmatprep.subr.mxu0 0.0
  %4084 = vmatpush1.msra.mxu0 0.0
  %4085 = vmatprep.subr.mxu0 0.0
  %4086 = vmatpush1.msra.mxu0 0.0
  %4087 = vmatprep.subr.mxu0 0.0
  %4088 = vmatpush1.msra.mxu0 0.0
  %4089 = vmatprep.subr.mxu0 0.0
  %4090 = vmatpush1.msra.mxu0 0.0
  %4091 = vmatprep.subr.mxu0 0.0
  %4092 = vmatpush1.msra.mxu0 0.0
  %4093 = vmatprep.subr.mxu0 0.0
  %4094 = vmatpush1.msra.mxu0 %v2861
  %4095 = vmatprep.subr.mxu0 0.0
  %4096 = vmatpush2.msra.mxu0 0.0
  %4097 = vmatprep.subr.mxu0 0.0
  %4098 = vmatpush2.msra.mxu0 0.0
  %4099 = vmatprep.subr.mxu0 0.0
  %4100 = vmatpush2.msra.mxu0 0.0
  %4101 = vmatprep.subr.mxu0 0.0
  %4102 = vmatpush2.msra.mxu0 0.0
  %4103 = vmatprep.subr.mxu0 0.0
  %4104 = vmatpush2.msra.mxu0 0.0
  %4105 = vmatprep.subr.mxu0 0.0
  %4106 = vmatpush2.msra.mxu0 0.0
  %4107 = vmatprep.subr.mxu0 0.0
  %4108 = vmatpush2.msra.mxu0 0.0
  %4109 = vmatprep.subr.mxu0 0.0
  %4110 = vmatpush2.msra.mxu0 0.0
  %4111 = vmatprep.subr.mxu0 0.0
  %4112 = vmatpush2.msra.mxu0 0.0
  %4113 = vmatprep.subr.mxu0 0.0
  %4114 = vmatpush2.msra.mxu0 0.0
  %4115 = vmatprep.subr.mxu0 0.0
  %4116 = vmatpush2.msra.mxu0 0.0
  %4117 = vmatprep.subr.mxu0 0.0
  %4118 = vmatpush2.msra.mxu0 0.0
  %4119 = vmatprep.subr.mxu0 0.0
  %4120 = vmatpush2.msra.mxu0 0.0
  %4121 = vmatprep.subr.mxu0 0.0
  %4122 = vmatpush2.msra.mxu0 0.0
  %4123 = vmatprep.subr.mxu0 0.0
  %4124 = vmatpush2.msra.mxu0 0.0
  %4125 = vmatprep.subr.mxu0 0.0
  %4126 = vmatpush2.msra.mxu0 0.0
  %4127 = vmatprep.mubr.f32.mxu0 0.0
  %4128 = vmatmul.mubr.f32.gmra.mxu0 %v3914
  %v4129 = vpop.f32.mrf.mxu0
  %v4130 = vadd.f32 0.0, %v4129
  %v4131 = vpop.f32.mrf.mxu0
  %4132 = vdwg.mxu0
  %v4133 = vadd.f32 %v4060, %v4130
  %v4134 = vxor.u32 %v4133, 2147483648
  %v4135 = vmul.f32 %v4134, 1.442695
  %v4136 = vpow.pop %v4135
  %v4137 = vadd.f32 %v4136, 1.0
  %v4138 = vrcp.pop %v4137
  %v4139 = vmul.f32 1.0, %v4138
  %4140 = vmatprep.subr.mxu0 0.0
  %4141 = vmatpush1.msra.mxu0 0.0
  %4142 = vmatprep.subr.mxu0 0.0
  %4143 = vmatpush1.msra.mxu0 0.0
  %4144 = vmatprep.subr.mxu0 0.0
  %4145 = vmatpush1.msra.mxu0 0.0
  %4146 = vmatprep.subr.mxu0 0.0
  %4147 = vmatpush1.msra.mxu0 0.0
  %4148 = vmatprep.subr.mxu0 0.0
  %4149 = vmatpush1.msra.mxu0 0.0
  %4150 = vmatprep.subr.mxu0 0.0
  %4151 = vmatpush1.msra.mxu0 0.0
  %4152 = vmatprep.subr.mxu0 0.0
  %4153 = vmatpush1.msra.mxu0 0.0
  %4154 = vmatprep.subr.mxu0 0.0
  %4155 = vmatpush1.msra.mxu0 0.0
  %4156 = vmatprep.subr.mxu0 0.0
  %4157 = vmatpush1.msra.mxu0 0.0
  %4158 = vmatprep.subr.mxu0 0.0
  %4159 = vmatpush1.msra.mxu0 0.0
  %4160 = vmatprep.subr.mxu0 0.0
  %4161 = vmatpush1.msra.mxu0 0.0
  %4162 = vmatprep.subr.mxu0 0.0
  %4163 = vmatpush1.msra.mxu0 0.0
  %4164 = vmatprep.subr.mxu0 0.0
  %4165 = vmatpush1.msra.mxu0 %v2604
  %4166 = vmatprep.subr.mxu0 0.0
  %4167 = vmatpush1.msra.mxu0 %v2603
  %4168 = vmatprep.subr.mxu0 0.0
  %4169 = vmatpush1.msra.mxu0 %v2602
  %4170 = vmatprep.subr.mxu0 0.0
  %4171 = vmatpush1.msra.mxu0 %v2601
  %4172 = vmatprep.subr.mxu0 0.0
  %4173 = vmatpush2.msra.mxu0 0.0
  %4174 = vmatprep.subr.mxu0 0.0
  %4175 = vmatpush2.msra.mxu0 0.0
  %4176 = vmatprep.subr.mxu0 0.0
  %4177 = vmatpush2.msra.mxu0 0.0
  %4178 = vmatprep.subr.mxu0 0.0
  %4179 = vmatpush2.msra.mxu0 0.0
  %4180 = vmatprep.subr.mxu0 0.0
  %4181 = vmatpush2.msra.mxu0 0.0
  %4182 = vmatprep.subr.mxu0 0.0
  %4183 = vmatpush2.msra.mxu0 0.0
  %4184 = vmatprep.subr.mxu0 0.0
  %4185 = vmatpush2.msra.mxu0 0.0
  %4186 = vmatprep.subr.mxu0 0.0
  %4187 = vmatpush2.msra.mxu0 0.0
  %4188 = vmatprep.subr.mxu0 0.0
  %4189 = vmatpush2.msra.mxu0 0.0
  %4190 = vmatprep.subr.mxu0 0.0
  %4191 = vmatpush2.msra.mxu0 0.0
  %4192 = vmatprep.subr.mxu0 0.0
  %4193 = vmatpush2.msra.mxu0 0.0
  %4194 = vmatprep.subr.mxu0 0.0
  %4195 = vmatpush2.msra.mxu0 0.0
  %4196 = vmatprep.subr.mxu0 0.0
  %4197 = vmatpush2.msra.mxu0 0.0
  %4198 = vmatprep.subr.mxu0 0.0
  %4199 = vmatpush2.msra.mxu0 0.0
  %4200 = vmatprep.subr.mxu0 0.0
  %4201 = vmatpush2.msra.mxu0 0.0
  %4202 = vmatprep.subr.mxu0 0.0
  %4203 = vmatpush2.msra.mxu0 0.0
  %4204 = vmatprep.mubr.f32.mxu0 0.0
  %4205 = vmatmul.mubr.f32.gmra.mxu0 %v999
  %v4206 = vpop.f32.mrf.mxu0
  %v4207 = vadd.f32 %v2944, %v4206
  %v4208 = vpop.f32.mrf.mxu0
  %4209 = vdwg.mxu0
  %4210 = vmatprep.subr.mxu0 0.0
  %4211 = vmatpush1.msra.mxu0 0.0
  %4212 = vmatprep.subr.mxu0 0.0
  %4213 = vmatpush1.msra.mxu0 0.0
  %4214 = vmatprep.subr.mxu0 0.0
  %4215 = vmatpush1.msra.mxu0 0.0
  %4216 = vmatprep.subr.mxu0 0.0
  %4217 = vmatpush1.msra.mxu0 0.0
  %4218 = vmatprep.subr.mxu0 0.0
  %4219 = vmatpush1.msra.mxu0 0.0
  %4220 = vmatprep.subr.mxu0 0.0
  %4221 = vmatpush1.msra.mxu0 0.0
  %4222 = vmatprep.subr.mxu0 0.0
  %4223 = vmatpush1.msra.mxu0 0.0
  %4224 = vmatprep.subr.mxu0 0.0
  %4225 = vmatpush1.msra.mxu0 0.0
  %4226 = vmatprep.subr.mxu0 0.0
  %4227 = vmatpush1.msra.mxu0 0.0
  %4228 = vmatprep.subr.mxu0 0.0
  %4229 = vmatpush1.msra.mxu0 0.0
  %4230 = vmatprep.subr.mxu0 0.0
  %4231 = vmatpush1.msra.mxu0 0.0
  %4232 = vmatprep.subr.mxu0 0.0
  %4233 = vmatpush1.msra.mxu0 0.0
  %4234 = vmatprep.subr.mxu0 0.0
  %4235 = vmatpush1.msra.mxu0 0.0
  %4236 = vmatprep.subr.mxu0 0.0
  %4237 = vmatpush1.msra.mxu0 0.0
  %4238 = vmatprep.subr.mxu0 0.0
  %4239 = vmatpush1.msra.mxu0 0.0
  %4240 = vmatprep.subr.mxu0 0.0
  %4241 = vmatpush1.msra.mxu0 %v3017
  %4242 = vmatprep.subr.mxu0 0.0
  %4243 = vmatpush2.msra.mxu0 0.0
  %4244 = vmatprep.subr.mxu0 0.0
  %4245 = vmatpush2.msra.mxu0 0.0
  %4246 = vmatprep.subr.mxu0 0.0
  %4247 = vmatpush2.msra.mxu0 0.0
  %4248 = vmatprep.subr.mxu0 0.0
  %4249 = vmatpush2.msra.mxu0 0.0
  %4250 = vmatprep.subr.mxu0 0.0
  %4251 = vmatpush2.msra.mxu0 0.0
  %4252 = vmatprep.subr.mxu0 0.0
  %4253 = vmatpush2.msra.mxu0 0.0
  %4254 = vmatprep.subr.mxu0 0.0
  %4255 = vmatpush2.msra.mxu0 0.0
  %4256 = vmatprep.subr.mxu0 0.0
  %4257 = vmatpush2.msra.mxu0 0.0
  %4258 = vmatprep.subr.mxu0 0.0
  %4259 = vmatpush2.msra.mxu0 0.0
  %4260 = vmatprep.subr.mxu0 0.0
  %4261 = vmatpush2.msra.mxu0 0.0
  %4262 = vmatprep.subr.mxu0 0.0
  %4263 = vmatpush2.msra.mxu0 0.0
  %4264 = vmatprep.subr.mxu0 0.0
  %4265 = vmatpush2.msra.mxu0 0.0
  %4266 = vmatprep.subr.mxu0 0.0
  %4267 = vmatpush2.msra.mxu0 0.0
  %4268 = vmatprep.subr.mxu0 0.0
  %4269 = vmatpush2.msra.mxu0 0.0
  %4270 = vmatprep.subr.mxu0 0.0
  %4271 = vmatpush2.msra.mxu0 0.0
  %4272 = vmatprep.subr.mxu0 0.0
  %4273 = vmatpush2.msra.mxu0 0.0
  %4274 = vmatprep.mubr.f32.mxu0 0.0
  %4275 = vmatmul.mubr.f32.gmra.mxu0 %v3914
  %v4276 = vpop.f32.mrf.mxu0
  %v4277 = vadd.f32 0.0, %v4276
  %v4278 = vpop.f32.mrf.mxu0
  %4279 = vdwg.mxu0
  %v4280 = vadd.f32 %v4207, %v4277
  %v4281 = vtanh.pop %v4280
  %4282 = vmatprep.subr.mxu0 0.0
  %4283 = vmatpush1.msra.mxu0 0.0
  %4284 = vmatprep.subr.mxu0 0.0
  %4285 = vmatpush1.msra.mxu0 0.0
  %4286 = vmatprep.subr.mxu0 0.0
  %4287 = vmatpush1.msra.mxu0 0.0
  %4288 = vmatprep.subr.mxu0 0.0
  %4289 = vmatpush1.msra.mxu0 0.0
  %4290 = vmatprep.subr.mxu0 0.0
  %4291 = vmatpush1.msra.mxu0 0.0
  %4292 = vmatprep.subr.mxu0 0.0
  %4293 = vmatpush1.msra.mxu0 0.0
  %4294 = vmatprep.subr.mxu0 0.0
  %4295 = vmatpush1.msra.mxu0 0.0
  %4296 = vmatprep.subr.mxu0 0.0
  %4297 = vmatpush1.msra.mxu0 0.0
  %4298 = vmatprep.subr.mxu0 0.0
  %4299 = vmatpush1.msra.mxu0 0.0
  %4300 = vmatprep.subr.mxu0 0.0
  %4301 = vmatpush1.msra.mxu0 0.0
  %4302 = vmatprep.subr.mxu0 0.0
  %4303 = vmatpush1.msra.mxu0 0.0
  %4304 = vmatprep.subr.mxu0 0.0
  %4305 = vmatpush1.msra.mxu0 0.0
  %4306 = vmatprep.subr.mxu0 0.0
  %4307 = vmatpush1.msra.mxu0 %v2609
  %4308 = vmatprep.subr.mxu0 0.0
  %4309 = vmatpush1.msra.mxu0 %v2608
  %4310 = vmatprep.subr.mxu0 0.0
  %4311 = vmatpush1.msra.mxu0 %v2607
  %4312 = vmatprep.subr.mxu0 0.0
  %4313 = vmatpush1.msra.mxu0 %v2606
  %4314 = vmatprep.subr.mxu0 0.0
  %4315 = vmatpush2.msra.mxu0 0.0
  %4316 = vmatprep.subr.mxu0 0.0
  %4317 = vmatpush2.msra.mxu0 0.0
  %4318 = vmatprep.subr.mxu0 0.0
  %4319 = vmatpush2.msra.mxu0 0.0
  %4320 = vmatprep.subr.mxu0 0.0
  %4321 = vmatpush2.msra.mxu0 0.0
  %4322 = vmatprep.subr.mxu0 0.0
  %4323 = vmatpush2.msra.mxu0 0.0
  %4324 = vmatprep.subr.mxu0 0.0
  %4325 = vmatpush2.msra.mxu0 0.0
  %4326 = vmatprep.subr.mxu0 0.0
  %4327 = vmatpush2.msra.mxu0 0.0
  %4328 = vmatprep.subr.mxu0 0.0
  %4329 = vmatpush2.msra.mxu0 0.0
  %4330 = vmatprep.subr.mxu0 0.0
  %4331 = vmatpush2.msra.mxu0 0.0
  %4332 = vmatprep.subr.mxu0 0.0
  %4333 = vmatpush2.msra.mxu0 0.0
  %4334 = vmatprep.subr.mxu0 0.0
  %4335 = vmatpush2.msra.mxu0 0.0
  %4336 = vmatprep.subr.mxu0 0.0
  %4337 = vmatpush2.msra.mxu0 0.0
  %4338 = vmatprep.subr.mxu0 0.0
  %4339 = vmatpush2.msra.mxu0 0.0
  %4340 = vmatprep.subr.mxu0 0.0
  %4341 = vmatpush2.msra.mxu0 0.0
  %4342 = vmatprep.subr.mxu0 0.0
  %4343 = vmatpush2.msra.mxu0 0.0
  %4344 = vmatprep.subr.mxu0 0.0
  %4345 = vmatpush2.msra.mxu0 0.0
  %4346 = vmatprep.mubr.f32.mxu0 0.0
  %4347 = vmatmul.mubr.f32.gmra.mxu0 %v999
  %v4348 = vpop.f32.mrf.mxu0
  %v4349 = vadd.f32 %v3095, %v4348
  %v4350 = vpop.f32.mrf.mxu0
  %4351 = vdwg.mxu0
  %4352 = vmatprep.subr.mxu0 0.0
  %4353 = vmatpush1.msra.mxu0 0.0
  %4354 = vmatprep.subr.mxu0 0.0
  %4355 = vmatpush1.msra.mxu0 0.0
  %4356 = vmatprep.subr.mxu0 0.0
  %4357 = vmatpush1.msra.mxu0 0.0
  %4358 = vmatprep.subr.mxu0 0.0
  %4359 = vmatpush1.msra.mxu0 0.0
  %4360 = vmatprep.subr.mxu0 0.0
  %4361 = vmatpush1.msra.mxu0 0.0
  %4362 = vmatprep.subr.mxu0 0.0
  %4363 = vmatpush1.msra.mxu0 0.0
  %4364 = vmatprep.subr.mxu0 0.0
  %4365 = vmatpush1.msra.mxu0 0.0
  %4366 = vmatprep.subr.mxu0 0.0
  %4367 = vmatpush1.msra.mxu0 0.0
  %4368 = vmatprep.subr.mxu0 0.0
  %4369 = vmatpush1.msra.mxu0 0.0
  %4370 = vmatprep.subr.mxu0 0.0
  %4371 = vmatpush1.msra.mxu0 0.0
  %4372 = vmatprep.subr.mxu0 0.0
  %4373 = vmatpush1.msra.mxu0 0.0
  %4374 = vmatprep.subr.mxu0 0.0
  %4375 = vmatpush1.msra.mxu0 0.0
  %4376 = vmatprep.subr.mxu0 0.0
  %4377 = vmatpush1.msra.mxu0 0.0
  %4378 = vmatprep.subr.mxu0 0.0
  %4379 = vmatpush1.msra.mxu0 0.0
  %4380 = vmatprep.subr.mxu0 0.0
  %4381 = vmatpush1.msra.mxu0 0.0
  %4382 = vmatprep.subr.mxu0 0.0
  %4383 = vmatpush1.msra.mxu0 %v3168
  %4384 = vmatprep.subr.mxu0 0.0
  %4385 = vmatpush2.msra.mxu0 0.0
  %4386 = vmatprep.subr.mxu0 0.0
  %4387 = vmatpush2.msra.mxu0 0.0
  %4388 = vmatprep.subr.mxu0 0.0
  %4389 = vmatpush2.msra.mxu0 0.0
  %4390 = vmatprep.subr.mxu0 0.0
  %4391 = vmatpush2.msra.mxu0 0.0
  %4392 = vmatprep.subr.mxu0 0.0
  %4393 = vmatpush2.msra.mxu0 0.0
  %4394 = vmatprep.subr.mxu0 0.0
  %4395 = vmatpush2.msra.mxu0 0.0
  %4396 = vmatprep.subr.mxu0 0.0
  %4397 = vmatpush2.msra.mxu0 0.0
  %4398 = vmatprep.subr.mxu0 0.0
  %4399 = vmatpush2.msra.mxu0 0.0
  %4400 = vmatprep.subr.mxu0 0.0
  %4401 = vmatpush2.msra.mxu0 0.0
  %4402 = vmatprep.subr.mxu0 0.0
  %4403 = vmatpush2.msra.mxu0 0.0
  %4404 = vmatprep.subr.mxu0 0.0
  %4405 = vmatpush2.msra.mxu0 0.0
  %4406 = vmatprep.subr.mxu0 0.0
  %4407 = vmatpush2.msra.mxu0 0.0
  %4408 = vmatprep.subr.mxu0 0.0
  %4409 = vmatpush2.msra.mxu0 0.0
  %4410 = vmatprep.subr.mxu0 0.0
  %4411 = vmatpush2.msra.mxu0 0.0
  %4412 = vmatprep.subr.mxu0 0.0
  %4413 = vmatpush2.msra.mxu0 0.0
  %4414 = vmatprep.subr.mxu0 0.0
  %4415 = vmatpush2.msra.mxu0 0.0
  %4416 = vmatprep.mubr.f32.mxu0 0.0
  %4417 = vmatmul.mubr.f32.gmra.mxu0 %v3914
  %v4418 = vpop.f32.mrf.mxu0
  %v4419 = vadd.f32 0.0, %v4418
  %v4420 = vpop.f32.mrf.mxu0
  %4421 = vdwg.mxu0
  %v4422 = vadd.f32 %v4349, %v4419
  %v4423 = vxor.u32 %v4422, 2147483648
  %v4424 = vmul.f32 %v4423, 1.442695
  %v4425 = vpow.pop %v4424
  %v4426 = vadd.f32 %v4425, 1.0
  %v4427 = vrcp.pop %v4426
  %v4428 = vmul.f32 1.0, %v4427
  %v4429 = vmul.f32 %v4139, %v3840
  %v4430 = vmul.f32 %v3992, %v4281
  %v4431 = vadd.f32 %v4429, %v4430
  %v4432 = vtanh.pop %v4431
  %v4433 = vmul.f32 %v4428, %v4432
  %4434 = vmatprep.subr.mxu0 0.0
  %4435 = vmatpush1.msra.mxu0 0.0
  %4436 = vmatprep.subr.mxu0 0.0
  %4437 = vmatpush1.msra.mxu0 0.0
  %4438 = vmatprep.subr.mxu0 0.0
  %4439 = vmatpush1.msra.mxu0 0.0
  %4440 = vmatprep.subr.mxu0 0.0
  %4441 = vmatpush1.msra.mxu0 0.0
  %4442 = vmatprep.subr.mxu0 0.0
  %4443 = vmatpush1.msra.mxu0 0.0
  %4444 = vmatprep.subr.mxu0 0.0
  %4445 = vmatpush1.msra.mxu0 0.0
  %4446 = vmatprep.subr.mxu0 0.0
  %4447 = vmatpush1.msra.mxu0 0.0
  %4448 = vmatprep.subr.mxu0 0.0
  %4449 = vmatpush1.msra.mxu0 0.0
  %4450 = vmatprep.subr.mxu0 0.0
  %4451 = vmatpush1.msra.mxu0 0.0
  %4452 = vmatprep.subr.mxu0 0.0
  %4453 = vmatpush1.msra.mxu0 0.0
  %4454 = vmatprep.subr.mxu0 0.0
  %4455 = vmatpush1.msra.mxu0 0.0
  %4456 = vmatprep.subr.mxu0 0.0
  %4457 = vmatpush1.msra.mxu0 0.0
  %4458 = vmatprep.subr.mxu0 0.0
  %4459 = vmatpush1.msra.mxu0 %v2594
  %4460 = vmatprep.subr.mxu0 0.0
  %4461 = vmatpush1.msra.mxu0 %v2593
  %4462 = vmatprep.subr.mxu0 0.0
  %4463 = vmatpush1.msra.mxu0 %v2592
  %4464 = vmatprep.subr.mxu0 0.0
  %4465 = vmatpush1.msra.mxu0 %v2591
  %4466 = vmatprep.subr.mxu0 0.0
  %4467 = vmatpush2.msra.mxu0 0.0
  %4468 = vmatprep.subr.mxu0 0.0
  %4469 = vmatpush2.msra.mxu0 0.0
  %4470 = vmatprep.subr.mxu0 0.0
  %4471 = vmatpush2.msra.mxu0 0.0
  %4472 = vmatprep.subr.mxu0 0.0
  %4473 = vmatpush2.msra.mxu0 0.0
  %4474 = vmatprep.subr.mxu0 0.0
  %4475 = vmatpush2.msra.mxu0 0.0
  %4476 = vmatprep.subr.mxu0 0.0
  %4477 = vmatpush2.msra.mxu0 0.0
  %4478 = vmatprep.subr.mxu0 0.0
  %4479 = vmatpush2.msra.mxu0 0.0
  %4480 = vmatprep.subr.mxu0 0.0
  %4481 = vmatpush2.msra.mxu0 0.0
  %4482 = vmatprep.subr.mxu0 0.0
  %4483 = vmatpush2.msra.mxu0 0.0
  %4484 = vmatprep.subr.mxu0 0.0
  %4485 = vmatpush2.msra.mxu0 0.0
  %4486 = vmatprep.subr.mxu0 0.0
  %4487 = vmatpush2.msra.mxu0 0.0
  %4488 = vmatprep.subr.mxu0 0.0
  %4489 = vmatpush2.msra.mxu0 0.0
  %4490 = vmatprep.subr.mxu0 0.0
  %4491 = vmatpush2.msra.mxu0 0.0
  %4492 = vmatprep.subr.mxu0 0.0
  %4493 = vmatpush2.msra.mxu0 0.0
  %4494 = vmatprep.subr.mxu0 0.0
  %4495 = vmatpush2.msra.mxu0 0.0
  %4496 = vmatprep.subr.mxu0 0.0
  %4497 = vmatpush2.msra.mxu0 0.0
  %4498 = vmatprep.mubr.f32.mxu0 0.0
  %4499 = vmatmul.mubr.f32.gmra.mxu0 %v1318
  %v4500 = vpop.f32.mrf.mxu0
  %v4501 = vadd.f32 %v2628, %v4500
  %v4502 = vpop.f32.mrf.mxu0
  %4503 = vdwg.mxu0
  %v4505 = vsel %vm2700, %v4433, 0
  %4507 = vmatprep.subr.mxu0 0.0
  %4508 = vmatpush1.msra.mxu0 0.0
  %4509 = vmatprep.subr.mxu0 0.0
  %4510 = vmatpush1.msra.mxu0 0.0
  %4511 = vmatprep.subr.mxu0 0.0
  %4512 = vmatpush1.msra.mxu0 0.0
  %4513 = vmatprep.subr.mxu0 0.0
  %4514 = vmatpush1.msra.mxu0 0.0
  %4515 = vmatprep.subr.mxu0 0.0
  %4516 = vmatpush1.msra.mxu0 0.0
  %4517 = vmatprep.subr.mxu0 0.0
  %4518 = vmatpush1.msra.mxu0 0.0
  %4519 = vmatprep.subr.mxu0 0.0
  %4520 = vmatpush1.msra.mxu0 0.0
  %4521 = vmatprep.subr.mxu0 0.0
  %4522 = vmatpush1.msra.mxu0 0.0
  %4523 = vmatprep.subr.mxu0 0.0
  %4524 = vmatpush1.msra.mxu0 0.0
  %4525 = vmatprep.subr.mxu0 0.0
  %4526 = vmatpush1.msra.mxu0 0.0
  %4527 = vmatprep.subr.mxu0 0.0
  %4528 = vmatpush1.msra.mxu0 0.0
  %4529 = vmatprep.subr.mxu0 0.0
  %4530 = vmatpush1.msra.mxu0 0.0
  %4531 = vmatprep.subr.mxu0 0.0
  %4532 = vmatpush1.msra.mxu0 0.0
  %4533 = vmatprep.subr.mxu0 0.0
  %4534 = vmatpush1.msra.mxu0 0.0
  %4535 = vmatprep.subr.mxu0 0.0
  %4536 = vmatpush1.msra.mxu0 0.0
  %4537 = vmatprep.subr.mxu0 0.0
  %4538 = vmatpush1.msra.mxu0 %v2705
  %4539 = vmatprep.subr.mxu0 0.0
  %4540 = vmatpush2.msra.mxu0 0.0
  %4541 = vmatprep.subr.mxu0 0.0
  %4542 = vmatpush2.msra.mxu0 0.0
  %4543 = vmatprep.subr.mxu0 0.0
  %4544 = vmatpush2.msra.mxu0 0.0
  %4545 = vmatprep.subr.mxu0 0.0
  %4546 = vmatpush2.msra.mxu0 0.0
  %4547 = vmatprep.subr.mxu0 0.0
  %4548 = vmatpush2.msra.mxu0 0.0
  %4549 = vmatprep.subr.mxu0 0.0
  %4550 = vmatpush2.msra.mxu0 0.0
  %4551 = vmatprep.subr.mxu0 0.0
  %4552 = vmatpush2.msra.mxu0 0.0
  %4553 = vmatprep.subr.mxu0 0.0
  %4554 = vmatpush2.msra.mxu0 0.0
  %4555 = vmatprep.subr.mxu0 0.0
  %4556 = vmatpush2.msra.mxu0 0.0
  %4557 = vmatprep.subr.mxu0 0.0
  %4558 = vmatpush2.msra.mxu0 0.0
  %4559 = vmatprep.subr.mxu0 0.0
  %4560 = vmatpush2.msra.mxu0 0.0
  %4561 = vmatprep.subr.mxu0 0.0
  %4562 = vmatpush2.msra.mxu0 0.0
  %4563 = vmatprep.subr.mxu0 0.0
  %4564 = vmatpush2.msra.mxu0 0.0
  %4565 = vmatprep.subr.mxu0 0.0
  %4566 = vmatpush2.msra.mxu0 0.0
  %4567 = vmatprep.subr.mxu0 0.0
  %4568 = vmatpush2.msra.mxu0 0.0
  %4569 = vmatprep.subr.mxu0 0.0
  %4570 = vmatpush2.msra.mxu0 0.0
  %4571 = vmatprep.mubr.f32.mxu0 0.0
  %4572 = vmatmul.mubr.f32.gmra.mxu0 %v4505
  %v4573 = vpop.f32.mrf.mxu0
  %v4574 = vadd.f32 0.0, %v4573
  %v4575 = vpop.f32.mrf.mxu0
  %4576 = vdwg.mxu0
  %v4577 = vadd.f32 %v4501, %v4574
  %v4578 = vxor.u32 %v4577, 2147483648
  %v4579 = vmul.f32 %v4578, 1.442695
  %v4580 = vpow.pop %v4579
  %v4581 = vadd.f32 %v4580, 1.0
  %v4582 = vrcp.pop %v4581
  %v4583 = vmul.f32 1.0, %v4582
  %4584 = vmatprep.subr.mxu0 0.0
  %4585 = vmatpush1.msra.mxu0 0.0
  %4586 = vmatprep.subr.mxu0 0.0
  %4587 = vmatpush1.msra.mxu0 0.0
  %4588 = vmatprep.subr.mxu0 0.0
  %4589 = vmatpush1.msra.mxu0 0.0
  %4590 = vmatprep.subr.mxu0 0.0
  %4591 = vmatpush1.msra.mxu0 0.0
  %4592 = vmatprep.subr.mxu0 0.0
  %4593 = vmatpush1.msra.mxu0 0.0
  %4594 = vmatprep.subr.mxu0 0.0
  %4595 = vmatpush1.msra.mxu0 0.0
  %4596 = vmatprep.subr.mxu0 0.0
  %4597 = vmatpush1.msra.mxu0 0.0
  %4598 = vmatprep.subr.mxu0 0.0
  %4599 = vmatpush1.msra.mxu0 0.0
  %4600 = vmatprep.subr.mxu0 0.0
  %4601 = vmatpush1.msra.mxu0 0.0
  %4602 = vmatprep.subr.mxu0 0.0
  %4603 = vmatpush1.msra.mxu0 0.0
  %4604 = vmatprep.subr.mxu0 0.0
  %4605 = vmatpush1.msra.mxu0 0.0
  %4606 = vmatprep.subr.mxu0 0.0
  %4607 = vmatpush1.msra.mxu0 0.0
  %4608 = vmatprep.subr.mxu0 0.0
  %4609 = vmatpush1.msra.mxu0 %v2599
  %4610 = vmatprep.subr.mxu0 0.0
  %4611 = vmatpush1.msra.mxu0 %v2598
  %4612 = vmatprep.subr.mxu0 0.0
  %4613 = vmatpush1.msra.mxu0 %v2597
  %4614 = vmatprep.subr.mxu0 0.0
  %4615 = vmatpush1.msra.mxu0 %v2596
  %4616 = vmatprep.subr.mxu0 0.0
  %4617 = vmatpush2.msra.mxu0 0.0
  %4618 = vmatprep.subr.mxu0 0.0
  %4619 = vmatpush2.msra.mxu0 0.0
  %4620 = vmatprep.subr.mxu0 0.0
  %4621 = vmatpush2.msra.mxu0 0.0
  %4622 = vmatprep.subr.mxu0 0.0
  %4623 = vmatpush2.msra.mxu0 0.0
  %4624 = vmatprep.subr.mxu0 0.0
  %4625 = vmatpush2.msra.mxu0 0.0
  %4626 = vmatprep.subr.mxu0 0.0
  %4627 = vmatpush2.msra.mxu0 0.0
  %4628 = vmatprep.subr.mxu0 0.0
  %4629 = vmatpush2.msra.mxu0 0.0
  %4630 = vmatprep.subr.mxu0 0.0
  %4631 = vmatpush2.msra.mxu0 0.0
  %4632 = vmatprep.subr.mxu0 0.0
  %4633 = vmatpush2.msra.mxu0 0.0
  %4634 = vmatprep.subr.mxu0 0.0
  %4635 = vmatpush2.msra.mxu0 0.0
  %4636 = vmatprep.subr.mxu0 0.0
  %4637 = vmatpush2.msra.mxu0 0.0
  %4638 = vmatprep.subr.mxu0 0.0
  %4639 = vmatpush2.msra.mxu0 0.0
  %4640 = vmatprep.subr.mxu0 0.0
  %4641 = vmatpush2.msra.mxu0 0.0
  %4642 = vmatprep.subr.mxu0 0.0
  %4643 = vmatpush2.msra.mxu0 0.0
  %4644 = vmatprep.subr.mxu0 0.0
  %4645 = vmatpush2.msra.mxu0 0.0
  %4646 = vmatprep.subr.mxu0 0.0
  %4647 = vmatpush2.msra.mxu0 0.0
  %4648 = vmatprep.mubr.f32.mxu0 0.0
  %4649 = vmatmul.mubr.f32.gmra.mxu0 %v1318
  %v4650 = vpop.f32.mrf.mxu0
  %v4651 = vadd.f32 %v2788, %v4650
  %v4652 = vpop.f32.mrf.mxu0
  %4653 = vdwg.mxu0
  %4654 = vmatprep.subr.mxu0 0.0
  %4655 = vmatpush1.msra.mxu0 0.0
  %4656 = vmatprep.subr.mxu0 0.0
  %4657 = vmatpush1.msra.mxu0 0.0
  %4658 = vmatprep.subr.mxu0 0.0
  %4659 = vmatpush1.msra.mxu0 0.0
  %4660 = vmatprep.subr.mxu0 0.0
  %4661 = vmatpush1.msra.mxu0 0.0
  %4662 = vmatprep.subr.mxu0 0.0
  %4663 = vmatpush1.msra.mxu0 0.0
  %4664 = vmatprep.subr.mxu0 0.0
  %4665 = vmatpush1.msra.mxu0 0.0
  %4666 = vmatprep.subr.mxu0 0.0
  %4667 = vmatpush1.msra.mxu0 0.0
  %4668 = vmatprep.subr.mxu0 0.0
  %4669 = vmatpush1.msra.mxu0 0.0
  %4670 = vmatprep.subr.mxu0 0.0
  %4671 = vmatpush1.msra.mxu0 0.0
  %4672 = vmatprep.subr.mxu0 0.0
  %4673 = vmatpush1.msra.mxu0 0.0
  %4674 = vmatprep.subr.mxu0 0.0
  %4675 = vmatpush1.msra.mxu0 0.0
  %4676 = vmatprep.subr.mxu0 0.0
  %4677 = vmatpush1.msra.mxu0 0.0
  %4678 = vmatprep.subr.mxu0 0.0
  %4679 = vmatpush1.msra.mxu0 0.0
  %4680 = vmatprep.subr.mxu0 0.0
  %4681 = vmatpush1.msra.mxu0 0.0
  %4682 = vmatprep.subr.mxu0 0.0
  %4683 = vmatpush1.msra.mxu0 0.0
  %4684 = vmatprep.subr.mxu0 0.0
  %4685 = vmatpush1.msra.mxu0 %v2861
  %4686 = vmatprep.subr.mxu0 0.0
  %4687 = vmatpush2.msra.mxu0 0.0
  %4688 = vmatprep.subr.mxu0 0.0
  %4689 = vmatpush2.msra.mxu0 0.0
  %4690 = vmatprep.subr.mxu0 0.0
  %4691 = vmatpush2.msra.mxu0 0.0
  %4692 = vmatprep.subr.mxu0 0.0
  %4693 = vmatpush2.msra.mxu0 0.0
  %4694 = vmatprep.subr.mxu0 0.0
  %4695 = vmatpush2.msra.mxu0 0.0
  %4696 = vmatprep.subr.mxu0 0.0
  %4697 = vmatpush2.msra.mxu0 0.0
  %4698 = vmatprep.subr.mxu0 0.0
  %4699 = vmatpush2.msra.mxu0 0.0
  %4700 = vmatprep.subr.mxu0 0.0
  %4701 = vmatpush2.msra.mxu0 0.0
  %4702 = vmatprep.subr.mxu0 0.0
  %4703 = vmatpush2.msra.mxu0 0.0
  %4704 = vmatprep.subr.mxu0 0.0
  %4705 = vmatpush2.msra.mxu0 0.0
  %4706 = vmatprep.subr.mxu0 0.0
  %4707 = vmatpush2.msra.mxu0 0.0
  %4708 = vmatprep.subr.mxu0 0.0
  %4709 = vmatpush2.msra.mxu0 0.0
  %4710 = vmatprep.subr.mxu0 0.0
  %4711 = vmatpush2.msra.mxu0 0.0
  %4712 = vmatprep.subr.mxu0 0.0
  %4713 = vmatpush2.msra.mxu0 0.0
  %4714 = vmatprep.subr.mxu0 0.0
  %4715 = vmatpush2.msra.mxu0 0.0
  %4716 = vmatprep.subr.mxu0 0.0
  %4717 = vmatpush2.msra.mxu0 0.0
  %4718 = vmatprep.mubr.f32.mxu0 0.0
  %4719 = vmatmul.mubr.f32.gmra.mxu0 %v4505
  %v4720 = vpop.f32.mrf.mxu0
  %v4721 = vadd.f32 0.0, %v4720
  %v4722 = vpop.f32.mrf.mxu0
  %4723 = vdwg.mxu0
  %v4724 = vadd.f32 %v4651, %v4721
  %v4725 = vxor.u32 %v4724, 2147483648
  %v4726 = vmul.f32 %v4725, 1.442695
  %v4727 = vpow.pop %v4726
  %v4728 = vadd.f32 %v4727, 1.0
  %v4729 = vrcp.pop %v4728
  %v4730 = vmul.f32 1.0, %v4729
  %4731 = vmatprep.subr.mxu0 0.0
  %4732 = vmatpush1.msra.mxu0 0.0
  %4733 = vmatprep.subr.mxu0 0.0
  %4734 = vmatpush1.msra.mxu0 0.0
  %4735 = vmatprep.subr.mxu0 0.0
  %4736 = vmatpush1.msra.mxu0 0.0
  %4737 = vmatprep.subr.mxu0 0.0
  %4738 = vmatpush1.msra.mxu0 0.0
  %4739 = vmatprep.subr.mxu0 0.0
  %4740 = vmatpush1.msra.mxu0 0.0
  %4741 = vmatprep.subr.mxu0 0.0
  %4742 = vmatpush1.msra.mxu0 0.0
  %4743 = vmatprep.subr.mxu0 0.0
  %4744 = vmatpush1.msra.mxu0 0.0
  %4745 = vmatprep.subr.mxu0 0.0
  %4746 = vmatpush1.msra.mxu0 0.0
  %4747 = vmatprep.subr.mxu0 0.0
  %4748 = vmatpush1.msra.mxu0 0.0
  %4749 = vmatprep.subr.mxu0 0.0
  %4750 = vmatpush1.msra.mxu0 0.0
  %4751 = vmatprep.subr.mxu0 0.0
  %4752 = vmatpush1.msra.mxu0 0.0
  %4753 = vmatprep.subr.mxu0 0.0
  %4754 = vmatpush1.msra.mxu0 0.0
  %4755 = vmatprep.subr.mxu0 0.0
  %4756 = vmatpush1.msra.mxu0 %v2604
  %4757 = vmatprep.subr.mxu0 0.0
  %4758 = vmatpush1.msra.mxu0 %v2603
  %4759 = vmatprep.subr.mxu0 0.0
  %4760 = vmatpush1.msra.mxu0 %v2602
  %4761 = vmatprep.subr.mxu0 0.0
  %4762 = vmatpush1.msra.mxu0 %v2601
  %4763 = vmatprep.subr.mxu0 0.0
  %4764 = vmatpush2.msra.mxu0 0.0
  %4765 = vmatprep.subr.mxu0 0.0
  %4766 = vmatpush2.msra.mxu0 0.0
  %4767 = vmatprep.subr.mxu0 0.0
  %4768 = vmatpush2.msra.mxu0 0.0
  %4769 = vmatprep.subr.mxu0 0.0
  %4770 = vmatpush2.msra.mxu0 0.0
  %4771 = vmatprep.subr.mxu0 0.0
  %4772 = vmatpush2.msra.mxu0 0.0
  %4773 = vmatprep.subr.mxu0 0.0
  %4774 = vmatpush2.msra.mxu0 0.0
  %4775 = vmatprep.subr.mxu0 0.0
  %4776 = vmatpush2.msra.mxu0 0.0
  %4777 = vmatprep.subr.mxu0 0.0
  %4778 = vmatpush2.msra.mxu0 0.0
  %4779 = vmatprep.subr.mxu0 0.0
  %4780 = vmatpush2.msra.mxu0 0.0
  %4781 = vmatprep.subr.mxu0 0.0
  %4782 = vmatpush2.msra.mxu0 0.0
  %4783 = vmatprep.subr.mxu0 0.0
  %4784 = vmatpush2.msra.mxu0 0.0
  %4785 = vmatprep.subr.mxu0 0.0
  %4786 = vmatpush2.msra.mxu0 0.0
  %4787 = vmatprep.subr.mxu0 0.0
  %4788 = vmatpush2.msra.mxu0 0.0
  %4789 = vmatprep.subr.mxu0 0.0
  %4790 = vmatpush2.msra.mxu0 0.0
  %4791 = vmatprep.subr.mxu0 0.0
  %4792 = vmatpush2.msra.mxu0 0.0
  %4793 = vmatprep.subr.mxu0 0.0
  %4794 = vmatpush2.msra.mxu0 0.0
  %4795 = vmatprep.mubr.f32.mxu0 0.0
  %4796 = vmatmul.mubr.f32.gmra.mxu0 %v1318
  %v4797 = vpop.f32.mrf.mxu0
  %v4798 = vadd.f32 %v2944, %v4797
  %v4799 = vpop.f32.mrf.mxu0
  %4800 = vdwg.mxu0
  %4801 = vmatprep.subr.mxu0 0.0
  %4802 = vmatpush1.msra.mxu0 0.0
  %4803 = vmatprep.subr.mxu0 0.0
  %4804 = vmatpush1.msra.mxu0 0.0
  %4805 = vmatprep.subr.mxu0 0.0
  %4806 = vmatpush1.msra.mxu0 0.0
  %4807 = vmatprep.subr.mxu0 0.0
  %4808 = vmatpush1.msra.mxu0 0.0
  %4809 = vmatprep.subr.mxu0 0.0
  %4810 = vmatpush1.msra.mxu0 0.0
  %4811 = vmatprep.subr.mxu0 0.0
  %4812 = vmatpush1.msra.mxu0 0.0
  %4813 = vmatprep.subr.mxu0 0.0
  %4814 = vmatpush1.msra.mxu0 0.0
  %4815 = vmatprep.subr.mxu0 0.0
  %4816 = vmatpush1.msra.mxu0 0.0
  %4817 = vmatprep.subr.mxu0 0.0
  %4818 = vmatpush1.msra.mxu0 0.0
  %4819 = vmatprep.subr.mxu0 0.0
  %4820 = vmatpush1.msra.mxu0 0.0
  %4821 = vmatprep.subr.mxu0 0.0
  %4822 = vmatpush1.msra.mxu0 0.0
  %4823 = vmatprep.subr.mxu0 0.0
  %4824 = vmatpush1.msra.mxu0 0.0
  %4825 = vmatprep.subr.mxu0 0.0
  %4826 = vmatpush1.msra.mxu0 0.0
  %4827 = vmatprep.subr.mxu0 0.0
  %4828 = vmatpush1.msra.mxu0 0.0
  %4829 = vmatprep.subr.mxu0 0.0
  %4830 = vmatpush1.msra.mxu0 0.0
  %4831 = vmatprep.subr.mxu0 0.0
  %4832 = vmatpush1.msra.mxu0 %v3017
  %4833 = vmatprep.subr.mxu0 0.0
  %4834 = vmatpush2.msra.mxu0 0.0
  %4835 = vmatprep.subr.mxu0 0.0
  %4836 = vmatpush2.msra.mxu0 0.0
  %4837 = vmatprep.subr.mxu0 0.0
  %4838 = vmatpush2.msra.mxu0 0.0
  %4839 = vmatprep.subr.mxu0 0.0
  %4840 = vmatpush2.msra.mxu0 0.0
  %4841 = vmatprep.subr.mxu0 0.0
  %4842 = vmatpush2.msra.mxu0 0.0
  %4843 = vmatprep.subr.mxu0 0.0
  %4844 = vmatpush2.msra.mxu0 0.0
  %4845 = vmatprep.subr.mxu0 0.0
  %4846 = vmatpush2.msra.mxu0 0.0
  %4847 = vmatprep.subr.mxu0 0.0
  %4848 = vmatpush2.msra.mxu0 0.0
  %4849 = vmatprep.subr.mxu0 0.0
  %4850 = vmatpush2.msra.mxu0 0.0
  %4851 = vmatprep.subr.mxu0 0.0
  %4852 = vmatpush2.msra.mxu0 0.0
  %4853 = vmatprep.subr.mxu0 0.0
  %4854 = vmatpush2.msra.mxu0 0.0
  %4855 = vmatprep.subr.mxu0 0.0
  %4856 = vmatpush2.msra.mxu0 0.0
  %4857 = vmatprep.subr.mxu0 0.0
  %4858 = vmatpush2.msra.mxu0 0.0
  %4859 = vmatprep.subr.mxu0 0.0
  %4860 = vmatpush2.msra.mxu0 0.0
  %4861 = vmatprep.subr.mxu0 0.0
  %4862 = vmatpush2.msra.mxu0 0.0
  %4863 = vmatprep.subr.mxu0 0.0
  %4864 = vmatpush2.msra.mxu0 0.0
  %4865 = vmatprep.mubr.f32.mxu0 0.0
  %4866 = vmatmul.mubr.f32.gmra.mxu0 %v4505
  %v4867 = vpop.f32.mrf.mxu0
  %v4868 = vadd.f32 0.0, %v4867
  %v4869 = vpop.f32.mrf.mxu0
  %4870 = vdwg.mxu0
  %v4871 = vadd.f32 %v4798, %v4868
  %v4872 = vtanh.pop %v4871
  %4873 = vmatprep.subr.mxu0 0.0
  %4874 = vmatpush1.msra.mxu0 0.0
  %4875 = vmatprep.subr.mxu0 0.0
  %4876 = vmatpush1.msra.mxu0 0.0
  %4877 = vmatprep.subr.mxu0 0.0
  %4878 = vmatpush1.msra.mxu0 0.0
  %4879 = vmatprep.subr.mxu0 0.0
  %4880 = vmatpush1.msra.mxu0 0.0
  %4881 = vmatprep.subr.mxu0 0.0
  %4882 = vmatpush1.msra.mxu0 0.0
  %4883 = vmatprep.subr.mxu0 0.0
  %4884 = vmatpush1.msra.mxu0 0.0
  %4885 = vmatprep.subr.mxu0 0.0
  %4886 = vmatpush1.msra.mxu0 0.0
  %4887 = vmatprep.subr.mxu0 0.0
  %4888 = vmatpush1.msra.mxu0 0.0
  %4889 = vmatprep.subr.mxu0 0.0
  %4890 = vmatpush1.msra.mxu0 0.0
  %4891 = vmatprep.subr.mxu0 0.0
  %4892 = vmatpush1.msra.mxu0 0.0
  %4893 = vmatprep.subr.mxu0 0.0
  %4894 = vmatpush1.msra.mxu0 0.0
  %4895 = vmatprep.subr.mxu0 0.0
  %4896 = vmatpush1.msra.mxu0 0.0
  %4897 = vmatprep.subr.mxu0 0.0
  %4898 = vmatpush1.msra.mxu0 %v2609
  %4899 = vmatprep.subr.mxu0 0.0
  %4900 = vmatpush1.msra.mxu0 %v2608
  %4901 = vmatprep.subr.mxu0 0.0
  %4902 = vmatpush1.msra.mxu0 %v2607
  %4903 = vmatprep.subr.mxu0 0.0
  %4904 = vmatpush1.msra.mxu0 %v2606
  %4905 = vmatprep.subr.mxu0 0.0
  %4906 = vmatpush2.msra.mxu0 0.0
  %4907 = vmatprep.subr.mxu0 0.0
  %4908 = vmatpush2.msra.mxu0 0.0
  %4909 = vmatprep.subr.mxu0 0.0
  %4910 = vmatpush2.msra.mxu0 0.0
  %4911 = vmatprep.subr.mxu0 0.0
  %4912 = vmatpush2.msra.mxu0 0.0
  %4913 = vmatprep.subr.mxu0 0.0
  %4914 = vmatpush2.msra.mxu0 0.0
  %4915 = vmatprep.subr.mxu0 0.0
  %4916 = vmatpush2.msra.mxu0 0.0
  %4917 = vmatprep.subr.mxu0 0.0
  %4918 = vmatpush2.msra.mxu0 0.0
  %4919 = vmatprep.subr.mxu0 0.0
  %4920 = vmatpush2.msra.mxu0 0.0
  %4921 = vmatprep.subr.mxu0 0.0
  %4922 = vmatpush2.msra.mxu0 0.0
  %4923 = vmatprep.subr.mxu0 0.0
  %4924 = vmatpush2.msra.mxu0 0.0
  %4925 = vmatprep.subr.mxu0 0.0
  %4926 = vmatpush2.msra.mxu0 0.0
  %4927 = vmatprep.subr.mxu0 0.0
  %4928 = vmatpush2.msra.mxu0 0.0
  %4929 = vmatprep.subr.mxu0 0.0
  %4930 = vmatpush2.msra.mxu0 0.0
  %4931 = vmatprep.subr.mxu0 0.0
  %4932 = vmatpush2.msra.mxu0 0.0
  %4933 = vmatprep.subr.mxu0 0.0
  %4934 = vmatpush2.msra.mxu0 0.0
  %4935 = vmatprep.subr.mxu0 0.0
  %4936 = vmatpush2.msra.mxu0 0.0
  %4937 = vmatprep.mubr.f32.mxu0 0.0
  %4938 = vmatmul.mubr.f32.gmra.mxu0 %v1318
  %v4939 = vpop.f32.mrf.mxu0
  %v4940 = vadd.f32 %v3095, %v4939
  %v4941 = vpop.f32.mrf.mxu0
  %4942 = vdwg.mxu0
  %4943 = vmatprep.subr.mxu0 0.0
  %4944 = vmatpush1.msra.mxu0 0.0
  %4945 = vmatprep.subr.mxu0 0.0
  %4946 = vmatpush1.msra.mxu0 0.0
  %4947 = vmatprep.subr.mxu0 0.0
  %4948 = vmatpush1.msra.mxu0 0.0
  %4949 = vmatprep.subr.mxu0 0.0
  %4950 = vmatpush1.msra.mxu0 0.0
  %4951 = vmatprep.subr.mxu0 0.0
  %4952 = vmatpush1.msra.mxu0 0.0
  %4953 = vmatprep.subr.mxu0 0.0
  %4954 = vmatpush1.msra.mxu0 0.0
  %4955 = vmatprep.subr.mxu0 0.0
  %4956 = vmatpush1.msra.mxu0 0.0
  %4957 = vmatprep.subr.mxu0 0.0
  %4958 = vmatpush1.msra.mxu0 0.0
  %4959 = vmatprep.subr.mxu0 0.0
  %4960 = vmatpush1.msra.mxu0 0.0
  %4961 = vmatprep.subr.mxu0 0.0
  %4962 = vmatpush1.msra.mxu0 0.0
  %4963 = vmatprep.subr.mxu0 0.0
  %4964 = vmatpush1.msra.mxu0 0.0
  %4965 = vmatprep.subr.mxu0 0.0
  %4966 = vmatpush1.msra.mxu0 0.0
  %4967 = vmatprep.subr.mxu0 0.0
  %4968 = vmatpush1.msra.mxu0 0.0
  %4969 = vmatprep.subr.mxu0 0.0
  %4970 = vmatpush1.msra.mxu0 0.0
  %4971 = vmatprep.subr.mxu0 0.0
  %4972 = vmatpush1.msra.mxu0 0.0
  %4973 = vmatprep.subr.mxu0 0.0
  %4974 = vmatpush1.msra.mxu0 %v3168
  %4975 = vmatprep.subr.mxu0 0.0
  %4976 = vmatpush2.msra.mxu0 0.0
  %4977 = vmatprep.subr.mxu0 0.0
  %4978 = vmatpush2.msra.mxu0 0.0
  %4979 = vmatprep.subr.mxu0 0.0
  %4980 = vmatpush2.msra.mxu0 0.0
  %4981 = vmatprep.subr.mxu0 0.0
  %4982 = vmatpush2.msra.mxu0 0.0
  %4983 = vmatprep.subr.mxu0 0.0
  %4984 = vmatpush2.msra.mxu0 0.0
  %4985 = vmatprep.subr.mxu0 0.0
  %4986 = vmatpush2.msra.mxu0 0.0
  %4987 = vmatprep.subr.mxu0 0.0
  %4988 = vmatpush2.msra.mxu0 0.0
  %4989 = vmatprep.subr.mxu0 0.0
  %4990 = vmatpush2.msra.mxu0 0.0
  %4991 = vmatprep.subr.mxu0 0.0
  %4992 = vmatpush2.msra.mxu0 0.0
  %4993 = vmatprep.subr.mxu0 0.0
  %4994 = vmatpush2.msra.mxu0 0.0
  %4995 = vmatprep.subr.mxu0 0.0
  %4996 = vmatpush2.msra.mxu0 0.0
  %4997 = vmatprep.subr.mxu0 0.0
  %4998 = vmatpush2.msra.mxu0 0.0
  %4999 = vmatprep.subr.mxu0 0.0
  %5000 = vmatpush2.msra.mxu0 0.0
  %5001 = vmatprep.subr.mxu0 0.0
  %5002 = vmatpush2.msra.mxu0 0.0
  %5003 = vmatprep.subr.mxu0 0.0
  %5004 = vmatpush2.msra.mxu0 0.0
  %5005 = vmatprep.subr.mxu0 0.0
  %5006 = vmatpush2.msra.mxu0 0.0
  %5007 = vmatprep.mubr.f32.mxu0 0.0
  %5008 = vmatmul.mubr.f32.gmra.mxu0 %v4505
  %v5009 = vpop.f32.mrf.mxu0
  %v5010 = vadd.f32 0.0, %v5009
  %v5011 = vpop.f32.mrf.mxu0
  %5012 = vdwg.mxu0
  %v5013 = vadd.f32 %v4940, %v5010
  %v5014 = vxor.u32 %v5013, 2147483648
  %v5015 = vmul.f32 %v5014, 1.442695
  %v5016 = vpow.pop %v5015
  %v5017 = vadd.f32 %v5016, 1.0
  %v5018 = vrcp.pop %v5017
  %v5019 = vmul.f32 1.0, %v5018
  %v5020 = vmul.f32 %v4730, %v4431
  %v5021 = vmul.f32 %v4583, %v4872
  %v5022 = vadd.f32 %v5020, %v5021
  %v5023 = vtanh.pop %v5022
  %v5024 = vmul.f32 %v5019, %v5023
  %5025 = vmatprep.subr.mxu0 0.0
  %5026 = vmatpush1.msra.mxu0 0.0
  %5027 = vmatprep.subr.mxu0 0.0
  %5028 = vmatpush1.msra.mxu0 0.0
  %5029 = vmatprep.subr.mxu0 0.0
  %5030 = vmatpush1.msra.mxu0 0.0
  %5031 = vmatprep.subr.mxu0 0.0
  %5032 = vmatpush1.msra.mxu0 0.0
  %5033 = vmatprep.subr.mxu0 0.0
  %5034 = vmatpush1.msra.mxu0 0.0
  %5035 = vmatprep.subr.mxu0 0.0
  %5036 = vmatpush1.msra.mxu0 0.0
  %5037 = vmatprep.subr.mxu0 0.0
  %5038 = vmatpush1.msra.mxu0 0.0
  %5039 = vmatprep.subr.mxu0 0.0
  %5040 = vmatpush1.msra.mxu0 0.0
  %5041 = vmatprep.subr.mxu0 0.0
  %5042 = vmatpush1.msra.mxu0 0.0
  %5043 = vmatprep.subr.mxu0 0.0
  %5044 = vmatpush1.msra.mxu0 0.0
  %5045 = vmatprep.subr.mxu0 0.0
  %5046 = vmatpush1.msra.mxu0 0.0
  %5047 = vmatprep.subr.mxu0 0.0
  %5048 = vmatpush1.msra.mxu0 0.0
  %5049 = vmatprep.subr.mxu0 0.0
  %5050 = vmatpush1.msra.mxu0 %v2594
  %5051 = vmatprep.subr.mxu0 0.0
  %5052 = vmatpush1.msra.mxu0 %v2593
  %5053 = vmatprep.subr.mxu0 0.0
  %5054 = vmatpush1.msra.mxu0 %v2592
  %5055 = vmatprep.subr.mxu0 0.0
  %5056 = vmatpush1.msra.mxu0 %v2591
  %5057 = vmatprep.subr.mxu0 0.0
  %5058 = vmatpush2.msra.mxu0 0.0
  %5059 = vmatprep.subr.mxu0 0.0
  %5060 = vmatpush2.msra.mxu0 0.0
  %5061 = vmatprep.subr.mxu0 0.0
  %5062 = vmatpush2.msra.mxu0 0.0
  %5063 = vmatprep.subr.mxu0 0.0
  %5064 = vmatpush2.msra.mxu0 0.0
  %5065 = vmatprep.subr.mxu0 0.0
  %5066 = vmatpush2.msra.mxu0 0.0
  %5067 = vmatprep.subr.mxu0 0.0
  %5068 = vmatpush2.msra.mxu0 0.0
  %5069 = vmatprep.subr.mxu0 0.0
  %5070 = vmatpush2.msra.mxu0 0.0
  %5071 = vmatprep.subr.mxu0 0.0
  %5072 = vmatpush2.msra.mxu0 0.0
  %5073 = vmatprep.subr.mxu0 0.0
  %5074 = vmatpush2.msra.mxu0 0.0
  %5075 = vmatprep.subr.mxu0 0.0
  %5076 = vmatpush2.msra.mxu0 0.0
  %5077 = vmatprep.subr.mxu0 0.0
  %5078 = vmatpush2.msra.mxu0 0.0
  %5079 = vmatprep.subr.mxu0 0.0
  %5080 = vmatpush2.msra.mxu0 0.0
  %5081 = vmatprep.subr.mxu0 0.0
  %5082 = vmatpush2.msra.mxu0 0.0
  %5083 = vmatprep.subr.mxu0 0.0
  %5084 = vmatpush2.msra.mxu0 0.0
  %5085 = vmatprep.subr.mxu0 0.0
  %5086 = vmatpush2.msra.mxu0 0.0
  %5087 = vmatprep.subr.mxu0 0.0
  %5088 = vmatpush2.msra.mxu0 0.0
  %5089 = vmatprep.mubr.f32.mxu0 0.0
  %5090 = vmatmul.mubr.f32.gmra.mxu0 %v1637
  %v5091 = vpop.f32.mrf.mxu0
  %v5092 = vadd.f32 %v2628, %v5091
  %v5093 = vpop.f32.mrf.mxu0
  %5094 = vdwg.mxu0
  %v5096 = vsel %vm2700, %v5024, 0
  %5098 = vmatprep.subr.mxu0 0.0
  %5099 = vmatpush1.msra.mxu0 0.0
  %5100 = vmatprep.subr.mxu0 0.0
  %5101 = vmatpush1.msra.mxu0 0.0
  %5102 = vmatprep.subr.mxu0 0.0
  %5103 = vmatpush1.msra.mxu0 0.0
  %5104 = vmatprep.subr.mxu0 0.0
  %5105 = vmatpush1.msra.mxu0 0.0
  %5106 = vmatprep.subr.mxu0 0.0
  %5107 = vmatpush1.msra.mxu0 0.0
  %5108 = vmatprep.subr.mxu0 0.0
  %5109 = vmatpush1.msra.mxu0 0.0
  %5110 = vmatprep.subr.mxu0 0.0
  %5111 = vmatpush1.msra.mxu0 0.0
  %5112 = vmatprep.subr.mxu0 0.0
  %5113 = vmatpush1.msra.mxu0 0.0
  %5114 = vmatprep.subr.mxu0 0.0
  %5115 = vmatpush1.msra.mxu0 0.0
  %5116 = vmatprep.subr.mxu0 0.0
  %5117 = vmatpush1.msra.mxu0 0.0
  %5118 = vmatprep.subr.mxu0 0.0
  %5119 = vmatpush1.msra.mxu0 0.0
  %5120 = vmatprep.subr.mxu0 0.0
  %5121 = vmatpush1.msra.mxu0 0.0
  %5122 = vmatprep.subr.mxu0 0.0
  %5123 = vmatpush1.msra.mxu0 0.0
  %5124 = vmatprep.subr.mxu0 0.0
  %5125 = vmatpush1.msra.mxu0 0.0
  %5126 = vmatprep.subr.mxu0 0.0
  %5127 = vmatpush1.msra.mxu0 0.0
  %5128 = vmatprep.subr.mxu0 0.0
  %5129 = vmatpush1.msra.mxu0 %v2705
  %5130 = vmatprep.subr.mxu0 0.0
  %5131 = vmatpush2.msra.mxu0 0.0
  %5132 = vmatprep.subr.mxu0 0.0
  %5133 = vmatpush2.msra.mxu0 0.0
  %5134 = vmatprep.subr.mxu0 0.0
  %5135 = vmatpush2.msra.mxu0 0.0
  %5136 = vmatprep.subr.mxu0 0.0
  %5137 = vmatpush2.msra.mxu0 0.0
  %5138 = vmatprep.subr.mxu0 0.0
  %5139 = vmatpush2.msra.mxu0 0.0
  %5140 = vmatprep.subr.mxu0 0.0
  %5141 = vmatpush2.msra.mxu0 0.0
  %5142 = vmatprep.subr.mxu0 0.0
  %5143 = vmatpush2.msra.mxu0 0.0
  %5144 = vmatprep.subr.mxu0 0.0
  %5145 = vmatpush2.msra.mxu0 0.0
  %5146 = vmatprep.subr.mxu0 0.0
  %5147 = vmatpush2.msra.mxu0 0.0
  %5148 = vmatprep.subr.mxu0 0.0
  %5149 = vmatpush2.msra.mxu0 0.0
  %5150 = vmatprep.subr.mxu0 0.0
  %5151 = vmatpush2.msra.mxu0 0.0
  %5152 = vmatprep.subr.mxu0 0.0
  %5153 = vmatpush2.msra.mxu0 0.0
  %5154 = vmatprep.subr.mxu0 0.0
  %5155 = vmatpush2.msra.mxu0 0.0
  %5156 = vmatprep.subr.mxu0 0.0
  %5157 = vmatpush2.msra.mxu0 0.0
  %5158 = vmatprep.subr.mxu0 0.0
  %5159 = vmatpush2.msra.mxu0 0.0
  %5160 = vmatprep.subr.mxu0 0.0
  %5161 = vmatpush2.msra.mxu0 0.0
  %5162 = vmatprep.mubr.f32.mxu0 0.0
  %5163 = vmatmul.mubr.f32.gmra.mxu0 %v5096
  %v5164 = vpop.f32.mrf.mxu0
  %v5165 = vadd.f32 0.0, %v5164
  %v5166 = vpop.f32.mrf.mxu0
  %5167 = vdwg.mxu0
  %v5168 = vadd.f32 %v5092, %v5165
  %v5169 = vxor.u32 %v5168, 2147483648
  %v5170 = vmul.f32 %v5169, 1.442695
  %v5171 = vpow.pop %v5170
  %v5172 = vadd.f32 %v5171, 1.0
  %v5173 = vrcp.pop %v5172
  %v5174 = vmul.f32 1.0, %v5173
  %5175 = vmatprep.subr.mxu0 0.0
  %5176 = vmatpush1.msra.mxu0 0.0
  %5177 = vmatprep.subr.mxu0 0.0
  %5178 = vmatpush1.msra.mxu0 0.0
  %5179 = vmatprep.subr.mxu0 0.0
  %5180 = vmatpush1.msra.mxu0 0.0
  %5181 = vmatprep.subr.mxu0 0.0
  %5182 = vmatpush1.msra.mxu0 0.0
  %5183 = vmatprep.subr.mxu0 0.0
  %5184 = vmatpush1.msra.mxu0 0.0
  %5185 = vmatprep.subr.mxu0 0.0
  %5186 = vmatpush1.msra.mxu0 0.0
  %5187 = vmatprep.subr.mxu0 0.0
  %5188 = vmatpush1.msra.mxu0 0.0
  %5189 = vmatprep.subr.mxu0 0.0
  %5190 = vmatpush1.msra.mxu0 0.0
  %5191 = vmatprep.subr.mxu0 0.0
  %5192 = vmatpush1.msra.mxu0 0.0
  %5193 = vmatprep.subr.mxu0 0.0
  %5194 = vmatpush1.msra.mxu0 0.0
  %5195 = vmatprep.subr.mxu0 0.0
  %5196 = vmatpush1.msra.mxu0 0.0
  %5197 = vmatprep.subr.mxu0 0.0
  %5198 = vmatpush1.msra.mxu0 0.0
  %5199 = vmatprep.subr.mxu0 0.0
  %5200 = vmatpush1.msra.mxu0 %v2599
  %5201 = vmatprep.subr.mxu0 0.0
  %5202 = vmatpush1.msra.mxu0 %v2598
  %5203 = vmatprep.subr.mxu0 0.0
  %5204 = vmatpush1.msra.mxu0 %v2597
  %5205 = vmatprep.subr.mxu0 0.0
  %5206 = vmatpush1.msra.mxu0 %v2596
  %5207 = vmatprep.subr.mxu0 0.0
  %5208 = vmatpush2.msra.mxu0 0.0
  %5209 = vmatprep.subr.mxu0 0.0
  %5210 = vmatpush2.msra.mxu0 0.0
  %5211 = vmatprep.subr.mxu0 0.0
  %5212 = vmatpush2.msra.mxu0 0.0
  %5213 = vmatprep.subr.mxu0 0.0
  %5214 = vmatpush2.msra.mxu0 0.0
  %5215 = vmatprep.subr.mxu0 0.0
  %5216 = vmatpush2.msra.mxu0 0.0
  %5217 = vmatprep.subr.mxu0 0.0
  %5218 = vmatpush2.msra.mxu0 0.0
  %5219 = vmatprep.subr.mxu0 0.0
  %5220 = vmatpush2.msra.mxu0 0.0
  %5221 = vmatprep.subr.mxu0 0.0
  %5222 = vmatpush2.msra.mxu0 0.0
  %5223 = vmatprep.subr.mxu0 0.0
  %5224 = vmatpush2.msra.mxu0 0.0
  %5225 = vmatprep.subr.mxu0 0.0
  %5226 = vmatpush2.msra.mxu0 0.0
  %5227 = vmatprep.subr.mxu0 0.0
  %5228 = vmatpush2.msra.mxu0 0.0
  %5229 = vmatprep.subr.mxu0 0.0
  %5230 = vmatpush2.msra.mxu0 0.0
  %5231 = vmatprep.subr.mxu0 0.0
  %5232 = vmatpush2.msra.mxu0 0.0
  %5233 = vmatprep.subr.mxu0 0.0
  %5234 = vmatpush2.msra.mxu0 0.0
  %5235 = vmatprep.subr.mxu0 0.0
  %5236 = vmatpush2.msra.mxu0 0.0
  %5237 = vmatprep.subr.mxu0 0.0
  %5238 = vmatpush2.msra.mxu0 0.0
  %5239 = vmatprep.mubr.f32.mxu0 0.0
  %5240 = vmatmul.mubr.f32.gmra.mxu0 %v1637
  %v5241 = vpop.f32.mrf.mxu0
  %v5242 = vadd.f32 %v2788, %v5241
  %v5243 = vpop.f32.mrf.mxu0
  %5244 = vdwg.mxu0
  %5245 = vmatprep.subr.mxu0 0.0
  %5246 = vmatpush1.msra.mxu0 0.0
  %5247 = vmatprep.subr.mxu0 0.0
  %5248 = vmatpush1.msra.mxu0 0.0
  %5249 = vmatprep.subr.mxu0 0.0
  %5250 = vmatpush1.msra.mxu0 0.0
  %5251 = vmatprep.subr.mxu0 0.0
  %5252 = vmatpush1.msra.mxu0 0.0
  %5253 = vmatprep.subr.mxu0 0.0
  %5254 = vmatpush1.msra.mxu0 0.0
  %5255 = vmatprep.subr.mxu0 0.0
  %5256 = vmatpush1.msra.mxu0 0.0
  %5257 = vmatprep.subr.mxu0 0.0
  %5258 = vmatpush1.msra.mxu0 0.0
  %5259 = vmatprep.subr.mxu0 0.0
  %5260 = vmatpush1.msra.mxu0 0.0
  %5261 = vmatprep.subr.mxu0 0.0
  %5262 = vmatpush1.msra.mxu0 0.0
  %5263 = vmatprep.subr.mxu0 0.0
  %5264 = vmatpush1.msra.mxu0 0.0
  %5265 = vmatprep.subr.mxu0 0.0
  %5266 = vmatpush1.msra.mxu0 0.0
  %5267 = vmatprep.subr.mxu0 0.0
  %5268 = vmatpush1.msra.mxu0 0.0
  %5269 = vmatprep.subr.mxu0 0.0
  %5270 = vmatpush1.msra.mxu0 0.0
  %5271 = vmatprep.subr.mxu0 0.0
  %5272 = vmatpush1.msra.mxu0 0.0
  %5273 = vmatprep.subr.mxu0 0.0
  %5274 = vmatpush1.msra.mxu0 0.0
  %5275 = vmatprep.subr.mxu0 0.0
  %5276 = vmatpush1.msra.mxu0 %v2861
  %5277 = vmatprep.subr.mxu0 0.0
  %5278 = vmatpush2.msra.mxu0 0.0
  %5279 = vmatprep.subr.mxu0 0.0
  %5280 = vmatpush2.msra.mxu0 0.0
  %5281 = vmatprep.subr.mxu0 0.0
  %5282 = vmatpush2.msra.mxu0 0.0
  %5283 = vmatprep.subr.mxu0 0.0
  %5284 = vmatpush2.msra.mxu0 0.0
  %5285 = vmatprep.subr.mxu0 0.0
  %5286 = vmatpush2.msra.mxu0 0.0
  %5287 = vmatprep.subr.mxu0 0.0
  %5288 = vmatpush2.msra.mxu0 0.0
  %5289 = vmatprep.subr.mxu0 0.0
  %5290 = vmatpush2.msra.mxu0 0.0
  %5291 = vmatprep.subr.mxu0 0.0
  %5292 = vmatpush2.msra.mxu0 0.0
  %5293 = vmatprep.subr.mxu0 0.0
  %5294 = vmatpush2.msra.mxu0 0.0
  %5295 = vmatprep.subr.mxu0 0.0
  %5296 = vmatpush2.msra.mxu0 0.0
  %5297 = vmatprep.subr.mxu0 0.0
  %5298 = vmatpush2.msra.mxu0 0.0
  %5299 = vmatprep.subr.mxu0 0.0
  %5300 = vmatpush2.msra.mxu0 0.0
  %5301 = vmatprep.subr.mxu0 0.0
  %5302 = vmatpush2.msra.mxu0 0.0
  %5303 = vmatprep.subr.mxu0 0.0
  %5304 = vmatpush2.msra.mxu0 0.0
  %5305 = vmatprep.subr.mxu0 0.0
  %5306 = vmatpush2.msra.mxu0 0.0
  %5307 = vmatprep.subr.mxu0 0.0
  %5308 = vmatpush2.msra.mxu0 0.0
  %5309 = vmatprep.mubr.f32.mxu0 0.0
  %5310 = vmatmul.mubr.f32.gmra.mxu0 %v5096
  %v5311 = vpop.f32.mrf.mxu0
  %v5312 = vadd.f32 0.0, %v5311
  %v5313 = vpop.f32.mrf.mxu0
  %5314 = vdwg.mxu0
  %v5315 = vadd.f32 %v5242, %v5312
  %v5316 = vxor.u32 %v5315, 2147483648
  %v5317 = vmul.f32 %v5316, 1.442695
  %v5318 = vpow.pop %v5317
  %v5319 = vadd.f32 %v5318, 1.0
  %v5320 = vrcp.pop %v5319
  %v5321 = vmul.f32 1.0, %v5320
  %5322 = vmatprep.subr.mxu0 0.0
  %5323 = vmatpush1.msra.mxu0 0.0
  %5324 = vmatprep.subr.mxu0 0.0
  %5325 = vmatpush1.msra.mxu0 0.0
  %5326 = vmatprep.subr.mxu0 0.0
  %5327 = vmatpush1.msra.mxu0 0.0
  %5328 = vmatprep.subr.mxu0 0.0
  %5329 = vmatpush1.msra.mxu0 0.0
  %5330 = vmatprep.subr.mxu0 0.0
  %5331 = vmatpush1.msra.mxu0 0.0
  %5332 = vmatprep.subr.mxu0 0.0
  %5333 = vmatpush1.msra.mxu0 0.0
  %5334 = vmatprep.subr.mxu0 0.0
  %5335 = vmatpush1.msra.mxu0 0.0
  %5336 = vmatprep.subr.mxu0 0.0
  %5337 = vmatpush1.msra.mxu0 0.0
  %5338 = vmatprep.subr.mxu0 0.0
  %5339 = vmatpush1.msra.mxu0 0.0
  %5340 = vmatprep.subr.mxu0 0.0
  %5341 = vmatpush1.msra.mxu0 0.0
  %5342 = vmatprep.subr.mxu0 0.0
  %5343 = vmatpush1.msra.mxu0 0.0
  %5344 = vmatprep.subr.mxu0 0.0
  %5345 = vmatpush1.msra.mxu0 0.0
  %5346 = vmatprep.subr.mxu0 0.0
  %5347 = vmatpush1.msra.mxu0 %v2604
  %5348 = vmatprep.subr.mxu0 0.0
  %5349 = vmatpush1.msra.mxu0 %v2603
  %5350 = vmatprep.subr.mxu0 0.0
  %5351 = vmatpush1.msra.mxu0 %v2602
  %5352 = vmatprep.subr.mxu0 0.0
  %5353 = vmatpush1.msra.mxu0 %v2601
  %5354 = vmatprep.subr.mxu0 0.0
  %5355 = vmatpush2.msra.mxu0 0.0
  %5356 = vmatprep.subr.mxu0 0.0
  %5357 = vmatpush2.msra.mxu0 0.0
  %5358 = vmatprep.subr.mxu0 0.0
  %5359 = vmatpush2.msra.mxu0 0.0
  %5360 = vmatprep.subr.mxu0 0.0
  %5361 = vmatpush2.msra.mxu0 0.0
  %5362 = vmatprep.subr.mxu0 0.0
  %5363 = vmatpush2.msra.mxu0 0.0
  %5364 = vmatprep.subr.mxu0 0.0
  %5365 = vmatpush2.msra.mxu0 0.0
  %5366 = vmatprep.subr.mxu0 0.0
  %5367 = vmatpush2.msra.mxu0 0.0
  %5368 = vmatprep.subr.mxu0 0.0
  %5369 = vmatpush2.msra.mxu0 0.0
  %5370 = vmatprep.subr.mxu0 0.0
  %5371 = vmatpush2.msra.mxu0 0.0
  %5372 = vmatprep.subr.mxu0 0.0
  %5373 = vmatpush2.msra.mxu0 0.0
  %5374 = vmatprep.subr.mxu0 0.0
  %5375 = vmatpush2.msra.mxu0 0.0
  %5376 = vmatprep.subr.mxu0 0.0
  %5377 = vmatpush2.msra.mxu0 0.0
  %5378 = vmatprep.subr.mxu0 0.0
  %5379 = vmatpush2.msra.mxu0 0.0
  %5380 = vmatprep.subr.mxu0 0.0
  %5381 = vmatpush2.msra.mxu0 0.0
  %5382 = vmatprep.subr.mxu0 0.0
  %5383 = vmatpush2.msra.mxu0 0.0
  %5384 = vmatprep.subr.mxu0 0.0
  %5385 = vmatpush2.msra.mxu0 0.0
  %5386 = vmatprep.mubr.f32.mxu0 0.0
  %5387 = vmatmul.mubr.f32.gmra.mxu0 %v1637
  %v5388 = vpop.f32.mrf.mxu0
  %v5389 = vadd.f32 %v2944, %v5388
  %v5390 = vpop.f32.mrf.mxu0
  %5391 = vdwg.mxu0
  %5392 = vmatprep.subr.mxu0 0.0
  %5393 = vmatpush1.msra.mxu0 0.0
  %5394 = vmatprep.subr.mxu0 0.0
  %5395 = vmatpush1.msra.mxu0 0.0
  %5396 = vmatprep.subr.mxu0 0.0
  %5397 = vmatpush1.msra.mxu0 0.0
  %5398 = vmatprep.subr.mxu0 0.0
  %5399 = vmatpush1.msra.mxu0 0.0
  %5400 = vmatprep.subr.mxu0 0.0
  %5401 = vmatpush1.msra.mxu0 0.0
  %5402 = vmatprep.subr.mxu0 0.0
  %5403 = vmatpush1.msra.mxu0 0.0
  %5404 = vmatprep.subr.mxu0 0.0
  %5405 = vmatpush1.msra.mxu0 0.0
  %5406 = vmatprep.subr.mxu0 0.0
  %5407 = vmatpush1.msra.mxu0 0.0
  %5408 = vmatprep.subr.mxu0 0.0
  %5409 = vmatpush1.msra.mxu0 0.0
  %5410 = vmatprep.subr.mxu0 0.0
  %5411 = vmatpush1.msra.mxu0 0.0
  %5412 = vmatprep.subr.mxu0 0.0
  %5413 = vmatpush1.msra.mxu0 0.0
  %5414 = vmatprep.subr.mxu0 0.0
  %5415 = vmatpush1.msra.mxu0 0.0
  %5416 = vmatprep.subr.mxu0 0.0
  %5417 = vmatpush1.msra.mxu0 0.0
  %5418 = vmatprep.subr.mxu0 0.0
  %5419 = vmatpush1.msra.mxu0 0.0
  %5420 = vmatprep.subr.mxu0 0.0
  %5421 = vmatpush1.msra.mxu0 0.0
  %5422 = vmatprep.subr.mxu0 0.0
  %5423 = vmatpush1.msra.mxu0 %v3017
  %5424 = vmatprep.subr.mxu0 0.0
  %5425 = vmatpush2.msra.mxu0 0.0
  %5426 = vmatprep.subr.mxu0 0.0
  %5427 = vmatpush2.msra.mxu0 0.0
  %5428 = vmatprep.subr.mxu0 0.0
  %5429 = vmatpush2.msra.mxu0 0.0
  %5430 = vmatprep.subr.mxu0 0.0
  %5431 = vmatpush2.msra.mxu0 0.0
  %5432 = vmatprep.subr.mxu0 0.0
  %5433 = vmatpush2.msra.mxu0 0.0
  %5434 = vmatprep.subr.mxu0 0.0
  %5435 = vmatpush2.msra.mxu0 0.0
  %5436 = vmatprep.subr.mxu0 0.0
  %5437 = vmatpush2.msra.mxu0 0.0
  %5438 = vmatprep.subr.mxu0 0.0
  %5439 = vmatpush2.msra.mxu0 0.0
  %5440 = vmatprep.subr.mxu0 0.0
  %5441 = vmatpush2.msra.mxu0 0.0
  %5442 = vmatprep.subr.mxu0 0.0
  %5443 = vmatpush2.msra.mxu0 0.0
  %5444 = vmatprep.subr.mxu0 0.0
  %5445 = vmatpush2.msra.mxu0 0.0
  %5446 = vmatprep.subr.mxu0 0.0
  %5447 = vmatpush2.msra.mxu0 0.0
  %5448 = vmatprep.subr.mxu0 0.0
  %5449 = vmatpush2.msra.mxu0 0.0
  %5450 = vmatprep.subr.mxu0 0.0
  %5451 = vmatpush2.msra.mxu0 0.0
  %5452 = vmatprep.subr.mxu0 0.0
  %5453 = vmatpush2.msra.mxu0 0.0
  %5454 = vmatprep.subr.mxu0 0.0
  %5455 = vmatpush2.msra.mxu0 0.0
  %5456 = vmatprep.mubr.f32.mxu0 0.0
  %5457 = vmatmul.mubr.f32.gmra.mxu0 %v5096
  %v5458 = vpop.f32.mrf.mxu0
  %v5459 = vadd.f32 0.0, %v5458
  %v5460 = vpop.f32.mrf.mxu0
  %5461 = vdwg.mxu0
  %v5462 = vadd.f32 %v5389, %v5459
  %v5463 = vtanh.pop %v5462
  %5464 = vmatprep.subr.mxu0 0.0
  %5465 = vmatpush1.msra.mxu0 0.0
  %5466 = vmatprep.subr.mxu0 0.0
  %5467 = vmatpush1.msra.mxu0 0.0
  %5468 = vmatprep.subr.mxu0 0.0
  %5469 = vmatpush1.msra.mxu0 0.0
  %5470 = vmatprep.subr.mxu0 0.0
  %5471 = vmatpush1.msra.mxu0 0.0
  %5472 = vmatprep.subr.mxu0 0.0
  %5473 = vmatpush1.msra.mxu0 0.0
  %5474 = vmatprep.subr.mxu0 0.0
  %5475 = vmatpush1.msra.mxu0 0.0
  %5476 = vmatprep.subr.mxu0 0.0
  %5477 = vmatpush1.msra.mxu0 0.0
  %5478 = vmatprep.subr.mxu0 0.0
  %5479 = vmatpush1.msra.mxu0 0.0
  %5480 = vmatprep.subr.mxu0 0.0
  %5481 = vmatpush1.msra.mxu0 0.0
  %5482 = vmatprep.subr.mxu0 0.0
  %5483 = vmatpush1.msra.mxu0 0.0
  %5484 = vmatprep.subr.mxu0 0.0
  %5485 = vmatpush1.msra.mxu0 0.0
  %5486 = vmatprep.subr.mxu0 0.0
  %5487 = vmatpush1.msra.mxu0 0.0
  %5488 = vmatprep.subr.mxu0 0.0
  %5489 = vmatpush1.msra.mxu0 %v2609
  %5490 = vmatprep.subr.mxu0 0.0
  %5491 = vmatpush1.msra.mxu0 %v2608
  %5492 = vmatprep.subr.mxu0 0.0
  %5493 = vmatpush1.msra.mxu0 %v2607
  %5494 = vmatprep.subr.mxu0 0.0
  %5495 = vmatpush1.msra.mxu0 %v2606
  %5496 = vmatprep.subr.mxu0 0.0
  %5497 = vmatpush2.msra.mxu0 0.0
  %5498 = vmatprep.subr.mxu0 0.0
  %5499 = vmatpush2.msra.mxu0 0.0
  %5500 = vmatprep.subr.mxu0 0.0
  %5501 = vmatpush2.msra.mxu0 0.0
  %5502 = vmatprep.subr.mxu0 0.0
  %5503 = vmatpush2.msra.mxu0 0.0
  %5504 = vmatprep.subr.mxu0 0.0
  %5505 = vmatpush2.msra.mxu0 0.0
  %5506 = vmatprep.subr.mxu0 0.0
  %5507 = vmatpush2.msra.mxu0 0.0
  %5508 = vmatprep.subr.mxu0 0.0
  %5509 = vmatpush2.msra.mxu0 0.0
  %5510 = vmatprep.subr.mxu0 0.0
  %5511 = vmatpush2.msra.mxu0 0.0
  %5512 = vmatprep.subr.mxu0 0.0
  %5513 = vmatpush2.msra.mxu0 0.0
  %5514 = vmatprep.subr.mxu0 0.0
  %5515 = vmatpush2.msra.mxu0 0.0
  %5516 = vmatprep.subr.mxu0 0.0
  %5517 = vmatpush2.msra.mxu0 0.0
  %5518 = vmatprep.subr.mxu0 0.0
  %5519 = vmatpush2.msra.mxu0 0.0
  %5520 = vmatprep.subr.mxu0 0.0
  %5521 = vmatpush2.msra.mxu0 0.0
  %5522 = vmatprep.subr.mxu0 0.0
  %5523 = vmatpush2.msra.mxu0 0.0
  %5524 = vmatprep.subr.mxu0 0.0
  %5525 = vmatpush2.msra.mxu0 0.0
  %5526 = vmatprep.subr.mxu0 0.0
  %5527 = vmatpush2.msra.mxu0 0.0
  %5528 = vmatprep.mubr.f32.mxu0 0.0
  %5529 = vmatmul.mubr.f32.gmra.mxu0 %v1637
  %v5530 = vpop.f32.mrf.mxu0
  %v5531 = vadd.f32 %v3095, %v5530
  %v5532 = vpop.f32.mrf.mxu0
  %5533 = vdwg.mxu0
  %5534 = vmatprep.subr.mxu0 0.0
  %5535 = vmatpush1.msra.mxu0 0.0
  %5536 = vmatprep.subr.mxu0 0.0
  %5537 = vmatpush1.msra.mxu0 0.0
  %5538 = vmatprep.subr.mxu0 0.0
  %5539 = vmatpush1.msra.mxu0 0.0
  %5540 = vmatprep.subr.mxu0 0.0
  %5541 = vmatpush1.msra.mxu0 0.0
  %5542 = vmatprep.subr.mxu0 0.0
  %5543 = vmatpush1.msra.mxu0 0.0
  %5544 = vmatprep.subr.mxu0 0.0
  %5545 = vmatpush1.msra.mxu0 0.0
  %5546 = vmatprep.subr.mxu0 0.0
  %5547 = vmatpush1.msra.mxu0 0.0
  %5548 = vmatprep.subr.mxu0 0.0
  %5549 = vmatpush1.msra.mxu0 0.0
  %5550 = vmatprep.subr.mxu0 0.0
  %5551 = vmatpush1.msra.mxu0 0.0
  %5552 = vmatprep.subr.mxu0 0.0
  %5553 = vmatpush1.msra.mxu0 0.0
  %5554 = vmatprep.subr.mxu0 0.0
  %5555 = vmatpush1.msra.mxu0 0.0
  %5556 = vmatprep.subr.mxu0 0.0
  %5557 = vmatpush1.msra.mxu0 0.0
  %5558 = vmatprep.subr.mxu0 0.0
  %5559 = vmatpush1.msra.mxu0 0.0
  %5560 = vmatprep.subr.mxu0 0.0
  %5561 = vmatpush1.msra.mxu0 0.0
  %5562 = vmatprep.subr.mxu0 0.0
  %5563 = vmatpush1.msra.mxu0 0.0
  %5564 = vmatprep.subr.mxu0 0.0
  %5565 = vmatpush1.msra.mxu0 %v3168
  %5566 = vmatprep.subr.mxu0 0.0
  %5567 = vmatpush2.msra.mxu0 0.0
  %5568 = vmatprep.subr.mxu0 0.0
  %5569 = vmatpush2.msra.mxu0 0.0
  %5570 = vmatprep.subr.mxu0 0.0
  %5571 = vmatpush2.msra.mxu0 0.0
  %5572 = vmatprep.subr.mxu0 0.0
  %5573 = vmatpush2.msra.mxu0 0.0
  %5574 = vmatprep.subr.mxu0 0.0
  %5575 = vmatpush2.msra.mxu0 0.0
  %5576 = vmatprep.subr.mxu0 0.0
  %5577 = vmatpush2.msra.mxu0 0.0
  %5578 = vmatprep.subr.mxu0 0.0
  %5579 = vmatpush2.msra.mxu0 0.0
  %5580 = vmatprep.subr.mxu0 0.0
  %5581 = vmatpush2.msra.mxu0 0.0
  %5582 = vmatprep.subr.mxu0 0.0
  %5583 = vmatpush2.msra.mxu0 0.0
  %5584 = vmatprep.subr.mxu0 0.0
  %5585 = vmatpush2.msra.mxu0 0.0
  %5586 = vmatprep.subr.mxu0 0.0
  %5587 = vmatpush2.msra.mxu0 0.0
  %5588 = vmatprep.subr.mxu0 0.0
  %5589 = vmatpush2.msra.mxu0 0.0
  %5590 = vmatprep.subr.mxu0 0.0
  %5591 = vmatpush2.msra.mxu0 0.0
  %5592 = vmatprep.subr.mxu0 0.0
  %5593 = vmatpush2.msra.mxu0 0.0
  %5594 = vmatprep.subr.mxu0 0.0
  %5595 = vmatpush2.msra.mxu0 0.0
  %5596 = vmatprep.subr.mxu0 0.0
  %5597 = vmatpush2.msra.mxu0 0.0
  %5598 = vmatprep.mubr.f32.mxu0 0.0
  %5599 = vmatmul.mubr.f32.gmra.mxu0 %v5096
  %v5600 = vpop.f32.mrf.mxu0
  %v5601 = vadd.f32 0.0, %v5600
  %v5602 = vpop.f32.mrf.mxu0
  %5603 = vdwg.mxu0
  %v5604 = vadd.f32 %v5531, %v5601
  %v5605 = vxor.u32 %v5604, 2147483648
  %v5606 = vmul.f32 %v5605, 1.442695
  %v5607 = vpow.pop %v5606
  %v5608 = vadd.f32 %v5607, 1.0
  %v5609 = vrcp.pop %v5608
  %v5610 = vmul.f32 1.0, %v5609
  %v5611 = vmul.f32 %v5321, %v5022
  %v5612 = vmul.f32 %v5174, %v5463
  %v5613 = vadd.f32 %v5611, %v5612
  %v5614 = vtanh.pop %v5613
  %v5615 = vmul.f32 %v5610, %v5614
  %5616 = vmatprep.subr.mxu0 0.0
  %5617 = vmatpush1.msra.mxu0 0.0
  %5618 = vmatprep.subr.mxu0 0.0
  %5619 = vmatpush1.msra.mxu0 0.0
  %5620 = vmatprep.subr.mxu0 0.0
  %5621 = vmatpush1.msra.mxu0 0.0
  %5622 = vmatprep.subr.mxu0 0.0
  %5623 = vmatpush1.msra.mxu0 0.0
  %5624 = vmatprep.subr.mxu0 0.0
  %5625 = vmatpush1.msra.mxu0 0.0
  %5626 = vmatprep.subr.mxu0 0.0
  %5627 = vmatpush1.msra.mxu0 0.0
  %5628 = vmatprep.subr.mxu0 0.0
  %5629 = vmatpush1.msra.mxu0 0.0
  %5630 = vmatprep.subr.mxu0 0.0
  %5631 = vmatpush1.msra.mxu0 0.0
  %5632 = vmatprep.subr.mxu0 0.0
  %5633 = vmatpush1.msra.mxu0 0.0
  %5634 = vmatprep.subr.mxu0 0.0
  %5635 = vmatpush1.msra.mxu0 0.0
  %5636 = vmatprep.subr.mxu0 0.0
  %5637 = vmatpush1.msra.mxu0 0.0
  %5638 = vmatprep.subr.mxu0 0.0
  %5639 = vmatpush1.msra.mxu0 0.0
  %5640 = vmatprep.subr.mxu0 0.0
  %5641 = vmatpush1.msra.mxu0 %v2594
  %5642 = vmatprep.subr.mxu0 0.0
  %5643 = vmatpush1.msra.mxu0 %v2593
  %5644 = vmatprep.subr.mxu0 0.0
  %5645 = vmatpush1.msra.mxu0 %v2592
  %5646 = vmatprep.subr.mxu0 0.0
  %5647 = vmatpush1.msra.mxu0 %v2591
  %5648 = vmatprep.subr.mxu0 0.0
  %5649 = vmatpush2.msra.mxu0 0.0
  %5650 = vmatprep.subr.mxu0 0.0
  %5651 = vmatpush2.msra.mxu0 0.0
  %5652 = vmatprep.subr.mxu0 0.0
  %5653 = vmatpush2.msra.mxu0 0.0
  %5654 = vmatprep.subr.mxu0 0.0
  %5655 = vmatpush2.msra.mxu0 0.0
  %5656 = vmatprep.subr.mxu0 0.0
  %5657 = vmatpush2.msra.mxu0 0.0
  %5658 = vmatprep.subr.mxu0 0.0
  %5659 = vmatpush2.msra.mxu0 0.0
  %5660 = vmatprep.subr.mxu0 0.0
  %5661 = vmatpush2.msra.mxu0 0.0
  %5662 = vmatprep.subr.mxu0 0.0
  %5663 = vmatpush2.msra.mxu0 0.0
  %5664 = vmatprep.subr.mxu0 0.0
  %5665 = vmatpush2.msra.mxu0 0.0
  %5666 = vmatprep.subr.mxu0 0.0
  %5667 = vmatpush2.msra.mxu0 0.0
  %5668 = vmatprep.subr.mxu0 0.0
  %5669 = vmatpush2.msra.mxu0 0.0
  %5670 = vmatprep.subr.mxu0 0.0
  %5671 = vmatpush2.msra.mxu0 0.0
  %5672 = vmatprep.subr.mxu0 0.0
  %5673 = vmatpush2.msra.mxu0 0.0
  %5674 = vmatprep.subr.mxu0 0.0
  %5675 = vmatpush2.msra.mxu0 0.0
  %5676 = vmatprep.subr.mxu0 0.0
  %5677 = vmatpush2.msra.mxu0 0.0
  %5678 = vmatprep.subr.mxu0 0.0
  %5679 = vmatpush2.msra.mxu0 0.0
  %5680 = vmatprep.mubr.f32.mxu0 0.0
  %5681 = vmatmul.mubr.f32.gmra.mxu0 %v1956
  %v5682 = vpop.f32.mrf.mxu0
  %v5683 = vadd.f32 %v2628, %v5682
  %v5684 = vpop.f32.mrf.mxu0
  %5685 = vdwg.mxu0
  %v5687 = vsel %vm2700, %v5615, 0
  %5689 = vmatprep.subr.mxu0 0.0
  %5690 = vmatpush1.msra.mxu0 0.0
  %5691 = vmatprep.subr.mxu0 0.0
  %5692 = vmatpush1.msra.mxu0 0.0
  %5693 = vmatprep.subr.mxu0 0.0
  %5694 = vmatpush1.msra.mxu0 0.0
  %5695 = vmatprep.subr.mxu0 0.0
  %5696 = vmatpush1.msra.mxu0 0.0
  %5697 = vmatprep.subr.mxu0 0.0
  %5698 = vmatpush1.msra.mxu0 0.0
  %5699 = vmatprep.subr.mxu0 0.0
  %5700 = vmatpush1.msra.mxu0 0.0
  %5701 = vmatprep.subr.mxu0 0.0
  %5702 = vmatpush1.msra.mxu0 0.0
  %5703 = vmatprep.subr.mxu0 0.0
  %5704 = vmatpush1.msra.mxu0 0.0
  %5705 = vmatprep.subr.mxu0 0.0
  %5706 = vmatpush1.msra.mxu0 0.0
  %5707 = vmatprep.subr.mxu0 0.0
  %5708 = vmatpush1.msra.mxu0 0.0
  %5709 = vmatprep.subr.mxu0 0.0
  %5710 = vmatpush1.msra.mxu0 0.0
  %5711 = vmatprep.subr.mxu0 0.0
  %5712 = vmatpush1.msra.mxu0 0.0
  %5713 = vmatprep.subr.mxu0 0.0
  %5714 = vmatpush1.msra.mxu0 0.0
  %5715 = vmatprep.subr.mxu0 0.0
  %5716 = vmatpush1.msra.mxu0 0.0
  %5717 = vmatprep.subr.mxu0 0.0
  %5718 = vmatpush1.msra.mxu0 0.0
  %5719 = vmatprep.subr.mxu0 0.0
  %5720 = vmatpush1.msra.mxu0 %v2705
  %5721 = vmatprep.subr.mxu0 0.0
  %5722 = vmatpush2.msra.mxu0 0.0
  %5723 = vmatprep.subr.mxu0 0.0
  %5724 = vmatpush2.msra.mxu0 0.0
  %5725 = vmatprep.subr.mxu0 0.0
  %5726 = vmatpush2.msra.mxu0 0.0
  %5727 = vmatprep.subr.mxu0 0.0
  %5728 = vmatpush2.msra.mxu0 0.0
  %5729 = vmatprep.subr.mxu0 0.0
  %5730 = vmatpush2.msra.mxu0 0.0
  %5731 = vmatprep.subr.mxu0 0.0
  %5732 = vmatpush2.msra.mxu0 0.0
  %5733 = vmatprep.subr.mxu0 0.0
  %5734 = vmatpush2.msra.mxu0 0.0
  %5735 = vmatprep.subr.mxu0 0.0
  %5736 = vmatpush2.msra.mxu0 0.0
  %5737 = vmatprep.subr.mxu0 0.0
  %5738 = vmatpush2.msra.mxu0 0.0
  %5739 = vmatprep.subr.mxu0 0.0
  %5740 = vmatpush2.msra.mxu0 0.0
  %5741 = vmatprep.subr.mxu0 0.0
  %5742 = vmatpush2.msra.mxu0 0.0
  %5743 = vmatprep.subr.mxu0 0.0
  %5744 = vmatpush2.msra.mxu0 0.0
  %5745 = vmatprep.subr.mxu0 0.0
  %5746 = vmatpush2.msra.mxu0 0.0
  %5747 = vmatprep.subr.mxu0 0.0
  %5748 = vmatpush2.msra.mxu0 0.0
  %5749 = vmatprep.subr.mxu0 0.0
  %5750 = vmatpush2.msra.mxu0 0.0
  %5751 = vmatprep.subr.mxu0 0.0
  %5752 = vmatpush2.msra.mxu0 0.0
  %5753 = vmatprep.mubr.f32.mxu0 0.0
  %5754 = vmatmul.mubr.f32.gmra.mxu0 %v5687
  %v5755 = vpop.f32.mrf.mxu0
  %v5756 = vadd.f32 0.0, %v5755
  %v5757 = vpop.f32.mrf.mxu0
  %5758 = vdwg.mxu0
  %v5759 = vadd.f32 %v5683, %v5756
  %v5760 = vxor.u32 %v5759, 2147483648
  %v5761 = vmul.f32 %v5760, 1.442695
  %v5762 = vpow.pop %v5761
  %v5763 = vadd.f32 %v5762, 1.0
  %v5764 = vrcp.pop %v5763
  %v5765 = vmul.f32 1.0, %v5764
  %5766 = vmatprep.subr.mxu0 0.0
  %5767 = vmatpush1.msra.mxu0 0.0
  %5768 = vmatprep.subr.mxu0 0.0
  %5769 = vmatpush1.msra.mxu0 0.0
  %5770 = vmatprep.subr.mxu0 0.0
  %5771 = vmatpush1.msra.mxu0 0.0
  %5772 = vmatprep.subr.mxu0 0.0
  %5773 = vmatpush1.msra.mxu0 0.0
  %5774 = vmatprep.subr.mxu0 0.0
  %5775 = vmatpush1.msra.mxu0 0.0
  %5776 = vmatprep.subr.mxu0 0.0
  %5777 = vmatpush1.msra.mxu0 0.0
  %5778 = vmatprep.subr.mxu0 0.0
  %5779 = vmatpush1.msra.mxu0 0.0
  %5780 = vmatprep.subr.mxu0 0.0
  %5781 = vmatpush1.msra.mxu0 0.0
  %5782 = vmatprep.subr.mxu0 0.0
  %5783 = vmatpush1.msra.mxu0 0.0
  %5784 = vmatprep.subr.mxu0 0.0
  %5785 = vmatpush1.msra.mxu0 0.0
  %5786 = vmatprep.subr.mxu0 0.0
  %5787 = vmatpush1.msra.mxu0 0.0
  %5788 = vmatprep.subr.mxu0 0.0
  %5789 = vmatpush1.msra.mxu0 0.0
  %5790 = vmatprep.subr.mxu0 0.0
  %5791 = vmatpush1.msra.mxu0 %v2599
  %5792 = vmatprep.subr.mxu0 0.0
  %5793 = vmatpush1.msra.mxu0 %v2598
  %5794 = vmatprep.subr.mxu0 0.0
  %5795 = vmatpush1.msra.mxu0 %v2597
  %5796 = vmatprep.subr.mxu0 0.0
  %5797 = vmatpush1.msra.mxu0 %v2596
  %5798 = vmatprep.subr.mxu0 0.0
  %5799 = vmatpush2.msra.mxu0 0.0
  %5800 = vmatprep.subr.mxu0 0.0
  %5801 = vmatpush2.msra.mxu0 0.0
  %5802 = vmatprep.subr.mxu0 0.0
  %5803 = vmatpush2.msra.mxu0 0.0
  %5804 = vmatprep.subr.mxu0 0.0
  %5805 = vmatpush2.msra.mxu0 0.0
  %5806 = vmatprep.subr.mxu0 0.0
  %5807 = vmatpush2.msra.mxu0 0.0
  %5808 = vmatprep.subr.mxu0 0.0
  %5809 = vmatpush2.msra.mxu0 0.0
  %5810 = vmatprep.subr.mxu0 0.0
  %5811 = vmatpush2.msra.mxu0 0.0
  %5812 = vmatprep.subr.mxu0 0.0
  %5813 = vmatpush2.msra.mxu0 0.0
  %5814 = vmatprep.subr.mxu0 0.0
  %5815 = vmatpush2.msra.mxu0 0.0
  %5816 = vmatprep.subr.mxu0 0.0
  %5817 = vmatpush2.msra.mxu0 0.0
  %5818 = vmatprep.subr.mxu0 0.0
  %5819 = vmatpush2.msra.mxu0 0.0
  %5820 = vmatprep.subr.mxu0 0.0
  %5821 = vmatpush2.msra.mxu0 0.0
  %5822 = vmatprep.subr.mxu0 0.0
  %5823 = vmatpush2.msra.mxu0 0.0
  %5824 = vmatprep.subr.mxu0 0.0
  %5825 = vmatpush2.msra.mxu0 0.0
  %5826 = vmatprep.subr.mxu0 0.0
  %5827 = vmatpush2.msra.mxu0 0.0
  %5828 = vmatprep.subr.mxu0 0.0
  %5829 = vmatpush2.msra.mxu0 0.0
  %5830 = vmatprep.mubr.f32.mxu0 0.0
  %5831 = vmatmul.mubr.f32.gmra.mxu0 %v1956
  %v5832 = vpop.f32.mrf.mxu0
  %v5833 = vadd.f32 %v2788, %v5832
  %v5834 = vpop.f32.mrf.mxu0
  %5835 = vdwg.mxu0
  %5836 = vmatprep.subr.mxu0 0.0
  %5837 = vmatpush1.msra.mxu0 0.0
  %5838 = vmatprep.subr.mxu0 0.0
  %5839 = vmatpush1.msra.mxu0 0.0
  %5840 = vmatprep.subr.mxu0 0.0
  %5841 = vmatpush1.msra.mxu0 0.0
  %5842 = vmatprep.subr.mxu0 0.0
  %5843 = vmatpush1.msra.mxu0 0.0
  %5844 = vmatprep.subr.mxu0 0.0
  %5845 = vmatpush1.msra.mxu0 0.0
  %5846 = vmatprep.subr.mxu0 0.0
  %5847 = vmatpush1.msra.mxu0 0.0
  %5848 = vmatprep.subr.mxu0 0.0
  %5849 = vmatpush1.msra.mxu0 0.0
  %5850 = vmatprep.subr.mxu0 0.0
  %5851 = vmatpush1.msra.mxu0 0.0
  %5852 = vmatprep.subr.mxu0 0.0
  %5853 = vmatpush1.msra.mxu0 0.0
  %5854 = vmatprep.subr.mxu0 0.0
  %5855 = vmatpush1.msra.mxu0 0.0
  %5856 = vmatprep.subr.mxu0 0.0
  %5857 = vmatpush1.msra.mxu0 0.0
  %5858 = vmatprep.subr.mxu0 0.0
  %5859 = vmatpush1.msra.mxu0 0.0
  %5860 = vmatprep.subr.mxu0 0.0
  %5861 = vmatpush1.msra.mxu0 0.0
  %5862 = vmatprep.subr.mxu0 0.0
  %5863 = vmatpush1.msra.mxu0 0.0
  %5864 = vmatprep.subr.mxu0 0.0
  %5865 = vmatpush1.msra.mxu0 0.0
  %5866 = vmatprep.subr.mxu0 0.0
  %5867 = vmatpush1.msra.mxu0 %v2861
  %5868 = vmatprep.subr.mxu0 0.0
  %5869 = vmatpush2.msra.mxu0 0.0
  %5870 = vmatprep.subr.mxu0 0.0
  %5871 = vmatpush2.msra.mxu0 0.0
  %5872 = vmatprep.subr.mxu0 0.0
  %5873 = vmatpush2.msra.mxu0 0.0
  %5874 = vmatprep.subr.mxu0 0.0
  %5875 = vmatpush2.msra.mxu0 0.0
  %5876 = vmatprep.subr.mxu0 0.0
  %5877 = vmatpush2.msra.mxu0 0.0
  %5878 = vmatprep.subr.mxu0 0.0
  %5879 = vmatpush2.msra.mxu0 0.0
  %5880 = vmatprep.subr.mxu0 0.0
  %5881 = vmatpush2.msra.mxu0 0.0
  %5882 = vmatprep.subr.mxu0 0.0
  %5883 = vmatpush2.msra.mxu0 0.0
  %5884 = vmatprep.subr.mxu0 0.0
  %5885 = vmatpush2.msra.mxu0 0.0
  %5886 = vmatprep.subr.mxu0 0.0
  %5887 = vmatpush2.msra.mxu0 0.0
  %5888 = vmatprep.subr.mxu0 0.0
  %5889 = vmatpush2.msra.mxu0 0.0
  %5890 = vmatprep.subr.mxu0 0.0
  %5891 = vmatpush2.msra.mxu0 0.0
  %5892 = vmatprep.subr.mxu0 0.0
  %5893 = vmatpush2.msra.mxu0 0.0
  %5894 = vmatprep.subr.mxu0 0.0
  %5895 = vmatpush2.msra.mxu0 0.0
  %5896 = vmatprep.subr.mxu0 0.0
  %5897 = vmatpush2.msra.mxu0 0.0
  %5898 = vmatprep.subr.mxu0 0.0
  %5899 = vmatpush2.msra.mxu0 0.0
  %5900 = vmatprep.mubr.f32.mxu0 0.0
  %5901 = vmatmul.mubr.f32.gmra.mxu0 %v5687
  %v5902 = vpop.f32.mrf.mxu0
  %v5903 = vadd.f32 0.0, %v5902
  %v5904 = vpop.f32.mrf.mxu0
  %5905 = vdwg.mxu0
  %v5906 = vadd.f32 %v5833, %v5903
  %v5907 = vxor.u32 %v5906, 2147483648
  %v5908 = vmul.f32 %v5907, 1.442695
  %v5909 = vpow.pop %v5908
  %v5910 = vadd.f32 %v5909, 1.0
  %v5911 = vrcp.pop %v5910
  %v5912 = vmul.f32 1.0, %v5911
  %5913 = vmatprep.subr.mxu0 0.0
  %5914 = vmatpush1.msra.mxu0 0.0
  %5915 = vmatprep.subr.mxu0 0.0
  %5916 = vmatpush1.msra.mxu0 0.0
  %5917 = vmatprep.subr.mxu0 0.0
  %5918 = vmatpush1.msra.mxu0 0.0
  %5919 = vmatprep.subr.mxu0 0.0
  %5920 = vmatpush1.msra.mxu0 0.0
  %5921 = vmatprep.subr.mxu0 0.0
  %5922 = vmatpush1.msra.mxu0 0.0
  %5923 = vmatprep.subr.mxu0 0.0
  %5924 = vmatpush1.msra.mxu0 0.0
  %5925 = vmatprep.subr.mxu0 0.0
  %5926 = vmatpush1.msra.mxu0 0.0
  %5927 = vmatprep.subr.mxu0 0.0
  %5928 = vmatpush1.msra.mxu0 0.0
  %5929 = vmatprep.subr.mxu0 0.0
  %5930 = vmatpush1.msra.mxu0 0.0
  %5931 = vmatprep.subr.mxu0 0.0
  %5932 = vmatpush1.msra.mxu0 0.0
  %5933 = vmatprep.subr.mxu0 0.0
  %5934 = vmatpush1.msra.mxu0 0.0
  %5935 = vmatprep.subr.mxu0 0.0
  %5936 = vmatpush1.msra.mxu0 0.0
  %5937 = vmatprep.subr.mxu0 0.0
  %5938 = vmatpush1.msra.mxu0 %v2604
  %5939 = vmatprep.subr.mxu0 0.0
  %5940 = vmatpush1.msra.mxu0 %v2603
  %5941 = vmatprep.subr.mxu0 0.0
  %5942 = vmatpush1.msra.mxu0 %v2602
  %5943 = vmatprep.subr.mxu0 0.0
  %5944 = vmatpush1.msra.mxu0 %v2601
  %5945 = vmatprep.subr.mxu0 0.0
  %5946 = vmatpush2.msra.mxu0 0.0
  %5947 = vmatprep.subr.mxu0 0.0
  %5948 = vmatpush2.msra.mxu0 0.0
  %5949 = vmatprep.subr.mxu0 0.0
  %5950 = vmatpush2.msra.mxu0 0.0
  %5951 = vmatprep.subr.mxu0 0.0
  %5952 = vmatpush2.msra.mxu0 0.0
  %5953 = vmatprep.subr.mxu0 0.0
  %5954 = vmatpush2.msra.mxu0 0.0
  %5955 = vmatprep.subr.mxu0 0.0
  %5956 = vmatpush2.msra.mxu0 0.0
  %5957 = vmatprep.subr.mxu0 0.0
  %5958 = vmatpush2.msra.mxu0 0.0
  %5959 = vmatprep.subr.mxu0 0.0
  %5960 = vmatpush2.msra.mxu0 0.0
  %5961 = vmatprep.subr.mxu0 0.0
  %5962 = vmatpush2.msra.mxu0 0.0
  %5963 = vmatprep.subr.mxu0 0.0
  %5964 = vmatpush2.msra.mxu0 0.0
  %5965 = vmatprep.subr.mxu0 0.0
  %5966 = vmatpush2.msra.mxu0 0.0
  %5967 = vmatprep.subr.mxu0 0.0
  %5968 = vmatpush2.msra.mxu0 0.0
  %5969 = vmatprep.subr.mxu0 0.0
  %5970 = vmatpush2.msra.mxu0 0.0
  %5971 = vmatprep.subr.mxu0 0.0
  %5972 = vmatpush2.msra.mxu0 0.0
  %5973 = vmatprep.subr.mxu0 0.0
  %5974 = vmatpush2.msra.mxu0 0.0
  %5975 = vmatprep.subr.mxu0 0.0
  %5976 = vmatpush2.msra.mxu0 0.0
  %5977 = vmatprep.mubr.f32.mxu0 0.0
  %5978 = vmatmul.mubr.f32.gmra.mxu0 %v1956
  %v5979 = vpop.f32.mrf.mxu0
  %v5980 = vadd.f32 %v2944, %v5979
  %v5981 = vpop.f32.mrf.mxu0
  %5982 = vdwg.mxu0
  %5983 = vmatprep.subr.mxu0 0.0
  %5984 = vmatpush1.msra.mxu0 0.0
  %5985 = vmatprep.subr.mxu0 0.0
  %5986 = vmatpush1.msra.mxu0 0.0
  %5987 = vmatprep.subr.mxu0 0.0
  %5988 = vmatpush1.msra.mxu0 0.0
  %5989 = vmatprep.subr.mxu0 0.0
  %5990 = vmatpush1.msra.mxu0 0.0
  %5991 = vmatprep.subr.mxu0 0.0
  %5992 = vmatpush1.msra.mxu0 0.0
  %5993 = vmatprep.subr.mxu0 0.0
  %5994 = vmatpush1.msra.mxu0 0.0
  %5995 = vmatprep.subr.mxu0 0.0
  %5996 = vmatpush1.msra.mxu0 0.0
  %5997 = vmatprep.subr.mxu0 0.0
  %5998 = vmatpush1.msra.mxu0 0.0
  %5999 = vmatprep.subr.mxu0 0.0
  %6000 = vmatpush1.msra.mxu0 0.0
  %6001 = vmatprep.subr.mxu0 0.0
  %6002 = vmatpush1.msra.mxu0 0.0
  %6003 = vmatprep.subr.mxu0 0.0
  %6004 = vmatpush1.msra.mxu0 0.0
  %6005 = vmatprep.subr.mxu0 0.0
  %6006 = vmatpush1.msra.mxu0 0.0
  %6007 = vmatprep.subr.mxu0 0.0
  %6008 = vmatpush1.msra.mxu0 0.0
  %6009 = vmatprep.subr.mxu0 0.0
  %6010 = vmatpush1.msra.mxu0 0.0
  %6011 = vmatprep.subr.mxu0 0.0
  %6012 = vmatpush1.msra.mxu0 0.0
  %6013 = vmatprep.subr.mxu0 0.0
  %6014 = vmatpush1.msra.mxu0 %v3017
  %6015 = vmatprep.subr.mxu0 0.0
  %6016 = vmatpush2.msra.mxu0 0.0
  %6017 = vmatprep.subr.mxu0 0.0
  %6018 = vmatpush2.msra.mxu0 0.0
  %6019 = vmatprep.subr.mxu0 0.0
  %6020 = vmatpush2.msra.mxu0 0.0
  %6021 = vmatprep.subr.mxu0 0.0
  %6022 = vmatpush2.msra.mxu0 0.0
  %6023 = vmatprep.subr.mxu0 0.0
  %6024 = vmatpush2.msra.mxu0 0.0
  %6025 = vmatprep.subr.mxu0 0.0
  %6026 = vmatpush2.msra.mxu0 0.0
  %6027 = vmatprep.subr.mxu0 0.0
  %6028 = vmatpush2.msra.mxu0 0.0
  %6029 = vmatprep.subr.mxu0 0.0
  %6030 = vmatpush2.msra.mxu0 0.0
  %6031 = vmatprep.subr.mxu0 0.0
  %6032 = vmatpush2.msra.mxu0 0.0
  %6033 = vmatprep.subr.mxu0 0.0
  %6034 = vmatpush2.msra.mxu0 0.0
  %6035 = vmatprep.subr.mxu0 0.0
  %6036 = vmatpush2.msra.mxu0 0.0
  %6037 = vmatprep.subr.mxu0 0.0
  %6038 = vmatpush2.msra.mxu0 0.0
  %6039 = vmatprep.subr.mxu0 0.0
  %6040 = vmatpush2.msra.mxu0 0.0
  %6041 = vmatprep.subr.mxu0 0.0
  %6042 = vmatpush2.msra.mxu0 0.0
  %6043 = vmatprep.subr.mxu0 0.0
  %6044 = vmatpush2.msra.mxu0 0.0
  %6045 = vmatprep.subr.mxu0 0.0
  %6046 = vmatpush2.msra.mxu0 0.0
  %6047 = vmatprep.mubr.f32.mxu0 0.0
  %6048 = vmatmul.mubr.f32.gmra.mxu0 %v5687
  %v6049 = vpop.f32.mrf.mxu0
  %v6050 = vadd.f32 0.0, %v6049
  %v6051 = vpop.f32.mrf.mxu0
  %6052 = vdwg.mxu0
  %v6053 = vadd.f32 %v5980, %v6050
  %v6054 = vtanh.pop %v6053
  %6055 = vmatprep.subr.mxu0 0.0
  %6056 = vmatpush1.msra.mxu0 0.0
  %6057 = vmatprep.subr.mxu0 0.0
  %6058 = vmatpush1.msra.mxu0 0.0
  %6059 = vmatprep.subr.mxu0 0.0
  %6060 = vmatpush1.msra.mxu0 0.0
  %6061 = vmatprep.subr.mxu0 0.0
  %6062 = vmatpush1.msra.mxu0 0.0
  %6063 = vmatprep.subr.mxu0 0.0
  %6064 = vmatpush1.msra.mxu0 0.0
  %6065 = vmatprep.subr.mxu0 0.0
  %6066 = vmatpush1.msra.mxu0 0.0
  %6067 = vmatprep.subr.mxu0 0.0
  %6068 = vmatpush1.msra.mxu0 0.0
  %6069 = vmatprep.subr.mxu0 0.0
  %6070 = vmatpush1.msra.mxu0 0.0
  %6071 = vmatprep.subr.mxu0 0.0
  %6072 = vmatpush1.msra.mxu0 0.0
  %6073 = vmatprep.subr.mxu0 0.0
  %6074 = vmatpush1.msra.mxu0 0.0
  %6075 = vmatprep.subr.mxu0 0.0
  %6076 = vmatpush1.msra.mxu0 0.0
  %6077 = vmatprep.subr.mxu0 0.0
  %6078 = vmatpush1.msra.mxu0 0.0
  %6079 = vmatprep.subr.mxu0 0.0
  %6080 = vmatpush1.msra.mxu0 %v2609
  %6081 = vmatprep.subr.mxu0 0.0
  %6082 = vmatpush1.msra.mxu0 %v2608
  %6083 = vmatprep.subr.mxu0 0.0
  %6084 = vmatpush1.msra.mxu0 %v2607
  %6085 = vmatprep.subr.mxu0 0.0
  %6086 = vmatpush1.msra.mxu0 %v2606
  %6087 = vmatprep.subr.mxu0 0.0
  %6088 = vmatpush2.msra.mxu0 0.0
  %6089 = vmatprep.subr.mxu0 0.0
  %6090 = vmatpush2.msra.mxu0 0.0
  %6091 = vmatprep.subr.mxu0 0.0
  %6092 = vmatpush2.msra.mxu0 0.0
  %6093 = vmatprep.subr.mxu0 0.0
  %6094 = vmatpush2.msra.mxu0 0.0
  %6095 = vmatprep.subr.mxu0 0.0
  %6096 = vmatpush2.msra.mxu0 0.0
  %6097 = vmatprep.subr.mxu0 0.0
  %6098 = vmatpush2.msra.mxu0 0.0
  %6099 = vmatprep.subr.mxu0 0.0
  %6100 = vmatpush2.msra.mxu0 0.0
  %6101 = vmatprep.subr.mxu0 0.0
  %6102 = vmatpush2.msra.mxu0 0.0
  %6103 = vmatprep.subr.mxu0 0.0
  %6104 = vmatpush2.msra.mxu0 0.0
  %6105 = vmatprep.subr.mxu0 0.0
  %6106 = vmatpush2.msra.mxu0 0.0
  %6107 = vmatprep.subr.mxu0 0.0
  %6108 = vmatpush2.msra.mxu0 0.0
  %6109 = vmatprep.subr.mxu0 0.0
  %6110 = vmatpush2.msra.mxu0 0.0
  %6111 = vmatprep.subr.mxu0 0.0
  %6112 = vmatpush2.msra.mxu0 0.0
  %6113 = vmatprep.subr.mxu0 0.0
  %6114 = vmatpush2.msra.mxu0 0.0
  %6115 = vmatprep.subr.mxu0 0.0
  %6116 = vmatpush2.msra.mxu0 0.0
  %6117 = vmatprep.subr.mxu0 0.0
  %6118 = vmatpush2.msra.mxu0 0.0
  %6119 = vmatprep.mubr.f32.mxu0 0.0
  %6120 = vmatmul.mubr.f32.gmra.mxu0 %v1956
  %v6121 = vpop.f32.mrf.mxu0
  %v6122 = vadd.f32 %v3095, %v6121
  %v6123 = vpop.f32.mrf.mxu0
  %6124 = vdwg.mxu0
  %6125 = vmatprep.subr.mxu0 0.0
  %6126 = vmatpush1.msra.mxu0 0.0
  %6127 = vmatprep.subr.mxu0 0.0
  %6128 = vmatpush1.msra.mxu0 0.0
  %6129 = vmatprep.subr.mxu0 0.0
  %6130 = vmatpush1.msra.mxu0 0.0
  %6131 = vmatprep.subr.mxu0 0.0
  %6132 = vmatpush1.msra.mxu0 0.0
  %6133 = vmatprep.subr.mxu0 0.0
  %6134 = vmatpush1.msra.mxu0 0.0
  %6135 = vmatprep.subr.mxu0 0.0
  %6136 = vmatpush1.msra.mxu0 0.0
  %6137 = vmatprep.subr.mxu0 0.0
  %6138 = vmatpush1.msra.mxu0 0.0
  %6139 = vmatprep.subr.mxu0 0.0
  %6140 = vmatpush1.msra.mxu0 0.0
  %6141 = vmatprep.subr.mxu0 0.0
  %6142 = vmatpush1.msra.mxu0 0.0
  %6143 = vmatprep.subr.mxu0 0.0
  %6144 = vmatpush1.msra.mxu0 0.0
  %6145 = vmatprep.subr.mxu0 0.0
  %6146 = vmatpush1.msra.mxu0 0.0
  %6147 = vmatprep.subr.mxu0 0.0
  %6148 = vmatpush1.msra.mxu0 0.0
  %6149 = vmatprep.subr.mxu0 0.0
  %6150 = vmatpush1.msra.mxu0 0.0
  %6151 = vmatprep.subr.mxu0 0.0
  %6152 = vmatpush1.msra.mxu0 0.0
  %6153 = vmatprep.subr.mxu0 0.0
  %6154 = vmatpush1.msra.mxu0 0.0
  %6155 = vmatprep.subr.mxu0 0.0
  %6156 = vmatpush1.msra.mxu0 %v3168
  %6157 = vmatprep.subr.mxu0 0.0
  %6158 = vmatpush2.msra.mxu0 0.0
  %6159 = vmatprep.subr.mxu0 0.0
  %6160 = vmatpush2.msra.mxu0 0.0
  %6161 = vmatprep.subr.mxu0 0.0
  %6162 = vmatpush2.msra.mxu0 0.0
  %6163 = vmatprep.subr.mxu0 0.0
  %6164 = vmatpush2.msra.mxu0 0.0
  %6165 = vmatprep.subr.mxu0 0.0
  %6166 = vmatpush2.msra.mxu0 0.0
  %6167 = vmatprep.subr.mxu0 0.0
  %6168 = vmatpush2.msra.mxu0 0.0
  %6169 = vmatprep.subr.mxu0 0.0
  %6170 = vmatpush2.msra.mxu0 0.0
  %6171 = vmatprep.subr.mxu0 0.0
  %6172 = vmatpush2.msra.mxu0 0.0
  %6173 = vmatprep.subr.mxu0 0.0
  %6174 = vmatpush2.msra.mxu0 0.0
  %6175 = vmatprep.subr.mxu0 0.0
  %6176 = vmatpush2.msra.mxu0 0.0
  %6177 = vmatprep.subr.mxu0 0.0
  %6178 = vmatpush2.msra.mxu0 0.0
  %6179 = vmatprep.subr.mxu0 0.0
  %6180 = vmatpush2.msra.mxu0 0.0
  %6181 = vmatprep.subr.mxu0 0.0
  %6182 = vmatpush2.msra.mxu0 0.0
  %6183 = vmatprep.subr.mxu0 0.0
  %6184 = vmatpush2.msra.mxu0 0.0
  %6185 = vmatprep.subr.mxu0 0.0
  %6186 = vmatpush2.msra.mxu0 0.0
  %6187 = vmatprep.subr.mxu0 0.0
  %6188 = vmatpush2.msra.mxu0 0.0
  %6189 = vmatprep.mubr.f32.mxu0 0.0
  %6190 = vmatmul.mubr.f32.gmra.mxu0 %v5687
  %v6191 = vpop.f32.mrf.mxu0
  %v6192 = vadd.f32 0.0, %v6191
  %v6193 = vpop.f32.mrf.mxu0
  %6194 = vdwg.mxu0
  %v6195 = vadd.f32 %v6122, %v6192
  %v6196 = vxor.u32 %v6195, 2147483648
  %v6197 = vmul.f32 %v6196, 1.442695
  %v6198 = vpow.pop %v6197
  %v6199 = vadd.f32 %v6198, 1.0
  %v6200 = vrcp.pop %v6199
  %v6201 = vmul.f32 1.0, %v6200
  %v6202 = vmul.f32 %v5912, %v5613
  %v6203 = vmul.f32 %v5765, %v6054
  %v6204 = vadd.f32 %v6202, %v6203
  %v6205 = vtanh.pop %v6204
  %v6206 = vmul.f32 %v6201, %v6205
  %6207 = vmatprep.subr.mxu0 0.0
  %6208 = vmatpush1.msra.mxu0 0.0
  %6209 = vmatprep.subr.mxu0 0.0
  %6210 = vmatpush1.msra.mxu0 0.0
  %6211 = vmatprep.subr.mxu0 0.0
  %6212 = vmatpush1.msra.mxu0 0.0
  %6213 = vmatprep.subr.mxu0 0.0
  %6214 = vmatpush1.msra.mxu0 0.0
  %6215 = vmatprep.subr.mxu0 0.0
  %6216 = vmatpush1.msra.mxu0 0.0
  %6217 = vmatprep.subr.mxu0 0.0
  %6218 = vmatpush1.msra.mxu0 0.0
  %6219 = vmatprep.subr.mxu0 0.0
  %6220 = vmatpush1.msra.mxu0 0.0
  %6221 = vmatprep.subr.mxu0 0.0
  %6222 = vmatpush1.msra.mxu0 0.0
  %6223 = vmatprep.subr.mxu0 0.0
  %6224 = vmatpush1.msra.mxu0 0.0
  %6225 = vmatprep.subr.mxu0 0.0
  %6226 = vmatpush1.msra.mxu0 0.0
  %6227 = vmatprep.subr.mxu0 0.0
  %6228 = vmatpush1.msra.mxu0 0.0
  %6229 = vmatprep.subr.mxu0 0.0
  %6230 = vmatpush1.msra.mxu0 0.0
  %6231 = vmatprep.subr.mxu0 0.0
  %6232 = vmatpush1.msra.mxu0 %v2594
  %6233 = vmatprep.subr.mxu0 0.0
  %6234 = vmatpush1.msra.mxu0 %v2593
  %6235 = vmatprep.subr.mxu0 0.0
  %6236 = vmatpush1.msra.mxu0 %v2592
  %6237 = vmatprep.subr.mxu0 0.0
  %6238 = vmatpush1.msra.mxu0 %v2591
  %6239 = vmatprep.subr.mxu0 0.0
  %6240 = vmatpush2.msra.mxu0 0.0
  %6241 = vmatprep.subr.mxu0 0.0
  %6242 = vmatpush2.msra.mxu0 0.0
  %6243 = vmatprep.subr.mxu0 0.0
  %6244 = vmatpush2.msra.mxu0 0.0
  %6245 = vmatprep.subr.mxu0 0.0
  %6246 = vmatpush2.msra.mxu0 0.0
  %6247 = vmatprep.subr.mxu0 0.0
  %6248 = vmatpush2.msra.mxu0 0.0
  %6249 = vmatprep.subr.mxu0 0.0
  %6250 = vmatpush2.msra.mxu0 0.0
  %6251 = vmatprep.subr.mxu0 0.0
  %6252 = vmatpush2.msra.mxu0 0.0
  %6253 = vmatprep.subr.mxu0 0.0
  %6254 = vmatpush2.msra.mxu0 0.0
  %6255 = vmatprep.subr.mxu0 0.0
  %6256 = vmatpush2.msra.mxu0 0.0
  %6257 = vmatprep.subr.mxu0 0.0
  %6258 = vmatpush2.msra.mxu0 0.0
  %6259 = vmatprep.subr.mxu0 0.0
  %6260 = vmatpush2.msra.mxu0 0.0
  %6261 = vmatprep.subr.mxu0 0.0
  %6262 = vmatpush2.msra.mxu0 0.0
  %6263 = vmatprep.subr.mxu0 0.0
  %6264 = vmatpush2.msra.mxu0 0.0
  %6265 = vmatprep.subr.mxu0 0.0
  %6266 = vmatpush2.msra.mxu0 0.0
  %6267 = vmatprep.subr.mxu0 0.0
  %6268 = vmatpush2.msra.mxu0 0.0
  %6269 = vmatprep.subr.mxu0 0.0
  %6270 = vmatpush2.msra.mxu0 0.0
  %6271 = vmatprep.mubr.f32.mxu0 0.0
  %6272 = vmatmul.mubr.f32.gmra.mxu0 %v2275
  %v6273 = vpop.f32.mrf.mxu0
  %v6274 = vadd.f32 %v2628, %v6273
  %v6275 = vpop.f32.mrf.mxu0
  %6276 = vdwg.mxu0
  %v6278 = vsel %vm2700, %v6206, 0
  %6280 = vmatprep.subr.mxu0 0.0
  %6281 = vmatpush1.msra.mxu0 0.0
  %6282 = vmatprep.subr.mxu0 0.0
  %6283 = vmatpush1.msra.mxu0 0.0
  %6284 = vmatprep.subr.mxu0 0.0
  %6285 = vmatpush1.msra.mxu0 0.0
  %6286 = vmatprep.subr.mxu0 0.0
  %6287 = vmatpush1.msra.mxu0 0.0
  %6288 = vmatprep.subr.mxu0 0.0
  %6289 = vmatpush1.msra.mxu0 0.0
  %6290 = vmatprep.subr.mxu0 0.0
  %6291 = vmatpush1.msra.mxu0 0.0
  %6292 = vmatprep.subr.mxu0 0.0
  %6293 = vmatpush1.msra.mxu0 0.0
  %6294 = vmatprep.subr.mxu0 0.0
  %6295 = vmatpush1.msra.mxu0 0.0
  %6296 = vmatprep.subr.mxu0 0.0
  %6297 = vmatpush1.msra.mxu0 0.0
  %6298 = vmatprep.subr.mxu0 0.0
  %6299 = vmatpush1.msra.mxu0 0.0
  %6300 = vmatprep.subr.mxu0 0.0
  %6301 = vmatpush1.msra.mxu0 0.0
  %6302 = vmatprep.subr.mxu0 0.0
  %6303 = vmatpush1.msra.mxu0 0.0
  %6304 = vmatprep.subr.mxu0 0.0
  %6305 = vmatpush1.msra.mxu0 0.0
  %6306 = vmatprep.subr.mxu0 0.0
  %6307 = vmatpush1.msra.mxu0 0.0
  %6308 = vmatprep.subr.mxu0 0.0
  %6309 = vmatpush1.msra.mxu0 0.0
  %6310 = vmatprep.subr.mxu0 0.0
  %6311 = vmatpush1.msra.mxu0 %v2705
  %6312 = vmatprep.subr.mxu0 0.0
  %6313 = vmatpush2.msra.mxu0 0.0
  %6314 = vmatprep.subr.mxu0 0.0
  %6315 = vmatpush2.msra.mxu0 0.0
  %6316 = vmatprep.subr.mxu0 0.0
  %6317 = vmatpush2.msra.mxu0 0.0
  %6318 = vmatprep.subr.mxu0 0.0
  %6319 = vmatpush2.msra.mxu0 0.0
  %6320 = vmatprep.subr.mxu0 0.0
  %6321 = vmatpush2.msra.mxu0 0.0
  %6322 = vmatprep.subr.mxu0 0.0
  %6323 = vmatpush2.msra.mxu0 0.0
  %6324 = vmatprep.subr.mxu0 0.0
  %6325 = vmatpush2.msra.mxu0 0.0
  %6326 = vmatprep.subr.mxu0 0.0
  %6327 = vmatpush2.msra.mxu0 0.0
  %6328 = vmatprep.subr.mxu0 0.0
  %6329 = vmatpush2.msra.mxu0 0.0
  %6330 = vmatprep.subr.mxu0 0.0
  %6331 = vmatpush2.msra.mxu0 0.0
  %6332 = vmatprep.subr.mxu0 0.0
  %6333 = vmatpush2.msra.mxu0 0.0
  %6334 = vmatprep.subr.mxu0 0.0
  %6335 = vmatpush2.msra.mxu0 0.0
  %6336 = vmatprep.subr.mxu0 0.0
  %6337 = vmatpush2.msra.mxu0 0.0
  %6338 = vmatprep.subr.mxu0 0.0
  %6339 = vmatpush2.msra.mxu0 0.0
  %6340 = vmatprep.subr.mxu0 0.0
  %6341 = vmatpush2.msra.mxu0 0.0
  %6342 = vmatprep.subr.mxu0 0.0
  %6343 = vmatpush2.msra.mxu0 0.0
  %6344 = vmatprep.mubr.f32.mxu0 0.0
  %6345 = vmatmul.mubr.f32.gmra.mxu0 %v6278
  %v6346 = vpop.f32.mrf.mxu0
  %v6347 = vadd.f32 0.0, %v6346
  %v6348 = vpop.f32.mrf.mxu0
  %6349 = vdwg.mxu0
  %v6350 = vadd.f32 %v6274, %v6347
  %v6351 = vxor.u32 %v6350, 2147483648
  %v6352 = vmul.f32 %v6351, 1.442695
  %v6353 = vpow.pop %v6352
  %v6354 = vadd.f32 %v6353, 1.0
  %v6355 = vrcp.pop %v6354
  %v6356 = vmul.f32 1.0, %v6355
  %6357 = vmatprep.subr.mxu0 0.0
  %6358 = vmatpush1.msra.mxu0 0.0
  %6359 = vmatprep.subr.mxu0 0.0
  %6360 = vmatpush1.msra.mxu0 0.0
  %6361 = vmatprep.subr.mxu0 0.0
  %6362 = vmatpush1.msra.mxu0 0.0
  %6363 = vmatprep.subr.mxu0 0.0
  %6364 = vmatpush1.msra.mxu0 0.0
  %6365 = vmatprep.subr.mxu0 0.0
  %6366 = vmatpush1.msra.mxu0 0.0
  %6367 = vmatprep.subr.mxu0 0.0
  %6368 = vmatpush1.msra.mxu0 0.0
  %6369 = vmatprep.subr.mxu0 0.0
  %6370 = vmatpush1.msra.mxu0 0.0
  %6371 = vmatprep.subr.mxu0 0.0
  %6372 = vmatpush1.msra.mxu0 0.0
  %6373 = vmatprep.subr.mxu0 0.0
  %6374 = vmatpush1.msra.mxu0 0.0
  %6375 = vmatprep.subr.mxu0 0.0
  %6376 = vmatpush1.msra.mxu0 0.0
  %6377 = vmatprep.subr.mxu0 0.0
  %6378 = vmatpush1.msra.mxu0 0.0
  %6379 = vmatprep.subr.mxu0 0.0
  %6380 = vmatpush1.msra.mxu0 0.0
  %6381 = vmatprep.subr.mxu0 0.0
  %6382 = vmatpush1.msra.mxu0 %v2599
  %6383 = vmatprep.subr.mxu0 0.0
  %6384 = vmatpush1.msra.mxu0 %v2598
  %6385 = vmatprep.subr.mxu0 0.0
  %6386 = vmatpush1.msra.mxu0 %v2597
  %6387 = vmatprep.subr.mxu0 0.0
  %6388 = vmatpush1.msra.mxu0 %v2596
  %6389 = vmatprep.subr.mxu0 0.0
  %6390 = vmatpush2.msra.mxu0 0.0
  %6391 = vmatprep.subr.mxu0 0.0
  %6392 = vmatpush2.msra.mxu0 0.0
  %6393 = vmatprep.subr.mxu0 0.0
  %6394 = vmatpush2.msra.mxu0 0.0
  %6395 = vmatprep.subr.mxu0 0.0
  %6396 = vmatpush2.msra.mxu0 0.0
  %6397 = vmatprep.subr.mxu0 0.0
  %6398 = vmatpush2.msra.mxu0 0.0
  %6399 = vmatprep.subr.mxu0 0.0
  %6400 = vmatpush2.msra.mxu0 0.0
  %6401 = vmatprep.subr.mxu0 0.0
  %6402 = vmatpush2.msra.mxu0 0.0
  %6403 = vmatprep.subr.mxu0 0.0
  %6404 = vmatpush2.msra.mxu0 0.0
  %6405 = vmatprep.subr.mxu0 0.0
  %6406 = vmatpush2.msra.mxu0 0.0
  %6407 = vmatprep.subr.mxu0 0.0
  %6408 = vmatpush2.msra.mxu0 0.0
  %6409 = vmatprep.subr.mxu0 0.0
  %6410 = vmatpush2.msra.mxu0 0.0
  %6411 = vmatprep.subr.mxu0 0.0
  %6412 = vmatpush2.msra.mxu0 0.0
  %6413 = vmatprep.subr.mxu0 0.0
  %6414 = vmatpush2.msra.mxu0 0.0
  %6415 = vmatprep.subr.mxu0 0.0
  %6416 = vmatpush2.msra.mxu0 0.0
  %6417 = vmatprep.subr.mxu0 0.0
  %6418 = vmatpush2.msra.mxu0 0.0
  %6419 = vmatprep.subr.mxu0 0.0
  %6420 = vmatpush2.msra.mxu0 0.0
  %6421 = vmatprep.mubr.f32.mxu0 0.0
  %6422 = vmatmul.mubr.f32.gmra.mxu0 %v2275
  %v6423 = vpop.f32.mrf.mxu0
  %v6424 = vadd.f32 %v2788, %v6423
  %v6425 = vpop.f32.mrf.mxu0
  %6426 = vdwg.mxu0
  %6427 = vmatprep.subr.mxu0 0.0
  %6428 = vmatpush1.msra.mxu0 0.0
  %6429 = vmatprep.subr.mxu0 0.0
  %6430 = vmatpush1.msra.mxu0 0.0
  %6431 = vmatprep.subr.mxu0 0.0
  %6432 = vmatpush1.msra.mxu0 0.0
  %6433 = vmatprep.subr.mxu0 0.0
  %6434 = vmatpush1.msra.mxu0 0.0
  %6435 = vmatprep.subr.mxu0 0.0
  %6436 = vmatpush1.msra.mxu0 0.0
  %6437 = vmatprep.subr.mxu0 0.0
  %6438 = vmatpush1.msra.mxu0 0.0
  %6439 = vmatprep.subr.mxu0 0.0
  %6440 = vmatpush1.msra.mxu0 0.0
  %6441 = vmatprep.subr.mxu0 0.0
  %6442 = vmatpush1.msra.mxu0 0.0
  %6443 = vmatprep.subr.mxu0 0.0
  %6444 = vmatpush1.msra.mxu0 0.0
  %6445 = vmatprep.subr.mxu0 0.0
  %6446 = vmatpush1.msra.mxu0 0.0
  %6447 = vmatprep.subr.mxu0 0.0
  %6448 = vmatpush1.msra.mxu0 0.0
  %6449 = vmatprep.subr.mxu0 0.0
  %6450 = vmatpush1.msra.mxu0 0.0
  %6451 = vmatprep.subr.mxu0 0.0
  %6452 = vmatpush1.msra.mxu0 0.0
  %6453 = vmatprep.subr.mxu0 0.0
  %6454 = vmatpush1.msra.mxu0 0.0
  %6455 = vmatprep.subr.mxu0 0.0
  %6456 = vmatpush1.msra.mxu0 0.0
  %6457 = vmatprep.subr.mxu0 0.0
  %6458 = vmatpush1.msra.mxu0 %v2861
  %6459 = vmatprep.subr.mxu0 0.0
  %6460 = vmatpush2.msra.mxu0 0.0
  %6461 = vmatprep.subr.mxu0 0.0
  %6462 = vmatpush2.msra.mxu0 0.0
  %6463 = vmatprep.subr.mxu0 0.0
  %6464 = vmatpush2.msra.mxu0 0.0
  %6465 = vmatprep.subr.mxu0 0.0
  %6466 = vmatpush2.msra.mxu0 0.0
  %6467 = vmatprep.subr.mxu0 0.0
  %6468 = vmatpush2.msra.mxu0 0.0
  %6469 = vmatprep.subr.mxu0 0.0
  %6470 = vmatpush2.msra.mxu0 0.0
  %6471 = vmatprep.subr.mxu0 0.0
  %6472 = vmatpush2.msra.mxu0 0.0
  %6473 = vmatprep.subr.mxu0 0.0
  %6474 = vmatpush2.msra.mxu0 0.0
  %6475 = vmatprep.subr.mxu0 0.0
  %6476 = vmatpush2.msra.mxu0 0.0
  %6477 = vmatprep.subr.mxu0 0.0
  %6478 = vmatpush2.msra.mxu0 0.0
  %6479 = vmatprep.subr.mxu0 0.0
  %6480 = vmatpush2.msra.mxu0 0.0
  %6481 = vmatprep.subr.mxu0 0.0
  %6482 = vmatpush2.msra.mxu0 0.0
  %6483 = vmatprep.subr.mxu0 0.0
  %6484 = vmatpush2.msra.mxu0 0.0
  %6485 = vmatprep.subr.mxu0 0.0
  %6486 = vmatpush2.msra.mxu0 0.0
  %6487 = vmatprep.subr.mxu0 0.0
  %6488 = vmatpush2.msra.mxu0 0.0
  %6489 = vmatprep.subr.mxu0 0.0
  %6490 = vmatpush2.msra.mxu0 0.0
  %6491 = vmatprep.mubr.f32.mxu0 0.0
  %6492 = vmatmul.mubr.f32.gmra.mxu0 %v6278
  %v6493 = vpop.f32.mrf.mxu0
  %v6494 = vadd.f32 0.0, %v6493
  %v6495 = vpop.f32.mrf.mxu0
  %6496 = vdwg.mxu0
  %v6497 = vadd.f32 %v6424, %v6494
  %v6498 = vxor.u32 %v6497, 2147483648
  %v6499 = vmul.f32 %v6498, 1.442695
  %v6500 = vpow.pop %v6499
  %v6501 = vadd.f32 %v6500, 1.0
  %v6502 = vrcp.pop %v6501
  %v6503 = vmul.f32 1.0, %v6502
  %6504 = vmatprep.subr.mxu0 0.0
  %6505 = vmatpush1.msra.mxu0 0.0
  %6506 = vmatprep.subr.mxu0 0.0
  %6507 = vmatpush1.msra.mxu0 0.0
  %6508 = vmatprep.subr.mxu0 0.0
  %6509 = vmatpush1.msra.mxu0 0.0
  %6510 = vmatprep.subr.mxu0 0.0
  %6511 = vmatpush1.msra.mxu0 0.0
  %6512 = vmatprep.subr.mxu0 0.0
  %6513 = vmatpush1.msra.mxu0 0.0
  %6514 = vmatprep.subr.mxu0 0.0
  %6515 = vmatpush1.msra.mxu0 0.0
  %6516 = vmatprep.subr.mxu0 0.0
  %6517 = vmatpush1.msra.mxu0 0.0
  %6518 = vmatprep.subr.mxu0 0.0
  %6519 = vmatpush1.msra.mxu0 0.0
  %6520 = vmatprep.subr.mxu0 0.0
  %6521 = vmatpush1.msra.mxu0 0.0
  %6522 = vmatprep.subr.mxu0 0.0
  %6523 = vmatpush1.msra.mxu0 0.0
  %6524 = vmatprep.subr.mxu0 0.0
  %6525 = vmatpush1.msra.mxu0 0.0
  %6526 = vmatprep.subr.mxu0 0.0
  %6527 = vmatpush1.msra.mxu0 0.0
  %6528 = vmatprep.subr.mxu0 0.0
  %6529 = vmatpush1.msra.mxu0 %v2604
  %6530 = vmatprep.subr.mxu0 0.0
  %6531 = vmatpush1.msra.mxu0 %v2603
  %6532 = vmatprep.subr.mxu0 0.0
  %6533 = vmatpush1.msra.mxu0 %v2602
  %6534 = vmatprep.subr.mxu0 0.0
  %6535 = vmatpush1.msra.mxu0 %v2601
  %6536 = vmatprep.subr.mxu0 0.0
  %6537 = vmatpush2.msra.mxu0 0.0
  %6538 = vmatprep.subr.mxu0 0.0
  %6539 = vmatpush2.msra.mxu0 0.0
  %6540 = vmatprep.subr.mxu0 0.0
  %6541 = vmatpush2.msra.mxu0 0.0
  %6542 = vmatprep.subr.mxu0 0.0
  %6543 = vmatpush2.msra.mxu0 0.0
  %6544 = vmatprep.subr.mxu0 0.0
  %6545 = vmatpush2.msra.mxu0 0.0
  %6546 = vmatprep.subr.mxu0 0.0
  %6547 = vmatpush2.msra.mxu0 0.0
  %6548 = vmatprep.subr.mxu0 0.0
  %6549 = vmatpush2.msra.mxu0 0.0
  %6550 = vmatprep.subr.mxu0 0.0
  %6551 = vmatpush2.msra.mxu0 0.0
  %6552 = vmatprep.subr.mxu0 0.0
  %6553 = vmatpush2.msra.mxu0 0.0
  %6554 = vmatprep.subr.mxu0 0.0
  %6555 = vmatpush2.msra.mxu0 0.0
  %6556 = vmatprep.subr.mxu0 0.0
  %6557 = vmatpush2.msra.mxu0 0.0
  %6558 = vmatprep.subr.mxu0 0.0
  %6559 = vmatpush2.msra.mxu0 0.0
  %6560 = vmatprep.subr.mxu0 0.0
  %6561 = vmatpush2.msra.mxu0 0.0
  %6562 = vmatprep.subr.mxu0 0.0
  %6563 = vmatpush2.msra.mxu0 0.0
  %6564 = vmatprep.subr.mxu0 0.0
  %6565 = vmatpush2.msra.mxu0 0.0
  %6566 = vmatprep.subr.mxu0 0.0
  %6567 = vmatpush2.msra.mxu0 0.0
  %6568 = vmatprep.mubr.f32.mxu0 0.0
  %6569 = vmatmul.mubr.f32.gmra.mxu0 %v2275
  %v6570 = vpop.f32.mrf.mxu0
  %v6571 = vadd.f32 %v2944, %v6570
  %v6572 = vpop.f32.mrf.mxu0
  %6573 = vdwg.mxu0
  %6574 = vmatprep.subr.mxu0 0.0
  %6575 = vmatpush1.msra.mxu0 0.0
  %6576 = vmatprep.subr.mxu0 0.0
  %6577 = vmatpush1.msra.mxu0 0.0
  %6578 = vmatprep.subr.mxu0 0.0
  %6579 = vmatpush1.msra.mxu0 0.0
  %6580 = vmatprep.subr.mxu0 0.0
  %6581 = vmatpush1.msra.mxu0 0.0
  %6582 = vmatprep.subr.mxu0 0.0
  %6583 = vmatpush1.msra.mxu0 0.0
  %6584 = vmatprep.subr.mxu0 0.0
  %6585 = vmatpush1.msra.mxu0 0.0
  %6586 = vmatprep.subr.mxu0 0.0
  %6587 = vmatpush1.msra.mxu0 0.0
  %6588 = vmatprep.subr.mxu0 0.0
  %6589 = vmatpush1.msra.mxu0 0.0
  %6590 = vmatprep.subr.mxu0 0.0
  %6591 = vmatpush1.msra.mxu0 0.0
  %6592 = vmatprep.subr.mxu0 0.0
  %6593 = vmatpush1.msra.mxu0 0.0
  %6594 = vmatprep.subr.mxu0 0.0
  %6595 = vmatpush1.msra.mxu0 0.0
  %6596 = vmatprep.subr.mxu0 0.0
  %6597 = vmatpush1.msra.mxu0 0.0
  %6598 = vmatprep.subr.mxu0 0.0
  %6599 = vmatpush1.msra.mxu0 0.0
  %6600 = vmatprep.subr.mxu0 0.0
  %6601 = vmatpush1.msra.mxu0 0.0
  %6602 = vmatprep.subr.mxu0 0.0
  %6603 = vmatpush1.msra.mxu0 0.0
  %6604 = vmatprep.subr.mxu0 0.0
  %6605 = vmatpush1.msra.mxu0 %v3017
  %6606 = vmatprep.subr.mxu0 0.0
  %6607 = vmatpush2.msra.mxu0 0.0
  %6608 = vmatprep.subr.mxu0 0.0
  %6609 = vmatpush2.msra.mxu0 0.0
  %6610 = vmatprep.subr.mxu0 0.0
  %6611 = vmatpush2.msra.mxu0 0.0
  %6612 = vmatprep.subr.mxu0 0.0
  %6613 = vmatpush2.msra.mxu0 0.0
  %6614 = vmatprep.subr.mxu0 0.0
  %6615 = vmatpush2.msra.mxu0 0.0
  %6616 = vmatprep.subr.mxu0 0.0
  %6617 = vmatpush2.msra.mxu0 0.0
  %6618 = vmatprep.subr.mxu0 0.0
  %6619 = vmatpush2.msra.mxu0 0.0
  %6620 = vmatprep.subr.mxu0 0.0
  %6621 = vmatpush2.msra.mxu0 0.0
  %6622 = vmatprep.subr.mxu0 0.0
  %6623 = vmatpush2.msra.mxu0 0.0
  %6624 = vmatprep.subr.mxu0 0.0
  %6625 = vmatpush2.msra.mxu0 0.0
  %6626 = vmatprep.subr.mxu0 0.0
  %6627 = vmatpush2.msra.mxu0 0.0
  %6628 = vmatprep.subr.mxu0 0.0
  %6629 = vmatpush2.msra.mxu0 0.0
  %6630 = vmatprep.subr.mxu0 0.0
  %6631 = vmatpush2.msra.mxu0 0.0
  %6632 = vmatprep.subr.mxu0 0.0
  %6633 = vmatpush2.msra.mxu0 0.0
  %6634 = vmatprep.subr.mxu0 0.0
  %6635 = vmatpush2.msra.mxu0 0.0
  %6636 = vmatprep.subr.mxu0 0.0
  %6637 = vmatpush2.msra.mxu0 0.0
  %6638 = vmatprep.mubr.f32.mxu0 0.0
  %6639 = vmatmul.mubr.f32.gmra.mxu0 %v6278
  %v6640 = vpop.f32.mrf.mxu0
  %v6641 = vadd.f32 0.0, %v6640
  %v6642 = vpop.f32.mrf.mxu0
  %6643 = vdwg.mxu0
  %v6644 = vadd.f32 %v6571, %v6641
  %v6645 = vtanh.pop %v6644
  %6646 = vmatprep.subr.mxu0 0.0
  %6647 = vmatpush1.msra.mxu0 0.0
  %6648 = vmatprep.subr.mxu0 0.0
  %6649 = vmatpush1.msra.mxu0 0.0
  %6650 = vmatprep.subr.mxu0 0.0
  %6651 = vmatpush1.msra.mxu0 0.0
  %6652 = vmatprep.subr.mxu0 0.0
  %6653 = vmatpush1.msra.mxu0 0.0
  %6654 = vmatprep.subr.mxu0 0.0
  %6655 = vmatpush1.msra.mxu0 0.0
  %6656 = vmatprep.subr.mxu0 0.0
  %6657 = vmatpush1.msra.mxu0 0.0
  %6658 = vmatprep.subr.mxu0 0.0
  %6659 = vmatpush1.msra.mxu0 0.0
  %6660 = vmatprep.subr.mxu0 0.0
  %6661 = vmatpush1.msra.mxu0 0.0
  %6662 = vmatprep.subr.mxu0 0.0
  %6663 = vmatpush1.msra.mxu0 0.0
  %6664 = vmatprep.subr.mxu0 0.0
  %6665 = vmatpush1.msra.mxu0 0.0
  %6666 = vmatprep.subr.mxu0 0.0
  %6667 = vmatpush1.msra.mxu0 0.0
  %6668 = vmatprep.subr.mxu0 0.0
  %6669 = vmatpush1.msra.mxu0 0.0
  %6670 = vmatprep.subr.mxu0 0.0
  %6671 = vmatpush1.msra.mxu0 %v2609
  %6672 = vmatprep.subr.mxu0 0.0
  %6673 = vmatpush1.msra.mxu0 %v2608
  %6674 = vmatprep.subr.mxu0 0.0
  %6675 = vmatpush1.msra.mxu0 %v2607
  %6676 = vmatprep.subr.mxu0 0.0
  %6677 = vmatpush1.msra.mxu0 %v2606
  %6678 = vmatprep.subr.mxu0 0.0
  %6679 = vmatpush2.msra.mxu0 0.0
  %6680 = vmatprep.subr.mxu0 0.0
  %6681 = vmatpush2.msra.mxu0 0.0
  %6682 = vmatprep.subr.mxu0 0.0
  %6683 = vmatpush2.msra.mxu0 0.0
  %6684 = vmatprep.subr.mxu0 0.0
  %6685 = vmatpush2.msra.mxu0 0.0
  %6686 = vmatprep.subr.mxu0 0.0
  %6687 = vmatpush2.msra.mxu0 0.0
  %6688 = vmatprep.subr.mxu0 0.0
  %6689 = vmatpush2.msra.mxu0 0.0
  %6690 = vmatprep.subr.mxu0 0.0
  %6691 = vmatpush2.msra.mxu0 0.0
  %6692 = vmatprep.subr.mxu0 0.0
  %6693 = vmatpush2.msra.mxu0 0.0
  %6694 = vmatprep.subr.mxu0 0.0
  %6695 = vmatpush2.msra.mxu0 0.0
  %6696 = vmatprep.subr.mxu0 0.0
  %6697 = vmatpush2.msra.mxu0 0.0
  %6698 = vmatprep.subr.mxu0 0.0
  %6699 = vmatpush2.msra.mxu0 0.0
  %6700 = vmatprep.subr.mxu0 0.0
  %6701 = vmatpush2.msra.mxu0 0.0
  %6702 = vmatprep.subr.mxu0 0.0
  %6703 = vmatpush2.msra.mxu0 0.0
  %6704 = vmatprep.subr.mxu0 0.0
  %6705 = vmatpush2.msra.mxu0 0.0
  %6706 = vmatprep.subr.mxu0 0.0
  %6707 = vmatpush2.msra.mxu0 0.0
  %6708 = vmatprep.subr.mxu0 0.0
  %6709 = vmatpush2.msra.mxu0 0.0
  %6710 = vmatprep.mubr.f32.mxu0 0.0
  %6711 = vmatmul.mubr.f32.gmra.mxu0 %v2275
  %v6712 = vpop.f32.mrf.mxu0
  %v6713 = vadd.f32 %v3095, %v6712
  %v6714 = vpop.f32.mrf.mxu0
  %6715 = vdwg.mxu0
  %6716 = vmatprep.subr.mxu0 0.0
  %6717 = vmatpush1.msra.mxu0 0.0
  %6718 = vmatprep.subr.mxu0 0.0
  %6719 = vmatpush1.msra.mxu0 0.0
  %6720 = vmatprep.subr.mxu0 0.0
  %6721 = vmatpush1.msra.mxu0 0.0
  %6722 = vmatprep.subr.mxu0 0.0
  %6723 = vmatpush1.msra.mxu0 0.0
  %6724 = vmatprep.subr.mxu0 0.0
  %6725 = vmatpush1.msra.mxu0 0.0
  %6726 = vmatprep.subr.mxu0 0.0
  %6727 = vmatpush1.msra.mxu0 0.0
  %6728 = vmatprep.subr.mxu0 0.0
  %6729 = vmatpush1.msra.mxu0 0.0
  %6730 = vmatprep.subr.mxu0 0.0
  %6731 = vmatpush1.msra.mxu0 0.0
  %6732 = vmatprep.subr.mxu0 0.0
  %6733 = vmatpush1.msra.mxu0 0.0
  %6734 = vmatprep.subr.mxu0 0.0
  %6735 = vmatpush1.msra.mxu0 0.0
  %6736 = vmatprep.subr.mxu0 0.0
  %6737 = vmatpush1.msra.mxu0 0.0
  %6738 = vmatprep.subr.mxu0 0.0
  %6739 = vmatpush1.msra.mxu0 0.0
  %6740 = vmatprep.subr.mxu0 0.0
  %6741 = vmatpush1.msra.mxu0 0.0
  %6742 = vmatprep.subr.mxu0 0.0
  %6743 = vmatpush1.msra.mxu0 0.0
  %6744 = vmatprep.subr.mxu0 0.0
  %6745 = vmatpush1.msra.mxu0 0.0
  %6746 = vmatprep.subr.mxu0 0.0
  %6747 = vmatpush1.msra.mxu0 %v3168
  %6748 = vmatprep.subr.mxu0 0.0
  %6749 = vmatpush2.msra.mxu0 0.0
  %6750 = vmatprep.subr.mxu0 0.0
  %6751 = vmatpush2.msra.mxu0 0.0
  %6752 = vmatprep.subr.mxu0 0.0
  %6753 = vmatpush2.msra.mxu0 0.0
  %6754 = vmatprep.subr.mxu0 0.0
  %6755 = vmatpush2.msra.mxu0 0.0
  %6756 = vmatprep.subr.mxu0 0.0
  %6757 = vmatpush2.msra.mxu0 0.0
  %6758 = vmatprep.subr.mxu0 0.0
  %6759 = vmatpush2.msra.mxu0 0.0
  %6760 = vmatprep.subr.mxu0 0.0
  %6761 = vmatpush2.msra.mxu0 0.0
  %6762 = vmatprep.subr.mxu0 0.0
  %6763 = vmatpush2.msra.mxu0 0.0
  %6764 = vmatprep.subr.mxu0 0.0
  %6765 = vmatpush2.msra.mxu0 0.0
  %6766 = vmatprep.subr.mxu0 0.0
  %6767 = vmatpush2.msra.mxu0 0.0
  %6768 = vmatprep.subr.mxu0 0.0
  %6769 = vmatpush2.msra.mxu0 0.0
  %6770 = vmatprep.subr.mxu0 0.0
  %6771 = vmatpush2.msra.mxu0 0.0
  %6772 = vmatprep.subr.mxu0 0.0
  %6773 = vmatpush2.msra.mxu0 0.0
  %6774 = vmatprep.subr.mxu0 0.0
  %6775 = vmatpush2.msra.mxu0 0.0
  %6776 = vmatprep.subr.mxu0 0.0
  %6777 = vmatpush2.msra.mxu0 0.0
  %6778 = vmatprep.subr.mxu0 0.0
  %6779 = vmatpush2.msra.mxu0 0.0
  %6780 = vmatprep.mubr.f32.mxu0 0.0
  %6781 = vmatmul.mubr.f32.gmra.mxu0 %v6278
  %v6782 = vpop.f32.mrf.mxu0
  %v6783 = vadd.f32 0.0, %v6782
  %v6784 = vpop.f32.mrf.mxu0
  %6785 = vdwg.mxu0
  %v6786 = vadd.f32 %v6713, %v6783
  %v6787 = vxor.u32 %v6786, 2147483648
  %v6788 = vmul.f32 %v6787, 1.442695
  %v6789 = vpow.pop %v6788
  %v6790 = vadd.f32 %v6789, 1.0
  %v6791 = vrcp.pop %v6790
  %v6792 = vmul.f32 1.0, %v6791
  %v6793 = vmul.f32 %v6503, %v6204
  %v6794 = vmul.f32 %v6356, %v6645
  %v6795 = vadd.f32 %v6793, %v6794
  %v6796 = vtanh.pop %v6795
  %v6797 = vmul.f32 %v6792, %v6796
  %v6799 = vsel %vm40, %v2590, 0
  %6801 = vmatprep.subr.mxu0 0.0
  %6802 = vmatpush1.msra.mxu0 0.0
  %6803 = vmatprep.subr.mxu0 0.0
  %6804 = vmatpush1.msra.mxu0 0.0
  %6805 = vmatprep.subr.mxu0 0.0
  %6806 = vmatpush1.msra.mxu0 0.0
  %6807 = vmatprep.subr.mxu0 0.0
  %6808 = vmatpush1.msra.mxu0 0.0
  %6809 = vmatprep.subr.mxu0 0.0
  %6810 = vmatpush1.msra.mxu0 0.0
  %6811 = vmatprep.subr.mxu0 0.0
  %6812 = vmatpush1.msra.mxu0 0.0
  %6813 = vmatprep.subr.mxu0 0.0
  %6814 = vmatpush1.msra.mxu0 0.0
  %6815 = vmatprep.subr.mxu0 0.0
  %6816 = vmatpush1.msra.mxu0 0.0
  %6817 = vmatprep.subr.mxu0 0.0
  %6818 = vmatpush1.msra.mxu0 0.0
  %6819 = vmatprep.subr.mxu0 0.0
  %6820 = vmatpush1.msra.mxu0 0.0
  %6821 = vmatprep.subr.mxu0 0.0
  %6822 = vmatpush1.msra.mxu0 0.0
  %6823 = vmatprep.subr.mxu0 0.0
  %6824 = vmatpush1.msra.mxu0 0.0
  %6825 = vmatprep.subr.mxu0 0.0
  %6826 = vmatpush1.msra.mxu0 %v2594
  %6827 = vmatprep.subr.mxu0 0.0
  %6828 = vmatpush1.msra.mxu0 %v2593
  %6829 = vmatprep.subr.mxu0 0.0
  %6830 = vmatpush1.msra.mxu0 %v2592
  %6831 = vmatprep.subr.mxu0 0.0
  %6832 = vmatpush1.msra.mxu0 %v2591
  %6833 = vmatprep.subr.mxu0 0.0
  %6834 = vmatpush2.msra.mxu0 0.0
  %6835 = vmatprep.subr.mxu0 0.0
  %6836 = vmatpush2.msra.mxu0 0.0
  %6837 = vmatprep.subr.mxu0 0.0
  %6838 = vmatpush2.msra.mxu0 0.0
  %6839 = vmatprep.subr.mxu0 0.0
  %6840 = vmatpush2.msra.mxu0 0.0
  %6841 = vmatprep.subr.mxu0 0.0
  %6842 = vmatpush2.msra.mxu0 0.0
  %6843 = vmatprep.subr.mxu0 0.0
  %6844 = vmatpush2.msra.mxu0 0.0
  %6845 = vmatprep.subr.mxu0 0.0
  %6846 = vmatpush2.msra.mxu0 0.0
  %6847 = vmatprep.subr.mxu0 0.0
  %6848 = vmatpush2.msra.mxu0 0.0
  %6849 = vmatprep.subr.mxu0 0.0
  %6850 = vmatpush2.msra.mxu0 0.0
  %6851 = vmatprep.subr.mxu0 0.0
  %6852 = vmatpush2.msra.mxu0 0.0
  %6853 = vmatprep.subr.mxu0 0.0
  %6854 = vmatpush2.msra.mxu0 0.0
  %6855 = vmatprep.subr.mxu0 0.0
  %6856 = vmatpush2.msra.mxu0 0.0
  %6857 = vmatprep.subr.mxu0 0.0
  %6858 = vmatpush2.msra.mxu0 0.0
  %6859 = vmatprep.subr.mxu0 0.0
  %6860 = vmatpush2.msra.mxu0 0.0
  %6861 = vmatprep.subr.mxu0 0.0
  %6862 = vmatpush2.msra.mxu0 0.0
  %6863 = vmatprep.subr.mxu0 0.0
  %6864 = vmatpush2.msra.mxu0 0.0
  %6865 = vmatprep.mubr.f32.mxu0 0.0
  %6866 = vmatmul.mubr.f32.gmra.mxu0 %v6799
  %v6867 = vpop.f32.mrf.mxu0
  %v6868 = vadd.f32 %v2628, %v6867
  %v6869 = vpop.f32.mrf.mxu0
  %6870 = vdwg.mxu0
  %v6872 = vsel %vm2700, %v6797, 0
  %6874 = vmatprep.subr.mxu0 0.0
  %6875 = vmatpush1.msra.mxu0 0.0
  %6876 = vmatprep.subr.mxu0 0.0
  %6877 = vmatpush1.msra.mxu0 0.0
  %6878 = vmatprep.subr.mxu0 0.0
  %6879 = vmatpush1.msra.mxu0 0.0
  %6880 = vmatprep.subr.mxu0 0.0
  %6881 = vmatpush1.msra.mxu0 0.0
  %6882 = vmatprep.subr.mxu0 0.0
  %6883 = vmatpush1.msra.mxu0 0.0
  %6884 = vmatprep.subr.mxu0 0.0
  %6885 = vmatpush1.msra.mxu0 0.0
  %6886 = vmatprep.subr.mxu0 0.0
  %6887 = vmatpush1.msra.mxu0 0.0
  %6888 = vmatprep.subr.mxu0 0.0
  %6889 = vmatpush1.msra.mxu0 0.0
  %6890 = vmatprep.subr.mxu0 0.0
  %6891 = vmatpush1.msra.mxu0 0.0
  %6892 = vmatprep.subr.mxu0 0.0
  %6893 = vmatpush1.msra.mxu0 0.0
  %6894 = vmatprep.subr.mxu0 0.0
  %6895 = vmatpush1.msra.mxu0 0.0
  %6896 = vmatprep.subr.mxu0 0.0
  %6897 = vmatpush1.msra.mxu0 0.0
  %6898 = vmatprep.subr.mxu0 0.0
  %6899 = vmatpush1.msra.mxu0 0.0
  %6900 = vmatprep.subr.mxu0 0.0
  %6901 = vmatpush1.msra.mxu0 0.0
  %6902 = vmatprep.subr.mxu0 0.0
  %6903 = vmatpush1.msra.mxu0 0.0
  %6904 = vmatprep.subr.mxu0 0.0
  %6905 = vmatpush1.msra.mxu0 %v2705
  %6906 = vmatprep.subr.mxu0 0.0
  %6907 = vmatpush2.msra.mxu0 0.0
  %6908 = vmatprep.subr.mxu0 0.0
  %6909 = vmatpush2.msra.mxu0 0.0
  %6910 = vmatprep.subr.mxu0 0.0
  %6911 = vmatpush2.msra.mxu0 0.0
  %6912 = vmatprep.subr.mxu0 0.0
  %6913 = vmatpush2.msra.mxu0 0.0
  %6914 = vmatprep.subr.mxu0 0.0
  %6915 = vmatpush2.msra.mxu0 0.0
  %6916 = vmatprep.subr.mxu0 0.0
  %6917 = vmatpush2.msra.mxu0 0.0
  %6918 = vmatprep.subr.mxu0 0.0
  %6919 = vmatpush2.msra.mxu0 0.0
  %6920 = vmatprep.subr.mxu0 0.0
  %6921 = vmatpush2.msra.mxu0 0.0
  %6922 = vmatprep.subr.mxu0 0.0
  %6923 = vmatpush2.msra.mxu0 0.0
  %6924 = vmatprep.subr.mxu0 0.0
  %6925 = vmatpush2.msra.mxu0 0.0
  %6926 = vmatprep.subr.mxu0 0.0
  %6927 = vmatpush2.msra.mxu0 0.0
  %6928 = vmatprep.subr.mxu0 0.0
  %6929 = vmatpush2.msra.mxu0 0.0
  %6930 = vmatprep.subr.mxu0 0.0
  %6931 = vmatpush2.msra.mxu0 0.0
  %6932 = vmatprep.subr.mxu0 0.0
  %6933 = vmatpush2.msra.mxu0 0.0
  %6934 = vmatprep.subr.mxu0 0.0
  %6935 = vmatpush2.msra.mxu0 0.0
  %6936 = vmatprep.subr.mxu0 0.0
  %6937 = vmatpush2.msra.mxu0 0.0
  %6938 = vmatprep.mubr.f32.mxu0 0.0
  %6939 = vmatmul.mubr.f32.gmra.mxu0 %v6872
  %v6940 = vpop.f32.mrf.mxu0
  %v6941 = vadd.f32 0.0, %v6940
  %v6942 = vpop.f32.mrf.mxu0
  %6943 = vdwg.mxu0
  %v6944 = vadd.f32 %v6868, %v6941
  %v6945 = vxor.u32 %v6944, 2147483648
  %v6946 = vmul.f32 %v6945, 1.442695
  %v6947 = vpow.pop %v6946
  %v6948 = vadd.f32 %v6947, 1.0
  %v6949 = vrcp.pop %v6948
  %v6950 = vmul.f32 1.0, %v6949
  %6951 = vmatprep.subr.mxu0 0.0
  %6952 = vmatpush1.msra.mxu0 0.0
  %6953 = vmatprep.subr.mxu0 0.0
  %6954 = vmatpush1.msra.mxu0 0.0
  %6955 = vmatprep.subr.mxu0 0.0
  %6956 = vmatpush1.msra.mxu0 0.0
  %6957 = vmatprep.subr.mxu0 0.0
  %6958 = vmatpush1.msra.mxu0 0.0
  %6959 = vmatprep.subr.mxu0 0.0
  %6960 = vmatpush1.msra.mxu0 0.0
  %6961 = vmatprep.subr.mxu0 0.0
  %6962 = vmatpush1.msra.mxu0 0.0
  %6963 = vmatprep.subr.mxu0 0.0
  %6964 = vmatpush1.msra.mxu0 0.0
  %6965 = vmatprep.subr.mxu0 0.0
  %6966 = vmatpush1.msra.mxu0 0.0
  %6967 = vmatprep.subr.mxu0 0.0
  %6968 = vmatpush1.msra.mxu0 0.0
  %6969 = vmatprep.subr.mxu0 0.0
  %6970 = vmatpush1.msra.mxu0 0.0
  %6971 = vmatprep.subr.mxu0 0.0
  %6972 = vmatpush1.msra.mxu0 0.0
  %6973 = vmatprep.subr.mxu0 0.0
  %6974 = vmatpush1.msra.mxu0 0.0
  %6975 = vmatprep.subr.mxu0 0.0
  %6976 = vmatpush1.msra.mxu0 %v2599
  %6977 = vmatprep.subr.mxu0 0.0
  %6978 = vmatpush1.msra.mxu0 %v2598
  %6979 = vmatprep.subr.mxu0 0.0
  %6980 = vmatpush1.msra.mxu0 %v2597
  %6981 = vmatprep.subr.mxu0 0.0
  %6982 = vmatpush1.msra.mxu0 %v2596
  %6983 = vmatprep.subr.mxu0 0.0
  %6984 = vmatpush2.msra.mxu0 0.0
  %6985 = vmatprep.subr.mxu0 0.0
  %6986 = vmatpush2.msra.mxu0 0.0
  %6987 = vmatprep.subr.mxu0 0.0
  %6988 = vmatpush2.msra.mxu0 0.0
  %6989 = vmatprep.subr.mxu0 0.0
  %6990 = vmatpush2.msra.mxu0 0.0
  %6991 = vmatprep.subr.mxu0 0.0
  %6992 = vmatpush2.msra.mxu0 0.0
  %6993 = vmatprep.subr.mxu0 0.0
  %6994 = vmatpush2.msra.mxu0 0.0
  %6995 = vmatprep.subr.mxu0 0.0
  %6996 = vmatpush2.msra.mxu0 0.0
  %6997 = vmatprep.subr.mxu0 0.0
  %6998 = vmatpush2.msra.mxu0 0.0
  %6999 = vmatprep.subr.mxu0 0.0
  %7000 = vmatpush2.msra.mxu0 0.0
  %7001 = vmatprep.subr.mxu0 0.0
  %7002 = vmatpush2.msra.mxu0 0.0
  %7003 = vmatprep.subr.mxu0 0.0
  %7004 = vmatpush2.msra.mxu0 0.0
  %7005 = vmatprep.subr.mxu0 0.0
  %7006 = vmatpush2.msra.mxu0 0.0
  %7007 = vmatprep.subr.mxu0 0.0
  %7008 = vmatpush2.msra.mxu0 0.0
  %7009 = vmatprep.subr.mxu0 0.0
  %7010 = vmatpush2.msra.mxu0 0.0
  %7011 = vmatprep.subr.mxu0 0.0
  %7012 = vmatpush2.msra.mxu0 0.0
  %7013 = vmatprep.subr.mxu0 0.0
  %7014 = vmatpush2.msra.mxu0 0.0
  %7015 = vmatprep.mubr.f32.mxu0 0.0
  %7016 = vmatmul.mubr.f32.gmra.mxu0 %v6799
  %v7017 = vpop.f32.mrf.mxu0
  %v7018 = vadd.f32 %v2788, %v7017
  %v7019 = vpop.f32.mrf.mxu0
  %7020 = vdwg.mxu0
  %7021 = vmatprep.subr.mxu0 0.0
  %7022 = vmatpush1.msra.mxu0 0.0
  %7023 = vmatprep.subr.mxu0 0.0
  %7024 = vmatpush1.msra.mxu0 0.0
  %7025 = vmatprep.subr.mxu0 0.0
  %7026 = vmatpush1.msra.mxu0 0.0
  %7027 = vmatprep.subr.mxu0 0.0
  %7028 = vmatpush1.msra.mxu0 0.0
  %7029 = vmatprep.subr.mxu0 0.0
  %7030 = vmatpush1.msra.mxu0 0.0
  %7031 = vmatprep.subr.mxu0 0.0
  %7032 = vmatpush1.msra.mxu0 0.0
  %7033 = vmatprep.subr.mxu0 0.0
  %7034 = vmatpush1.msra.mxu0 0.0
  %7035 = vmatprep.subr.mxu0 0.0
  %7036 = vmatpush1.msra.mxu0 0.0
  %7037 = vmatprep.subr.mxu0 0.0
  %7038 = vmatpush1.msra.mxu0 0.0
  %7039 = vmatprep.subr.mxu0 0.0
  %7040 = vmatpush1.msra.mxu0 0.0
  %7041 = vmatprep.subr.mxu0 0.0
  %7042 = vmatpush1.msra.mxu0 0.0
  %7043 = vmatprep.subr.mxu0 0.0
  %7044 = vmatpush1.msra.mxu0 0.0
  %7045 = vmatprep.subr.mxu0 0.0
  %7046 = vmatpush1.msra.mxu0 0.0
  %7047 = vmatprep.subr.mxu0 0.0
  %7048 = vmatpush1.msra.mxu0 0.0
  %7049 = vmatprep.subr.mxu0 0.0
  %7050 = vmatpush1.msra.mxu0 0.0
  %7051 = vmatprep.subr.mxu0 0.0
  %7052 = vmatpush1.msra.mxu0 %v2861
  %7053 = vmatprep.subr.mxu0 0.0
  %7054 = vmatpush2.msra.mxu0 0.0
  %7055 = vmatprep.subr.mxu0 0.0
  %7056 = vmatpush2.msra.mxu0 0.0
  %7057 = vmatprep.subr.mxu0 0.0
  %7058 = vmatpush2.msra.mxu0 0.0
  %7059 = vmatprep.subr.mxu0 0.0
  %7060 = vmatpush2.msra.mxu0 0.0
  %7061 = vmatprep.subr.mxu0 0.0
  %7062 = vmatpush2.msra.mxu0 0.0
  %7063 = vmatprep.subr.mxu0 0.0
  %7064 = vmatpush2.msra.mxu0 0.0
  %7065 = vmatprep.subr.mxu0 0.0
  %7066 = vmatpush2.msra.mxu0 0.0
  %7067 = vmatprep.subr.mxu0 0.0
  %7068 = vmatpush2.msra.mxu0 0.0
  %7069 = vmatprep.subr.mxu0 0.0
  %7070 = vmatpush2.msra.mxu0 0.0
  %7071 = vmatprep.subr.mxu0 0.0
  %7072 = vmatpush2.msra.mxu0 0.0
  %7073 = vmatprep.subr.mxu0 0.0
  %7074 = vmatpush2.msra.mxu0 0.0
  %7075 = vmatprep.subr.mxu0 0.0
  %7076 = vmatpush2.msra.mxu0 0.0
  %7077 = vmatprep.subr.mxu0 0.0
  %7078 = vmatpush2.msra.mxu0 0.0
  %7079 = vmatprep.subr.mxu0 0.0
  %7080 = vmatpush2.msra.mxu0 0.0
  %7081 = vmatprep.subr.mxu0 0.0
  %7082 = vmatpush2.msra.mxu0 0.0
  %7083 = vmatprep.subr.mxu0 0.0
  %7084 = vmatpush2.msra.mxu0 0.0
  %7085 = vmatprep.mubr.f32.mxu0 0.0
  %7086 = vmatmul.mubr.f32.gmra.mxu0 %v6872
  %v7087 = vpop.f32.mrf.mxu0
  %v7088 = vadd.f32 0.0, %v7087
  %v7089 = vpop.f32.mrf.mxu0
  %7090 = vdwg.mxu0
  %v7091 = vadd.f32 %v7018, %v7088
  %v7092 = vxor.u32 %v7091, 2147483648
  %v7093 = vmul.f32 %v7092, 1.442695
  %v7094 = vpow.pop %v7093
  %v7095 = vadd.f32 %v7094, 1.0
  %v7096 = vrcp.pop %v7095
  %v7097 = vmul.f32 1.0, %v7096
  %7098 = vmatprep.subr.mxu0 0.0
  %7099 = vmatpush1.msra.mxu0 0.0
  %7100 = vmatprep.subr.mxu0 0.0
  %7101 = vmatpush1.msra.mxu0 0.0
  %7102 = vmatprep.subr.mxu0 0.0
  %7103 = vmatpush1.msra.mxu0 0.0
  %7104 = vmatprep.subr.mxu0 0.0
  %7105 = vmatpush1.msra.mxu0 0.0
  %7106 = vmatprep.subr.mxu0 0.0
  %7107 = vmatpush1.msra.mxu0 0.0
  %7108 = vmatprep.subr.mxu0 0.0
  %7109 = vmatpush1.msra.mxu0 0.0
  %7110 = vmatprep.subr.mxu0 0.0
  %7111 = vmatpush1.msra.mxu0 0.0
  %7112 = vmatprep.subr.mxu0 0.0
  %7113 = vmatpush1.msra.mxu0 0.0
  %7114 = vmatprep.subr.mxu0 0.0
  %7115 = vmatpush1.msra.mxu0 0.0
  %7116 = vmatprep.subr.mxu0 0.0
  %7117 = vmatpush1.msra.mxu0 0.0
  %7118 = vmatprep.subr.mxu0 0.0
  %7119 = vmatpush1.msra.mxu0 0.0
  %7120 = vmatprep.subr.mxu0 0.0
  %7121 = vmatpush1.msra.mxu0 0.0
  %7122 = vmatprep.subr.mxu0 0.0
  %7123 = vmatpush1.msra.mxu0 %v2604
  %7124 = vmatprep.subr.mxu0 0.0
  %7125 = vmatpush1.msra.mxu0 %v2603
  %7126 = vmatprep.subr.mxu0 0.0
  %7127 = vmatpush1.msra.mxu0 %v2602
  %7128 = vmatprep.subr.mxu0 0.0
  %7129 = vmatpush1.msra.mxu0 %v2601
  %7130 = vmatprep.subr.mxu0 0.0
  %7131 = vmatpush2.msra.mxu0 0.0
  %7132 = vmatprep.subr.mxu0 0.0
  %7133 = vmatpush2.msra.mxu0 0.0
  %7134 = vmatprep.subr.mxu0 0.0
  %7135 = vmatpush2.msra.mxu0 0.0
  %7136 = vmatprep.subr.mxu0 0.0
  %7137 = vmatpush2.msra.mxu0 0.0
  %7138 = vmatprep.subr.mxu0 0.0
  %7139 = vmatpush2.msra.mxu0 0.0
  %7140 = vmatprep.subr.mxu0 0.0
  %7141 = vmatpush2.msra.mxu0 0.0
  %7142 = vmatprep.subr.mxu0 0.0
  %7143 = vmatpush2.msra.mxu0 0.0
  %7144 = vmatprep.subr.mxu0 0.0
  %7145 = vmatpush2.msra.mxu0 0.0
  %7146 = vmatprep.subr.mxu0 0.0
  %7147 = vmatpush2.msra.mxu0 0.0
  %7148 = vmatprep.subr.mxu0 0.0
  %7149 = vmatpush2.msra.mxu0 0.0
  %7150 = vmatprep.subr.mxu0 0.0
  %7151 = vmatpush2.msra.mxu0 0.0
  %7152 = vmatprep.subr.mxu0 0.0
  %7153 = vmatpush2.msra.mxu0 0.0
  %7154 = vmatprep.subr.mxu0 0.0
  %7155 = vmatpush2.msra.mxu0 0.0
  %7156 = vmatprep.subr.mxu0 0.0
  %7157 = vmatpush2.msra.mxu0 0.0
  %7158 = vmatprep.subr.mxu0 0.0
  %7159 = vmatpush2.msra.mxu0 0.0
  %7160 = vmatprep.subr.mxu0 0.0
  %7161 = vmatpush2.msra.mxu0 0.0
  %7162 = vmatprep.mubr.f32.mxu0 0.0
  %7163 = vmatmul.mubr.f32.gmra.mxu0 %v6799
  %v7164 = vpop.f32.mrf.mxu0
  %v7165 = vadd.f32 %v2944, %v7164
  %v7166 = vpop.f32.mrf.mxu0
  %7167 = vdwg.mxu0
  %7168 = vmatprep.subr.mxu0 0.0
  %7169 = vmatpush1.msra.mxu0 0.0
  %7170 = vmatprep.subr.mxu0 0.0
  %7171 = vmatpush1.msra.mxu0 0.0
  %7172 = vmatprep.subr.mxu0 0.0
  %7173 = vmatpush1.msra.mxu0 0.0
  %7174 = vmatprep.subr.mxu0 0.0
  %7175 = vmatpush1.msra.mxu0 0.0
  %7176 = vmatprep.subr.mxu0 0.0
  %7177 = vmatpush1.msra.mxu0 0.0
  %7178 = vmatprep.subr.mxu0 0.0
  %7179 = vmatpush1.msra.mxu0 0.0
  %7180 = vmatprep.subr.mxu0 0.0
  %7181 = vmatpush1.msra.mxu0 0.0
  %7182 = vmatprep.subr.mxu0 0.0
  %7183 = vmatpush1.msra.mxu0 0.0
  %7184 = vmatprep.subr.mxu0 0.0
  %7185 = vmatpush1.msra.mxu0 0.0
  %7186 = vmatprep.subr.mxu0 0.0
  %7187 = vmatpush1.msra.mxu0 0.0
  %7188 = vmatprep.subr.mxu0 0.0
  %7189 = vmatpush1.msra.mxu0 0.0
  %7190 = vmatprep.subr.mxu0 0.0
  %7191 = vmatpush1.msra.mxu0 0.0
  %7192 = vmatprep.subr.mxu0 0.0
  %7193 = vmatpush1.msra.mxu0 0.0
  %7194 = vmatprep.subr.mxu0 0.0
  %7195 = vmatpush1.msra.mxu0 0.0
  %7196 = vmatprep.subr.mxu0 0.0
  %7197 = vmatpush1.msra.mxu0 0.0
  %7198 = vmatprep.subr.mxu0 0.0
  %7199 = vmatpush1.msra.mxu0 %v3017
  %7200 = vmatprep.subr.mxu0 0.0
  %7201 = vmatpush2.msra.mxu0 0.0
  %7202 = vmatprep.subr.mxu0 0.0
  %7203 = vmatpush2.msra.mxu0 0.0
  %7204 = vmatprep.subr.mxu0 0.0
  %7205 = vmatpush2.msra.mxu0 0.0
  %7206 = vmatprep.subr.mxu0 0.0
  %7207 = vmatpush2.msra.mxu0 0.0
  %7208 = vmatprep.subr.mxu0 0.0
  %7209 = vmatpush2.msra.mxu0 0.0
  %7210 = vmatprep.subr.mxu0 0.0
  %7211 = vmatpush2.msra.mxu0 0.0
  %7212 = vmatprep.subr.mxu0 0.0
  %7213 = vmatpush2.msra.mxu0 0.0
  %7214 = vmatprep.subr.mxu0 0.0
  %7215 = vmatpush2.msra.mxu0 0.0
  %7216 = vmatprep.subr.mxu0 0.0
  %7217 = vmatpush2.msra.mxu0 0.0
  %7218 = vmatprep.subr.mxu0 0.0
  %7219 = vmatpush2.msra.mxu0 0.0
  %7220 = vmatprep.subr.mxu0 0.0
  %7221 = vmatpush2.msra.mxu0 0.0
  %7222 = vmatprep.subr.mxu0 0.0
  %7223 = vmatpush2.msra.mxu0 0.0
  %7224 = vmatprep.subr.mxu0 0.0
  %7225 = vmatpush2.msra.mxu0 0.0
  %7226 = vmatprep.subr.mxu0 0.0
  %7227 = vmatpush2.msra.mxu0 0.0
  %7228 = vmatprep.subr.mxu0 0.0
  %7229 = vmatpush2.msra.mxu0 0.0
  %7230 = vmatprep.subr.mxu0 0.0
  %7231 = vmatpush2.msra.mxu0 0.0
  %7232 = vmatprep.mubr.f32.mxu0 0.0
  %7233 = vmatmul.mubr.f32.gmra.mxu0 %v6872
  %v7234 = vpop.f32.mrf.mxu0
  %v7235 = vadd.f32 0.0, %v7234
  %v7236 = vpop.f32.mrf.mxu0
  %7237 = vdwg.mxu0
  %v7238 = vadd.f32 %v7165, %v7235
  %v7239 = vtanh.pop %v7238
  %7240 = vmatprep.subr.mxu0 0.0
  %7241 = vmatpush1.msra.mxu0 0.0
  %7242 = vmatprep.subr.mxu0 0.0
  %7243 = vmatpush1.msra.mxu0 0.0
  %7244 = vmatprep.subr.mxu0 0.0
  %7245 = vmatpush1.msra.mxu0 0.0
  %7246 = vmatprep.subr.mxu0 0.0
  %7247 = vmatpush1.msra.mxu0 0.0
  %7248 = vmatprep.subr.mxu0 0.0
  %7249 = vmatpush1.msra.mxu0 0.0
  %7250 = vmatprep.subr.mxu0 0.0
  %7251 = vmatpush1.msra.mxu0 0.0
  %7252 = vmatprep.subr.mxu0 0.0
  %7253 = vmatpush1.msra.mxu0 0.0
  %7254 = vmatprep.subr.mxu0 0.0
  %7255 = vmatpush1.msra.mxu0 0.0
  %7256 = vmatprep.subr.mxu0 0.0
  %7257 = vmatpush1.msra.mxu0 0.0
  %7258 = vmatprep.subr.mxu0 0.0
  %7259 = vmatpush1.msra.mxu0 0.0
  %7260 = vmatprep.subr.mxu0 0.0
  %7261 = vmatpush1.msra.mxu0 0.0
  %7262 = vmatprep.subr.mxu0 0.0
  %7263 = vmatpush1.msra.mxu0 0.0
  %7264 = vmatprep.subr.mxu0 0.0
  %7265 = vmatpush1.msra.mxu0 %v2609
  %7266 = vmatprep.subr.mxu0 0.0
  %7267 = vmatpush1.msra.mxu0 %v2608
  %7268 = vmatprep.subr.mxu0 0.0
  %7269 = vmatpush1.msra.mxu0 %v2607
  %7270 = vmatprep.subr.mxu0 0.0
  %7271 = vmatpush1.msra.mxu0 %v2606
  %7272 = vmatprep.subr.mxu0 0.0
  %7273 = vmatpush2.msra.mxu0 0.0
  %7274 = vmatprep.subr.mxu0 0.0
  %7275 = vmatpush2.msra.mxu0 0.0
  %7276 = vmatprep.subr.mxu0 0.0
  %7277 = vmatpush2.msra.mxu0 0.0
  %7278 = vmatprep.subr.mxu0 0.0
  %7279 = vmatpush2.msra.mxu0 0.0
  %7280 = vmatprep.subr.mxu0 0.0
  %7281 = vmatpush2.msra.mxu0 0.0
  %7282 = vmatprep.subr.mxu0 0.0
  %7283 = vmatpush2.msra.mxu0 0.0
  %7284 = vmatprep.subr.mxu0 0.0
  %7285 = vmatpush2.msra.mxu0 0.0
  %7286 = vmatprep.subr.mxu0 0.0
  %7287 = vmatpush2.msra.mxu0 0.0
  %7288 = vmatprep.subr.mxu0 0.0
  %7289 = vmatpush2.msra.mxu0 0.0
  %7290 = vmatprep.subr.mxu0 0.0
  %7291 = vmatpush2.msra.mxu0 0.0
  %7292 = vmatprep.subr.mxu0 0.0
  %7293 = vmatpush2.msra.mxu0 0.0
  %7294 = vmatprep.subr.mxu0 0.0
  %7295 = vmatpush2.msra.mxu0 0.0
  %7296 = vmatprep.subr.mxu0 0.0
  %7297 = vmatpush2.msra.mxu0 0.0
  %7298 = vmatprep.subr.mxu0 0.0
  %7299 = vmatpush2.msra.mxu0 0.0
  %7300 = vmatprep.subr.mxu0 0.0
  %7301 = vmatpush2.msra.mxu0 0.0
  %7302 = vmatprep.subr.mxu0 0.0
  %7303 = vmatpush2.msra.mxu0 0.0
  %7304 = vmatprep.mubr.f32.mxu0 0.0
  %7305 = vmatmul.mubr.f32.gmra.mxu0 %v6799
  %v7306 = vpop.f32.mrf.mxu0
  %v7307 = vadd.f32 %v3095, %v7306
  %v7308 = vpop.f32.mrf.mxu0
  %7309 = vdwg.mxu0
  %7310 = vmatprep.subr.mxu0 0.0
  %7311 = vmatpush1.msra.mxu0 0.0
  %7312 = vmatprep.subr.mxu0 0.0
  %7313 = vmatpush1.msra.mxu0 0.0
  %7314 = vmatprep.subr.mxu0 0.0
  %7315 = vmatpush1.msra.mxu0 0.0
  %7316 = vmatprep.subr.mxu0 0.0
  %7317 = vmatpush1.msra.mxu0 0.0
  %7318 = vmatprep.subr.mxu0 0.0
  %7319 = vmatpush1.msra.mxu0 0.0
  %7320 = vmatprep.subr.mxu0 0.0
  %7321 = vmatpush1.msra.mxu0 0.0
  %7322 = vmatprep.subr.mxu0 0.0
  %7323 = vmatpush1.msra.mxu0 0.0
  %7324 = vmatprep.subr.mxu0 0.0
  %7325 = vmatpush1.msra.mxu0 0.0
  %7326 = vmatprep.subr.mxu0 0.0
  %7327 = vmatpush1.msra.mxu0 0.0
  %7328 = vmatprep.subr.mxu0 0.0
  %7329 = vmatpush1.msra.mxu0 0.0
  %7330 = vmatprep.subr.mxu0 0.0
  %7331 = vmatpush1.msra.mxu0 0.0
  %7332 = vmatprep.subr.mxu0 0.0
  %7333 = vmatpush1.msra.mxu0 0.0
  %7334 = vmatprep.subr.mxu0 0.0
  %7335 = vmatpush1.msra.mxu0 0.0
  %7336 = vmatprep.subr.mxu0 0.0
  %7337 = vmatpush1.msra.mxu0 0.0
  %7338 = vmatprep.subr.mxu0 0.0
  %7339 = vmatpush1.msra.mxu0 0.0
  %7340 = vmatprep.subr.mxu0 0.0
  %7341 = vmatpush1.msra.mxu0 %v3168
  %7342 = vmatprep.subr.mxu0 0.0
  %7343 = vmatpush2.msra.mxu0 0.0
  %7344 = vmatprep.subr.mxu0 0.0
  %7345 = vmatpush2.msra.mxu0 0.0
  %7346 = vmatprep.subr.mxu0 0.0
  %7347 = vmatpush2.msra.mxu0 0.0
  %7348 = vmatprep.subr.mxu0 0.0
  %7349 = vmatpush2.msra.mxu0 0.0
  %7350 = vmatprep.subr.mxu0 0.0
  %7351 = vmatpush2.msra.mxu0 0.0
  %7352 = vmatprep.subr.mxu0 0.0
  %7353 = vmatpush2.msra.mxu0 0.0
  %7354 = vmatprep.subr.mxu0 0.0
  %7355 = vmatpush2.msra.mxu0 0.0
  %7356 = vmatprep.subr.mxu0 0.0
  %7357 = vmatpush2.msra.mxu0 0.0
  %7358 = vmatprep.subr.mxu0 0.0
  %7359 = vmatpush2.msra.mxu0 0.0
  %7360 = vmatprep.subr.mxu0 0.0
  %7361 = vmatpush2.msra.mxu0 0.0
  %7362 = vmatprep.subr.mxu0 0.0
  %7363 = vmatpush2.msra.mxu0 0.0
  %7364 = vmatprep.subr.mxu0 0.0
  %7365 = vmatpush2.msra.mxu0 0.0
  %7366 = vmatprep.subr.mxu0 0.0
  %7367 = vmatpush2.msra.mxu0 0.0
  %7368 = vmatprep.subr.mxu0 0.0
  %7369 = vmatpush2.msra.mxu0 0.0
  %7370 = vmatprep.subr.mxu0 0.0
  %7371 = vmatpush2.msra.mxu0 0.0
  %7372 = vmatprep.subr.mxu0 0.0
  %7373 = vmatpush2.msra.mxu0 0.0
  %7374 = vmatprep.mubr.f32.mxu0 0.0
  %7375 = vmatmul.mubr.f32.gmra.mxu0 %v6872
  %v7376 = vpop.f32.mrf.mxu0
  %v7377 = vadd.f32 0.0, %v7376
  %v7378 = vpop.f32.mrf.mxu0
  %7379 = vdwg.mxu0
  %v7380 = vadd.f32 %v7307, %v7377
  %v7381 = vxor.u32 %v7380, 2147483648
  %v7382 = vmul.f32 %v7381, 1.442695
  %v7383 = vpow.pop %v7382
  %v7384 = vadd.f32 %v7383, 1.0
  %v7385 = vrcp.pop %v7384
  %v7386 = vmul.f32 1.0, %v7385
  %v7387 = vmul.f32 %v7097, %v6795
  %v7388 = vmul.f32 %v6950, %v7239
  %v7389 = vadd.f32 %v7387, %v7388
  %v7390 = vtanh.pop %v7389
  %v7391 = vmul.f32 %v7386, %v7390
  %vm7392 = vcmask 25600
  %7393 = vst.msk [vmem:[%s5] sm:$0x3] %vm7392, %v3251
  %7394 = vst.msk [vmem:[%s5 + $0x2] sm:$0x3] %vm7392, %v3842
  %7395 = vst.msk [vmem:[%s5 + $0x4] sm:$0x3] %vm7392, %v4433
  %7396 = vst.msk [vmem:[%s5 + $0x6] sm:$0x3] %vm7392, %v5024
  %7397 = vst.msk [vmem:[%s5 + $0x8] sm:$0x3] %vm7392, %v5615
  %7398 = vst.msk [vmem:[%s5 + $0xa] sm:$0x3] %vm7392, %v6206
  %7399 = vst.msk [vmem:[%s5 + $0xc] sm:$0x3] %vm7392, %v6797
  %7400 = vst.msk [vmem:[%s5 + $0xe] sm:$0x3] %vm7392, %v7391
  // Predicated region
  $region22: #{lstm_ae_forward.1} parent=0 // pred_check
    _
  $region23: #{lstm_ae_forward.1} parent=0 // pred_check_branch
    %7402 = sbr.rel (0) target = $region25
  $region24: #{lstm_ae_forward.1} parent=0 // pred_region
    _
  $region25: #{lstm_ae_forward.1} parent=0 // pred_fallthru
    _
  // Predicated region
  $region26: #{lstm_ae_forward.1} parent=0 // pred_check
    _
  $region27: #{lstm_ae_forward.1} parent=0 // pred_check_branch
    %7404 = sbr.rel (0) target = $region29
  $region28: #{lstm_ae_forward.1} parent=0 // pred_region
    _
  $region29: #{lstm_ae_forward.1} parent=0 // pred_fallthru
    _

</llo_original>
